<compile_context>
chip_gen: v5e
topology: v5e:2x2
jax: 0.10.0
libtpu: 0.0.40
codegen_flags: <defaults>
</compile_context>

<pallas_src>
import functools

import jax
import jax.numpy as jnp
import numpy as np
from jax import lax
from jax.experimental import pallas as pl
from jax.experimental.pallas import tpu as pltpu


# ------------------------------- Pallas kernel -------------------------------

def _triplet_kernel(p_ref, x_ref, o_ref, *, K):
    """Fused TripletAttention forward for one batch chunk.

    p_ref : SMEM (3, 2*K*K + 1)  BN-folded conv taps ([max K*K, avg K*K]) and
                                 the folded BN shift, one row per branch
                                 (hw, cw, ch); the ch row holds the transposed
                                 conv kernel.
    x_ref : VMEM (tb, C, H, W)   input chunk.
    o_ref : VMEM (tb, C, H, W)   x * (attn_hw + attn_cw + attn_ch) / 3.
    """
    pad = (K - 1) // 2
    KK = K * K
    tb, C, H, W = x_ref.shape
    x = x_ref[...].astype(jnp.float32)

    def conv_bn_sigmoid(mx, av, row, raxis, caxis):
        """'same' conv(2->1,K) + folded BN + sigmoid over plane (raxis, caxis)."""
        A = mx.shape[raxis]
        B = mx.shape[caxis]
        # Hoist every scalar parameter out of the unrolled tap loop.
        w_mx = [p_ref[row, t] for t in range(KK)]
        w_av = [p_ref[row, KK + t] for t in range(KK)]
        shift = p_ref[row, 2 * KK]

        def zpad(p):
            if pad:
                sr = list(p.shape)
                sr[raxis] = pad
                zr = jnp.zeros(sr, jnp.float32)
                p = jnp.concatenate([zr, p, zr], axis=raxis)
                sc = list(p.shape)
                sc[caxis] = pad
                zc = jnp.zeros(sc, jnp.float32)
                p = jnp.concatenate([zc, p, zc], axis=caxis)
            return p

        mx_p = zpad(mx)
        av_p = zpad(av)

        def tap(p, dy, dx):
            idx = [slice(None)] * 4
            idx[raxis] = slice(dy, dy + A)
            idx[caxis] = slice(dx, dx + B)
            return p[tuple(idx)]

        acc = jnp.zeros(mx.shape, jnp.float32)
        for dy in range(K):
            for dx in range(K):
                t = dy * K + dx
                acc = acc + (w_mx[t] * tap(mx_p, dy, dx) +
                             w_av[t] * tap(av_p, dy, dx))
        return jax.nn.sigmoid(acc + shift)

    # ---- hw branch: pool over C, conv over (H, W) ---------------------------
    if C <= 32:
        mx_hw = x[:, 0:1]
        sm_hw = x[:, 0:1]
        for c in range(1, C):
            xc = x[:, c:c + 1]
            mx_hw = jnp.maximum(mx_hw, xc)
            sm_hw = sm_hw + xc
    else:
        # TODO(synk): for very large C a channel-chunk grid axis (streamed DMA
        # with running accumulators) would overlap pooling with channel loads.
        def body(c, carry):
            m, s = carry
            xc = x_ref[:, pl.ds(c, 1), :, :].astype(jnp.float32)
            return jnp.maximum(m, xc), s + xc

        mx_hw, sm_hw = lax.fori_loop(1, C, body, (x[:, 0:1], x[:, 0:1]),
                                     unroll=4)
    attn_hw = conv_bn_sigmoid(mx_hw, sm_hw * (1.0 / C), 0, 2, 3)   # (tb,1,H,W)

    # ---- cw branch: pool over H (sublane reduce), conv over (C, W) ----------
    attn_cw = conv_bn_sigmoid(jnp.max(x, axis=2, keepdims=True),
                              jnp.mean(x, axis=2, keepdims=True),
                              1, 1, 3)                              # (tb,C,1,W)

    # ---- ch branch: pool over W (lane reduce), conv over (C, H) -------------
    # (transposed plane vs. PyTorch's (H, C); the transposed conv weight is
    #  supplied by the host, so the result is identical.)
    attn_ch = conv_bn_sigmoid(jnp.max(x, axis=3, keepdims=True),
                              jnp.mean(x, axis=3, keepdims=True),
                              2, 1, 2)                              # (tb,C,H,1)

    # ---- fused gate + 3-way average, single lane-dense store ----------------
    gate = (attn_hw + attn_cw + attn_ch) * (1.0 / 3.0)
    o_ref[...] = (x * gate).astype(o_ref.dtype)


# ------------------------------ host-side wrapper ----------------------------

def _vmem_capacity_bytes():
    try:
        info = pltpu.get_tpu_info()
        for attr in ("vmem_capacity_bytes", "vmem_size_bytes", "vmem_bytes"):
            v = getattr(info, attr, None)
            if v:
                return int(v)
    except Exception:
        pass
    return 64 * 1024 * 1024   # conservative (v7x-sized) fallback


def _fold_branch(p, K, transpose_kernel, eps):
    """Fold eval-mode BatchNorm2d(1) into the Conv2d(2,1,K) taps + bias."""
    w = p["conv_w"].astype(jnp.float32).reshape(2, K, K)
    if transpose_kernel:
        w = jnp.swapaxes(w, -1, -2)
    scale = (p["gamma"] / jnp.sqrt(p["var"] + eps)).astype(jnp.float32)
    w = (w * scale).reshape(-1)                       # [max K*K, avg K*K]
    shift = scale * (p["conv_b"] - p["mean"]) + p["beta"]
    return jnp.concatenate([w, jnp.reshape(shift, (1,)).astype(jnp.float32)])


def triplet_attention_forward(x, params, eps=1e-5):
    """Full TripletAttention forward. x: (N, C, H, W) -> (N, C, H, W)."""
    N, C, H, W = x.shape
    K = params["hw"]["conv_w"].shape[-1]
    assert K % 2 == 1, "padding='same' path implemented for odd kernel sizes"

    pvec = jnp.stack([
        _fold_branch(params["hw"], K, False, eps),
        _fold_branch(params["cw"], K, False, eps),
        _fold_branch(params["ch"], K, True, eps),     # transposed (C,H) plane
    ])                                                # (3, 2*K*K + 1)

    # ---- generation-aware tiling --------------------------------------------
    cap = _vmem_capacity_bytes()
    vmem_limit = int(max(32 << 20, min(cap * 3 // 4, cap - (8 << 20))))
    row_bytes = C * H * W * x.dtype.itemsize
    # in block + out block (double-buffered) + in-kernel temporaries ~ 8 rows.
    tb = max(1, vmem_limit // (8 * max(row_bytes, 1)))
    if N >= 2:
        tb = min(tb, pl.cdiv(N, 2))   # >= 2 grid steps: keep both v7x TCs busy
    tb = max(1, min(tb, N))
    while N % tb:                     # exact blocks: no ragged last block
        tb -= 1
    grid = (pl.cdiv(N, tb),)

    kernel = functools.partial(_triplet_kernel, K=K)
    out = pl.pallas_call(
        kernel,
        out_shape=jax.ShapeDtypeStruct((N, C, H, W), x.dtype),
        grid_spec=pltpu.PrefetchScalarGridSpec(
            num_scalar_prefetch=0,
            grid=grid,
            in_specs=[
                pl.BlockSpec(memory_space=pltpu.MemorySpace.SMEM),
                pl.BlockSpec((tb, C, H, W), lambda n: (n, 0, 0, 0)),
            ],
            out_specs=pl.BlockSpec((tb, C, H, W), lambda n: (n, 0, 0, 0)),
        ),
        compiler_params=pltpu.CompilerParams(
            dimension_semantics=("parallel",),
            vmem_limit_bytes=vmem_limit),
    )(pvec, x)
    return out


# ------------------------------ pure-JAX reference ---------------------------

def _branch_reference(x, conv_w, conv_b, gamma, beta, mean, var, eps=1e-5):
    mx = jnp.max(x, axis=1, keepdims=True)
    av = jnp.mean(x, axis=1, keepdims=True)
    pooled = jnp.concatenate([mx, av], axis=1)
    conv = lax.conv_general_dilated(
        pooled, conv_w, window_strides=(1, 1), padding="SAME",
        dimension_numbers=("NCHW", "OIHW", "NCHW"),
        precision=lax.Precision.HIGHEST) + conv_b
    bn = (conv - mean) / jnp.sqrt(var + eps) * gamma + beta
    return jax.nn.sigmoid(bn)


def _triplet_reference(x, params, eps=1e-5):
    def branch(xp, p):
        return _branch_reference(xp, p["conv_w"], p["conv_b"], p["gamma"],
                                 p["beta"], p["mean"], p["var"], eps)
    x_cw = jnp.transpose(x, (0, 2, 1, 3))
    x_ch = jnp.transpose(x, (0, 3, 2, 1))
    out_hw = branch(x, params["hw"]) * x
    out_cw = jnp.transpose(branch(x_cw, params["cw"]) * x_cw, (0, 2, 1, 3))
    out_ch = jnp.transpose(branch(x_ch, params["ch"]) * x_ch, (0, 3, 2, 1))
    return (out_hw + out_cw + out_ch) / 3.0


if __name__ == "__main__":
    key = jax.random.PRNGKey(0)
    kx, khw, kcw, kch = jax.random.split(key, 4)

    # TripletAttention(in_channels=4, height=16, width=16, kernel_size=7)
    N, C, H, W, K = 2, 4, 16, 16, 7
    x = jax.random.normal(kx, (N, C, H, W), jnp.float32)

    def init_branch(k):
        kw, kb = jax.random.split(k)
        fan_in = 2 * K * K
        bound = 1.0 / np.sqrt(fan_in)
        return dict(
            conv_w=jax.random.uniform(kw, (1, 2, K, K), jnp.float32, -bound, bound),
            conv_b=jax.random.uniform(kb, (), jnp.float32, -bound, bound),
            gamma=jnp.float32(1.0), beta=jnp.float32(0.0),  # BatchNorm2d(1) defaults
            mean=jnp.float32(0.0), var=jnp.float32(1.0))

    params = {"hw": init_branch(khw), "cw": init_branch(kcw),
              "ch": init_branch(kch)}

    out = jax.block_until_ready(triplet_attention_forward(x, params))
    assert out.shape == (N, C, H, W)

    ref = _triplet_reference(x, params)
    np.testing.assert_allclose(np.asarray(out), np.asarray(ref),
                               rtol=1e-5, atol=1e-5)

    print("KERNEL_OK")
</pallas_src>

<mosaic_0001>
module attributes {stable_mosaic.version = 11 : i64} {
  func.func @_triplet_kernel(%arg0: i32, %arg1: memref<3x99xf32, #tpu.memory_space<smem>>, %arg2: memref<1x4x16x16xf32, #tpu.memory_space<vmem>>, %arg3: memref<1x4x16x16xf32, #tpu.memory_space<vmem>>) attributes {dimension_semantics = [#tpu.dimension_semantics<parallel>], iteration_bounds = array<i64: 2>, scalar_prefetch = 0 : i64, scratch_operands = 0 : i64, tpu.core_type = #tpu.core_type<tc>, window_params = [{transform_indices = @transform_0, window_bounds = array<i64: 3, 99>}, {transform_indices = @transform_1, window_bounds = array<i64: 1, 4, 16, 16>}, {transform_indices = @transform_2, window_bounds = array<i64: 1, 4, 16, 16>}]} {
    %c0 = arith.constant 0 : index
    %c0_0 = arith.constant 0 : index
    %c0_1 = arith.constant 0 : index
    %c0_2 = arith.constant 0 : index
    %0 = vector.load %arg2[%c0, %c0_0, %c0_1, %c0_2] : memref<1x4x16x16xf32, #tpu.memory_space<vmem>>, vector<1x4x16x16xf32>
    %1 = vector.extract_strided_slice %0 {offsets = [0, 0, 0, 0], sizes = [1, 1, 16, 16], strides = [1, 1, 1, 1]} : vector<1x4x16x16xf32> to vector<1x1x16x16xf32>
    %2 = vector.extract_strided_slice %0 {offsets = [0, 0, 0, 0], sizes = [1, 1, 16, 16], strides = [1, 1, 1, 1]} : vector<1x4x16x16xf32> to vector<1x1x16x16xf32>
    %3 = vector.extract_strided_slice %0 {offsets = [0, 1, 0, 0], sizes = [1, 1, 16, 16], strides = [1, 1, 1, 1]} : vector<1x4x16x16xf32> to vector<1x1x16x16xf32>
    %4 = arith.maximumf %1, %3 : vector<1x1x16x16xf32>
    %5 = arith.addf %2, %3 : vector<1x1x16x16xf32>
    %6 = vector.extract_strided_slice %0 {offsets = [0, 2, 0, 0], sizes = [1, 1, 16, 16], strides = [1, 1, 1, 1]} : vector<1x4x16x16xf32> to vector<1x1x16x16xf32>
    %7 = arith.maximumf %4, %6 : vector<1x1x16x16xf32>
    %8 = arith.addf %5, %6 : vector<1x1x16x16xf32>
    %9 = vector.extract_strided_slice %0 {offsets = [0, 3, 0, 0], sizes = [1, 1, 16, 16], strides = [1, 1, 1, 1]} : vector<1x4x16x16xf32> to vector<1x1x16x16xf32>
    %10 = arith.maximumf %7, %9 : vector<1x1x16x16xf32>
    %11 = arith.addf %8, %9 : vector<1x1x16x16xf32>
    %cst = arith.constant 2.500000e-01 : f32
    %12 = vector.broadcast %cst : f32 to vector<1x1x16x16xf32>
    %13 = arith.mulf %11, %12 : vector<1x1x16x16xf32>
    %c0_3 = arith.constant 0 : index
    %c0_4 = arith.constant 0 : index
    %14 = memref.load %arg1[%c0_3, %c0_4] : memref<3x99xf32, #tpu.memory_space<smem>>
    %c0_5 = arith.constant 0 : index
    %c1 = arith.constant 1 : index
    %15 = memref.load %arg1[%c0_5, %c1] : memref<3x99xf32, #tpu.memory_space<smem>>
    %c0_6 = arith.constant 0 : index
    %c2 = arith.constant 2 : index
    %16 = memref.load %arg1[%c0_6, %c2] : memref<3x99xf32, #tpu.memory_space<smem>>
    %c0_7 = arith.constant 0 : index
    %c3 = arith.constant 3 : index
    %17 = memref.load %arg1[%c0_7, %c3] : memref<3x99xf32, #tpu.memory_space<smem>>
    %c0_8 = arith.constant 0 : index
    %c4 = arith.constant 4 : index
    %18 = memref.load %arg1[%c0_8, %c4] : memref<3x99xf32, #tpu.memory_space<smem>>
    %c0_9 = arith.constant 0 : index
    %c5 = arith.constant 5 : index
    %19 = memref.load %arg1[%c0_9, %c5] : memref<3x99xf32, #tpu.memory_space<smem>>
    %c0_10 = arith.constant 0 : index
    %c6 = arith.constant 6 : index
    %20 = memref.load %arg1[%c0_10, %c6] : memref<3x99xf32, #tpu.memory_space<smem>>
    %c0_11 = arith.constant 0 : index
    %c7 = arith.constant 7 : index
    %21 = memref.load %arg1[%c0_11, %c7] : memref<3x99xf32, #tpu.memory_space<smem>>
    %c0_12 = arith.constant 0 : index
    %c8 = arith.constant 8 : index
    %22 = memref.load %arg1[%c0_12, %c8] : memref<3x99xf32, #tpu.memory_space<smem>>
    %c0_13 = arith.constant 0 : index
    %c9 = arith.constant 9 : index
    %23 = memref.load %arg1[%c0_13, %c9] : memref<3x99xf32, #tpu.memory_space<smem>>
    %c0_14 = arith.constant 0 : index
    %c10 = arith.constant 10 : index
    %24 = memref.load %arg1[%c0_14, %c10] : memref<3x99xf32, #tpu.memory_space<smem>>
    %c0_15 = arith.constant 0 : index
    %c11 = arith.constant 11 : index
    %25 = memref.load %arg1[%c0_15, %c11] : memref<3x99xf32, #tpu.memory_space<smem>>
    %c0_16 = arith.constant 0 : index
    %c12 = arith.constant 12 : index
    %26 = memref.load %arg1[%c0_16, %c12] : memref<3x99xf32, #tpu.memory_space<smem>>
    %c0_17 = arith.constant 0 : index
    %c13 = arith.constant 13 : index
    %27 = memref.load %arg1[%c0_17, %c13] : memref<3x99xf32, #tpu.memory_space<smem>>
    %c0_18 = arith.constant 0 : index
    %c14 = arith.constant 14 : index
    %28 = memref.load %arg1[%c0_18, %c14] : memref<3x99xf32, #tpu.memory_space<smem>>
    %c0_19 = arith.constant 0 : index
    %c15 = arith.constant 15 : index
    %29 = memref.load %arg1[%c0_19, %c15] : memref<3x99xf32, #tpu.memory_space<smem>>
    %c0_20 = arith.constant 0 : index
    %c16 = arith.constant 16 : index
    %30 = memref.load %arg1[%c0_20, %c16] : memref<3x99xf32, #tpu.memory_space<smem>>
    %c0_21 = arith.constant 0 : index
    %c17 = arith.constant 17 : index
    %31 = memref.load %arg1[%c0_21, %c17] : memref<3x99xf32, #tpu.memory_space<smem>>
    %c0_22 = arith.constant 0 : index
    %c18 = arith.constant 18 : index
    %32 = memref.load %arg1[%c0_22, %c18] : memref<3x99xf32, #tpu.memory_space<smem>>
    %c0_23 = arith.constant 0 : index
    %c19 = arith.constant 19 : index
    %33 = memref.load %arg1[%c0_23, %c19] : memref<3x99xf32, #tpu.memory_space<smem>>
    %c0_24 = arith.constant 0 : index
    %c20 = arith.constant 20 : index
    %34 = memref.load %arg1[%c0_24, %c20] : memref<3x99xf32, #tpu.memory_space<smem>>
    %c0_25 = arith.constant 0 : index
    %c21 = arith.constant 21 : index
    %35 = memref.load %arg1[%c0_25, %c21] : memref<3x99xf32, #tpu.memory_space<smem>>
    %c0_26 = arith.constant 0 : index
    %c22 = arith.constant 22 : index
    %36 = memref.load %arg1[%c0_26, %c22] : memref<3x99xf32, #tpu.memory_space<smem>>
    %c0_27 = arith.constant 0 : index
    %c23 = arith.constant 23 : index
    %37 = memref.load %arg1[%c0_27, %c23] : memref<3x99xf32, #tpu.memory_space<smem>>
    %c0_28 = arith.constant 0 : index
    %c24 = arith.constant 24 : index
    %38 = memref.load %arg1[%c0_28, %c24] : memref<3x99xf32, #tpu.memory_space<smem>>
    %c0_29 = arith.constant 0 : index
    %c25 = arith.constant 25 : index
    %39 = memref.load %arg1[%c0_29, %c25] : memref<3x99xf32, #tpu.memory_space<smem>>
    %c0_30 = arith.constant 0 : index
    %c26 = arith.constant 26 : index
    %40 = memref.load %arg1[%c0_30, %c26] : memref<3x99xf32, #tpu.memory_space<smem>>
    %c0_31 = arith.constant 0 : index
    %c27 = arith.constant 27 : index
    %41 = memref.load %arg1[%c0_31, %c27] : memref<3x99xf32, #tpu.memory_space<smem>>
    %c0_32 = arith.constant 0 : index
    %c28 = arith.constant 28 : index
    %42 = memref.load %arg1[%c0_32, %c28] : memref<3x99xf32, #tpu.memory_space<smem>>
    %c0_33 = arith.constant 0 : index
    %c29 = arith.constant 29 : index
    %43 = memref.load %arg1[%c0_33, %c29] : memref<3x99xf32, #tpu.memory_space<smem>>
    %c0_34 = arith.constant 0 : index
    %c30 = arith.constant 30 : index
    %44 = memref.load %arg1[%c0_34, %c30] : memref<3x99xf32, #tpu.memory_space<smem>>
    %c0_35 = arith.constant 0 : index
    %c31 = arith.constant 31 : index
    %45 = memref.load %arg1[%c0_35, %c31] : memref<3x99xf32, #tpu.memory_space<smem>>
    %c0_36 = arith.constant 0 : index
    %c32 = arith.constant 32 : index
    %46 = memref.load %arg1[%c0_36, %c32] : memref<3x99xf32, #tpu.memory_space<smem>>
    %c0_37 = arith.constant 0 : index
    %c33 = arith.constant 33 : index
    %47 = memref.load %arg1[%c0_37, %c33] : memref<3x99xf32, #tpu.memory_space<smem>>
    %c0_38 = arith.constant 0 : index
    %c34 = arith.constant 34 : index
    %48 = memref.load %arg1[%c0_38, %c34] : memref<3x99xf32, #tpu.memory_space<smem>>
    %c0_39 = arith.constant 0 : index
    %c35 = arith.constant 35 : index
    %49 = memref.load %arg1[%c0_39, %c35] : memref<3x99xf32, #tpu.memory_space<smem>>
    %c0_40 = arith.constant 0 : index
    %c36 = arith.constant 36 : index
    %50 = memref.load %arg1[%c0_40, %c36] : memref<3x99xf32, #tpu.memory_space<smem>>
    %c0_41 = arith.constant 0 : index
    %c37 = arith.constant 37 : index
    %51 = memref.load %arg1[%c0_41, %c37] : memref<3x99xf32, #tpu.memory_space<smem>>
    %c0_42 = arith.constant 0 : index
    %c38 = arith.constant 38 : index
    %52 = memref.load %arg1[%c0_42, %c38] : memref<3x99xf32, #tpu.memory_space<smem>>
    %c0_43 = arith.constant 0 : index
    %c39 = arith.constant 39 : index
    %53 = memref.load %arg1[%c0_43, %c39] : memref<3x99xf32, #tpu.memory_space<smem>>
    %c0_44 = arith.constant 0 : index
    %c40 = arith.constant 40 : index
    %54 = memref.load %arg1[%c0_44, %c40] : memref<3x99xf32, #tpu.memory_space<smem>>
    %c0_45 = arith.constant 0 : index
    %c41 = arith.constant 41 : index
    %55 = memref.load %arg1[%c0_45, %c41] : memref<3x99xf32, #tpu.memory_space<smem>>
    %c0_46 = arith.constant 0 : index
    %c42 = arith.constant 42 : index
    %56 = memref.load %arg1[%c0_46, %c42] : memref<3x99xf32, #tpu.memory_space<smem>>
    %c0_47 = arith.constant 0 : index
    %c43 = arith.constant 43 : index
    %57 = memref.load %arg1[%c0_47, %c43] : memref<3x99xf32, #tpu.memory_space<smem>>
    %c0_48 = arith.constant 0 : index
    %c44 = arith.constant 44 : index
    %58 = memref.load %arg1[%c0_48, %c44] : memref<3x99xf32, #tpu.memory_space<smem>>
    %c0_49 = arith.constant 0 : index
    %c45 = arith.constant 45 : index
    %59 = memref.load %arg1[%c0_49, %c45] : memref<3x99xf32, #tpu.memory_space<smem>>
    %c0_50 = arith.constant 0 : index
    %c46 = arith.constant 46 : index
    %60 = memref.load %arg1[%c0_50, %c46] : memref<3x99xf32, #tpu.memory_space<smem>>
    %c0_51 = arith.constant 0 : index
    %c47 = arith.constant 47 : index
    %61 = memref.load %arg1[%c0_51, %c47] : memref<3x99xf32, #tpu.memory_space<smem>>
    %c0_52 = arith.constant 0 : index
    %c48 = arith.constant 48 : index
    %62 = memref.load %arg1[%c0_52, %c48] : memref<3x99xf32, #tpu.memory_space<smem>>
    %c0_53 = arith.constant 0 : index
    %c49 = arith.constant 49 : index
    %63 = memref.load %arg1[%c0_53, %c49] : memref<3x99xf32, #tpu.memory_space<smem>>
    %c0_54 = arith.constant 0 : index
    %c50 = arith.constant 50 : index
    %64 = memref.load %arg1[%c0_54, %c50] : memref<3x99xf32, #tpu.memory_space<smem>>
    %c0_55 = arith.constant 0 : index
    %c51 = arith.constant 51 : index
    %65 = memref.load %arg1[%c0_55, %c51] : memref<3x99xf32, #tpu.memory_space<smem>>
    %c0_56 = arith.constant 0 : index
    %c52 = arith.constant 52 : index
    %66 = memref.load %arg1[%c0_56, %c52] : memref<3x99xf32, #tpu.memory_space<smem>>
    %c0_57 = arith.constant 0 : index
    %c53 = arith.constant 53 : index
    %67 = memref.load %arg1[%c0_57, %c53] : memref<3x99xf32, #tpu.memory_space<smem>>
    %c0_58 = arith.constant 0 : index
    %c54 = arith.constant 54 : index
    %68 = memref.load %arg1[%c0_58, %c54] : memref<3x99xf32, #tpu.memory_space<smem>>
    %c0_59 = arith.constant 0 : index
    %c55 = arith.constant 55 : index
    %69 = memref.load %arg1[%c0_59, %c55] : memref<3x99xf32, #tpu.memory_space<smem>>
    %c0_60 = arith.constant 0 : index
    %c56 = arith.constant 56 : index
    %70 = memref.load %arg1[%c0_60, %c56] : memref<3x99xf32, #tpu.memory_space<smem>>
    %c0_61 = arith.constant 0 : index
    %c57 = arith.constant 57 : index
    %71 = memref.load %arg1[%c0_61, %c57] : memref<3x99xf32, #tpu.memory_space<smem>>
    %c0_62 = arith.constant 0 : index
    %c58 = arith.constant 58 : index
    %72 = memref.load %arg1[%c0_62, %c58] : memref<3x99xf32, #tpu.memory_space<smem>>
    %c0_63 = arith.constant 0 : index
    %c59 = arith.constant 59 : index
    %73 = memref.load %arg1[%c0_63, %c59] : memref<3x99xf32, #tpu.memory_space<smem>>
    %c0_64 = arith.constant 0 : index
    %c60 = arith.constant 60 : index
    %74 = memref.load %arg1[%c0_64, %c60] : memref<3x99xf32, #tpu.memory_space<smem>>
    %c0_65 = arith.constant 0 : index
    %c61 = arith.constant 61 : index
    %75 = memref.load %arg1[%c0_65, %c61] : memref<3x99xf32, #tpu.memory_space<smem>>
    %c0_66 = arith.constant 0 : index
    %c62 = arith.constant 62 : index
    %76 = memref.load %arg1[%c0_66, %c62] : memref<3x99xf32, #tpu.memory_space<smem>>
    %c0_67 = arith.constant 0 : index
    %c63 = arith.constant 63 : index
    %77 = memref.load %arg1[%c0_67, %c63] : memref<3x99xf32, #tpu.memory_space<smem>>
    %c0_68 = arith.constant 0 : index
    %c64 = arith.constant 64 : index
    %78 = memref.load %arg1[%c0_68, %c64] : memref<3x99xf32, #tpu.memory_space<smem>>
    %c0_69 = arith.constant 0 : index
    %c65 = arith.constant 65 : index
    %79 = memref.load %arg1[%c0_69, %c65] : memref<3x99xf32, #tpu.memory_space<smem>>
    %c0_70 = arith.constant 0 : index
    %c66 = arith.constant 66 : index
    %80 = memref.load %arg1[%c0_70, %c66] : memref<3x99xf32, #tpu.memory_space<smem>>
    %c0_71 = arith.constant 0 : index
    %c67 = arith.constant 67 : index
    %81 = memref.load %arg1[%c0_71, %c67] : memref<3x99xf32, #tpu.memory_space<smem>>
    %c0_72 = arith.constant 0 : index
    %c68 = arith.constant 68 : index
    %82 = memref.load %arg1[%c0_72, %c68] : memref<3x99xf32, #tpu.memory_space<smem>>
    %c0_73 = arith.constant 0 : index
    %c69 = arith.constant 69 : index
    %83 = memref.load %arg1[%c0_73, %c69] : memref<3x99xf32, #tpu.memory_space<smem>>
    %c0_74 = arith.constant 0 : index
    %c70 = arith.constant 70 : index
    %84 = memref.load %arg1[%c0_74, %c70] : memref<3x99xf32, #tpu.memory_space<smem>>
    %c0_75 = arith.constant 0 : index
    %c71 = arith.constant 71 : index
    %85 = memref.load %arg1[%c0_75, %c71] : memref<3x99xf32, #tpu.memory_space<smem>>
    %c0_76 = arith.constant 0 : index
    %c72 = arith.constant 72 : index
    %86 = memref.load %arg1[%c0_76, %c72] : memref<3x99xf32, #tpu.memory_space<smem>>
    %c0_77 = arith.constant 0 : index
    %c73 = arith.constant 73 : index
    %87 = memref.load %arg1[%c0_77, %c73] : memref<3x99xf32, #tpu.memory_space<smem>>
    %c0_78 = arith.constant 0 : index
    %c74 = arith.constant 74 : index
    %88 = memref.load %arg1[%c0_78, %c74] : memref<3x99xf32, #tpu.memory_space<smem>>
    %c0_79 = arith.constant 0 : index
    %c75 = arith.constant 75 : index
    %89 = memref.load %arg1[%c0_79, %c75] : memref<3x99xf32, #tpu.memory_space<smem>>
    %c0_80 = arith.constant 0 : index
    %c76 = arith.constant 76 : index
    %90 = memref.load %arg1[%c0_80, %c76] : memref<3x99xf32, #tpu.memory_space<smem>>
    %c0_81 = arith.constant 0 : index
    %c77 = arith.constant 77 : index
    %91 = memref.load %arg1[%c0_81, %c77] : memref<3x99xf32, #tpu.memory_space<smem>>
    %c0_82 = arith.constant 0 : index
    %c78 = arith.constant 78 : index
    %92 = memref.load %arg1[%c0_82, %c78] : memref<3x99xf32, #tpu.memory_space<smem>>
    %c0_83 = arith.constant 0 : index
    %c79 = arith.constant 79 : index
    %93 = memref.load %arg1[%c0_83, %c79] : memref<3x99xf32, #tpu.memory_space<smem>>
    %c0_84 = arith.constant 0 : index
    %c80 = arith.constant 80 : index
    %94 = memref.load %arg1[%c0_84, %c80] : memref<3x99xf32, #tpu.memory_space<smem>>
    %c0_85 = arith.constant 0 : index
    %c81 = arith.constant 81 : index
    %95 = memref.load %arg1[%c0_85, %c81] : memref<3x99xf32, #tpu.memory_space<smem>>
    %c0_86 = arith.constant 0 : index
    %c82 = arith.constant 82 : index
    %96 = memref.load %arg1[%c0_86, %c82] : memref<3x99xf32, #tpu.memory_space<smem>>
    %c0_87 = arith.constant 0 : index
    %c83 = arith.constant 83 : index
    %97 = memref.load %arg1[%c0_87, %c83] : memref<3x99xf32, #tpu.memory_space<smem>>
    %c0_88 = arith.constant 0 : index
    %c84 = arith.constant 84 : index
    %98 = memref.load %arg1[%c0_88, %c84] : memref<3x99xf32, #tpu.memory_space<smem>>
    %c0_89 = arith.constant 0 : index
    %c85 = arith.constant 85 : index
    %99 = memref.load %arg1[%c0_89, %c85] : memref<3x99xf32, #tpu.memory_space<smem>>
    %c0_90 = arith.constant 0 : index
    %c86 = arith.constant 86 : index
    %100 = memref.load %arg1[%c0_90, %c86] : memref<3x99xf32, #tpu.memory_space<smem>>
    %c0_91 = arith.constant 0 : index
    %c87 = arith.constant 87 : index
    %101 = memref.load %arg1[%c0_91, %c87] : memref<3x99xf32, #tpu.memory_space<smem>>
    %c0_92 = arith.constant 0 : index
    %c88 = arith.constant 88 : index
    %102 = memref.load %arg1[%c0_92, %c88] : memref<3x99xf32, #tpu.memory_space<smem>>
    %c0_93 = arith.constant 0 : index
    %c89 = arith.constant 89 : index
    %103 = memref.load %arg1[%c0_93, %c89] : memref<3x99xf32, #tpu.memory_space<smem>>
    %c0_94 = arith.constant 0 : index
    %c90 = arith.constant 90 : index
    %104 = memref.load %arg1[%c0_94, %c90] : memref<3x99xf32, #tpu.memory_space<smem>>
    %c0_95 = arith.constant 0 : index
    %c91 = arith.constant 91 : index
    %105 = memref.load %arg1[%c0_95, %c91] : memref<3x99xf32, #tpu.memory_space<smem>>
    %c0_96 = arith.constant 0 : index
    %c92 = arith.constant 92 : index
    %106 = memref.load %arg1[%c0_96, %c92] : memref<3x99xf32, #tpu.memory_space<smem>>
    %c0_97 = arith.constant 0 : index
    %c93 = arith.constant 93 : index
    %107 = memref.load %arg1[%c0_97, %c93] : memref<3x99xf32, #tpu.memory_space<smem>>
    %c0_98 = arith.constant 0 : index
    %c94 = arith.constant 94 : index
    %108 = memref.load %arg1[%c0_98, %c94] : memref<3x99xf32, #tpu.memory_space<smem>>
    %c0_99 = arith.constant 0 : index
    %c95 = arith.constant 95 : index
    %109 = memref.load %arg1[%c0_99, %c95] : memref<3x99xf32, #tpu.memory_space<smem>>
    %c0_100 = arith.constant 0 : index
    %c96 = arith.constant 96 : index
    %110 = memref.load %arg1[%c0_100, %c96] : memref<3x99xf32, #tpu.memory_space<smem>>
    %c0_101 = arith.constant 0 : index
    %c97 = arith.constant 97 : index
    %111 = memref.load %arg1[%c0_101, %c97] : memref<3x99xf32, #tpu.memory_space<smem>>
    %c0_102 = arith.constant 0 : index
    %c98 = arith.constant 98 : index
    %112 = memref.load %arg1[%c0_102, %c98] : memref<3x99xf32, #tpu.memory_space<smem>>
    %cst_103 = arith.constant 0.000000e+00 : f32
    %113 = vector.broadcast %cst_103 : f32 to vector<1x1x3x16xf32>
    %114 = tpu.concatenate %113, %10, %113 in 2 : vector<1x1x3x16xf32>, vector<1x1x16x16xf32>, vector<1x1x3x16xf32> -> vector<1x1x22x16xf32>
    %cst_104 = arith.constant 0.000000e+00 : f32
    %115 = vector.broadcast %cst_104 : f32 to vector<1x1x22x3xf32>
    %116 = tpu.concatenate %115, %114, %115 in 3 : vector<1x1x22x3xf32>, vector<1x1x22x16xf32>, vector<1x1x22x3xf32> -> vector<1x1x22x22xf32>
    %cst_105 = arith.constant 0.000000e+00 : f32
    %117 = vector.broadcast %cst_105 : f32 to vector<1x1x3x16xf32>
    %118 = tpu.concatenate %117, %13, %117 in 2 : vector<1x1x3x16xf32>, vector<1x1x16x16xf32>, vector<1x1x3x16xf32> -> vector<1x1x22x16xf32>
    %cst_106 = arith.constant 0.000000e+00 : f32
    %119 = vector.broadcast %cst_106 : f32 to vector<1x1x22x3xf32>
    %120 = tpu.concatenate %119, %118, %119 in 3 : vector<1x1x22x3xf32>, vector<1x1x22x16xf32>, vector<1x1x22x3xf32> -> vector<1x1x22x22xf32>
    %cst_107 = arith.constant 0.000000e+00 : f32
    %121 = vector.broadcast %cst_107 : f32 to vector<1x1x16x16xf32>
    %122 = vector.extract_strided_slice %116 {offsets = [0, 0, 0, 0], sizes = [1, 1, 16, 16], strides = [1, 1, 1, 1]} : vector<1x1x22x22xf32> to vector<1x1x16x16xf32>
    %123 = vector.broadcast %14 : f32 to vector<1x1x16x16xf32>
    %124 = arith.mulf %123, %122 : vector<1x1x16x16xf32>
    %125 = vector.extract_strided_slice %120 {offsets = [0, 0, 0, 0], sizes = [1, 1, 16, 16], strides = [1, 1, 1, 1]} : vector<1x1x22x22xf32> to vector<1x1x16x16xf32>
    %126 = vector.broadcast %63 : f32 to vector<1x1x16x16xf32>
    %127 = arith.mulf %126, %125 : vector<1x1x16x16xf32>
    %128 = arith.addf %124, %127 : vector<1x1x16x16xf32>
    %129 = arith.addf %121, %128 : vector<1x1x16x16xf32>
    %130 = vector.extract_strided_slice %116 {offsets = [0, 0, 0, 1], sizes = [1, 1, 16, 16], strides = [1, 1, 1, 1]} : vector<1x1x22x22xf32> to vector<1x1x16x16xf32>
    %131 = vector.broadcast %15 : f32 to vector<1x1x16x16xf32>
    %132 = arith.mulf %131, %130 : vector<1x1x16x16xf32>
    %133 = vector.extract_strided_slice %120 {offsets = [0, 0, 0, 1], sizes = [1, 1, 16, 16], strides = [1, 1, 1, 1]} : vector<1x1x22x22xf32> to vector<1x1x16x16xf32>
    %134 = vector.broadcast %64 : f32 to vector<1x1x16x16xf32>
    %135 = arith.mulf %134, %133 : vector<1x1x16x16xf32>
    %136 = arith.addf %132, %135 : vector<1x1x16x16xf32>
    %137 = arith.addf %129, %136 : vector<1x1x16x16xf32>
    %138 = vector.extract_strided_slice %116 {offsets = [0, 0, 0, 2], sizes = [1, 1, 16, 16], strides = [1, 1, 1, 1]} : vector<1x1x22x22xf32> to vector<1x1x16x16xf32>
    %139 = vector.broadcast %16 : f32 to vector<1x1x16x16xf32>
    %140 = arith.mulf %139, %138 : vector<1x1x16x16xf32>
    %141 = vector.extract_strided_slice %120 {offsets = [0, 0, 0, 2], sizes = [1, 1, 16, 16], strides = [1, 1, 1, 1]} : vector<1x1x22x22xf32> to vector<1x1x16x16xf32>
    %142 = vector.broadcast %65 : f32 to vector<1x1x16x16xf32>
    %143 = arith.mulf %142, %141 : vector<1x1x16x16xf32>
    %144 = arith.addf %140, %143 : vector<1x1x16x16xf32>
    %145 = arith.addf %137, %144 : vector<1x1x16x16xf32>
    %146 = vector.extract_strided_slice %116 {offsets = [0, 0, 0, 3], sizes = [1, 1, 16, 16], strides = [1, 1, 1, 1]} : vector<1x1x22x22xf32> to vector<1x1x16x16xf32>
    %147 = vector.broadcast %17 : f32 to vector<1x1x16x16xf32>
    %148 = arith.mulf %147, %146 : vector<1x1x16x16xf32>
    %149 = vector.extract_strided_slice %120 {offsets = [0, 0, 0, 3], sizes = [1, 1, 16, 16], strides = [1, 1, 1, 1]} : vector<1x1x22x22xf32> to vector<1x1x16x16xf32>
    %150 = vector.broadcast %66 : f32 to vector<1x1x16x16xf32>
    %151 = arith.mulf %150, %149 : vector<1x1x16x16xf32>
    %152 = arith.addf %148, %151 : vector<1x1x16x16xf32>
    %153 = arith.addf %145, %152 : vector<1x1x16x16xf32>
    %154 = vector.extract_strided_slice %116 {offsets = [0, 0, 0, 4], sizes = [1, 1, 16, 16], strides = [1, 1, 1, 1]} : vector<1x1x22x22xf32> to vector<1x1x16x16xf32>
    %155 = vector.broadcast %18 : f32 to vector<1x1x16x16xf32>
    %156 = arith.mulf %155, %154 : vector<1x1x16x16xf32>
    %157 = vector.extract_strided_slice %120 {offsets = [0, 0, 0, 4], sizes = [1, 1, 16, 16], strides = [1, 1, 1, 1]} : vector<1x1x22x22xf32> to vector<1x1x16x16xf32>
    %158 = vector.broadcast %67 : f32 to vector<1x1x16x16xf32>
    %159 = arith.mulf %158, %157 : vector<1x1x16x16xf32>
    %160 = arith.addf %156, %159 : vector<1x1x16x16xf32>
    %161 = arith.addf %153, %160 : vector<1x1x16x16xf32>
    %162 = vector.extract_strided_slice %116 {offsets = [0, 0, 0, 5], sizes = [1, 1, 16, 16], strides = [1, 1, 1, 1]} : vector<1x1x22x22xf32> to vector<1x1x16x16xf32>
    %163 = vector.broadcast %19 : f32 to vector<1x1x16x16xf32>
    %164 = arith.mulf %163, %162 : vector<1x1x16x16xf32>
    %165 = vector.extract_strided_slice %120 {offsets = [0, 0, 0, 5], sizes = [1, 1, 16, 16], strides = [1, 1, 1, 1]} : vector<1x1x22x22xf32> to vector<1x1x16x16xf32>
    %166 = vector.broadcast %68 : f32 to vector<1x1x16x16xf32>
    %167 = arith.mulf %166, %165 : vector<1x1x16x16xf32>
    %168 = arith.addf %164, %167 : vector<1x1x16x16xf32>
    %169 = arith.addf %161, %168 : vector<1x1x16x16xf32>
    %170 = vector.extract_strided_slice %116 {offsets = [0, 0, 0, 6], sizes = [1, 1, 16, 16], strides = [1, 1, 1, 1]} : vector<1x1x22x22xf32> to vector<1x1x16x16xf32>
    %171 = vector.broadcast %20 : f32 to vector<1x1x16x16xf32>
    %172 = arith.mulf %171, %170 : vector<1x1x16x16xf32>
    %173 = vector.extract_strided_slice %120 {offsets = [0, 0, 0, 6], sizes = [1, 1, 16, 16], strides = [1, 1, 1, 1]} : vector<1x1x22x22xf32> to vector<1x1x16x16xf32>
    %174 = vector.broadcast %69 : f32 to vector<1x1x16x16xf32>
    %175 = arith.mulf %174, %173 : vector<1x1x16x16xf32>
    %176 = arith.addf %172, %175 : vector<1x1x16x16xf32>
    %177 = arith.addf %169, %176 : vector<1x1x16x16xf32>
    %178 = vector.extract_strided_slice %116 {offsets = [0, 0, 1, 0], sizes = [1, 1, 16, 16], strides = [1, 1, 1, 1]} : vector<1x1x22x22xf32> to vector<1x1x16x16xf32>
    %179 = vector.broadcast %21 : f32 to vector<1x1x16x16xf32>
    %180 = arith.mulf %179, %178 : vector<1x1x16x16xf32>
    %181 = vector.extract_strided_slice %120 {offsets = [0, 0, 1, 0], sizes = [1, 1, 16, 16], strides = [1, 1, 1, 1]} : vector<1x1x22x22xf32> to vector<1x1x16x16xf32>
    %182 = vector.broadcast %70 : f32 to vector<1x1x16x16xf32>
    %183 = arith.mulf %182, %181 : vector<1x1x16x16xf32>
    %184 = arith.addf %180, %183 : vector<1x1x16x16xf32>
    %185 = arith.addf %177, %184 : vector<1x1x16x16xf32>
    %186 = vector.extract_strided_slice %116 {offsets = [0, 0, 1, 1], sizes = [1, 1, 16, 16], strides = [1, 1, 1, 1]} : vector<1x1x22x22xf32> to vector<1x1x16x16xf32>
    %187 = vector.broadcast %22 : f32 to vector<1x1x16x16xf32>
    %188 = arith.mulf %187, %186 : vector<1x1x16x16xf32>
    %189 = vector.extract_strided_slice %120 {offsets = [0, 0, 1, 1], sizes = [1, 1, 16, 16], strides = [1, 1, 1, 1]} : vector<1x1x22x22xf32> to vector<1x1x16x16xf32>
    %190 = vector.broadcast %71 : f32 to vector<1x1x16x16xf32>
    %191 = arith.mulf %190, %189 : vector<1x1x16x16xf32>
    %192 = arith.addf %188, %191 : vector<1x1x16x16xf32>
    %193 = arith.addf %185, %192 : vector<1x1x16x16xf32>
    %194 = vector.extract_strided_slice %116 {offsets = [0, 0, 1, 2], sizes = [1, 1, 16, 16], strides = [1, 1, 1, 1]} : vector<1x1x22x22xf32> to vector<1x1x16x16xf32>
    %195 = vector.broadcast %23 : f32 to vector<1x1x16x16xf32>
    %196 = arith.mulf %195, %194 : vector<1x1x16x16xf32>
    %197 = vector.extract_strided_slice %120 {offsets = [0, 0, 1, 2], sizes = [1, 1, 16, 16], strides = [1, 1, 1, 1]} : vector<1x1x22x22xf32> to vector<1x1x16x16xf32>
    %198 = vector.broadcast %72 : f32 to vector<1x1x16x16xf32>
    %199 = arith.mulf %198, %197 : vector<1x1x16x16xf32>
    %200 = arith.addf %196, %199 : vector<1x1x16x16xf32>
    %201 = arith.addf %193, %200 : vector<1x1x16x16xf32>
    %202 = vector.extract_strided_slice %116 {offsets = [0, 0, 1, 3], sizes = [1, 1, 16, 16], strides = [1, 1, 1, 1]} : vector<1x1x22x22xf32> to vector<1x1x16x16xf32>
    %203 = vector.broadcast %24 : f32 to vector<1x1x16x16xf32>
    %204 = arith.mulf %203, %202 : vector<1x1x16x16xf32>
    %205 = vector.extract_strided_slice %120 {offsets = [0, 0, 1, 3], sizes = [1, 1, 16, 16], strides = [1, 1, 1, 1]} : vector<1x1x22x22xf32> to vector<1x1x16x16xf32>
    %206 = vector.broadcast %73 : f32 to vector<1x1x16x16xf32>
    %207 = arith.mulf %206, %205 : vector<1x1x16x16xf32>
    %208 = arith.addf %204, %207 : vector<1x1x16x16xf32>
    %209 = arith.addf %201, %208 : vector<1x1x16x16xf32>
    %210 = vector.extract_strided_slice %116 {offsets = [0, 0, 1, 4], sizes = [1, 1, 16, 16], strides = [1, 1, 1, 1]} : vector<1x1x22x22xf32> to vector<1x1x16x16xf32>
    %211 = vector.broadcast %25 : f32 to vector<1x1x16x16xf32>
    %212 = arith.mulf %211, %210 : vector<1x1x16x16xf32>
    %213 = vector.extract_strided_slice %120 {offsets = [0, 0, 1, 4], sizes = [1, 1, 16, 16], strides = [1, 1, 1, 1]} : vector<1x1x22x22xf32> to vector<1x1x16x16xf32>
    %214 = vector.broadcast %74 : f32 to vector<1x1x16x16xf32>
    %215 = arith.mulf %214, %213 : vector<1x1x16x16xf32>
    %216 = arith.addf %212, %215 : vector<1x1x16x16xf32>
    %217 = arith.addf %209, %216 : vector<1x1x16x16xf32>
    %218 = vector.extract_strided_slice %116 {offsets = [0, 0, 1, 5], sizes = [1, 1, 16, 16], strides = [1, 1, 1, 1]} : vector<1x1x22x22xf32> to vector<1x1x16x16xf32>
    %219 = vector.broadcast %26 : f32 to vector<1x1x16x16xf32>
    %220 = arith.mulf %219, %218 : vector<1x1x16x16xf32>
    %221 = vector.extract_strided_slice %120 {offsets = [0, 0, 1, 5], sizes = [1, 1, 16, 16], strides = [1, 1, 1, 1]} : vector<1x1x22x22xf32> to vector<1x1x16x16xf32>
    %222 = vector.broadcast %75 : f32 to vector<1x1x16x16xf32>
    %223 = arith.mulf %222, %221 : vector<1x1x16x16xf32>
    %224 = arith.addf %220, %223 : vector<1x1x16x16xf32>
    %225 = arith.addf %217, %224 : vector<1x1x16x16xf32>
    %226 = vector.extract_strided_slice %116 {offsets = [0, 0, 1, 6], sizes = [1, 1, 16, 16], strides = [1, 1, 1, 1]} : vector<1x1x22x22xf32> to vector<1x1x16x16xf32>
    %227 = vector.broadcast %27 : f32 to vector<1x1x16x16xf32>
    %228 = arith.mulf %227, %226 : vector<1x1x16x16xf32>
    %229 = vector.extract_strided_slice %120 {offsets = [0, 0, 1, 6], sizes = [1, 1, 16, 16], strides = [1, 1, 1, 1]} : vector<1x1x22x22xf32> to vector<1x1x16x16xf32>
    %230 = vector.broadcast %76 : f32 to vector<1x1x16x16xf32>
    %231 = arith.mulf %230, %229 : vector<1x1x16x16xf32>
    %232 = arith.addf %228, %231 : vector<1x1x16x16xf32>
    %233 = arith.addf %225, %232 : vector<1x1x16x16xf32>
    %234 = vector.extract_strided_slice %116 {offsets = [0, 0, 2, 0], sizes = [1, 1, 16, 16], strides = [1, 1, 1, 1]} : vector<1x1x22x22xf32> to vector<1x1x16x16xf32>
    %235 = vector.broadcast %28 : f32 to vector<1x1x16x16xf32>
    %236 = arith.mulf %235, %234 : vector<1x1x16x16xf32>
    %237 = vector.extract_strided_slice %120 {offsets = [0, 0, 2, 0], sizes = [1, 1, 16, 16], strides = [1, 1, 1, 1]} : vector<1x1x22x22xf32> to vector<1x1x16x16xf32>
    %238 = vector.broadcast %77 : f32 to vector<1x1x16x16xf32>
    %239 = arith.mulf %238, %237 : vector<1x1x16x16xf32>
    %240 = arith.addf %236, %239 : vector<1x1x16x16xf32>
    %241 = arith.addf %233, %240 : vector<1x1x16x16xf32>
    %242 = vector.extract_strided_slice %116 {offsets = [0, 0, 2, 1], sizes = [1, 1, 16, 16], strides = [1, 1, 1, 1]} : vector<1x1x22x22xf32> to vector<1x1x16x16xf32>
    %243 = vector.broadcast %29 : f32 to vector<1x1x16x16xf32>
    %244 = arith.mulf %243, %242 : vector<1x1x16x16xf32>
    %245 = vector.extract_strided_slice %120 {offsets = [0, 0, 2, 1], sizes = [1, 1, 16, 16], strides = [1, 1, 1, 1]} : vector<1x1x22x22xf32> to vector<1x1x16x16xf32>
    %246 = vector.broadcast %78 : f32 to vector<1x1x16x16xf32>
    %247 = arith.mulf %246, %245 : vector<1x1x16x16xf32>
    %248 = arith.addf %244, %247 : vector<1x1x16x16xf32>
    %249 = arith.addf %241, %248 : vector<1x1x16x16xf32>
    %250 = vector.extract_strided_slice %116 {offsets = [0, 0, 2, 2], sizes = [1, 1, 16, 16], strides = [1, 1, 1, 1]} : vector<1x1x22x22xf32> to vector<1x1x16x16xf32>
    %251 = vector.broadcast %30 : f32 to vector<1x1x16x16xf32>
    %252 = arith.mulf %251, %250 : vector<1x1x16x16xf32>
    %253 = vector.extract_strided_slice %120 {offsets = [0, 0, 2, 2], sizes = [1, 1, 16, 16], strides = [1, 1, 1, 1]} : vector<1x1x22x22xf32> to vector<1x1x16x16xf32>
    %254 = vector.broadcast %79 : f32 to vector<1x1x16x16xf32>
    %255 = arith.mulf %254, %253 : vector<1x1x16x16xf32>
    %256 = arith.addf %252, %255 : vector<1x1x16x16xf32>
    %257 = arith.addf %249, %256 : vector<1x1x16x16xf32>
    %258 = vector.extract_strided_slice %116 {offsets = [0, 0, 2, 3], sizes = [1, 1, 16, 16], strides = [1, 1, 1, 1]} : vector<1x1x22x22xf32> to vector<1x1x16x16xf32>
    %259 = vector.broadcast %31 : f32 to vector<1x1x16x16xf32>
    %260 = arith.mulf %259, %258 : vector<1x1x16x16xf32>
    %261 = vector.extract_strided_slice %120 {offsets = [0, 0, 2, 3], sizes = [1, 1, 16, 16], strides = [1, 1, 1, 1]} : vector<1x1x22x22xf32> to vector<1x1x16x16xf32>
    %262 = vector.broadcast %80 : f32 to vector<1x1x16x16xf32>
    %263 = arith.mulf %262, %261 : vector<1x1x16x16xf32>
    %264 = arith.addf %260, %263 : vector<1x1x16x16xf32>
    %265 = arith.addf %257, %264 : vector<1x1x16x16xf32>
    %266 = vector.extract_strided_slice %116 {offsets = [0, 0, 2, 4], sizes = [1, 1, 16, 16], strides = [1, 1, 1, 1]} : vector<1x1x22x22xf32> to vector<1x1x16x16xf32>
    %267 = vector.broadcast %32 : f32 to vector<1x1x16x16xf32>
    %268 = arith.mulf %267, %266 : vector<1x1x16x16xf32>
    %269 = vector.extract_strided_slice %120 {offsets = [0, 0, 2, 4], sizes = [1, 1, 16, 16], strides = [1, 1, 1, 1]} : vector<1x1x22x22xf32> to vector<1x1x16x16xf32>
    %270 = vector.broadcast %81 : f32 to vector<1x1x16x16xf32>
    %271 = arith.mulf %270, %269 : vector<1x1x16x16xf32>
    %272 = arith.addf %268, %271 : vector<1x1x16x16xf32>
    %273 = arith.addf %265, %272 : vector<1x1x16x16xf32>
    %274 = vector.extract_strided_slice %116 {offsets = [0, 0, 2, 5], sizes = [1, 1, 16, 16], strides = [1, 1, 1, 1]} : vector<1x1x22x22xf32> to vector<1x1x16x16xf32>
    %275 = vector.broadcast %33 : f32 to vector<1x1x16x16xf32>
    %276 = arith.mulf %275, %274 : vector<1x1x16x16xf32>
    %277 = vector.extract_strided_slice %120 {offsets = [0, 0, 2, 5], sizes = [1, 1, 16, 16], strides = [1, 1, 1, 1]} : vector<1x1x22x22xf32> to vector<1x1x16x16xf32>
    %278 = vector.broadcast %82 : f32 to vector<1x1x16x16xf32>
    %279 = arith.mulf %278, %277 : vector<1x1x16x16xf32>
    %280 = arith.addf %276, %279 : vector<1x1x16x16xf32>
    %281 = arith.addf %273, %280 : vector<1x1x16x16xf32>
    %282 = vector.extract_strided_slice %116 {offsets = [0, 0, 2, 6], sizes = [1, 1, 16, 16], strides = [1, 1, 1, 1]} : vector<1x1x22x22xf32> to vector<1x1x16x16xf32>
    %283 = vector.broadcast %34 : f32 to vector<1x1x16x16xf32>
    %284 = arith.mulf %283, %282 : vector<1x1x16x16xf32>
    %285 = vector.extract_strided_slice %120 {offsets = [0, 0, 2, 6], sizes = [1, 1, 16, 16], strides = [1, 1, 1, 1]} : vector<1x1x22x22xf32> to vector<1x1x16x16xf32>
    %286 = vector.broadcast %83 : f32 to vector<1x1x16x16xf32>
    %287 = arith.mulf %286, %285 : vector<1x1x16x16xf32>
    %288 = arith.addf %284, %287 : vector<1x1x16x16xf32>
    %289 = arith.addf %281, %288 : vector<1x1x16x16xf32>
    %290 = vector.extract_strided_slice %116 {offsets = [0, 0, 3, 0], sizes = [1, 1, 16, 16], strides = [1, 1, 1, 1]} : vector<1x1x22x22xf32> to vector<1x1x16x16xf32>
    %291 = vector.broadcast %35 : f32 to vector<1x1x16x16xf32>
    %292 = arith.mulf %291, %290 : vector<1x1x16x16xf32>
    %293 = vector.extract_strided_slice %120 {offsets = [0, 0, 3, 0], sizes = [1, 1, 16, 16], strides = [1, 1, 1, 1]} : vector<1x1x22x22xf32> to vector<1x1x16x16xf32>
    %294 = vector.broadcast %84 : f32 to vector<1x1x16x16xf32>
    %295 = arith.mulf %294, %293 : vector<1x1x16x16xf32>
    %296 = arith.addf %292, %295 : vector<1x1x16x16xf32>
    %297 = arith.addf %289, %296 : vector<1x1x16x16xf32>
    %298 = vector.extract_strided_slice %116 {offsets = [0, 0, 3, 1], sizes = [1, 1, 16, 16], strides = [1, 1, 1, 1]} : vector<1x1x22x22xf32> to vector<1x1x16x16xf32>
    %299 = vector.broadcast %36 : f32 to vector<1x1x16x16xf32>
    %300 = arith.mulf %299, %298 : vector<1x1x16x16xf32>
    %301 = vector.extract_strided_slice %120 {offsets = [0, 0, 3, 1], sizes = [1, 1, 16, 16], strides = [1, 1, 1, 1]} : vector<1x1x22x22xf32> to vector<1x1x16x16xf32>
    %302 = vector.broadcast %85 : f32 to vector<1x1x16x16xf32>
    %303 = arith.mulf %302, %301 : vector<1x1x16x16xf32>
    %304 = arith.addf %300, %303 : vector<1x1x16x16xf32>
    %305 = arith.addf %297, %304 : vector<1x1x16x16xf32>
    %306 = vector.extract_strided_slice %116 {offsets = [0, 0, 3, 2], sizes = [1, 1, 16, 16], strides = [1, 1, 1, 1]} : vector<1x1x22x22xf32> to vector<1x1x16x16xf32>
    %307 = vector.broadcast %37 : f32 to vector<1x1x16x16xf32>
    %308 = arith.mulf %307, %306 : vector<1x1x16x16xf32>
    %309 = vector.extract_strided_slice %120 {offsets = [0, 0, 3, 2], sizes = [1, 1, 16, 16], strides = [1, 1, 1, 1]} : vector<1x1x22x22xf32> to vector<1x1x16x16xf32>
    %310 = vector.broadcast %86 : f32 to vector<1x1x16x16xf32>
    %311 = arith.mulf %310, %309 : vector<1x1x16x16xf32>
    %312 = arith.addf %308, %311 : vector<1x1x16x16xf32>
    %313 = arith.addf %305, %312 : vector<1x1x16x16xf32>
    %314 = vector.extract_strided_slice %116 {offsets = [0, 0, 3, 3], sizes = [1, 1, 16, 16], strides = [1, 1, 1, 1]} : vector<1x1x22x22xf32> to vector<1x1x16x16xf32>
    %315 = vector.broadcast %38 : f32 to vector<1x1x16x16xf32>
    %316 = arith.mulf %315, %314 : vector<1x1x16x16xf32>
    %317 = vector.extract_strided_slice %120 {offsets = [0, 0, 3, 3], sizes = [1, 1, 16, 16], strides = [1, 1, 1, 1]} : vector<1x1x22x22xf32> to vector<1x1x16x16xf32>
    %318 = vector.broadcast %87 : f32 to vector<1x1x16x16xf32>
    %319 = arith.mulf %318, %317 : vector<1x1x16x16xf32>
    %320 = arith.addf %316, %319 : vector<1x1x16x16xf32>
    %321 = arith.addf %313, %320 : vector<1x1x16x16xf32>
    %322 = vector.extract_strided_slice %116 {offsets = [0, 0, 3, 4], sizes = [1, 1, 16, 16], strides = [1, 1, 1, 1]} : vector<1x1x22x22xf32> to vector<1x1x16x16xf32>
    %323 = vector.broadcast %39 : f32 to vector<1x1x16x16xf32>
    %324 = arith.mulf %323, %322 : vector<1x1x16x16xf32>
    %325 = vector.extract_strided_slice %120 {offsets = [0, 0, 3, 4], sizes = [1, 1, 16, 16], strides = [1, 1, 1, 1]} : vector<1x1x22x22xf32> to vector<1x1x16x16xf32>
    %326 = vector.broadcast %88 : f32 to vector<1x1x16x16xf32>
    %327 = arith.mulf %326, %325 : vector<1x1x16x16xf32>
    %328 = arith.addf %324, %327 : vector<1x1x16x16xf32>
    %329 = arith.addf %321, %328 : vector<1x1x16x16xf32>
    %330 = vector.extract_strided_slice %116 {offsets = [0, 0, 3, 5], sizes = [1, 1, 16, 16], strides = [1, 1, 1, 1]} : vector<1x1x22x22xf32> to vector<1x1x16x16xf32>
    %331 = vector.broadcast %40 : f32 to vector<1x1x16x16xf32>
    %332 = arith.mulf %331, %330 : vector<1x1x16x16xf32>
    %333 = vector.extract_strided_slice %120 {offsets = [0, 0, 3, 5], sizes = [1, 1, 16, 16], strides = [1, 1, 1, 1]} : vector<1x1x22x22xf32> to vector<1x1x16x16xf32>
    %334 = vector.broadcast %89 : f32 to vector<1x1x16x16xf32>
    %335 = arith.mulf %334, %333 : vector<1x1x16x16xf32>
    %336 = arith.addf %332, %335 : vector<1x1x16x16xf32>
    %337 = arith.addf %329, %336 : vector<1x1x16x16xf32>
    %338 = vector.extract_strided_slice %116 {offsets = [0, 0, 3, 6], sizes = [1, 1, 16, 16], strides = [1, 1, 1, 1]} : vector<1x1x22x22xf32> to vector<1x1x16x16xf32>
    %339 = vector.broadcast %41 : f32 to vector<1x1x16x16xf32>
    %340 = arith.mulf %339, %338 : vector<1x1x16x16xf32>
    %341 = vector.extract_strided_slice %120 {offsets = [0, 0, 3, 6], sizes = [1, 1, 16, 16], strides = [1, 1, 1, 1]} : vector<1x1x22x22xf32> to vector<1x1x16x16xf32>
    %342 = vector.broadcast %90 : f32 to vector<1x1x16x16xf32>
    %343 = arith.mulf %342, %341 : vector<1x1x16x16xf32>
    %344 = arith.addf %340, %343 : vector<1x1x16x16xf32>
    %345 = arith.addf %337, %344 : vector<1x1x16x16xf32>
    %346 = vector.extract_strided_slice %116 {offsets = [0, 0, 4, 0], sizes = [1, 1, 16, 16], strides = [1, 1, 1, 1]} : vector<1x1x22x22xf32> to vector<1x1x16x16xf32>
    %347 = vector.broadcast %42 : f32 to vector<1x1x16x16xf32>
    %348 = arith.mulf %347, %346 : vector<1x1x16x16xf32>
    %349 = vector.extract_strided_slice %120 {offsets = [0, 0, 4, 0], sizes = [1, 1, 16, 16], strides = [1, 1, 1, 1]} : vector<1x1x22x22xf32> to vector<1x1x16x16xf32>
    %350 = vector.broadcast %91 : f32 to vector<1x1x16x16xf32>
    %351 = arith.mulf %350, %349 : vector<1x1x16x16xf32>
    %352 = arith.addf %348, %351 : vector<1x1x16x16xf32>
    %353 = arith.addf %345, %352 : vector<1x1x16x16xf32>
    %354 = vector.extract_strided_slice %116 {offsets = [0, 0, 4, 1], sizes = [1, 1, 16, 16], strides = [1, 1, 1, 1]} : vector<1x1x22x22xf32> to vector<1x1x16x16xf32>
    %355 = vector.broadcast %43 : f32 to vector<1x1x16x16xf32>
    %356 = arith.mulf %355, %354 : vector<1x1x16x16xf32>
    %357 = vector.extract_strided_slice %120 {offsets = [0, 0, 4, 1], sizes = [1, 1, 16, 16], strides = [1, 1, 1, 1]} : vector<1x1x22x22xf32> to vector<1x1x16x16xf32>
    %358 = vector.broadcast %92 : f32 to vector<1x1x16x16xf32>
    %359 = arith.mulf %358, %357 : vector<1x1x16x16xf32>
    %360 = arith.addf %356, %359 : vector<1x1x16x16xf32>
    %361 = arith.addf %353, %360 : vector<1x1x16x16xf32>
    %362 = vector.extract_strided_slice %116 {offsets = [0, 0, 4, 2], sizes = [1, 1, 16, 16], strides = [1, 1, 1, 1]} : vector<1x1x22x22xf32> to vector<1x1x16x16xf32>
    %363 = vector.broadcast %44 : f32 to vector<1x1x16x16xf32>
    %364 = arith.mulf %363, %362 : vector<1x1x16x16xf32>
    %365 = vector.extract_strided_slice %120 {offsets = [0, 0, 4, 2], sizes = [1, 1, 16, 16], strides = [1, 1, 1, 1]} : vector<1x1x22x22xf32> to vector<1x1x16x16xf32>
    %366 = vector.broadcast %93 : f32 to vector<1x1x16x16xf32>
    %367 = arith.mulf %366, %365 : vector<1x1x16x16xf32>
    %368 = arith.addf %364, %367 : vector<1x1x16x16xf32>
    %369 = arith.addf %361, %368 : vector<1x1x16x16xf32>
    %370 = vector.extract_strided_slice %116 {offsets = [0, 0, 4, 3], sizes = [1, 1, 16, 16], strides = [1, 1, 1, 1]} : vector<1x1x22x22xf32> to vector<1x1x16x16xf32>
    %371 = vector.broadcast %45 : f32 to vector<1x1x16x16xf32>
    %372 = arith.mulf %371, %370 : vector<1x1x16x16xf32>
    %373 = vector.extract_strided_slice %120 {offsets = [0, 0, 4, 3], sizes = [1, 1, 16, 16], strides = [1, 1, 1, 1]} : vector<1x1x22x22xf32> to vector<1x1x16x16xf32>
    %374 = vector.broadcast %94 : f32 to vector<1x1x16x16xf32>
    %375 = arith.mulf %374, %373 : vector<1x1x16x16xf32>
    %376 = arith.addf %372, %375 : vector<1x1x16x16xf32>
    %377 = arith.addf %369, %376 : vector<1x1x16x16xf32>
    %378 = vector.extract_strided_slice %116 {offsets = [0, 0, 4, 4], sizes = [1, 1, 16, 16], strides = [1, 1, 1, 1]} : vector<1x1x22x22xf32> to vector<1x1x16x16xf32>
    %379 = vector.broadcast %46 : f32 to vector<1x1x16x16xf32>
    %380 = arith.mulf %379, %378 : vector<1x1x16x16xf32>
    %381 = vector.extract_strided_slice %120 {offsets = [0, 0, 4, 4], sizes = [1, 1, 16, 16], strides = [1, 1, 1, 1]} : vector<1x1x22x22xf32> to vector<1x1x16x16xf32>
    %382 = vector.broadcast %95 : f32 to vector<1x1x16x16xf32>
    %383 = arith.mulf %382, %381 : vector<1x1x16x16xf32>
    %384 = arith.addf %380, %383 : vector<1x1x16x16xf32>
    %385 = arith.addf %377, %384 : vector<1x1x16x16xf32>
    %386 = vector.extract_strided_slice %116 {offsets = [0, 0, 4, 5], sizes = [1, 1, 16, 16], strides = [1, 1, 1, 1]} : vector<1x1x22x22xf32> to vector<1x1x16x16xf32>
    %387 = vector.broadcast %47 : f32 to vector<1x1x16x16xf32>
    %388 = arith.mulf %387, %386 : vector<1x1x16x16xf32>
    %389 = vector.extract_strided_slice %120 {offsets = [0, 0, 4, 5], sizes = [1, 1, 16, 16], strides = [1, 1, 1, 1]} : vector<1x1x22x22xf32> to vector<1x1x16x16xf32>
    %390 = vector.broadcast %96 : f32 to vector<1x1x16x16xf32>
    %391 = arith.mulf %390, %389 : vector<1x1x16x16xf32>
    %392 = arith.addf %388, %391 : vector<1x1x16x16xf32>
    %393 = arith.addf %385, %392 : vector<1x1x16x16xf32>
    %394 = vector.extract_strided_slice %116 {offsets = [0, 0, 4, 6], sizes = [1, 1, 16, 16], strides = [1, 1, 1, 1]} : vector<1x1x22x22xf32> to vector<1x1x16x16xf32>
    %395 = vector.broadcast %48 : f32 to vector<1x1x16x16xf32>
    %396 = arith.mulf %395, %394 : vector<1x1x16x16xf32>
    %397 = vector.extract_strided_slice %120 {offsets = [0, 0, 4, 6], sizes = [1, 1, 16, 16], strides = [1, 1, 1, 1]} : vector<1x1x22x22xf32> to vector<1x1x16x16xf32>
    %398 = vector.broadcast %97 : f32 to vector<1x1x16x16xf32>
    %399 = arith.mulf %398, %397 : vector<1x1x16x16xf32>
    %400 = arith.addf %396, %399 : vector<1x1x16x16xf32>
    %401 = arith.addf %393, %400 : vector<1x1x16x16xf32>
    %402 = vector.extract_strided_slice %116 {offsets = [0, 0, 5, 0], sizes = [1, 1, 16, 16], strides = [1, 1, 1, 1]} : vector<1x1x22x22xf32> to vector<1x1x16x16xf32>
    %403 = vector.broadcast %49 : f32 to vector<1x1x16x16xf32>
    %404 = arith.mulf %403, %402 : vector<1x1x16x16xf32>
    %405 = vector.extract_strided_slice %120 {offsets = [0, 0, 5, 0], sizes = [1, 1, 16, 16], strides = [1, 1, 1, 1]} : vector<1x1x22x22xf32> to vector<1x1x16x16xf32>
    %406 = vector.broadcast %98 : f32 to vector<1x1x16x16xf32>
    %407 = arith.mulf %406, %405 : vector<1x1x16x16xf32>
    %408 = arith.addf %404, %407 : vector<1x1x16x16xf32>
    %409 = arith.addf %401, %408 : vector<1x1x16x16xf32>
    %410 = vector.extract_strided_slice %116 {offsets = [0, 0, 5, 1], sizes = [1, 1, 16, 16], strides = [1, 1, 1, 1]} : vector<1x1x22x22xf32> to vector<1x1x16x16xf32>
    %411 = vector.broadcast %50 : f32 to vector<1x1x16x16xf32>
    %412 = arith.mulf %411, %410 : vector<1x1x16x16xf32>
    %413 = vector.extract_strided_slice %120 {offsets = [0, 0, 5, 1], sizes = [1, 1, 16, 16], strides = [1, 1, 1, 1]} : vector<1x1x22x22xf32> to vector<1x1x16x16xf32>
    %414 = vector.broadcast %99 : f32 to vector<1x1x16x16xf32>
    %415 = arith.mulf %414, %413 : vector<1x1x16x16xf32>
    %416 = arith.addf %412, %415 : vector<1x1x16x16xf32>
    %417 = arith.addf %409, %416 : vector<1x1x16x16xf32>
    %418 = vector.extract_strided_slice %116 {offsets = [0, 0, 5, 2], sizes = [1, 1, 16, 16], strides = [1, 1, 1, 1]} : vector<1x1x22x22xf32> to vector<1x1x16x16xf32>
    %419 = vector.broadcast %51 : f32 to vector<1x1x16x16xf32>
    %420 = arith.mulf %419, %418 : vector<1x1x16x16xf32>
    %421 = vector.extract_strided_slice %120 {offsets = [0, 0, 5, 2], sizes = [1, 1, 16, 16], strides = [1, 1, 1, 1]} : vector<1x1x22x22xf32> to vector<1x1x16x16xf32>
    %422 = vector.broadcast %100 : f32 to vector<1x1x16x16xf32>
    %423 = arith.mulf %422, %421 : vector<1x1x16x16xf32>
    %424 = arith.addf %420, %423 : vector<1x1x16x16xf32>
    %425 = arith.addf %417, %424 : vector<1x1x16x16xf32>
    %426 = vector.extract_strided_slice %116 {offsets = [0, 0, 5, 3], sizes = [1, 1, 16, 16], strides = [1, 1, 1, 1]} : vector<1x1x22x22xf32> to vector<1x1x16x16xf32>
    %427 = vector.broadcast %52 : f32 to vector<1x1x16x16xf32>
    %428 = arith.mulf %427, %426 : vector<1x1x16x16xf32>
    %429 = vector.extract_strided_slice %120 {offsets = [0, 0, 5, 3], sizes = [1, 1, 16, 16], strides = [1, 1, 1, 1]} : vector<1x1x22x22xf32> to vector<1x1x16x16xf32>
    %430 = vector.broadcast %101 : f32 to vector<1x1x16x16xf32>
    %431 = arith.mulf %430, %429 : vector<1x1x16x16xf32>
    %432 = arith.addf %428, %431 : vector<1x1x16x16xf32>
    %433 = arith.addf %425, %432 : vector<1x1x16x16xf32>
    %434 = vector.extract_strided_slice %116 {offsets = [0, 0, 5, 4], sizes = [1, 1, 16, 16], strides = [1, 1, 1, 1]} : vector<1x1x22x22xf32> to vector<1x1x16x16xf32>
    %435 = vector.broadcast %53 : f32 to vector<1x1x16x16xf32>
    %436 = arith.mulf %435, %434 : vector<1x1x16x16xf32>
    %437 = vector.extract_strided_slice %120 {offsets = [0, 0, 5, 4], sizes = [1, 1, 16, 16], strides = [1, 1, 1, 1]} : vector<1x1x22x22xf32> to vector<1x1x16x16xf32>
    %438 = vector.broadcast %102 : f32 to vector<1x1x16x16xf32>
    %439 = arith.mulf %438, %437 : vector<1x1x16x16xf32>
    %440 = arith.addf %436, %439 : vector<1x1x16x16xf32>
    %441 = arith.addf %433, %440 : vector<1x1x16x16xf32>
    %442 = vector.extract_strided_slice %116 {offsets = [0, 0, 5, 5], sizes = [1, 1, 16, 16], strides = [1, 1, 1, 1]} : vector<1x1x22x22xf32> to vector<1x1x16x16xf32>
    %443 = vector.broadcast %54 : f32 to vector<1x1x16x16xf32>
    %444 = arith.mulf %443, %442 : vector<1x1x16x16xf32>
    %445 = vector.extract_strided_slice %120 {offsets = [0, 0, 5, 5], sizes = [1, 1, 16, 16], strides = [1, 1, 1, 1]} : vector<1x1x22x22xf32> to vector<1x1x16x16xf32>
    %446 = vector.broadcast %103 : f32 to vector<1x1x16x16xf32>
    %447 = arith.mulf %446, %445 : vector<1x1x16x16xf32>
    %448 = arith.addf %444, %447 : vector<1x1x16x16xf32>
    %449 = arith.addf %441, %448 : vector<1x1x16x16xf32>
    %450 = vector.extract_strided_slice %116 {offsets = [0, 0, 5, 6], sizes = [1, 1, 16, 16], strides = [1, 1, 1, 1]} : vector<1x1x22x22xf32> to vector<1x1x16x16xf32>
    %451 = vector.broadcast %55 : f32 to vector<1x1x16x16xf32>
    %452 = arith.mulf %451, %450 : vector<1x1x16x16xf32>
    %453 = vector.extract_strided_slice %120 {offsets = [0, 0, 5, 6], sizes = [1, 1, 16, 16], strides = [1, 1, 1, 1]} : vector<1x1x22x22xf32> to vector<1x1x16x16xf32>
    %454 = vector.broadcast %104 : f32 to vector<1x1x16x16xf32>
    %455 = arith.mulf %454, %453 : vector<1x1x16x16xf32>
    %456 = arith.addf %452, %455 : vector<1x1x16x16xf32>
    %457 = arith.addf %449, %456 : vector<1x1x16x16xf32>
    %458 = vector.extract_strided_slice %116 {offsets = [0, 0, 6, 0], sizes = [1, 1, 16, 16], strides = [1, 1, 1, 1]} : vector<1x1x22x22xf32> to vector<1x1x16x16xf32>
    %459 = vector.broadcast %56 : f32 to vector<1x1x16x16xf32>
    %460 = arith.mulf %459, %458 : vector<1x1x16x16xf32>
    %461 = vector.extract_strided_slice %120 {offsets = [0, 0, 6, 0], sizes = [1, 1, 16, 16], strides = [1, 1, 1, 1]} : vector<1x1x22x22xf32> to vector<1x1x16x16xf32>
    %462 = vector.broadcast %105 : f32 to vector<1x1x16x16xf32>
    %463 = arith.mulf %462, %461 : vector<1x1x16x16xf32>
    %464 = arith.addf %460, %463 : vector<1x1x16x16xf32>
    %465 = arith.addf %457, %464 : vector<1x1x16x16xf32>
    %466 = vector.extract_strided_slice %116 {offsets = [0, 0, 6, 1], sizes = [1, 1, 16, 16], strides = [1, 1, 1, 1]} : vector<1x1x22x22xf32> to vector<1x1x16x16xf32>
    %467 = vector.broadcast %57 : f32 to vector<1x1x16x16xf32>
    %468 = arith.mulf %467, %466 : vector<1x1x16x16xf32>
    %469 = vector.extract_strided_slice %120 {offsets = [0, 0, 6, 1], sizes = [1, 1, 16, 16], strides = [1, 1, 1, 1]} : vector<1x1x22x22xf32> to vector<1x1x16x16xf32>
    %470 = vector.broadcast %106 : f32 to vector<1x1x16x16xf32>
    %471 = arith.mulf %470, %469 : vector<1x1x16x16xf32>
    %472 = arith.addf %468, %471 : vector<1x1x16x16xf32>
    %473 = arith.addf %465, %472 : vector<1x1x16x16xf32>
    %474 = vector.extract_strided_slice %116 {offsets = [0, 0, 6, 2], sizes = [1, 1, 16, 16], strides = [1, 1, 1, 1]} : vector<1x1x22x22xf32> to vector<1x1x16x16xf32>
    %475 = vector.broadcast %58 : f32 to vector<1x1x16x16xf32>
    %476 = arith.mulf %475, %474 : vector<1x1x16x16xf32>
    %477 = vector.extract_strided_slice %120 {offsets = [0, 0, 6, 2], sizes = [1, 1, 16, 16], strides = [1, 1, 1, 1]} : vector<1x1x22x22xf32> to vector<1x1x16x16xf32>
    %478 = vector.broadcast %107 : f32 to vector<1x1x16x16xf32>
    %479 = arith.mulf %478, %477 : vector<1x1x16x16xf32>
    %480 = arith.addf %476, %479 : vector<1x1x16x16xf32>
    %481 = arith.addf %473, %480 : vector<1x1x16x16xf32>
    %482 = vector.extract_strided_slice %116 {offsets = [0, 0, 6, 3], sizes = [1, 1, 16, 16], strides = [1, 1, 1, 1]} : vector<1x1x22x22xf32> to vector<1x1x16x16xf32>
    %483 = vector.broadcast %59 : f32 to vector<1x1x16x16xf32>
    %484 = arith.mulf %483, %482 : vector<1x1x16x16xf32>
    %485 = vector.extract_strided_slice %120 {offsets = [0, 0, 6, 3], sizes = [1, 1, 16, 16], strides = [1, 1, 1, 1]} : vector<1x1x22x22xf32> to vector<1x1x16x16xf32>
    %486 = vector.broadcast %108 : f32 to vector<1x1x16x16xf32>
    %487 = arith.mulf %486, %485 : vector<1x1x16x16xf32>
    %488 = arith.addf %484, %487 : vector<1x1x16x16xf32>
    %489 = arith.addf %481, %488 : vector<1x1x16x16xf32>
    %490 = vector.extract_strided_slice %116 {offsets = [0, 0, 6, 4], sizes = [1, 1, 16, 16], strides = [1, 1, 1, 1]} : vector<1x1x22x22xf32> to vector<1x1x16x16xf32>
    %491 = vector.broadcast %60 : f32 to vector<1x1x16x16xf32>
    %492 = arith.mulf %491, %490 : vector<1x1x16x16xf32>
    %493 = vector.extract_strided_slice %120 {offsets = [0, 0, 6, 4], sizes = [1, 1, 16, 16], strides = [1, 1, 1, 1]} : vector<1x1x22x22xf32> to vector<1x1x16x16xf32>
    %494 = vector.broadcast %109 : f32 to vector<1x1x16x16xf32>
    %495 = arith.mulf %494, %493 : vector<1x1x16x16xf32>
    %496 = arith.addf %492, %495 : vector<1x1x16x16xf32>
    %497 = arith.addf %489, %496 : vector<1x1x16x16xf32>
    %498 = vector.extract_strided_slice %116 {offsets = [0, 0, 6, 5], sizes = [1, 1, 16, 16], strides = [1, 1, 1, 1]} : vector<1x1x22x22xf32> to vector<1x1x16x16xf32>
    %499 = vector.broadcast %61 : f32 to vector<1x1x16x16xf32>
    %500 = arith.mulf %499, %498 : vector<1x1x16x16xf32>
    %501 = vector.extract_strided_slice %120 {offsets = [0, 0, 6, 5], sizes = [1, 1, 16, 16], strides = [1, 1, 1, 1]} : vector<1x1x22x22xf32> to vector<1x1x16x16xf32>
    %502 = vector.broadcast %110 : f32 to vector<1x1x16x16xf32>
    %503 = arith.mulf %502, %501 : vector<1x1x16x16xf32>
    %504 = arith.addf %500, %503 : vector<1x1x16x16xf32>
    %505 = arith.addf %497, %504 : vector<1x1x16x16xf32>
    %506 = vector.extract_strided_slice %116 {offsets = [0, 0, 6, 6], sizes = [1, 1, 16, 16], strides = [1, 1, 1, 1]} : vector<1x1x22x22xf32> to vector<1x1x16x16xf32>
    %507 = vector.broadcast %62 : f32 to vector<1x1x16x16xf32>
    %508 = arith.mulf %507, %506 : vector<1x1x16x16xf32>
    %509 = vector.extract_strided_slice %120 {offsets = [0, 0, 6, 6], sizes = [1, 1, 16, 16], strides = [1, 1, 1, 1]} : vector<1x1x22x22xf32> to vector<1x1x16x16xf32>
    %510 = vector.broadcast %111 : f32 to vector<1x1x16x16xf32>
    %511 = arith.mulf %510, %509 : vector<1x1x16x16xf32>
    %512 = arith.addf %508, %511 : vector<1x1x16x16xf32>
    %513 = arith.addf %505, %512 : vector<1x1x16x16xf32>
    %514 = vector.broadcast %112 : f32 to vector<1x1x16x16xf32>
    %515 = arith.addf %513, %514 : vector<1x1x16x16xf32>
    %516 = arith.negf %515 : vector<1x1x16x16xf32>
    %517 = math.exp %516 : vector<1x1x16x16xf32>
    %cst_108 = arith.constant 1.000000e+00 : f32
    %518 = vector.broadcast %cst_108 : f32 to vector<1x1x16x16xf32>
    %519 = arith.addf %518, %517 : vector<1x1x16x16xf32>
    %520 = arith.divf %518, %519 : vector<1x1x16x16xf32>
    %cst_109 = arith.constant dense<0xFF800000> : vector<1x4x16xf32>
    %521 = vector.multi_reduction <maximumf>, %0, %cst_109 [2] : vector<1x4x16x16xf32> to vector<1x4x16xf32>
    %522 = vector.shape_cast %521 : vector<1x4x16xf32> to vector<1x4x1x16xf32>
    %cst_110 = arith.constant dense<0.000000e+00> : vector<1x4x16xf32>
    %523 = vector.multi_reduction <add>, %0, %cst_110 [2] : vector<1x4x16x16xf32> to vector<1x4x16xf32>
    %524 = vector.shape_cast %523 : vector<1x4x16xf32> to vector<1x4x1x16xf32>
    %cst_111 = arith.constant 1.600000e+01 : f32
    %525 = vector.broadcast %cst_111 : f32 to vector<1x4x1x16xf32>
    %526 = arith.divf %524, %525 : vector<1x4x1x16xf32>
    %c1_112 = arith.constant 1 : index
    %c0_113 = arith.constant 0 : index
    %527 = memref.load %arg1[%c1_112, %c0_113] : memref<3x99xf32, #tpu.memory_space<smem>>
    %c1_114 = arith.constant 1 : index
    %c1_115 = arith.constant 1 : index
    %528 = memref.load %arg1[%c1_114, %c1_115] : memref<3x99xf32, #tpu.memory_space<smem>>
    %c1_116 = arith.constant 1 : index
    %c2_117 = arith.constant 2 : index
    %529 = memref.load %arg1[%c1_116, %c2_117] : memref<3x99xf32, #tpu.memory_space<smem>>
    %c1_118 = arith.constant 1 : index
    %c3_119 = arith.constant 3 : index
    %530 = memref.load %arg1[%c1_118, %c3_119] : memref<3x99xf32, #tpu.memory_space<smem>>
    %c1_120 = arith.constant 1 : index
    %c4_121 = arith.constant 4 : index
    %531 = memref.load %arg1[%c1_120, %c4_121] : memref<3x99xf32, #tpu.memory_space<smem>>
    %c1_122 = arith.constant 1 : index
    %c5_123 = arith.constant 5 : index
    %532 = memref.load %arg1[%c1_122, %c5_123] : memref<3x99xf32, #tpu.memory_space<smem>>
    %c1_124 = arith.constant 1 : index
    %c6_125 = arith.constant 6 : index
    %533 = memref.load %arg1[%c1_124, %c6_125] : memref<3x99xf32, #tpu.memory_space<smem>>
    %c1_126 = arith.constant 1 : index
    %c7_127 = arith.constant 7 : index
    %534 = memref.load %arg1[%c1_126, %c7_127] : memref<3x99xf32, #tpu.memory_space<smem>>
    %c1_128 = arith.constant 1 : index
    %c8_129 = arith.constant 8 : index
    %535 = memref.load %arg1[%c1_128, %c8_129] : memref<3x99xf32, #tpu.memory_space<smem>>
    %c1_130 = arith.constant 1 : index
    %c9_131 = arith.constant 9 : index
    %536 = memref.load %arg1[%c1_130, %c9_131] : memref<3x99xf32, #tpu.memory_space<smem>>
    %c1_132 = arith.constant 1 : index
    %c10_133 = arith.constant 10 : index
    %537 = memref.load %arg1[%c1_132, %c10_133] : memref<3x99xf32, #tpu.memory_space<smem>>
    %c1_134 = arith.constant 1 : index
    %c11_135 = arith.constant 11 : index
    %538 = memref.load %arg1[%c1_134, %c11_135] : memref<3x99xf32, #tpu.memory_space<smem>>
    %c1_136 = arith.constant 1 : index
    %c12_137 = arith.constant 12 : index
    %539 = memref.load %arg1[%c1_136, %c12_137] : memref<3x99xf32, #tpu.memory_space<smem>>
    %c1_138 = arith.constant 1 : index
    %c13_139 = arith.constant 13 : index
    %540 = memref.load %arg1[%c1_138, %c13_139] : memref<3x99xf32, #tpu.memory_space<smem>>
    %c1_140 = arith.constant 1 : index
    %c14_141 = arith.constant 14 : index
    %541 = memref.load %arg1[%c1_140, %c14_141] : memref<3x99xf32, #tpu.memory_space<smem>>
    %c1_142 = arith.constant 1 : index
    %c15_143 = arith.constant 15 : index
    %542 = memref.load %arg1[%c1_142, %c15_143] : memref<3x99xf32, #tpu.memory_space<smem>>
    %c1_144 = arith.constant 1 : index
    %c16_145 = arith.constant 16 : index
    %543 = memref.load %arg1[%c1_144, %c16_145] : memref<3x99xf32, #tpu.memory_space<smem>>
    %c1_146 = arith.constant 1 : index
    %c17_147 = arith.constant 17 : index
    %544 = memref.load %arg1[%c1_146, %c17_147] : memref<3x99xf32, #tpu.memory_space<smem>>
    %c1_148 = arith.constant 1 : index
    %c18_149 = arith.constant 18 : index
    %545 = memref.load %arg1[%c1_148, %c18_149] : memref<3x99xf32, #tpu.memory_space<smem>>
    %c1_150 = arith.constant 1 : index
    %c19_151 = arith.constant 19 : index
    %546 = memref.load %arg1[%c1_150, %c19_151] : memref<3x99xf32, #tpu.memory_space<smem>>
    %c1_152 = arith.constant 1 : index
    %c20_153 = arith.constant 20 : index
    %547 = memref.load %arg1[%c1_152, %c20_153] : memref<3x99xf32, #tpu.memory_space<smem>>
    %c1_154 = arith.constant 1 : index
    %c21_155 = arith.constant 21 : index
    %548 = memref.load %arg1[%c1_154, %c21_155] : memref<3x99xf32, #tpu.memory_space<smem>>
    %c1_156 = arith.constant 1 : index
    %c22_157 = arith.constant 22 : index
    %549 = memref.load %arg1[%c1_156, %c22_157] : memref<3x99xf32, #tpu.memory_space<smem>>
    %c1_158 = arith.constant 1 : index
    %c23_159 = arith.constant 23 : index
    %550 = memref.load %arg1[%c1_158, %c23_159] : memref<3x99xf32, #tpu.memory_space<smem>>
    %c1_160 = arith.constant 1 : index
    %c24_161 = arith.constant 24 : index
    %551 = memref.load %arg1[%c1_160, %c24_161] : memref<3x99xf32, #tpu.memory_space<smem>>
    %c1_162 = arith.constant 1 : index
    %c25_163 = arith.constant 25 : index
    %552 = memref.load %arg1[%c1_162, %c25_163] : memref<3x99xf32, #tpu.memory_space<smem>>
    %c1_164 = arith.constant 1 : index
    %c26_165 = arith.constant 26 : index
    %553 = memref.load %arg1[%c1_164, %c26_165] : memref<3x99xf32, #tpu.memory_space<smem>>
    %c1_166 = arith.constant 1 : index
    %c27_167 = arith.constant 27 : index
    %554 = memref.load %arg1[%c1_166, %c27_167] : memref<3x99xf32, #tpu.memory_space<smem>>
    %c1_168 = arith.constant 1 : index
    %c28_169 = arith.constant 28 : index
    %555 = memref.load %arg1[%c1_168, %c28_169] : memref<3x99xf32, #tpu.memory_space<smem>>
    %c1_170 = arith.constant 1 : index
    %c29_171 = arith.constant 29 : index
    %556 = memref.load %arg1[%c1_170, %c29_171] : memref<3x99xf32, #tpu.memory_space<smem>>
    %c1_172 = arith.constant 1 : index
    %c30_173 = arith.constant 30 : index
    %557 = memref.load %arg1[%c1_172, %c30_173] : memref<3x99xf32, #tpu.memory_space<smem>>
    %c1_174 = arith.constant 1 : index
    %c31_175 = arith.constant 31 : index
    %558 = memref.load %arg1[%c1_174, %c31_175] : memref<3x99xf32, #tpu.memory_space<smem>>
    %c1_176 = arith.constant 1 : index
    %c32_177 = arith.constant 32 : index
    %559 = memref.load %arg1[%c1_176, %c32_177] : memref<3x99xf32, #tpu.memory_space<smem>>
    %c1_178 = arith.constant 1 : index
    %c33_179 = arith.constant 33 : index
    %560 = memref.load %arg1[%c1_178, %c33_179] : memref<3x99xf32, #tpu.memory_space<smem>>
    %c1_180 = arith.constant 1 : index
    %c34_181 = arith.constant 34 : index
    %561 = memref.load %arg1[%c1_180, %c34_181] : memref<3x99xf32, #tpu.memory_space<smem>>
    %c1_182 = arith.constant 1 : index
    %c35_183 = arith.constant 35 : index
    %562 = memref.load %arg1[%c1_182, %c35_183] : memref<3x99xf32, #tpu.memory_space<smem>>
    %c1_184 = arith.constant 1 : index
    %c36_185 = arith.constant 36 : index
    %563 = memref.load %arg1[%c1_184, %c36_185] : memref<3x99xf32, #tpu.memory_space<smem>>
    %c1_186 = arith.constant 1 : index
    %c37_187 = arith.constant 37 : index
    %564 = memref.load %arg1[%c1_186, %c37_187] : memref<3x99xf32, #tpu.memory_space<smem>>
    %c1_188 = arith.constant 1 : index
    %c38_189 = arith.constant 38 : index
    %565 = memref.load %arg1[%c1_188, %c38_189] : memref<3x99xf32, #tpu.memory_space<smem>>
    %c1_190 = arith.constant 1 : index
    %c39_191 = arith.constant 39 : index
    %566 = memref.load %arg1[%c1_190, %c39_191] : memref<3x99xf32, #tpu.memory_space<smem>>
    %c1_192 = arith.constant 1 : index
    %c40_193 = arith.constant 40 : index
    %567 = memref.load %arg1[%c1_192, %c40_193] : memref<3x99xf32, #tpu.memory_space<smem>>
    %c1_194 = arith.constant 1 : index
    %c41_195 = arith.constant 41 : index
    %568 = memref.load %arg1[%c1_194, %c41_195] : memref<3x99xf32, #tpu.memory_space<smem>>
    %c1_196 = arith.constant 1 : index
    %c42_197 = arith.constant 42 : index
    %569 = memref.load %arg1[%c1_196, %c42_197] : memref<3x99xf32, #tpu.memory_space<smem>>
    %c1_198 = arith.constant 1 : index
    %c43_199 = arith.constant 43 : index
    %570 = memref.load %arg1[%c1_198, %c43_199] : memref<3x99xf32, #tpu.memory_space<smem>>
    %c1_200 = arith.constant 1 : index
    %c44_201 = arith.constant 44 : index
    %571 = memref.load %arg1[%c1_200, %c44_201] : memref<3x99xf32, #tpu.memory_space<smem>>
    %c1_202 = arith.constant 1 : index
    %c45_203 = arith.constant 45 : index
    %572 = memref.load %arg1[%c1_202, %c45_203] : memref<3x99xf32, #tpu.memory_space<smem>>
    %c1_204 = arith.constant 1 : index
    %c46_205 = arith.constant 46 : index
    %573 = memref.load %arg1[%c1_204, %c46_205] : memref<3x99xf32, #tpu.memory_space<smem>>
    %c1_206 = arith.constant 1 : index
    %c47_207 = arith.constant 47 : index
    %574 = memref.load %arg1[%c1_206, %c47_207] : memref<3x99xf32, #tpu.memory_space<smem>>
    %c1_208 = arith.constant 1 : index
    %c48_209 = arith.constant 48 : index
    %575 = memref.load %arg1[%c1_208, %c48_209] : memref<3x99xf32, #tpu.memory_space<smem>>
    %c1_210 = arith.constant 1 : index
    %c49_211 = arith.constant 49 : index
    %576 = memref.load %arg1[%c1_210, %c49_211] : memref<3x99xf32, #tpu.memory_space<smem>>
    %c1_212 = arith.constant 1 : index
    %c50_213 = arith.constant 50 : index
    %577 = memref.load %arg1[%c1_212, %c50_213] : memref<3x99xf32, #tpu.memory_space<smem>>
    %c1_214 = arith.constant 1 : index
    %c51_215 = arith.constant 51 : index
    %578 = memref.load %arg1[%c1_214, %c51_215] : memref<3x99xf32, #tpu.memory_space<smem>>
    %c1_216 = arith.constant 1 : index
    %c52_217 = arith.constant 52 : index
    %579 = memref.load %arg1[%c1_216, %c52_217] : memref<3x99xf32, #tpu.memory_space<smem>>
    %c1_218 = arith.constant 1 : index
    %c53_219 = arith.constant 53 : index
    %580 = memref.load %arg1[%c1_218, %c53_219] : memref<3x99xf32, #tpu.memory_space<smem>>
    %c1_220 = arith.constant 1 : index
    %c54_221 = arith.constant 54 : index
    %581 = memref.load %arg1[%c1_220, %c54_221] : memref<3x99xf32, #tpu.memory_space<smem>>
    %c1_222 = arith.constant 1 : index
    %c55_223 = arith.constant 55 : index
    %582 = memref.load %arg1[%c1_222, %c55_223] : memref<3x99xf32, #tpu.memory_space<smem>>
    %c1_224 = arith.constant 1 : index
    %c56_225 = arith.constant 56 : index
    %583 = memref.load %arg1[%c1_224, %c56_225] : memref<3x99xf32, #tpu.memory_space<smem>>
    %c1_226 = arith.constant 1 : index
    %c57_227 = arith.constant 57 : index
    %584 = memref.load %arg1[%c1_226, %c57_227] : memref<3x99xf32, #tpu.memory_space<smem>>
    %c1_228 = arith.constant 1 : index
    %c58_229 = arith.constant 58 : index
    %585 = memref.load %arg1[%c1_228, %c58_229] : memref<3x99xf32, #tpu.memory_space<smem>>
    %c1_230 = arith.constant 1 : index
    %c59_231 = arith.constant 59 : index
    %586 = memref.load %arg1[%c1_230, %c59_231] : memref<3x99xf32, #tpu.memory_space<smem>>
    %c1_232 = arith.constant 1 : index
    %c60_233 = arith.constant 60 : index
    %587 = memref.load %arg1[%c1_232, %c60_233] : memref<3x99xf32, #tpu.memory_space<smem>>
    %c1_234 = arith.constant 1 : index
    %c61_235 = arith.constant 61 : index
    %588 = memref.load %arg1[%c1_234, %c61_235] : memref<3x99xf32, #tpu.memory_space<smem>>
    %c1_236 = arith.constant 1 : index
    %c62_237 = arith.constant 62 : index
    %589 = memref.load %arg1[%c1_236, %c62_237] : memref<3x99xf32, #tpu.memory_space<smem>>
    %c1_238 = arith.constant 1 : index
    %c63_239 = arith.constant 63 : index
    %590 = memref.load %arg1[%c1_238, %c63_239] : memref<3x99xf32, #tpu.memory_space<smem>>
    %c1_240 = arith.constant 1 : index
    %c64_241 = arith.constant 64 : index
    %591 = memref.load %arg1[%c1_240, %c64_241] : memref<3x99xf32, #tpu.memory_space<smem>>
    %c1_242 = arith.constant 1 : index
    %c65_243 = arith.constant 65 : index
    %592 = memref.load %arg1[%c1_242, %c65_243] : memref<3x99xf32, #tpu.memory_space<smem>>
    %c1_244 = arith.constant 1 : index
    %c66_245 = arith.constant 66 : index
    %593 = memref.load %arg1[%c1_244, %c66_245] : memref<3x99xf32, #tpu.memory_space<smem>>
    %c1_246 = arith.constant 1 : index
    %c67_247 = arith.constant 67 : index
    %594 = memref.load %arg1[%c1_246, %c67_247] : memref<3x99xf32, #tpu.memory_space<smem>>
    %c1_248 = arith.constant 1 : index
    %c68_249 = arith.constant 68 : index
    %595 = memref.load %arg1[%c1_248, %c68_249] : memref<3x99xf32, #tpu.memory_space<smem>>
    %c1_250 = arith.constant 1 : index
    %c69_251 = arith.constant 69 : index
    %596 = memref.load %arg1[%c1_250, %c69_251] : memref<3x99xf32, #tpu.memory_space<smem>>
    %c1_252 = arith.constant 1 : index
    %c70_253 = arith.constant 70 : index
    %597 = memref.load %arg1[%c1_252, %c70_253] : memref<3x99xf32, #tpu.memory_space<smem>>
    %c1_254 = arith.constant 1 : index
    %c71_255 = arith.constant 71 : index
    %598 = memref.load %arg1[%c1_254, %c71_255] : memref<3x99xf32, #tpu.memory_space<smem>>
    %c1_256 = arith.constant 1 : index
    %c72_257 = arith.constant 72 : index
    %599 = memref.load %arg1[%c1_256, %c72_257] : memref<3x99xf32, #tpu.memory_space<smem>>
    %c1_258 = arith.constant 1 : index
    %c73_259 = arith.constant 73 : index
    %600 = memref.load %arg1[%c1_258, %c73_259] : memref<3x99xf32, #tpu.memory_space<smem>>
    %c1_260 = arith.constant 1 : index
    %c74_261 = arith.constant 74 : index
    %601 = memref.load %arg1[%c1_260, %c74_261] : memref<3x99xf32, #tpu.memory_space<smem>>
    %c1_262 = arith.constant 1 : index
    %c75_263 = arith.constant 75 : index
    %602 = memref.load %arg1[%c1_262, %c75_263] : memref<3x99xf32, #tpu.memory_space<smem>>
    %c1_264 = arith.constant 1 : index
    %c76_265 = arith.constant 76 : index
    %603 = memref.load %arg1[%c1_264, %c76_265] : memref<3x99xf32, #tpu.memory_space<smem>>
    %c1_266 = arith.constant 1 : index
    %c77_267 = arith.constant 77 : index
    %604 = memref.load %arg1[%c1_266, %c77_267] : memref<3x99xf32, #tpu.memory_space<smem>>
    %c1_268 = arith.constant 1 : index
    %c78_269 = arith.constant 78 : index
    %605 = memref.load %arg1[%c1_268, %c78_269] : memref<3x99xf32, #tpu.memory_space<smem>>
    %c1_270 = arith.constant 1 : index
    %c79_271 = arith.constant 79 : index
    %606 = memref.load %arg1[%c1_270, %c79_271] : memref<3x99xf32, #tpu.memory_space<smem>>
    %c1_272 = arith.constant 1 : index
    %c80_273 = arith.constant 80 : index
    %607 = memref.load %arg1[%c1_272, %c80_273] : memref<3x99xf32, #tpu.memory_space<smem>>
    %c1_274 = arith.constant 1 : index
    %c81_275 = arith.constant 81 : index
    %608 = memref.load %arg1[%c1_274, %c81_275] : memref<3x99xf32, #tpu.memory_space<smem>>
    %c1_276 = arith.constant 1 : index
    %c82_277 = arith.constant 82 : index
    %609 = memref.load %arg1[%c1_276, %c82_277] : memref<3x99xf32, #tpu.memory_space<smem>>
    %c1_278 = arith.constant 1 : index
    %c83_279 = arith.constant 83 : index
    %610 = memref.load %arg1[%c1_278, %c83_279] : memref<3x99xf32, #tpu.memory_space<smem>>
    %c1_280 = arith.constant 1 : index
    %c84_281 = arith.constant 84 : index
    %611 = memref.load %arg1[%c1_280, %c84_281] : memref<3x99xf32, #tpu.memory_space<smem>>
    %c1_282 = arith.constant 1 : index
    %c85_283 = arith.constant 85 : index
    %612 = memref.load %arg1[%c1_282, %c85_283] : memref<3x99xf32, #tpu.memory_space<smem>>
    %c1_284 = arith.constant 1 : index
    %c86_285 = arith.constant 86 : index
    %613 = memref.load %arg1[%c1_284, %c86_285] : memref<3x99xf32, #tpu.memory_space<smem>>
    %c1_286 = arith.constant 1 : index
    %c87_287 = arith.constant 87 : index
    %614 = memref.load %arg1[%c1_286, %c87_287] : memref<3x99xf32, #tpu.memory_space<smem>>
    %c1_288 = arith.constant 1 : index
    %c88_289 = arith.constant 88 : index
    %615 = memref.load %arg1[%c1_288, %c88_289] : memref<3x99xf32, #tpu.memory_space<smem>>
    %c1_290 = arith.constant 1 : index
    %c89_291 = arith.constant 89 : index
    %616 = memref.load %arg1[%c1_290, %c89_291] : memref<3x99xf32, #tpu.memory_space<smem>>
    %c1_292 = arith.constant 1 : index
    %c90_293 = arith.constant 90 : index
    %617 = memref.load %arg1[%c1_292, %c90_293] : memref<3x99xf32, #tpu.memory_space<smem>>
    %c1_294 = arith.constant 1 : index
    %c91_295 = arith.constant 91 : index
    %618 = memref.load %arg1[%c1_294, %c91_295] : memref<3x99xf32, #tpu.memory_space<smem>>
    %c1_296 = arith.constant 1 : index
    %c92_297 = arith.constant 92 : index
    %619 = memref.load %arg1[%c1_296, %c92_297] : memref<3x99xf32, #tpu.memory_space<smem>>
    %c1_298 = arith.constant 1 : index
    %c93_299 = arith.constant 93 : index
    %620 = memref.load %arg1[%c1_298, %c93_299] : memref<3x99xf32, #tpu.memory_space<smem>>
    %c1_300 = arith.constant 1 : index
    %c94_301 = arith.constant 94 : index
    %621 = memref.load %arg1[%c1_300, %c94_301] : memref<3x99xf32, #tpu.memory_space<smem>>
    %c1_302 = arith.constant 1 : index
    %c95_303 = arith.constant 95 : index
    %622 = memref.load %arg1[%c1_302, %c95_303] : memref<3x99xf32, #tpu.memory_space<smem>>
    %c1_304 = arith.constant 1 : index
    %c96_305 = arith.constant 96 : index
    %623 = memref.load %arg1[%c1_304, %c96_305] : memref<3x99xf32, #tpu.memory_space<smem>>
    %c1_306 = arith.constant 1 : index
    %c97_307 = arith.constant 97 : index
    %624 = memref.load %arg1[%c1_306, %c97_307] : memref<3x99xf32, #tpu.memory_space<smem>>
    %c1_308 = arith.constant 1 : index
    %c98_309 = arith.constant 98 : index
    %625 = memref.load %arg1[%c1_308, %c98_309] : memref<3x99xf32, #tpu.memory_space<smem>>
    %cst_310 = arith.constant 0.000000e+00 : f32
    %626 = vector.broadcast %cst_310 : f32 to vector<1x3x1x16xf32>
    %627 = tpu.concatenate %626, %522, %626 in 1 : vector<1x3x1x16xf32>, vector<1x4x1x16xf32>, vector<1x3x1x16xf32> -> vector<1x10x1x16xf32>
    %cst_311 = arith.constant 0.000000e+00 : f32
    %628 = vector.broadcast %cst_311 : f32 to vector<1x10x1x3xf32>
    %629 = tpu.concatenate %628, %627, %628 in 3 : vector<1x10x1x3xf32>, vector<1x10x1x16xf32>, vector<1x10x1x3xf32> -> vector<1x10x1x22xf32>
    %cst_312 = arith.constant 0.000000e+00 : f32
    %630 = vector.broadcast %cst_312 : f32 to vector<1x3x1x16xf32>
    %631 = tpu.concatenate %630, %526, %630 in 1 : vector<1x3x1x16xf32>, vector<1x4x1x16xf32>, vector<1x3x1x16xf32> -> vector<1x10x1x16xf32>
    %cst_313 = arith.constant 0.000000e+00 : f32
    %632 = vector.broadcast %cst_313 : f32 to vector<1x10x1x3xf32>
    %633 = tpu.concatenate %632, %631, %632 in 3 : vector<1x10x1x3xf32>, vector<1x10x1x16xf32>, vector<1x10x1x3xf32> -> vector<1x10x1x22xf32>
    %cst_314 = arith.constant 0.000000e+00 : f32
    %634 = vector.broadcast %cst_314 : f32 to vector<1x4x1x16xf32>
    %635 = vector.extract_strided_slice %629 {offsets = [0, 0, 0, 0], sizes = [1, 4, 1, 16], strides = [1, 1, 1, 1]} : vector<1x10x1x22xf32> to vector<1x4x1x16xf32>
    %636 = vector.broadcast %527 : f32 to vector<1x4x1x16xf32>
    %637 = arith.mulf %636, %635 : vector<1x4x1x16xf32>
    %638 = vector.extract_strided_slice %633 {offsets = [0, 0, 0, 0], sizes = [1, 4, 1, 16], strides = [1, 1, 1, 1]} : vector<1x10x1x22xf32> to vector<1x4x1x16xf32>
    %639 = vector.broadcast %576 : f32 to vector<1x4x1x16xf32>
    %640 = arith.mulf %639, %638 : vector<1x4x1x16xf32>
    %641 = arith.addf %637, %640 : vector<1x4x1x16xf32>
    %642 = arith.addf %634, %641 : vector<1x4x1x16xf32>
    %643 = vector.extract_strided_slice %629 {offsets = [0, 0, 0, 1], sizes = [1, 4, 1, 16], strides = [1, 1, 1, 1]} : vector<1x10x1x22xf32> to vector<1x4x1x16xf32>
    %644 = vector.broadcast %528 : f32 to vector<1x4x1x16xf32>
    %645 = arith.mulf %644, %643 : vector<1x4x1x16xf32>
    %646 = vector.extract_strided_slice %633 {offsets = [0, 0, 0, 1], sizes = [1, 4, 1, 16], strides = [1, 1, 1, 1]} : vector<1x10x1x22xf32> to vector<1x4x1x16xf32>
    %647 = vector.broadcast %577 : f32 to vector<1x4x1x16xf32>
    %648 = arith.mulf %647, %646 : vector<1x4x1x16xf32>
    %649 = arith.addf %645, %648 : vector<1x4x1x16xf32>
    %650 = arith.addf %642, %649 : vector<1x4x1x16xf32>
    %651 = vector.extract_strided_slice %629 {offsets = [0, 0, 0, 2], sizes = [1, 4, 1, 16], strides = [1, 1, 1, 1]} : vector<1x10x1x22xf32> to vector<1x4x1x16xf32>
    %652 = vector.broadcast %529 : f32 to vector<1x4x1x16xf32>
    %653 = arith.mulf %652, %651 : vector<1x4x1x16xf32>
    %654 = vector.extract_strided_slice %633 {offsets = [0, 0, 0, 2], sizes = [1, 4, 1, 16], strides = [1, 1, 1, 1]} : vector<1x10x1x22xf32> to vector<1x4x1x16xf32>
    %655 = vector.broadcast %578 : f32 to vector<1x4x1x16xf32>
    %656 = arith.mulf %655, %654 : vector<1x4x1x16xf32>
    %657 = arith.addf %653, %656 : vector<1x4x1x16xf32>
    %658 = arith.addf %650, %657 : vector<1x4x1x16xf32>
    %659 = vector.extract_strided_slice %629 {offsets = [0, 0, 0, 3], sizes = [1, 4, 1, 16], strides = [1, 1, 1, 1]} : vector<1x10x1x22xf32> to vector<1x4x1x16xf32>
    %660 = vector.broadcast %530 : f32 to vector<1x4x1x16xf32>
    %661 = arith.mulf %660, %659 : vector<1x4x1x16xf32>
    %662 = vector.extract_strided_slice %633 {offsets = [0, 0, 0, 3], sizes = [1, 4, 1, 16], strides = [1, 1, 1, 1]} : vector<1x10x1x22xf32> to vector<1x4x1x16xf32>
    %663 = vector.broadcast %579 : f32 to vector<1x4x1x16xf32>
    %664 = arith.mulf %663, %662 : vector<1x4x1x16xf32>
    %665 = arith.addf %661, %664 : vector<1x4x1x16xf32>
    %666 = arith.addf %658, %665 : vector<1x4x1x16xf32>
    %667 = vector.extract_strided_slice %629 {offsets = [0, 0, 0, 4], sizes = [1, 4, 1, 16], strides = [1, 1, 1, 1]} : vector<1x10x1x22xf32> to vector<1x4x1x16xf32>
    %668 = vector.broadcast %531 : f32 to vector<1x4x1x16xf32>
    %669 = arith.mulf %668, %667 : vector<1x4x1x16xf32>
    %670 = vector.extract_strided_slice %633 {offsets = [0, 0, 0, 4], sizes = [1, 4, 1, 16], strides = [1, 1, 1, 1]} : vector<1x10x1x22xf32> to vector<1x4x1x16xf32>
    %671 = vector.broadcast %580 : f32 to vector<1x4x1x16xf32>
    %672 = arith.mulf %671, %670 : vector<1x4x1x16xf32>
    %673 = arith.addf %669, %672 : vector<1x4x1x16xf32>
    %674 = arith.addf %666, %673 : vector<1x4x1x16xf32>
    %675 = vector.extract_strided_slice %629 {offsets = [0, 0, 0, 5], sizes = [1, 4, 1, 16], strides = [1, 1, 1, 1]} : vector<1x10x1x22xf32> to vector<1x4x1x16xf32>
    %676 = vector.broadcast %532 : f32 to vector<1x4x1x16xf32>
    %677 = arith.mulf %676, %675 : vector<1x4x1x16xf32>
    %678 = vector.extract_strided_slice %633 {offsets = [0, 0, 0, 5], sizes = [1, 4, 1, 16], strides = [1, 1, 1, 1]} : vector<1x10x1x22xf32> to vector<1x4x1x16xf32>
    %679 = vector.broadcast %581 : f32 to vector<1x4x1x16xf32>
    %680 = arith.mulf %679, %678 : vector<1x4x1x16xf32>
    %681 = arith.addf %677, %680 : vector<1x4x1x16xf32>
    %682 = arith.addf %674, %681 : vector<1x4x1x16xf32>
    %683 = vector.extract_strided_slice %629 {offsets = [0, 0, 0, 6], sizes = [1, 4, 1, 16], strides = [1, 1, 1, 1]} : vector<1x10x1x22xf32> to vector<1x4x1x16xf32>
    %684 = vector.broadcast %533 : f32 to vector<1x4x1x16xf32>
    %685 = arith.mulf %684, %683 : vector<1x4x1x16xf32>
    %686 = vector.extract_strided_slice %633 {offsets = [0, 0, 0, 6], sizes = [1, 4, 1, 16], strides = [1, 1, 1, 1]} : vector<1x10x1x22xf32> to vector<1x4x1x16xf32>
    %687 = vector.broadcast %582 : f32 to vector<1x4x1x16xf32>
    %688 = arith.mulf %687, %686 : vector<1x4x1x16xf32>
    %689 = arith.addf %685, %688 : vector<1x4x1x16xf32>
    %690 = arith.addf %682, %689 : vector<1x4x1x16xf32>
    %691 = vector.extract_strided_slice %629 {offsets = [0, 1, 0, 0], sizes = [1, 4, 1, 16], strides = [1, 1, 1, 1]} : vector<1x10x1x22xf32> to vector<1x4x1x16xf32>
    %692 = vector.broadcast %534 : f32 to vector<1x4x1x16xf32>
    %693 = arith.mulf %692, %691 : vector<1x4x1x16xf32>
    %694 = vector.extract_strided_slice %633 {offsets = [0, 1, 0, 0], sizes = [1, 4, 1, 16], strides = [1, 1, 1, 1]} : vector<1x10x1x22xf32> to vector<1x4x1x16xf32>
    %695 = vector.broadcast %583 : f32 to vector<1x4x1x16xf32>
    %696 = arith.mulf %695, %694 : vector<1x4x1x16xf32>
    %697 = arith.addf %693, %696 : vector<1x4x1x16xf32>
    %698 = arith.addf %690, %697 : vector<1x4x1x16xf32>
    %699 = vector.extract_strided_slice %629 {offsets = [0, 1, 0, 1], sizes = [1, 4, 1, 16], strides = [1, 1, 1, 1]} : vector<1x10x1x22xf32> to vector<1x4x1x16xf32>
    %700 = vector.broadcast %535 : f32 to vector<1x4x1x16xf32>
    %701 = arith.mulf %700, %699 : vector<1x4x1x16xf32>
    %702 = vector.extract_strided_slice %633 {offsets = [0, 1, 0, 1], sizes = [1, 4, 1, 16], strides = [1, 1, 1, 1]} : vector<1x10x1x22xf32> to vector<1x4x1x16xf32>
    %703 = vector.broadcast %584 : f32 to vector<1x4x1x16xf32>
    %704 = arith.mulf %703, %702 : vector<1x4x1x16xf32>
    %705 = arith.addf %701, %704 : vector<1x4x1x16xf32>
    %706 = arith.addf %698, %705 : vector<1x4x1x16xf32>
    %707 = vector.extract_strided_slice %629 {offsets = [0, 1, 0, 2], sizes = [1, 4, 1, 16], strides = [1, 1, 1, 1]} : vector<1x10x1x22xf32> to vector<1x4x1x16xf32>
    %708 = vector.broadcast %536 : f32 to vector<1x4x1x16xf32>
    %709 = arith.mulf %708, %707 : vector<1x4x1x16xf32>
    %710 = vector.extract_strided_slice %633 {offsets = [0, 1, 0, 2], sizes = [1, 4, 1, 16], strides = [1, 1, 1, 1]} : vector<1x10x1x22xf32> to vector<1x4x1x16xf32>
    %711 = vector.broadcast %585 : f32 to vector<1x4x1x16xf32>
    %712 = arith.mulf %711, %710 : vector<1x4x1x16xf32>
    %713 = arith.addf %709, %712 : vector<1x4x1x16xf32>
    %714 = arith.addf %706, %713 : vector<1x4x1x16xf32>
    %715 = vector.extract_strided_slice %629 {offsets = [0, 1, 0, 3], sizes = [1, 4, 1, 16], strides = [1, 1, 1, 1]} : vector<1x10x1x22xf32> to vector<1x4x1x16xf32>
    %716 = vector.broadcast %537 : f32 to vector<1x4x1x16xf32>
    %717 = arith.mulf %716, %715 : vector<1x4x1x16xf32>
    %718 = vector.extract_strided_slice %633 {offsets = [0, 1, 0, 3], sizes = [1, 4, 1, 16], strides = [1, 1, 1, 1]} : vector<1x10x1x22xf32> to vector<1x4x1x16xf32>
    %719 = vector.broadcast %586 : f32 to vector<1x4x1x16xf32>
    %720 = arith.mulf %719, %718 : vector<1x4x1x16xf32>
    %721 = arith.addf %717, %720 : vector<1x4x1x16xf32>
    %722 = arith.addf %714, %721 : vector<1x4x1x16xf32>
    %723 = vector.extract_strided_slice %629 {offsets = [0, 1, 0, 4], sizes = [1, 4, 1, 16], strides = [1, 1, 1, 1]} : vector<1x10x1x22xf32> to vector<1x4x1x16xf32>
    %724 = vector.broadcast %538 : f32 to vector<1x4x1x16xf32>
    %725 = arith.mulf %724, %723 : vector<1x4x1x16xf32>
    %726 = vector.extract_strided_slice %633 {offsets = [0, 1, 0, 4], sizes = [1, 4, 1, 16], strides = [1, 1, 1, 1]} : vector<1x10x1x22xf32> to vector<1x4x1x16xf32>
    %727 = vector.broadcast %587 : f32 to vector<1x4x1x16xf32>
    %728 = arith.mulf %727, %726 : vector<1x4x1x16xf32>
    %729 = arith.addf %725, %728 : vector<1x4x1x16xf32>
    %730 = arith.addf %722, %729 : vector<1x4x1x16xf32>
    %731 = vector.extract_strided_slice %629 {offsets = [0, 1, 0, 5], sizes = [1, 4, 1, 16], strides = [1, 1, 1, 1]} : vector<1x10x1x22xf32> to vector<1x4x1x16xf32>
    %732 = vector.broadcast %539 : f32 to vector<1x4x1x16xf32>
    %733 = arith.mulf %732, %731 : vector<1x4x1x16xf32>
    %734 = vector.extract_strided_slice %633 {offsets = [0, 1, 0, 5], sizes = [1, 4, 1, 16], strides = [1, 1, 1, 1]} : vector<1x10x1x22xf32> to vector<1x4x1x16xf32>
    %735 = vector.broadcast %588 : f32 to vector<1x4x1x16xf32>
    %736 = arith.mulf %735, %734 : vector<1x4x1x16xf32>
    %737 = arith.addf %733, %736 : vector<1x4x1x16xf32>
    %738 = arith.addf %730, %737 : vector<1x4x1x16xf32>
    %739 = vector.extract_strided_slice %629 {offsets = [0, 1, 0, 6], sizes = [1, 4, 1, 16], strides = [1, 1, 1, 1]} : vector<1x10x1x22xf32> to vector<1x4x1x16xf32>
    %740 = vector.broadcast %540 : f32 to vector<1x4x1x16xf32>
    %741 = arith.mulf %740, %739 : vector<1x4x1x16xf32>
    %742 = vector.extract_strided_slice %633 {offsets = [0, 1, 0, 6], sizes = [1, 4, 1, 16], strides = [1, 1, 1, 1]} : vector<1x10x1x22xf32> to vector<1x4x1x16xf32>
    %743 = vector.broadcast %589 : f32 to vector<1x4x1x16xf32>
    %744 = arith.mulf %743, %742 : vector<1x4x1x16xf32>
    %745 = arith.addf %741, %744 : vector<1x4x1x16xf32>
    %746 = arith.addf %738, %745 : vector<1x4x1x16xf32>
    %747 = vector.extract_strided_slice %629 {offsets = [0, 2, 0, 0], sizes = [1, 4, 1, 16], strides = [1, 1, 1, 1]} : vector<1x10x1x22xf32> to vector<1x4x1x16xf32>
    %748 = vector.broadcast %541 : f32 to vector<1x4x1x16xf32>
    %749 = arith.mulf %748, %747 : vector<1x4x1x16xf32>
    %750 = vector.extract_strided_slice %633 {offsets = [0, 2, 0, 0], sizes = [1, 4, 1, 16], strides = [1, 1, 1, 1]} : vector<1x10x1x22xf32> to vector<1x4x1x16xf32>
    %751 = vector.broadcast %590 : f32 to vector<1x4x1x16xf32>
    %752 = arith.mulf %751, %750 : vector<1x4x1x16xf32>
    %753 = arith.addf %749, %752 : vector<1x4x1x16xf32>
    %754 = arith.addf %746, %753 : vector<1x4x1x16xf32>
    %755 = vector.extract_strided_slice %629 {offsets = [0, 2, 0, 1], sizes = [1, 4, 1, 16], strides = [1, 1, 1, 1]} : vector<1x10x1x22xf32> to vector<1x4x1x16xf32>
    %756 = vector.broadcast %542 : f32 to vector<1x4x1x16xf32>
    %757 = arith.mulf %756, %755 : vector<1x4x1x16xf32>
    %758 = vector.extract_strided_slice %633 {offsets = [0, 2, 0, 1], sizes = [1, 4, 1, 16], strides = [1, 1, 1, 1]} : vector<1x10x1x22xf32> to vector<1x4x1x16xf32>
    %759 = vector.broadcast %591 : f32 to vector<1x4x1x16xf32>
    %760 = arith.mulf %759, %758 : vector<1x4x1x16xf32>
    %761 = arith.addf %757, %760 : vector<1x4x1x16xf32>
    %762 = arith.addf %754, %761 : vector<1x4x1x16xf32>
    %763 = vector.extract_strided_slice %629 {offsets = [0, 2, 0, 2], sizes = [1, 4, 1, 16], strides = [1, 1, 1, 1]} : vector<1x10x1x22xf32> to vector<1x4x1x16xf32>
    %764 = vector.broadcast %543 : f32 to vector<1x4x1x16xf32>
    %765 = arith.mulf %764, %763 : vector<1x4x1x16xf32>
    %766 = vector.extract_strided_slice %633 {offsets = [0, 2, 0, 2], sizes = [1, 4, 1, 16], strides = [1, 1, 1, 1]} : vector<1x10x1x22xf32> to vector<1x4x1x16xf32>
    %767 = vector.broadcast %592 : f32 to vector<1x4x1x16xf32>
    %768 = arith.mulf %767, %766 : vector<1x4x1x16xf32>
    %769 = arith.addf %765, %768 : vector<1x4x1x16xf32>
    %770 = arith.addf %762, %769 : vector<1x4x1x16xf32>
    %771 = vector.extract_strided_slice %629 {offsets = [0, 2, 0, 3], sizes = [1, 4, 1, 16], strides = [1, 1, 1, 1]} : vector<1x10x1x22xf32> to vector<1x4x1x16xf32>
    %772 = vector.broadcast %544 : f32 to vector<1x4x1x16xf32>
    %773 = arith.mulf %772, %771 : vector<1x4x1x16xf32>
    %774 = vector.extract_strided_slice %633 {offsets = [0, 2, 0, 3], sizes = [1, 4, 1, 16], strides = [1, 1, 1, 1]} : vector<1x10x1x22xf32> to vector<1x4x1x16xf32>
    %775 = vector.broadcast %593 : f32 to vector<1x4x1x16xf32>
    %776 = arith.mulf %775, %774 : vector<1x4x1x16xf32>
    %777 = arith.addf %773, %776 : vector<1x4x1x16xf32>
    %778 = arith.addf %770, %777 : vector<1x4x1x16xf32>
    %779 = vector.extract_strided_slice %629 {offsets = [0, 2, 0, 4], sizes = [1, 4, 1, 16], strides = [1, 1, 1, 1]} : vector<1x10x1x22xf32> to vector<1x4x1x16xf32>
    %780 = vector.broadcast %545 : f32 to vector<1x4x1x16xf32>
    %781 = arith.mulf %780, %779 : vector<1x4x1x16xf32>
    %782 = vector.extract_strided_slice %633 {offsets = [0, 2, 0, 4], sizes = [1, 4, 1, 16], strides = [1, 1, 1, 1]} : vector<1x10x1x22xf32> to vector<1x4x1x16xf32>
    %783 = vector.broadcast %594 : f32 to vector<1x4x1x16xf32>
    %784 = arith.mulf %783, %782 : vector<1x4x1x16xf32>
    %785 = arith.addf %781, %784 : vector<1x4x1x16xf32>
    %786 = arith.addf %778, %785 : vector<1x4x1x16xf32>
    %787 = vector.extract_strided_slice %629 {offsets = [0, 2, 0, 5], sizes = [1, 4, 1, 16], strides = [1, 1, 1, 1]} : vector<1x10x1x22xf32> to vector<1x4x1x16xf32>
    %788 = vector.broadcast %546 : f32 to vector<1x4x1x16xf32>
    %789 = arith.mulf %788, %787 : vector<1x4x1x16xf32>
    %790 = vector.extract_strided_slice %633 {offsets = [0, 2, 0, 5], sizes = [1, 4, 1, 16], strides = [1, 1, 1, 1]} : vector<1x10x1x22xf32> to vector<1x4x1x16xf32>
    %791 = vector.broadcast %595 : f32 to vector<1x4x1x16xf32>
    %792 = arith.mulf %791, %790 : vector<1x4x1x16xf32>
    %793 = arith.addf %789, %792 : vector<1x4x1x16xf32>
    %794 = arith.addf %786, %793 : vector<1x4x1x16xf32>
    %795 = vector.extract_strided_slice %629 {offsets = [0, 2, 0, 6], sizes = [1, 4, 1, 16], strides = [1, 1, 1, 1]} : vector<1x10x1x22xf32> to vector<1x4x1x16xf32>
    %796 = vector.broadcast %547 : f32 to vector<1x4x1x16xf32>
    %797 = arith.mulf %796, %795 : vector<1x4x1x16xf32>
    %798 = vector.extract_strided_slice %633 {offsets = [0, 2, 0, 6], sizes = [1, 4, 1, 16], strides = [1, 1, 1, 1]} : vector<1x10x1x22xf32> to vector<1x4x1x16xf32>
    %799 = vector.broadcast %596 : f32 to vector<1x4x1x16xf32>
    %800 = arith.mulf %799, %798 : vector<1x4x1x16xf32>
    %801 = arith.addf %797, %800 : vector<1x4x1x16xf32>
    %802 = arith.addf %794, %801 : vector<1x4x1x16xf32>
    %803 = vector.extract_strided_slice %629 {offsets = [0, 3, 0, 0], sizes = [1, 4, 1, 16], strides = [1, 1, 1, 1]} : vector<1x10x1x22xf32> to vector<1x4x1x16xf32>
    %804 = vector.broadcast %548 : f32 to vector<1x4x1x16xf32>
    %805 = arith.mulf %804, %803 : vector<1x4x1x16xf32>
    %806 = vector.extract_strided_slice %633 {offsets = [0, 3, 0, 0], sizes = [1, 4, 1, 16], strides = [1, 1, 1, 1]} : vector<1x10x1x22xf32> to vector<1x4x1x16xf32>
    %807 = vector.broadcast %597 : f32 to vector<1x4x1x16xf32>
    %808 = arith.mulf %807, %806 : vector<1x4x1x16xf32>
    %809 = arith.addf %805, %808 : vector<1x4x1x16xf32>
    %810 = arith.addf %802, %809 : vector<1x4x1x16xf32>
    %811 = vector.extract_strided_slice %629 {offsets = [0, 3, 0, 1], sizes = [1, 4, 1, 16], strides = [1, 1, 1, 1]} : vector<1x10x1x22xf32> to vector<1x4x1x16xf32>
    %812 = vector.broadcast %549 : f32 to vector<1x4x1x16xf32>
    %813 = arith.mulf %812, %811 : vector<1x4x1x16xf32>
    %814 = vector.extract_strided_slice %633 {offsets = [0, 3, 0, 1], sizes = [1, 4, 1, 16], strides = [1, 1, 1, 1]} : vector<1x10x1x22xf32> to vector<1x4x1x16xf32>
    %815 = vector.broadcast %598 : f32 to vector<1x4x1x16xf32>
    %816 = arith.mulf %815, %814 : vector<1x4x1x16xf32>
    %817 = arith.addf %813, %816 : vector<1x4x1x16xf32>
    %818 = arith.addf %810, %817 : vector<1x4x1x16xf32>
    %819 = vector.extract_strided_slice %629 {offsets = [0, 3, 0, 2], sizes = [1, 4, 1, 16], strides = [1, 1, 1, 1]} : vector<1x10x1x22xf32> to vector<1x4x1x16xf32>
    %820 = vector.broadcast %550 : f32 to vector<1x4x1x16xf32>
    %821 = arith.mulf %820, %819 : vector<1x4x1x16xf32>
    %822 = vector.extract_strided_slice %633 {offsets = [0, 3, 0, 2], sizes = [1, 4, 1, 16], strides = [1, 1, 1, 1]} : vector<1x10x1x22xf32> to vector<1x4x1x16xf32>
    %823 = vector.broadcast %599 : f32 to vector<1x4x1x16xf32>
    %824 = arith.mulf %823, %822 : vector<1x4x1x16xf32>
    %825 = arith.addf %821, %824 : vector<1x4x1x16xf32>
    %826 = arith.addf %818, %825 : vector<1x4x1x16xf32>
    %827 = vector.extract_strided_slice %629 {offsets = [0, 3, 0, 3], sizes = [1, 4, 1, 16], strides = [1, 1, 1, 1]} : vector<1x10x1x22xf32> to vector<1x4x1x16xf32>
    %828 = vector.broadcast %551 : f32 to vector<1x4x1x16xf32>
    %829 = arith.mulf %828, %827 : vector<1x4x1x16xf32>
    %830 = vector.extract_strided_slice %633 {offsets = [0, 3, 0, 3], sizes = [1, 4, 1, 16], strides = [1, 1, 1, 1]} : vector<1x10x1x22xf32> to vector<1x4x1x16xf32>
    %831 = vector.broadcast %600 : f32 to vector<1x4x1x16xf32>
    %832 = arith.mulf %831, %830 : vector<1x4x1x16xf32>
    %833 = arith.addf %829, %832 : vector<1x4x1x16xf32>
    %834 = arith.addf %826, %833 : vector<1x4x1x16xf32>
    %835 = vector.extract_strided_slice %629 {offsets = [0, 3, 0, 4], sizes = [1, 4, 1, 16], strides = [1, 1, 1, 1]} : vector<1x10x1x22xf32> to vector<1x4x1x16xf32>
    %836 = vector.broadcast %552 : f32 to vector<1x4x1x16xf32>
    %837 = arith.mulf %836, %835 : vector<1x4x1x16xf32>
    %838 = vector.extract_strided_slice %633 {offsets = [0, 3, 0, 4], sizes = [1, 4, 1, 16], strides = [1, 1, 1, 1]} : vector<1x10x1x22xf32> to vector<1x4x1x16xf32>
    %839 = vector.broadcast %601 : f32 to vector<1x4x1x16xf32>
    %840 = arith.mulf %839, %838 : vector<1x4x1x16xf32>
    %841 = arith.addf %837, %840 : vector<1x4x1x16xf32>
    %842 = arith.addf %834, %841 : vector<1x4x1x16xf32>
    %843 = vector.extract_strided_slice %629 {offsets = [0, 3, 0, 5], sizes = [1, 4, 1, 16], strides = [1, 1, 1, 1]} : vector<1x10x1x22xf32> to vector<1x4x1x16xf32>
    %844 = vector.broadcast %553 : f32 to vector<1x4x1x16xf32>
    %845 = arith.mulf %844, %843 : vector<1x4x1x16xf32>
    %846 = vector.extract_strided_slice %633 {offsets = [0, 3, 0, 5], sizes = [1, 4, 1, 16], strides = [1, 1, 1, 1]} : vector<1x10x1x22xf32> to vector<1x4x1x16xf32>
    %847 = vector.broadcast %602 : f32 to vector<1x4x1x16xf32>
    %848 = arith.mulf %847, %846 : vector<1x4x1x16xf32>
    %849 = arith.addf %845, %848 : vector<1x4x1x16xf32>
    %850 = arith.addf %842, %849 : vector<1x4x1x16xf32>
    %851 = vector.extract_strided_slice %629 {offsets = [0, 3, 0, 6], sizes = [1, 4, 1, 16], strides = [1, 1, 1, 1]} : vector<1x10x1x22xf32> to vector<1x4x1x16xf32>
    %852 = vector.broadcast %554 : f32 to vector<1x4x1x16xf32>
    %853 = arith.mulf %852, %851 : vector<1x4x1x16xf32>
    %854 = vector.extract_strided_slice %633 {offsets = [0, 3, 0, 6], sizes = [1, 4, 1, 16], strides = [1, 1, 1, 1]} : vector<1x10x1x22xf32> to vector<1x4x1x16xf32>
    %855 = vector.broadcast %603 : f32 to vector<1x4x1x16xf32>
    %856 = arith.mulf %855, %854 : vector<1x4x1x16xf32>
    %857 = arith.addf %853, %856 : vector<1x4x1x16xf32>
    %858 = arith.addf %850, %857 : vector<1x4x1x16xf32>
    %859 = vector.extract_strided_slice %629 {offsets = [0, 4, 0, 0], sizes = [1, 4, 1, 16], strides = [1, 1, 1, 1]} : vector<1x10x1x22xf32> to vector<1x4x1x16xf32>
    %860 = vector.broadcast %555 : f32 to vector<1x4x1x16xf32>
    %861 = arith.mulf %860, %859 : vector<1x4x1x16xf32>
    %862 = vector.extract_strided_slice %633 {offsets = [0, 4, 0, 0], sizes = [1, 4, 1, 16], strides = [1, 1, 1, 1]} : vector<1x10x1x22xf32> to vector<1x4x1x16xf32>
    %863 = vector.broadcast %604 : f32 to vector<1x4x1x16xf32>
    %864 = arith.mulf %863, %862 : vector<1x4x1x16xf32>
    %865 = arith.addf %861, %864 : vector<1x4x1x16xf32>
    %866 = arith.addf %858, %865 : vector<1x4x1x16xf32>
    %867 = vector.extract_strided_slice %629 {offsets = [0, 4, 0, 1], sizes = [1, 4, 1, 16], strides = [1, 1, 1, 1]} : vector<1x10x1x22xf32> to vector<1x4x1x16xf32>
    %868 = vector.broadcast %556 : f32 to vector<1x4x1x16xf32>
    %869 = arith.mulf %868, %867 : vector<1x4x1x16xf32>
    %870 = vector.extract_strided_slice %633 {offsets = [0, 4, 0, 1], sizes = [1, 4, 1, 16], strides = [1, 1, 1, 1]} : vector<1x10x1x22xf32> to vector<1x4x1x16xf32>
    %871 = vector.broadcast %605 : f32 to vector<1x4x1x16xf32>
    %872 = arith.mulf %871, %870 : vector<1x4x1x16xf32>
    %873 = arith.addf %869, %872 : vector<1x4x1x16xf32>
    %874 = arith.addf %866, %873 : vector<1x4x1x16xf32>
    %875 = vector.extract_strided_slice %629 {offsets = [0, 4, 0, 2], sizes = [1, 4, 1, 16], strides = [1, 1, 1, 1]} : vector<1x10x1x22xf32> to vector<1x4x1x16xf32>
    %876 = vector.broadcast %557 : f32 to vector<1x4x1x16xf32>
    %877 = arith.mulf %876, %875 : vector<1x4x1x16xf32>
    %878 = vector.extract_strided_slice %633 {offsets = [0, 4, 0, 2], sizes = [1, 4, 1, 16], strides = [1, 1, 1, 1]} : vector<1x10x1x22xf32> to vector<1x4x1x16xf32>
    %879 = vector.broadcast %606 : f32 to vector<1x4x1x16xf32>
    %880 = arith.mulf %879, %878 : vector<1x4x1x16xf32>
    %881 = arith.addf %877, %880 : vector<1x4x1x16xf32>
    %882 = arith.addf %874, %881 : vector<1x4x1x16xf32>
    %883 = vector.extract_strided_slice %629 {offsets = [0, 4, 0, 3], sizes = [1, 4, 1, 16], strides = [1, 1, 1, 1]} : vector<1x10x1x22xf32> to vector<1x4x1x16xf32>
    %884 = vector.broadcast %558 : f32 to vector<1x4x1x16xf32>
    %885 = arith.mulf %884, %883 : vector<1x4x1x16xf32>
    %886 = vector.extract_strided_slice %633 {offsets = [0, 4, 0, 3], sizes = [1, 4, 1, 16], strides = [1, 1, 1, 1]} : vector<1x10x1x22xf32> to vector<1x4x1x16xf32>
    %887 = vector.broadcast %607 : f32 to vector<1x4x1x16xf32>
    %888 = arith.mulf %887, %886 : vector<1x4x1x16xf32>
    %889 = arith.addf %885, %888 : vector<1x4x1x16xf32>
    %890 = arith.addf %882, %889 : vector<1x4x1x16xf32>
    %891 = vector.extract_strided_slice %629 {offsets = [0, 4, 0, 4], sizes = [1, 4, 1, 16], strides = [1, 1, 1, 1]} : vector<1x10x1x22xf32> to vector<1x4x1x16xf32>
    %892 = vector.broadcast %559 : f32 to vector<1x4x1x16xf32>
    %893 = arith.mulf %892, %891 : vector<1x4x1x16xf32>
    %894 = vector.extract_strided_slice %633 {offsets = [0, 4, 0, 4], sizes = [1, 4, 1, 16], strides = [1, 1, 1, 1]} : vector<1x10x1x22xf32> to vector<1x4x1x16xf32>
    %895 = vector.broadcast %608 : f32 to vector<1x4x1x16xf32>
    %896 = arith.mulf %895, %894 : vector<1x4x1x16xf32>
    %897 = arith.addf %893, %896 : vector<1x4x1x16xf32>
    %898 = arith.addf %890, %897 : vector<1x4x1x16xf32>
    %899 = vector.extract_strided_slice %629 {offsets = [0, 4, 0, 5], sizes = [1, 4, 1, 16], strides = [1, 1, 1, 1]} : vector<1x10x1x22xf32> to vector<1x4x1x16xf32>
    %900 = vector.broadcast %560 : f32 to vector<1x4x1x16xf32>
    %901 = arith.mulf %900, %899 : vector<1x4x1x16xf32>
    %902 = vector.extract_strided_slice %633 {offsets = [0, 4, 0, 5], sizes = [1, 4, 1, 16], strides = [1, 1, 1, 1]} : vector<1x10x1x22xf32> to vector<1x4x1x16xf32>
    %903 = vector.broadcast %609 : f32 to vector<1x4x1x16xf32>
    %904 = arith.mulf %903, %902 : vector<1x4x1x16xf32>
    %905 = arith.addf %901, %904 : vector<1x4x1x16xf32>
    %906 = arith.addf %898, %905 : vector<1x4x1x16xf32>
    %907 = vector.extract_strided_slice %629 {offsets = [0, 4, 0, 6], sizes = [1, 4, 1, 16], strides = [1, 1, 1, 1]} : vector<1x10x1x22xf32> to vector<1x4x1x16xf32>
    %908 = vector.broadcast %561 : f32 to vector<1x4x1x16xf32>
    %909 = arith.mulf %908, %907 : vector<1x4x1x16xf32>
    %910 = vector.extract_strided_slice %633 {offsets = [0, 4, 0, 6], sizes = [1, 4, 1, 16], strides = [1, 1, 1, 1]} : vector<1x10x1x22xf32> to vector<1x4x1x16xf32>
    %911 = vector.broadcast %610 : f32 to vector<1x4x1x16xf32>
    %912 = arith.mulf %911, %910 : vector<1x4x1x16xf32>
    %913 = arith.addf %909, %912 : vector<1x4x1x16xf32>
    %914 = arith.addf %906, %913 : vector<1x4x1x16xf32>
    %915 = vector.extract_strided_slice %629 {offsets = [0, 5, 0, 0], sizes = [1, 4, 1, 16], strides = [1, 1, 1, 1]} : vector<1x10x1x22xf32> to vector<1x4x1x16xf32>
    %916 = vector.broadcast %562 : f32 to vector<1x4x1x16xf32>
    %917 = arith.mulf %916, %915 : vector<1x4x1x16xf32>
    %918 = vector.extract_strided_slice %633 {offsets = [0, 5, 0, 0], sizes = [1, 4, 1, 16], strides = [1, 1, 1, 1]} : vector<1x10x1x22xf32> to vector<1x4x1x16xf32>
    %919 = vector.broadcast %611 : f32 to vector<1x4x1x16xf32>
    %920 = arith.mulf %919, %918 : vector<1x4x1x16xf32>
    %921 = arith.addf %917, %920 : vector<1x4x1x16xf32>
    %922 = arith.addf %914, %921 : vector<1x4x1x16xf32>
    %923 = vector.extract_strided_slice %629 {offsets = [0, 5, 0, 1], sizes = [1, 4, 1, 16], strides = [1, 1, 1, 1]} : vector<1x10x1x22xf32> to vector<1x4x1x16xf32>
    %924 = vector.broadcast %563 : f32 to vector<1x4x1x16xf32>
    %925 = arith.mulf %924, %923 : vector<1x4x1x16xf32>
    %926 = vector.extract_strided_slice %633 {offsets = [0, 5, 0, 1], sizes = [1, 4, 1, 16], strides = [1, 1, 1, 1]} : vector<1x10x1x22xf32> to vector<1x4x1x16xf32>
    %927 = vector.broadcast %612 : f32 to vector<1x4x1x16xf32>
    %928 = arith.mulf %927, %926 : vector<1x4x1x16xf32>
    %929 = arith.addf %925, %928 : vector<1x4x1x16xf32>
    %930 = arith.addf %922, %929 : vector<1x4x1x16xf32>
    %931 = vector.extract_strided_slice %629 {offsets = [0, 5, 0, 2], sizes = [1, 4, 1, 16], strides = [1, 1, 1, 1]} : vector<1x10x1x22xf32> to vector<1x4x1x16xf32>
    %932 = vector.broadcast %564 : f32 to vector<1x4x1x16xf32>
    %933 = arith.mulf %932, %931 : vector<1x4x1x16xf32>
    %934 = vector.extract_strided_slice %633 {offsets = [0, 5, 0, 2], sizes = [1, 4, 1, 16], strides = [1, 1, 1, 1]} : vector<1x10x1x22xf32> to vector<1x4x1x16xf32>
    %935 = vector.broadcast %613 : f32 to vector<1x4x1x16xf32>
    %936 = arith.mulf %935, %934 : vector<1x4x1x16xf32>
    %937 = arith.addf %933, %936 : vector<1x4x1x16xf32>
    %938 = arith.addf %930, %937 : vector<1x4x1x16xf32>
    %939 = vector.extract_strided_slice %629 {offsets = [0, 5, 0, 3], sizes = [1, 4, 1, 16], strides = [1, 1, 1, 1]} : vector<1x10x1x22xf32> to vector<1x4x1x16xf32>
    %940 = vector.broadcast %565 : f32 to vector<1x4x1x16xf32>
    %941 = arith.mulf %940, %939 : vector<1x4x1x16xf32>
    %942 = vector.extract_strided_slice %633 {offsets = [0, 5, 0, 3], sizes = [1, 4, 1, 16], strides = [1, 1, 1, 1]} : vector<1x10x1x22xf32> to vector<1x4x1x16xf32>
    %943 = vector.broadcast %614 : f32 to vector<1x4x1x16xf32>
    %944 = arith.mulf %943, %942 : vector<1x4x1x16xf32>
    %945 = arith.addf %941, %944 : vector<1x4x1x16xf32>
    %946 = arith.addf %938, %945 : vector<1x4x1x16xf32>
    %947 = vector.extract_strided_slice %629 {offsets = [0, 5, 0, 4], sizes = [1, 4, 1, 16], strides = [1, 1, 1, 1]} : vector<1x10x1x22xf32> to vector<1x4x1x16xf32>
    %948 = vector.broadcast %566 : f32 to vector<1x4x1x16xf32>
    %949 = arith.mulf %948, %947 : vector<1x4x1x16xf32>
    %950 = vector.extract_strided_slice %633 {offsets = [0, 5, 0, 4], sizes = [1, 4, 1, 16], strides = [1, 1, 1, 1]} : vector<1x10x1x22xf32> to vector<1x4x1x16xf32>
    %951 = vector.broadcast %615 : f32 to vector<1x4x1x16xf32>
    %952 = arith.mulf %951, %950 : vector<1x4x1x16xf32>
    %953 = arith.addf %949, %952 : vector<1x4x1x16xf32>
    %954 = arith.addf %946, %953 : vector<1x4x1x16xf32>
    %955 = vector.extract_strided_slice %629 {offsets = [0, 5, 0, 5], sizes = [1, 4, 1, 16], strides = [1, 1, 1, 1]} : vector<1x10x1x22xf32> to vector<1x4x1x16xf32>
    %956 = vector.broadcast %567 : f32 to vector<1x4x1x16xf32>
    %957 = arith.mulf %956, %955 : vector<1x4x1x16xf32>
    %958 = vector.extract_strided_slice %633 {offsets = [0, 5, 0, 5], sizes = [1, 4, 1, 16], strides = [1, 1, 1, 1]} : vector<1x10x1x22xf32> to vector<1x4x1x16xf32>
    %959 = vector.broadcast %616 : f32 to vector<1x4x1x16xf32>
    %960 = arith.mulf %959, %958 : vector<1x4x1x16xf32>
    %961 = arith.addf %957, %960 : vector<1x4x1x16xf32>
    %962 = arith.addf %954, %961 : vector<1x4x1x16xf32>
    %963 = vector.extract_strided_slice %629 {offsets = [0, 5, 0, 6], sizes = [1, 4, 1, 16], strides = [1, 1, 1, 1]} : vector<1x10x1x22xf32> to vector<1x4x1x16xf32>
    %964 = vector.broadcast %568 : f32 to vector<1x4x1x16xf32>
    %965 = arith.mulf %964, %963 : vector<1x4x1x16xf32>
    %966 = vector.extract_strided_slice %633 {offsets = [0, 5, 0, 6], sizes = [1, 4, 1, 16], strides = [1, 1, 1, 1]} : vector<1x10x1x22xf32> to vector<1x4x1x16xf32>
    %967 = vector.broadcast %617 : f32 to vector<1x4x1x16xf32>
    %968 = arith.mulf %967, %966 : vector<1x4x1x16xf32>
    %969 = arith.addf %965, %968 : vector<1x4x1x16xf32>
    %970 = arith.addf %962, %969 : vector<1x4x1x16xf32>
    %971 = vector.extract_strided_slice %629 {offsets = [0, 6, 0, 0], sizes = [1, 4, 1, 16], strides = [1, 1, 1, 1]} : vector<1x10x1x22xf32> to vector<1x4x1x16xf32>
    %972 = vector.broadcast %569 : f32 to vector<1x4x1x16xf32>
    %973 = arith.mulf %972, %971 : vector<1x4x1x16xf32>
    %974 = vector.extract_strided_slice %633 {offsets = [0, 6, 0, 0], sizes = [1, 4, 1, 16], strides = [1, 1, 1, 1]} : vector<1x10x1x22xf32> to vector<1x4x1x16xf32>
    %975 = vector.broadcast %618 : f32 to vector<1x4x1x16xf32>
    %976 = arith.mulf %975, %974 : vector<1x4x1x16xf32>
    %977 = arith.addf %973, %976 : vector<1x4x1x16xf32>
    %978 = arith.addf %970, %977 : vector<1x4x1x16xf32>
    %979 = vector.extract_strided_slice %629 {offsets = [0, 6, 0, 1], sizes = [1, 4, 1, 16], strides = [1, 1, 1, 1]} : vector<1x10x1x22xf32> to vector<1x4x1x16xf32>
    %980 = vector.broadcast %570 : f32 to vector<1x4x1x16xf32>
    %981 = arith.mulf %980, %979 : vector<1x4x1x16xf32>
    %982 = vector.extract_strided_slice %633 {offsets = [0, 6, 0, 1], sizes = [1, 4, 1, 16], strides = [1, 1, 1, 1]} : vector<1x10x1x22xf32> to vector<1x4x1x16xf32>
    %983 = vector.broadcast %619 : f32 to vector<1x4x1x16xf32>
    %984 = arith.mulf %983, %982 : vector<1x4x1x16xf32>
    %985 = arith.addf %981, %984 : vector<1x4x1x16xf32>
    %986 = arith.addf %978, %985 : vector<1x4x1x16xf32>
    %987 = vector.extract_strided_slice %629 {offsets = [0, 6, 0, 2], sizes = [1, 4, 1, 16], strides = [1, 1, 1, 1]} : vector<1x10x1x22xf32> to vector<1x4x1x16xf32>
    %988 = vector.broadcast %571 : f32 to vector<1x4x1x16xf32>
    %989 = arith.mulf %988, %987 : vector<1x4x1x16xf32>
    %990 = vector.extract_strided_slice %633 {offsets = [0, 6, 0, 2], sizes = [1, 4, 1, 16], strides = [1, 1, 1, 1]} : vector<1x10x1x22xf32> to vector<1x4x1x16xf32>
    %991 = vector.broadcast %620 : f32 to vector<1x4x1x16xf32>
    %992 = arith.mulf %991, %990 : vector<1x4x1x16xf32>
    %993 = arith.addf %989, %992 : vector<1x4x1x16xf32>
    %994 = arith.addf %986, %993 : vector<1x4x1x16xf32>
    %995 = vector.extract_strided_slice %629 {offsets = [0, 6, 0, 3], sizes = [1, 4, 1, 16], strides = [1, 1, 1, 1]} : vector<1x10x1x22xf32> to vector<1x4x1x16xf32>
    %996 = vector.broadcast %572 : f32 to vector<1x4x1x16xf32>
    %997 = arith.mulf %996, %995 : vector<1x4x1x16xf32>
    %998 = vector.extract_strided_slice %633 {offsets = [0, 6, 0, 3], sizes = [1, 4, 1, 16], strides = [1, 1, 1, 1]} : vector<1x10x1x22xf32> to vector<1x4x1x16xf32>
    %999 = vector.broadcast %621 : f32 to vector<1x4x1x16xf32>
    %1000 = arith.mulf %999, %998 : vector<1x4x1x16xf32>
    %1001 = arith.addf %997, %1000 : vector<1x4x1x16xf32>
    %1002 = arith.addf %994, %1001 : vector<1x4x1x16xf32>
    %1003 = vector.extract_strided_slice %629 {offsets = [0, 6, 0, 4], sizes = [1, 4, 1, 16], strides = [1, 1, 1, 1]} : vector<1x10x1x22xf32> to vector<1x4x1x16xf32>
    %1004 = vector.broadcast %573 : f32 to vector<1x4x1x16xf32>
    %1005 = arith.mulf %1004, %1003 : vector<1x4x1x16xf32>
    %1006 = vector.extract_strided_slice %633 {offsets = [0, 6, 0, 4], sizes = [1, 4, 1, 16], strides = [1, 1, 1, 1]} : vector<1x10x1x22xf32> to vector<1x4x1x16xf32>
    %1007 = vector.broadcast %622 : f32 to vector<1x4x1x16xf32>
    %1008 = arith.mulf %1007, %1006 : vector<1x4x1x16xf32>
    %1009 = arith.addf %1005, %1008 : vector<1x4x1x16xf32>
    %1010 = arith.addf %1002, %1009 : vector<1x4x1x16xf32>
    %1011 = vector.extract_strided_slice %629 {offsets = [0, 6, 0, 5], sizes = [1, 4, 1, 16], strides = [1, 1, 1, 1]} : vector<1x10x1x22xf32> to vector<1x4x1x16xf32>
    %1012 = vector.broadcast %574 : f32 to vector<1x4x1x16xf32>
    %1013 = arith.mulf %1012, %1011 : vector<1x4x1x16xf32>
    %1014 = vector.extract_strided_slice %633 {offsets = [0, 6, 0, 5], sizes = [1, 4, 1, 16], strides = [1, 1, 1, 1]} : vector<1x10x1x22xf32> to vector<1x4x1x16xf32>
    %1015 = vector.broadcast %623 : f32 to vector<1x4x1x16xf32>
    %1016 = arith.mulf %1015, %1014 : vector<1x4x1x16xf32>
    %1017 = arith.addf %1013, %1016 : vector<1x4x1x16xf32>
    %1018 = arith.addf %1010, %1017 : vector<1x4x1x16xf32>
    %1019 = vector.extract_strided_slice %629 {offsets = [0, 6, 0, 6], sizes = [1, 4, 1, 16], strides = [1, 1, 1, 1]} : vector<1x10x1x22xf32> to vector<1x4x1x16xf32>
    %1020 = vector.broadcast %575 : f32 to vector<1x4x1x16xf32>
    %1021 = arith.mulf %1020, %1019 : vector<1x4x1x16xf32>
    %1022 = vector.extract_strided_slice %633 {offsets = [0, 6, 0, 6], sizes = [1, 4, 1, 16], strides = [1, 1, 1, 1]} : vector<1x10x1x22xf32> to vector<1x4x1x16xf32>
    %1023 = vector.broadcast %624 : f32 to vector<1x4x1x16xf32>
    %1024 = arith.mulf %1023, %1022 : vector<1x4x1x16xf32>
    %1025 = arith.addf %1021, %1024 : vector<1x4x1x16xf32>
    %1026 = arith.addf %1018, %1025 : vector<1x4x1x16xf32>
    %1027 = vector.broadcast %625 : f32 to vector<1x4x1x16xf32>
    %1028 = arith.addf %1026, %1027 : vector<1x4x1x16xf32>
    %1029 = arith.negf %1028 : vector<1x4x1x16xf32>
    %1030 = math.exp %1029 : vector<1x4x1x16xf32>
    %cst_315 = arith.constant 1.000000e+00 : f32
    %1031 = vector.broadcast %cst_315 : f32 to vector<1x4x1x16xf32>
    %1032 = arith.addf %1031, %1030 : vector<1x4x1x16xf32>
    %1033 = arith.divf %1031, %1032 : vector<1x4x1x16xf32>
    %cst_316 = arith.constant dense<0xFF800000> : vector<1x4x16xf32>
    %1034 = vector.multi_reduction <maximumf>, %0, %cst_316 [3] : vector<1x4x16x16xf32> to vector<1x4x16xf32>
    %1035 = vector.shape_cast %1034 : vector<1x4x16xf32> to vector<1x4x16x1xf32>
    %cst_317 = arith.constant dense<0.000000e+00> : vector<1x4x16xf32>
    %1036 = vector.multi_reduction <add>, %0, %cst_317 [3] : vector<1x4x16x16xf32> to vector<1x4x16xf32>
    %1037 = vector.shape_cast %1036 : vector<1x4x16xf32> to vector<1x4x16x1xf32>
    %cst_318 = arith.constant 1.600000e+01 : f32
    %1038 = vector.broadcast %cst_318 : f32 to vector<1x4x16x1xf32>
    %1039 = arith.divf %1037, %1038 : vector<1x4x16x1xf32>
    %c2_319 = arith.constant 2 : index
    %c0_320 = arith.constant 0 : index
    %1040 = memref.load %arg1[%c2_319, %c0_320] : memref<3x99xf32, #tpu.memory_space<smem>>
    %c2_321 = arith.constant 2 : index
    %c1_322 = arith.constant 1 : index
    %1041 = memref.load %arg1[%c2_321, %c1_322] : memref<3x99xf32, #tpu.memory_space<smem>>
    %c2_323 = arith.constant 2 : index
    %c2_324 = arith.constant 2 : index
    %1042 = memref.load %arg1[%c2_323, %c2_324] : memref<3x99xf32, #tpu.memory_space<smem>>
    %c2_325 = arith.constant 2 : index
    %c3_326 = arith.constant 3 : index
    %1043 = memref.load %arg1[%c2_325, %c3_326] : memref<3x99xf32, #tpu.memory_space<smem>>
    %c2_327 = arith.constant 2 : index
    %c4_328 = arith.constant 4 : index
    %1044 = memref.load %arg1[%c2_327, %c4_328] : memref<3x99xf32, #tpu.memory_space<smem>>
    %c2_329 = arith.constant 2 : index
    %c5_330 = arith.constant 5 : index
    %1045 = memref.load %arg1[%c2_329, %c5_330] : memref<3x99xf32, #tpu.memory_space<smem>>
    %c2_331 = arith.constant 2 : index
    %c6_332 = arith.constant 6 : index
    %1046 = memref.load %arg1[%c2_331, %c6_332] : memref<3x99xf32, #tpu.memory_space<smem>>
    %c2_333 = arith.constant 2 : index
    %c7_334 = arith.constant 7 : index
    %1047 = memref.load %arg1[%c2_333, %c7_334] : memref<3x99xf32, #tpu.memory_space<smem>>
    %c2_335 = arith.constant 2 : index
    %c8_336 = arith.constant 8 : index
    %1048 = memref.load %arg1[%c2_335, %c8_336] : memref<3x99xf32, #tpu.memory_space<smem>>
    %c2_337 = arith.constant 2 : index
    %c9_338 = arith.constant 9 : index
    %1049 = memref.load %arg1[%c2_337, %c9_338] : memref<3x99xf32, #tpu.memory_space<smem>>
    %c2_339 = arith.constant 2 : index
    %c10_340 = arith.constant 10 : index
    %1050 = memref.load %arg1[%c2_339, %c10_340] : memref<3x99xf32, #tpu.memory_space<smem>>
    %c2_341 = arith.constant 2 : index
    %c11_342 = arith.constant 11 : index
    %1051 = memref.load %arg1[%c2_341, %c11_342] : memref<3x99xf32, #tpu.memory_space<smem>>
    %c2_343 = arith.constant 2 : index
    %c12_344 = arith.constant 12 : index
    %1052 = memref.load %arg1[%c2_343, %c12_344] : memref<3x99xf32, #tpu.memory_space<smem>>
    %c2_345 = arith.constant 2 : index
    %c13_346 = arith.constant 13 : index
    %1053 = memref.load %arg1[%c2_345, %c13_346] : memref<3x99xf32, #tpu.memory_space<smem>>
    %c2_347 = arith.constant 2 : index
    %c14_348 = arith.constant 14 : index
    %1054 = memref.load %arg1[%c2_347, %c14_348] : memref<3x99xf32, #tpu.memory_space<smem>>
    %c2_349 = arith.constant 2 : index
    %c15_350 = arith.constant 15 : index
    %1055 = memref.load %arg1[%c2_349, %c15_350] : memref<3x99xf32, #tpu.memory_space<smem>>
    %c2_351 = arith.constant 2 : index
    %c16_352 = arith.constant 16 : index
    %1056 = memref.load %arg1[%c2_351, %c16_352] : memref<3x99xf32, #tpu.memory_space<smem>>
    %c2_353 = arith.constant 2 : index
    %c17_354 = arith.constant 17 : index
    %1057 = memref.load %arg1[%c2_353, %c17_354] : memref<3x99xf32, #tpu.memory_space<smem>>
    %c2_355 = arith.constant 2 : index
    %c18_356 = arith.constant 18 : index
    %1058 = memref.load %arg1[%c2_355, %c18_356] : memref<3x99xf32, #tpu.memory_space<smem>>
    %c2_357 = arith.constant 2 : index
    %c19_358 = arith.constant 19 : index
    %1059 = memref.load %arg1[%c2_357, %c19_358] : memref<3x99xf32, #tpu.memory_space<smem>>
    %c2_359 = arith.constant 2 : index
    %c20_360 = arith.constant 20 : index
    %1060 = memref.load %arg1[%c2_359, %c20_360] : memref<3x99xf32, #tpu.memory_space<smem>>
    %c2_361 = arith.constant 2 : index
    %c21_362 = arith.constant 21 : index
    %1061 = memref.load %arg1[%c2_361, %c21_362] : memref<3x99xf32, #tpu.memory_space<smem>>
    %c2_363 = arith.constant 2 : index
    %c22_364 = arith.constant 22 : index
    %1062 = memref.load %arg1[%c2_363, %c22_364] : memref<3x99xf32, #tpu.memory_space<smem>>
    %c2_365 = arith.constant 2 : index
    %c23_366 = arith.constant 23 : index
    %1063 = memref.load %arg1[%c2_365, %c23_366] : memref<3x99xf32, #tpu.memory_space<smem>>
    %c2_367 = arith.constant 2 : index
    %c24_368 = arith.constant 24 : index
    %1064 = memref.load %arg1[%c2_367, %c24_368] : memref<3x99xf32, #tpu.memory_space<smem>>
    %c2_369 = arith.constant 2 : index
    %c25_370 = arith.constant 25 : index
    %1065 = memref.load %arg1[%c2_369, %c25_370] : memref<3x99xf32, #tpu.memory_space<smem>>
    %c2_371 = arith.constant 2 : index
    %c26_372 = arith.constant 26 : index
    %1066 = memref.load %arg1[%c2_371, %c26_372] : memref<3x99xf32, #tpu.memory_space<smem>>
    %c2_373 = arith.constant 2 : index
    %c27_374 = arith.constant 27 : index
    %1067 = memref.load %arg1[%c2_373, %c27_374] : memref<3x99xf32, #tpu.memory_space<smem>>
    %c2_375 = arith.constant 2 : index
    %c28_376 = arith.constant 28 : index
    %1068 = memref.load %arg1[%c2_375, %c28_376] : memref<3x99xf32, #tpu.memory_space<smem>>
    %c2_377 = arith.constant 2 : index
    %c29_378 = arith.constant 29 : index
    %1069 = memref.load %arg1[%c2_377, %c29_378] : memref<3x99xf32, #tpu.memory_space<smem>>
    %c2_379 = arith.constant 2 : index
    %c30_380 = arith.constant 30 : index
    %1070 = memref.load %arg1[%c2_379, %c30_380] : memref<3x99xf32, #tpu.memory_space<smem>>
    %c2_381 = arith.constant 2 : index
    %c31_382 = arith.constant 31 : index
    %1071 = memref.load %arg1[%c2_381, %c31_382] : memref<3x99xf32, #tpu.memory_space<smem>>
    %c2_383 = arith.constant 2 : index
    %c32_384 = arith.constant 32 : index
    %1072 = memref.load %arg1[%c2_383, %c32_384] : memref<3x99xf32, #tpu.memory_space<smem>>
    %c2_385 = arith.constant 2 : index
    %c33_386 = arith.constant 33 : index
    %1073 = memref.load %arg1[%c2_385, %c33_386] : memref<3x99xf32, #tpu.memory_space<smem>>
    %c2_387 = arith.constant 2 : index
    %c34_388 = arith.constant 34 : index
    %1074 = memref.load %arg1[%c2_387, %c34_388] : memref<3x99xf32, #tpu.memory_space<smem>>
    %c2_389 = arith.constant 2 : index
    %c35_390 = arith.constant 35 : index
    %1075 = memref.load %arg1[%c2_389, %c35_390] : memref<3x99xf32, #tpu.memory_space<smem>>
    %c2_391 = arith.constant 2 : index
    %c36_392 = arith.constant 36 : index
    %1076 = memref.load %arg1[%c2_391, %c36_392] : memref<3x99xf32, #tpu.memory_space<smem>>
    %c2_393 = arith.constant 2 : index
    %c37_394 = arith.constant 37 : index
    %1077 = memref.load %arg1[%c2_393, %c37_394] : memref<3x99xf32, #tpu.memory_space<smem>>
    %c2_395 = arith.constant 2 : index
    %c38_396 = arith.constant 38 : index
    %1078 = memref.load %arg1[%c2_395, %c38_396] : memref<3x99xf32, #tpu.memory_space<smem>>
    %c2_397 = arith.constant 2 : index
    %c39_398 = arith.constant 39 : index
    %1079 = memref.load %arg1[%c2_397, %c39_398] : memref<3x99xf32, #tpu.memory_space<smem>>
    %c2_399 = arith.constant 2 : index
    %c40_400 = arith.constant 40 : index
    %1080 = memref.load %arg1[%c2_399, %c40_400] : memref<3x99xf32, #tpu.memory_space<smem>>
    %c2_401 = arith.constant 2 : index
    %c41_402 = arith.constant 41 : index
    %1081 = memref.load %arg1[%c2_401, %c41_402] : memref<3x99xf32, #tpu.memory_space<smem>>
    %c2_403 = arith.constant 2 : index
    %c42_404 = arith.constant 42 : index
    %1082 = memref.load %arg1[%c2_403, %c42_404] : memref<3x99xf32, #tpu.memory_space<smem>>
    %c2_405 = arith.constant 2 : index
    %c43_406 = arith.constant 43 : index
    %1083 = memref.load %arg1[%c2_405, %c43_406] : memref<3x99xf32, #tpu.memory_space<smem>>
    %c2_407 = arith.constant 2 : index
    %c44_408 = arith.constant 44 : index
    %1084 = memref.load %arg1[%c2_407, %c44_408] : memref<3x99xf32, #tpu.memory_space<smem>>
    %c2_409 = arith.constant 2 : index
    %c45_410 = arith.constant 45 : index
    %1085 = memref.load %arg1[%c2_409, %c45_410] : memref<3x99xf32, #tpu.memory_space<smem>>
    %c2_411 = arith.constant 2 : index
    %c46_412 = arith.constant 46 : index
    %1086 = memref.load %arg1[%c2_411, %c46_412] : memref<3x99xf32, #tpu.memory_space<smem>>
    %c2_413 = arith.constant 2 : index
    %c47_414 = arith.constant 47 : index
    %1087 = memref.load %arg1[%c2_413, %c47_414] : memref<3x99xf32, #tpu.memory_space<smem>>
    %c2_415 = arith.constant 2 : index
    %c48_416 = arith.constant 48 : index
    %1088 = memref.load %arg1[%c2_415, %c48_416] : memref<3x99xf32, #tpu.memory_space<smem>>
    %c2_417 = arith.constant 2 : index
    %c49_418 = arith.constant 49 : index
    %1089 = memref.load %arg1[%c2_417, %c49_418] : memref<3x99xf32, #tpu.memory_space<smem>>
    %c2_419 = arith.constant 2 : index
    %c50_420 = arith.constant 50 : index
    %1090 = memref.load %arg1[%c2_419, %c50_420] : memref<3x99xf32, #tpu.memory_space<smem>>
    %c2_421 = arith.constant 2 : index
    %c51_422 = arith.constant 51 : index
    %1091 = memref.load %arg1[%c2_421, %c51_422] : memref<3x99xf32, #tpu.memory_space<smem>>
    %c2_423 = arith.constant 2 : index
    %c52_424 = arith.constant 52 : index
    %1092 = memref.load %arg1[%c2_423, %c52_424] : memref<3x99xf32, #tpu.memory_space<smem>>
    %c2_425 = arith.constant 2 : index
    %c53_426 = arith.constant 53 : index
    %1093 = memref.load %arg1[%c2_425, %c53_426] : memref<3x99xf32, #tpu.memory_space<smem>>
    %c2_427 = arith.constant 2 : index
    %c54_428 = arith.constant 54 : index
    %1094 = memref.load %arg1[%c2_427, %c54_428] : memref<3x99xf32, #tpu.memory_space<smem>>
    %c2_429 = arith.constant 2 : index
    %c55_430 = arith.constant 55 : index
    %1095 = memref.load %arg1[%c2_429, %c55_430] : memref<3x99xf32, #tpu.memory_space<smem>>
    %c2_431 = arith.constant 2 : index
    %c56_432 = arith.constant 56 : index
    %1096 = memref.load %arg1[%c2_431, %c56_432] : memref<3x99xf32, #tpu.memory_space<smem>>
    %c2_433 = arith.constant 2 : index
    %c57_434 = arith.constant 57 : index
    %1097 = memref.load %arg1[%c2_433, %c57_434] : memref<3x99xf32, #tpu.memory_space<smem>>
    %c2_435 = arith.constant 2 : index
    %c58_436 = arith.constant 58 : index
    %1098 = memref.load %arg1[%c2_435, %c58_436] : memref<3x99xf32, #tpu.memory_space<smem>>
    %c2_437 = arith.constant 2 : index
    %c59_438 = arith.constant 59 : index
    %1099 = memref.load %arg1[%c2_437, %c59_438] : memref<3x99xf32, #tpu.memory_space<smem>>
    %c2_439 = arith.constant 2 : index
    %c60_440 = arith.constant 60 : index
    %1100 = memref.load %arg1[%c2_439, %c60_440] : memref<3x99xf32, #tpu.memory_space<smem>>
    %c2_441 = arith.constant 2 : index
    %c61_442 = arith.constant 61 : index
    %1101 = memref.load %arg1[%c2_441, %c61_442] : memref<3x99xf32, #tpu.memory_space<smem>>
    %c2_443 = arith.constant 2 : index
    %c62_444 = arith.constant 62 : index
    %1102 = memref.load %arg1[%c2_443, %c62_444] : memref<3x99xf32, #tpu.memory_space<smem>>
    %c2_445 = arith.constant 2 : index
    %c63_446 = arith.constant 63 : index
    %1103 = memref.load %arg1[%c2_445, %c63_446] : memref<3x99xf32, #tpu.memory_space<smem>>
    %c2_447 = arith.constant 2 : index
    %c64_448 = arith.constant 64 : index
    %1104 = memref.load %arg1[%c2_447, %c64_448] : memref<3x99xf32, #tpu.memory_space<smem>>
    %c2_449 = arith.constant 2 : index
    %c65_450 = arith.constant 65 : index
    %1105 = memref.load %arg1[%c2_449, %c65_450] : memref<3x99xf32, #tpu.memory_space<smem>>
    %c2_451 = arith.constant 2 : index
    %c66_452 = arith.constant 66 : index
    %1106 = memref.load %arg1[%c2_451, %c66_452] : memref<3x99xf32, #tpu.memory_space<smem>>
    %c2_453 = arith.constant 2 : index
    %c67_454 = arith.constant 67 : index
    %1107 = memref.load %arg1[%c2_453, %c67_454] : memref<3x99xf32, #tpu.memory_space<smem>>
    %c2_455 = arith.constant 2 : index
    %c68_456 = arith.constant 68 : index
    %1108 = memref.load %arg1[%c2_455, %c68_456] : memref<3x99xf32, #tpu.memory_space<smem>>
    %c2_457 = arith.constant 2 : index
    %c69_458 = arith.constant 69 : index
    %1109 = memref.load %arg1[%c2_457, %c69_458] : memref<3x99xf32, #tpu.memory_space<smem>>
    %c2_459 = arith.constant 2 : index
    %c70_460 = arith.constant 70 : index
    %1110 = memref.load %arg1[%c2_459, %c70_460] : memref<3x99xf32, #tpu.memory_space<smem>>
    %c2_461 = arith.constant 2 : index
    %c71_462 = arith.constant 71 : index
    %1111 = memref.load %arg1[%c2_461, %c71_462] : memref<3x99xf32, #tpu.memory_space<smem>>
    %c2_463 = arith.constant 2 : index
    %c72_464 = arith.constant 72 : index
    %1112 = memref.load %arg1[%c2_463, %c72_464] : memref<3x99xf32, #tpu.memory_space<smem>>
    %c2_465 = arith.constant 2 : index
    %c73_466 = arith.constant 73 : index
    %1113 = memref.load %arg1[%c2_465, %c73_466] : memref<3x99xf32, #tpu.memory_space<smem>>
    %c2_467 = arith.constant 2 : index
    %c74_468 = arith.constant 74 : index
    %1114 = memref.load %arg1[%c2_467, %c74_468] : memref<3x99xf32, #tpu.memory_space<smem>>
    %c2_469 = arith.constant 2 : index
    %c75_470 = arith.constant 75 : index
    %1115 = memref.load %arg1[%c2_469, %c75_470] : memref<3x99xf32, #tpu.memory_space<smem>>
    %c2_471 = arith.constant 2 : index
    %c76_472 = arith.constant 76 : index
    %1116 = memref.load %arg1[%c2_471, %c76_472] : memref<3x99xf32, #tpu.memory_space<smem>>
    %c2_473 = arith.constant 2 : index
    %c77_474 = arith.constant 77 : index
    %1117 = memref.load %arg1[%c2_473, %c77_474] : memref<3x99xf32, #tpu.memory_space<smem>>
    %c2_475 = arith.constant 2 : index
    %c78_476 = arith.constant 78 : index
    %1118 = memref.load %arg1[%c2_475, %c78_476] : memref<3x99xf32, #tpu.memory_space<smem>>
    %c2_477 = arith.constant 2 : index
    %c79_478 = arith.constant 79 : index
    %1119 = memref.load %arg1[%c2_477, %c79_478] : memref<3x99xf32, #tpu.memory_space<smem>>
    %c2_479 = arith.constant 2 : index
    %c80_480 = arith.constant 80 : index
    %1120 = memref.load %arg1[%c2_479, %c80_480] : memref<3x99xf32, #tpu.memory_space<smem>>
    %c2_481 = arith.constant 2 : index
    %c81_482 = arith.constant 81 : index
    %1121 = memref.load %arg1[%c2_481, %c81_482] : memref<3x99xf32, #tpu.memory_space<smem>>
    %c2_483 = arith.constant 2 : index
    %c82_484 = arith.constant 82 : index
    %1122 = memref.load %arg1[%c2_483, %c82_484] : memref<3x99xf32, #tpu.memory_space<smem>>
    %c2_485 = arith.constant 2 : index
    %c83_486 = arith.constant 83 : index
    %1123 = memref.load %arg1[%c2_485, %c83_486] : memref<3x99xf32, #tpu.memory_space<smem>>
    %c2_487 = arith.constant 2 : index
    %c84_488 = arith.constant 84 : index
    %1124 = memref.load %arg1[%c2_487, %c84_488] : memref<3x99xf32, #tpu.memory_space<smem>>
    %c2_489 = arith.constant 2 : index
    %c85_490 = arith.constant 85 : index
    %1125 = memref.load %arg1[%c2_489, %c85_490] : memref<3x99xf32, #tpu.memory_space<smem>>
    %c2_491 = arith.constant 2 : index
    %c86_492 = arith.constant 86 : index
    %1126 = memref.load %arg1[%c2_491, %c86_492] : memref<3x99xf32, #tpu.memory_space<smem>>
    %c2_493 = arith.constant 2 : index
    %c87_494 = arith.constant 87 : index
    %1127 = memref.load %arg1[%c2_493, %c87_494] : memref<3x99xf32, #tpu.memory_space<smem>>
    %c2_495 = arith.constant 2 : index
    %c88_496 = arith.constant 88 : index
    %1128 = memref.load %arg1[%c2_495, %c88_496] : memref<3x99xf32, #tpu.memory_space<smem>>
    %c2_497 = arith.constant 2 : index
    %c89_498 = arith.constant 89 : index
    %1129 = memref.load %arg1[%c2_497, %c89_498] : memref<3x99xf32, #tpu.memory_space<smem>>
    %c2_499 = arith.constant 2 : index
    %c90_500 = arith.constant 90 : index
    %1130 = memref.load %arg1[%c2_499, %c90_500] : memref<3x99xf32, #tpu.memory_space<smem>>
    %c2_501 = arith.constant 2 : index
    %c91_502 = arith.constant 91 : index
    %1131 = memref.load %arg1[%c2_501, %c91_502] : memref<3x99xf32, #tpu.memory_space<smem>>
    %c2_503 = arith.constant 2 : index
    %c92_504 = arith.constant 92 : index
    %1132 = memref.load %arg1[%c2_503, %c92_504] : memref<3x99xf32, #tpu.memory_space<smem>>
    %c2_505 = arith.constant 2 : index
    %c93_506 = arith.constant 93 : index
    %1133 = memref.load %arg1[%c2_505, %c93_506] : memref<3x99xf32, #tpu.memory_space<smem>>
    %c2_507 = arith.constant 2 : index
    %c94_508 = arith.constant 94 : index
    %1134 = memref.load %arg1[%c2_507, %c94_508] : memref<3x99xf32, #tpu.memory_space<smem>>
    %c2_509 = arith.constant 2 : index
    %c95_510 = arith.constant 95 : index
    %1135 = memref.load %arg1[%c2_509, %c95_510] : memref<3x99xf32, #tpu.memory_space<smem>>
    %c2_511 = arith.constant 2 : index
    %c96_512 = arith.constant 96 : index
    %1136 = memref.load %arg1[%c2_511, %c96_512] : memref<3x99xf32, #tpu.memory_space<smem>>
    %c2_513 = arith.constant 2 : index
    %c97_514 = arith.constant 97 : index
    %1137 = memref.load %arg1[%c2_513, %c97_514] : memref<3x99xf32, #tpu.memory_space<smem>>
    %c2_515 = arith.constant 2 : index
    %c98_516 = arith.constant 98 : index
    %1138 = memref.load %arg1[%c2_515, %c98_516] : memref<3x99xf32, #tpu.memory_space<smem>>
    %cst_517 = arith.constant 0.000000e+00 : f32
    %1139 = vector.broadcast %cst_517 : f32 to vector<1x3x16x1xf32>
    %1140 = tpu.concatenate %1139, %1035, %1139 in 1 : vector<1x3x16x1xf32>, vector<1x4x16x1xf32>, vector<1x3x16x1xf32> -> vector<1x10x16x1xf32>
    %cst_518 = arith.constant 0.000000e+00 : f32
    %1141 = vector.broadcast %cst_518 : f32 to vector<1x10x3x1xf32>
    %1142 = tpu.concatenate %1141, %1140, %1141 in 2 : vector<1x10x3x1xf32>, vector<1x10x16x1xf32>, vector<1x10x3x1xf32> -> vector<1x10x22x1xf32>
    %cst_519 = arith.constant 0.000000e+00 : f32
    %1143 = vector.broadcast %cst_519 : f32 to vector<1x3x16x1xf32>
    %1144 = tpu.concatenate %1143, %1039, %1143 in 1 : vector<1x3x16x1xf32>, vector<1x4x16x1xf32>, vector<1x3x16x1xf32> -> vector<1x10x16x1xf32>
    %cst_520 = arith.constant 0.000000e+00 : f32
    %1145 = vector.broadcast %cst_520 : f32 to vector<1x10x3x1xf32>
    %1146 = tpu.concatenate %1145, %1144, %1145 in 2 : vector<1x10x3x1xf32>, vector<1x10x16x1xf32>, vector<1x10x3x1xf32> -> vector<1x10x22x1xf32>
    %cst_521 = arith.constant 0.000000e+00 : f32
    %1147 = vector.broadcast %cst_521 : f32 to vector<1x4x16x1xf32>
    %1148 = vector.extract_strided_slice %1142 {offsets = [0, 0, 0, 0], sizes = [1, 4, 16, 1], strides = [1, 1, 1, 1]} : vector<1x10x22x1xf32> to vector<1x4x16x1xf32>
    %1149 = vector.broadcast %1040 : f32 to vector<1x4x16x1xf32>
    %1150 = arith.mulf %1149, %1148 : vector<1x4x16x1xf32>
    %1151 = vector.extract_strided_slice %1146 {offsets = [0, 0, 0, 0], sizes = [1, 4, 16, 1], strides = [1, 1, 1, 1]} : vector<1x10x22x1xf32> to vector<1x4x16x1xf32>
    %1152 = vector.broadcast %1089 : f32 to vector<1x4x16x1xf32>
    %1153 = arith.mulf %1152, %1151 : vector<1x4x16x1xf32>
    %1154 = arith.addf %1150, %1153 : vector<1x4x16x1xf32>
    %1155 = arith.addf %1147, %1154 : vector<1x4x16x1xf32>
    %1156 = vector.extract_strided_slice %1142 {offsets = [0, 0, 1, 0], sizes = [1, 4, 16, 1], strides = [1, 1, 1, 1]} : vector<1x10x22x1xf32> to vector<1x4x16x1xf32>
    %1157 = vector.broadcast %1041 : f32 to vector<1x4x16x1xf32>
    %1158 = arith.mulf %1157, %1156 : vector<1x4x16x1xf32>
    %1159 = vector.extract_strided_slice %1146 {offsets = [0, 0, 1, 0], sizes = [1, 4, 16, 1], strides = [1, 1, 1, 1]} : vector<1x10x22x1xf32> to vector<1x4x16x1xf32>
    %1160 = vector.broadcast %1090 : f32 to vector<1x4x16x1xf32>
    %1161 = arith.mulf %1160, %1159 : vector<1x4x16x1xf32>
    %1162 = arith.addf %1158, %1161 : vector<1x4x16x1xf32>
    %1163 = arith.addf %1155, %1162 : vector<1x4x16x1xf32>
    %1164 = vector.extract_strided_slice %1142 {offsets = [0, 0, 2, 0], sizes = [1, 4, 16, 1], strides = [1, 1, 1, 1]} : vector<1x10x22x1xf32> to vector<1x4x16x1xf32>
    %1165 = vector.broadcast %1042 : f32 to vector<1x4x16x1xf32>
    %1166 = arith.mulf %1165, %1164 : vector<1x4x16x1xf32>
    %1167 = vector.extract_strided_slice %1146 {offsets = [0, 0, 2, 0], sizes = [1, 4, 16, 1], strides = [1, 1, 1, 1]} : vector<1x10x22x1xf32> to vector<1x4x16x1xf32>
    %1168 = vector.broadcast %1091 : f32 to vector<1x4x16x1xf32>
    %1169 = arith.mulf %1168, %1167 : vector<1x4x16x1xf32>
    %1170 = arith.addf %1166, %1169 : vector<1x4x16x1xf32>
    %1171 = arith.addf %1163, %1170 : vector<1x4x16x1xf32>
    %1172 = vector.extract_strided_slice %1142 {offsets = [0, 0, 3, 0], sizes = [1, 4, 16, 1], strides = [1, 1, 1, 1]} : vector<1x10x22x1xf32> to vector<1x4x16x1xf32>
    %1173 = vector.broadcast %1043 : f32 to vector<1x4x16x1xf32>
    %1174 = arith.mulf %1173, %1172 : vector<1x4x16x1xf32>
    %1175 = vector.extract_strided_slice %1146 {offsets = [0, 0, 3, 0], sizes = [1, 4, 16, 1], strides = [1, 1, 1, 1]} : vector<1x10x22x1xf32> to vector<1x4x16x1xf32>
    %1176 = vector.broadcast %1092 : f32 to vector<1x4x16x1xf32>
    %1177 = arith.mulf %1176, %1175 : vector<1x4x16x1xf32>
    %1178 = arith.addf %1174, %1177 : vector<1x4x16x1xf32>
    %1179 = arith.addf %1171, %1178 : vector<1x4x16x1xf32>
    %1180 = vector.extract_strided_slice %1142 {offsets = [0, 0, 4, 0], sizes = [1, 4, 16, 1], strides = [1, 1, 1, 1]} : vector<1x10x22x1xf32> to vector<1x4x16x1xf32>
    %1181 = vector.broadcast %1044 : f32 to vector<1x4x16x1xf32>
    %1182 = arith.mulf %1181, %1180 : vector<1x4x16x1xf32>
    %1183 = vector.extract_strided_slice %1146 {offsets = [0, 0, 4, 0], sizes = [1, 4, 16, 1], strides = [1, 1, 1, 1]} : vector<1x10x22x1xf32> to vector<1x4x16x1xf32>
    %1184 = vector.broadcast %1093 : f32 to vector<1x4x16x1xf32>
    %1185 = arith.mulf %1184, %1183 : vector<1x4x16x1xf32>
    %1186 = arith.addf %1182, %1185 : vector<1x4x16x1xf32>
    %1187 = arith.addf %1179, %1186 : vector<1x4x16x1xf32>
    %1188 = vector.extract_strided_slice %1142 {offsets = [0, 0, 5, 0], sizes = [1, 4, 16, 1], strides = [1, 1, 1, 1]} : vector<1x10x22x1xf32> to vector<1x4x16x1xf32>
    %1189 = vector.broadcast %1045 : f32 to vector<1x4x16x1xf32>
    %1190 = arith.mulf %1189, %1188 : vector<1x4x16x1xf32>
    %1191 = vector.extract_strided_slice %1146 {offsets = [0, 0, 5, 0], sizes = [1, 4, 16, 1], strides = [1, 1, 1, 1]} : vector<1x10x22x1xf32> to vector<1x4x16x1xf32>
    %1192 = vector.broadcast %1094 : f32 to vector<1x4x16x1xf32>
    %1193 = arith.mulf %1192, %1191 : vector<1x4x16x1xf32>
    %1194 = arith.addf %1190, %1193 : vector<1x4x16x1xf32>
    %1195 = arith.addf %1187, %1194 : vector<1x4x16x1xf32>
    %1196 = vector.extract_strided_slice %1142 {offsets = [0, 0, 6, 0], sizes = [1, 4, 16, 1], strides = [1, 1, 1, 1]} : vector<1x10x22x1xf32> to vector<1x4x16x1xf32>
    %1197 = vector.broadcast %1046 : f32 to vector<1x4x16x1xf32>
    %1198 = arith.mulf %1197, %1196 : vector<1x4x16x1xf32>
    %1199 = vector.extract_strided_slice %1146 {offsets = [0, 0, 6, 0], sizes = [1, 4, 16, 1], strides = [1, 1, 1, 1]} : vector<1x10x22x1xf32> to vector<1x4x16x1xf32>
    %1200 = vector.broadcast %1095 : f32 to vector<1x4x16x1xf32>
    %1201 = arith.mulf %1200, %1199 : vector<1x4x16x1xf32>
    %1202 = arith.addf %1198, %1201 : vector<1x4x16x1xf32>
    %1203 = arith.addf %1195, %1202 : vector<1x4x16x1xf32>
    %1204 = vector.extract_strided_slice %1142 {offsets = [0, 1, 0, 0], sizes = [1, 4, 16, 1], strides = [1, 1, 1, 1]} : vector<1x10x22x1xf32> to vector<1x4x16x1xf32>
    %1205 = vector.broadcast %1047 : f32 to vector<1x4x16x1xf32>
    %1206 = arith.mulf %1205, %1204 : vector<1x4x16x1xf32>
    %1207 = vector.extract_strided_slice %1146 {offsets = [0, 1, 0, 0], sizes = [1, 4, 16, 1], strides = [1, 1, 1, 1]} : vector<1x10x22x1xf32> to vector<1x4x16x1xf32>
    %1208 = vector.broadcast %1096 : f32 to vector<1x4x16x1xf32>
    %1209 = arith.mulf %1208, %1207 : vector<1x4x16x1xf32>
    %1210 = arith.addf %1206, %1209 : vector<1x4x16x1xf32>
    %1211 = arith.addf %1203, %1210 : vector<1x4x16x1xf32>
    %1212 = vector.extract_strided_slice %1142 {offsets = [0, 1, 1, 0], sizes = [1, 4, 16, 1], strides = [1, 1, 1, 1]} : vector<1x10x22x1xf32> to vector<1x4x16x1xf32>
    %1213 = vector.broadcast %1048 : f32 to vector<1x4x16x1xf32>
    %1214 = arith.mulf %1213, %1212 : vector<1x4x16x1xf32>
    %1215 = vector.extract_strided_slice %1146 {offsets = [0, 1, 1, 0], sizes = [1, 4, 16, 1], strides = [1, 1, 1, 1]} : vector<1x10x22x1xf32> to vector<1x4x16x1xf32>
    %1216 = vector.broadcast %1097 : f32 to vector<1x4x16x1xf32>
    %1217 = arith.mulf %1216, %1215 : vector<1x4x16x1xf32>
    %1218 = arith.addf %1214, %1217 : vector<1x4x16x1xf32>
    %1219 = arith.addf %1211, %1218 : vector<1x4x16x1xf32>
    %1220 = vector.extract_strided_slice %1142 {offsets = [0, 1, 2, 0], sizes = [1, 4, 16, 1], strides = [1, 1, 1, 1]} : vector<1x10x22x1xf32> to vector<1x4x16x1xf32>
    %1221 = vector.broadcast %1049 : f32 to vector<1x4x16x1xf32>
    %1222 = arith.mulf %1221, %1220 : vector<1x4x16x1xf32>
    %1223 = vector.extract_strided_slice %1146 {offsets = [0, 1, 2, 0], sizes = [1, 4, 16, 1], strides = [1, 1, 1, 1]} : vector<1x10x22x1xf32> to vector<1x4x16x1xf32>
    %1224 = vector.broadcast %1098 : f32 to vector<1x4x16x1xf32>
    %1225 = arith.mulf %1224, %1223 : vector<1x4x16x1xf32>
    %1226 = arith.addf %1222, %1225 : vector<1x4x16x1xf32>
    %1227 = arith.addf %1219, %1226 : vector<1x4x16x1xf32>
    %1228 = vector.extract_strided_slice %1142 {offsets = [0, 1, 3, 0], sizes = [1, 4, 16, 1], strides = [1, 1, 1, 1]} : vector<1x10x22x1xf32> to vector<1x4x16x1xf32>
    %1229 = vector.broadcast %1050 : f32 to vector<1x4x16x1xf32>
    %1230 = arith.mulf %1229, %1228 : vector<1x4x16x1xf32>
    %1231 = vector.extract_strided_slice %1146 {offsets = [0, 1, 3, 0], sizes = [1, 4, 16, 1], strides = [1, 1, 1, 1]} : vector<1x10x22x1xf32> to vector<1x4x16x1xf32>
    %1232 = vector.broadcast %1099 : f32 to vector<1x4x16x1xf32>
    %1233 = arith.mulf %1232, %1231 : vector<1x4x16x1xf32>
    %1234 = arith.addf %1230, %1233 : vector<1x4x16x1xf32>
    %1235 = arith.addf %1227, %1234 : vector<1x4x16x1xf32>
    %1236 = vector.extract_strided_slice %1142 {offsets = [0, 1, 4, 0], sizes = [1, 4, 16, 1], strides = [1, 1, 1, 1]} : vector<1x10x22x1xf32> to vector<1x4x16x1xf32>
    %1237 = vector.broadcast %1051 : f32 to vector<1x4x16x1xf32>
    %1238 = arith.mulf %1237, %1236 : vector<1x4x16x1xf32>
    %1239 = vector.extract_strided_slice %1146 {offsets = [0, 1, 4, 0], sizes = [1, 4, 16, 1], strides = [1, 1, 1, 1]} : vector<1x10x22x1xf32> to vector<1x4x16x1xf32>
    %1240 = vector.broadcast %1100 : f32 to vector<1x4x16x1xf32>
    %1241 = arith.mulf %1240, %1239 : vector<1x4x16x1xf32>
    %1242 = arith.addf %1238, %1241 : vector<1x4x16x1xf32>
    %1243 = arith.addf %1235, %1242 : vector<1x4x16x1xf32>
    %1244 = vector.extract_strided_slice %1142 {offsets = [0, 1, 5, 0], sizes = [1, 4, 16, 1], strides = [1, 1, 1, 1]} : vector<1x10x22x1xf32> to vector<1x4x16x1xf32>
    %1245 = vector.broadcast %1052 : f32 to vector<1x4x16x1xf32>
    %1246 = arith.mulf %1245, %1244 : vector<1x4x16x1xf32>
    %1247 = vector.extract_strided_slice %1146 {offsets = [0, 1, 5, 0], sizes = [1, 4, 16, 1], strides = [1, 1, 1, 1]} : vector<1x10x22x1xf32> to vector<1x4x16x1xf32>
    %1248 = vector.broadcast %1101 : f32 to vector<1x4x16x1xf32>
    %1249 = arith.mulf %1248, %1247 : vector<1x4x16x1xf32>
    %1250 = arith.addf %1246, %1249 : vector<1x4x16x1xf32>
    %1251 = arith.addf %1243, %1250 : vector<1x4x16x1xf32>
    %1252 = vector.extract_strided_slice %1142 {offsets = [0, 1, 6, 0], sizes = [1, 4, 16, 1], strides = [1, 1, 1, 1]} : vector<1x10x22x1xf32> to vector<1x4x16x1xf32>
    %1253 = vector.broadcast %1053 : f32 to vector<1x4x16x1xf32>
    %1254 = arith.mulf %1253, %1252 : vector<1x4x16x1xf32>
    %1255 = vector.extract_strided_slice %1146 {offsets = [0, 1, 6, 0], sizes = [1, 4, 16, 1], strides = [1, 1, 1, 1]} : vector<1x10x22x1xf32> to vector<1x4x16x1xf32>
    %1256 = vector.broadcast %1102 : f32 to vector<1x4x16x1xf32>
    %1257 = arith.mulf %1256, %1255 : vector<1x4x16x1xf32>
    %1258 = arith.addf %1254, %1257 : vector<1x4x16x1xf32>
    %1259 = arith.addf %1251, %1258 : vector<1x4x16x1xf32>
    %1260 = vector.extract_strided_slice %1142 {offsets = [0, 2, 0, 0], sizes = [1, 4, 16, 1], strides = [1, 1, 1, 1]} : vector<1x10x22x1xf32> to vector<1x4x16x1xf32>
    %1261 = vector.broadcast %1054 : f32 to vector<1x4x16x1xf32>
    %1262 = arith.mulf %1261, %1260 : vector<1x4x16x1xf32>
    %1263 = vector.extract_strided_slice %1146 {offsets = [0, 2, 0, 0], sizes = [1, 4, 16, 1], strides = [1, 1, 1, 1]} : vector<1x10x22x1xf32> to vector<1x4x16x1xf32>
    %1264 = vector.broadcast %1103 : f32 to vector<1x4x16x1xf32>
    %1265 = arith.mulf %1264, %1263 : vector<1x4x16x1xf32>
    %1266 = arith.addf %1262, %1265 : vector<1x4x16x1xf32>
    %1267 = arith.addf %1259, %1266 : vector<1x4x16x1xf32>
    %1268 = vector.extract_strided_slice %1142 {offsets = [0, 2, 1, 0], sizes = [1, 4, 16, 1], strides = [1, 1, 1, 1]} : vector<1x10x22x1xf32> to vector<1x4x16x1xf32>
    %1269 = vector.broadcast %1055 : f32 to vector<1x4x16x1xf32>
    %1270 = arith.mulf %1269, %1268 : vector<1x4x16x1xf32>
    %1271 = vector.extract_strided_slice %1146 {offsets = [0, 2, 1, 0], sizes = [1, 4, 16, 1], strides = [1, 1, 1, 1]} : vector<1x10x22x1xf32> to vector<1x4x16x1xf32>
    %1272 = vector.broadcast %1104 : f32 to vector<1x4x16x1xf32>
    %1273 = arith.mulf %1272, %1271 : vector<1x4x16x1xf32>
    %1274 = arith.addf %1270, %1273 : vector<1x4x16x1xf32>
    %1275 = arith.addf %1267, %1274 : vector<1x4x16x1xf32>
    %1276 = vector.extract_strided_slice %1142 {offsets = [0, 2, 2, 0], sizes = [1, 4, 16, 1], strides = [1, 1, 1, 1]} : vector<1x10x22x1xf32> to vector<1x4x16x1xf32>
    %1277 = vector.broadcast %1056 : f32 to vector<1x4x16x1xf32>
    %1278 = arith.mulf %1277, %1276 : vector<1x4x16x1xf32>
    %1279 = vector.extract_strided_slice %1146 {offsets = [0, 2, 2, 0], sizes = [1, 4, 16, 1], strides = [1, 1, 1, 1]} : vector<1x10x22x1xf32> to vector<1x4x16x1xf32>
    %1280 = vector.broadcast %1105 : f32 to vector<1x4x16x1xf32>
    %1281 = arith.mulf %1280, %1279 : vector<1x4x16x1xf32>
    %1282 = arith.addf %1278, %1281 : vector<1x4x16x1xf32>
    %1283 = arith.addf %1275, %1282 : vector<1x4x16x1xf32>
    %1284 = vector.extract_strided_slice %1142 {offsets = [0, 2, 3, 0], sizes = [1, 4, 16, 1], strides = [1, 1, 1, 1]} : vector<1x10x22x1xf32> to vector<1x4x16x1xf32>
    %1285 = vector.broadcast %1057 : f32 to vector<1x4x16x1xf32>
    %1286 = arith.mulf %1285, %1284 : vector<1x4x16x1xf32>
    %1287 = vector.extract_strided_slice %1146 {offsets = [0, 2, 3, 0], sizes = [1, 4, 16, 1], strides = [1, 1, 1, 1]} : vector<1x10x22x1xf32> to vector<1x4x16x1xf32>
    %1288 = vector.broadcast %1106 : f32 to vector<1x4x16x1xf32>
    %1289 = arith.mulf %1288, %1287 : vector<1x4x16x1xf32>
    %1290 = arith.addf %1286, %1289 : vector<1x4x16x1xf32>
    %1291 = arith.addf %1283, %1290 : vector<1x4x16x1xf32>
    %1292 = vector.extract_strided_slice %1142 {offsets = [0, 2, 4, 0], sizes = [1, 4, 16, 1], strides = [1, 1, 1, 1]} : vector<1x10x22x1xf32> to vector<1x4x16x1xf32>
    %1293 = vector.broadcast %1058 : f32 to vector<1x4x16x1xf32>
    %1294 = arith.mulf %1293, %1292 : vector<1x4x16x1xf32>
    %1295 = vector.extract_strided_slice %1146 {offsets = [0, 2, 4, 0], sizes = [1, 4, 16, 1], strides = [1, 1, 1, 1]} : vector<1x10x22x1xf32> to vector<1x4x16x1xf32>
    %1296 = vector.broadcast %1107 : f32 to vector<1x4x16x1xf32>
    %1297 = arith.mulf %1296, %1295 : vector<1x4x16x1xf32>
    %1298 = arith.addf %1294, %1297 : vector<1x4x16x1xf32>
    %1299 = arith.addf %1291, %1298 : vector<1x4x16x1xf32>
    %1300 = vector.extract_strided_slice %1142 {offsets = [0, 2, 5, 0], sizes = [1, 4, 16, 1], strides = [1, 1, 1, 1]} : vector<1x10x22x1xf32> to vector<1x4x16x1xf32>
    %1301 = vector.broadcast %1059 : f32 to vector<1x4x16x1xf32>
    %1302 = arith.mulf %1301, %1300 : vector<1x4x16x1xf32>
    %1303 = vector.extract_strided_slice %1146 {offsets = [0, 2, 5, 0], sizes = [1, 4, 16, 1], strides = [1, 1, 1, 1]} : vector<1x10x22x1xf32> to vector<1x4x16x1xf32>
    %1304 = vector.broadcast %1108 : f32 to vector<1x4x16x1xf32>
    %1305 = arith.mulf %1304, %1303 : vector<1x4x16x1xf32>
    %1306 = arith.addf %1302, %1305 : vector<1x4x16x1xf32>
    %1307 = arith.addf %1299, %1306 : vector<1x4x16x1xf32>
    %1308 = vector.extract_strided_slice %1142 {offsets = [0, 2, 6, 0], sizes = [1, 4, 16, 1], strides = [1, 1, 1, 1]} : vector<1x10x22x1xf32> to vector<1x4x16x1xf32>
    %1309 = vector.broadcast %1060 : f32 to vector<1x4x16x1xf32>
    %1310 = arith.mulf %1309, %1308 : vector<1x4x16x1xf32>
    %1311 = vector.extract_strided_slice %1146 {offsets = [0, 2, 6, 0], sizes = [1, 4, 16, 1], strides = [1, 1, 1, 1]} : vector<1x10x22x1xf32> to vector<1x4x16x1xf32>
    %1312 = vector.broadcast %1109 : f32 to vector<1x4x16x1xf32>
    %1313 = arith.mulf %1312, %1311 : vector<1x4x16x1xf32>
    %1314 = arith.addf %1310, %1313 : vector<1x4x16x1xf32>
    %1315 = arith.addf %1307, %1314 : vector<1x4x16x1xf32>
    %1316 = vector.extract_strided_slice %1142 {offsets = [0, 3, 0, 0], sizes = [1, 4, 16, 1], strides = [1, 1, 1, 1]} : vector<1x10x22x1xf32> to vector<1x4x16x1xf32>
    %1317 = vector.broadcast %1061 : f32 to vector<1x4x16x1xf32>
    %1318 = arith.mulf %1317, %1316 : vector<1x4x16x1xf32>
    %1319 = vector.extract_strided_slice %1146 {offsets = [0, 3, 0, 0], sizes = [1, 4, 16, 1], strides = [1, 1, 1, 1]} : vector<1x10x22x1xf32> to vector<1x4x16x1xf32>
    %1320 = vector.broadcast %1110 : f32 to vector<1x4x16x1xf32>
    %1321 = arith.mulf %1320, %1319 : vector<1x4x16x1xf32>
    %1322 = arith.addf %1318, %1321 : vector<1x4x16x1xf32>
    %1323 = arith.addf %1315, %1322 : vector<1x4x16x1xf32>
    %1324 = vector.extract_strided_slice %1142 {offsets = [0, 3, 1, 0], sizes = [1, 4, 16, 1], strides = [1, 1, 1, 1]} : vector<1x10x22x1xf32> to vector<1x4x16x1xf32>
    %1325 = vector.broadcast %1062 : f32 to vector<1x4x16x1xf32>
    %1326 = arith.mulf %1325, %1324 : vector<1x4x16x1xf32>
    %1327 = vector.extract_strided_slice %1146 {offsets = [0, 3, 1, 0], sizes = [1, 4, 16, 1], strides = [1, 1, 1, 1]} : vector<1x10x22x1xf32> to vector<1x4x16x1xf32>
    %1328 = vector.broadcast %1111 : f32 to vector<1x4x16x1xf32>
    %1329 = arith.mulf %1328, %1327 : vector<1x4x16x1xf32>
    %1330 = arith.addf %1326, %1329 : vector<1x4x16x1xf32>
    %1331 = arith.addf %1323, %1330 : vector<1x4x16x1xf32>
    %1332 = vector.extract_strided_slice %1142 {offsets = [0, 3, 2, 0], sizes = [1, 4, 16, 1], strides = [1, 1, 1, 1]} : vector<1x10x22x1xf32> to vector<1x4x16x1xf32>
    %1333 = vector.broadcast %1063 : f32 to vector<1x4x16x1xf32>
    %1334 = arith.mulf %1333, %1332 : vector<1x4x16x1xf32>
    %1335 = vector.extract_strided_slice %1146 {offsets = [0, 3, 2, 0], sizes = [1, 4, 16, 1], strides = [1, 1, 1, 1]} : vector<1x10x22x1xf32> to vector<1x4x16x1xf32>
    %1336 = vector.broadcast %1112 : f32 to vector<1x4x16x1xf32>
    %1337 = arith.mulf %1336, %1335 : vector<1x4x16x1xf32>
    %1338 = arith.addf %1334, %1337 : vector<1x4x16x1xf32>
    %1339 = arith.addf %1331, %1338 : vector<1x4x16x1xf32>
    %1340 = vector.extract_strided_slice %1142 {offsets = [0, 3, 3, 0], sizes = [1, 4, 16, 1], strides = [1, 1, 1, 1]} : vector<1x10x22x1xf32> to vector<1x4x16x1xf32>
    %1341 = vector.broadcast %1064 : f32 to vector<1x4x16x1xf32>
    %1342 = arith.mulf %1341, %1340 : vector<1x4x16x1xf32>
    %1343 = vector.extract_strided_slice %1146 {offsets = [0, 3, 3, 0], sizes = [1, 4, 16, 1], strides = [1, 1, 1, 1]} : vector<1x10x22x1xf32> to vector<1x4x16x1xf32>
    %1344 = vector.broadcast %1113 : f32 to vector<1x4x16x1xf32>
    %1345 = arith.mulf %1344, %1343 : vector<1x4x16x1xf32>
    %1346 = arith.addf %1342, %1345 : vector<1x4x16x1xf32>
    %1347 = arith.addf %1339, %1346 : vector<1x4x16x1xf32>
    %1348 = vector.extract_strided_slice %1142 {offsets = [0, 3, 4, 0], sizes = [1, 4, 16, 1], strides = [1, 1, 1, 1]} : vector<1x10x22x1xf32> to vector<1x4x16x1xf32>
    %1349 = vector.broadcast %1065 : f32 to vector<1x4x16x1xf32>
    %1350 = arith.mulf %1349, %1348 : vector<1x4x16x1xf32>
    %1351 = vector.extract_strided_slice %1146 {offsets = [0, 3, 4, 0], sizes = [1, 4, 16, 1], strides = [1, 1, 1, 1]} : vector<1x10x22x1xf32> to vector<1x4x16x1xf32>
    %1352 = vector.broadcast %1114 : f32 to vector<1x4x16x1xf32>
    %1353 = arith.mulf %1352, %1351 : vector<1x4x16x1xf32>
    %1354 = arith.addf %1350, %1353 : vector<1x4x16x1xf32>
    %1355 = arith.addf %1347, %1354 : vector<1x4x16x1xf32>
    %1356 = vector.extract_strided_slice %1142 {offsets = [0, 3, 5, 0], sizes = [1, 4, 16, 1], strides = [1, 1, 1, 1]} : vector<1x10x22x1xf32> to vector<1x4x16x1xf32>
    %1357 = vector.broadcast %1066 : f32 to vector<1x4x16x1xf32>
    %1358 = arith.mulf %1357, %1356 : vector<1x4x16x1xf32>
    %1359 = vector.extract_strided_slice %1146 {offsets = [0, 3, 5, 0], sizes = [1, 4, 16, 1], strides = [1, 1, 1, 1]} : vector<1x10x22x1xf32> to vector<1x4x16x1xf32>
    %1360 = vector.broadcast %1115 : f32 to vector<1x4x16x1xf32>
    %1361 = arith.mulf %1360, %1359 : vector<1x4x16x1xf32>
    %1362 = arith.addf %1358, %1361 : vector<1x4x16x1xf32>
    %1363 = arith.addf %1355, %1362 : vector<1x4x16x1xf32>
    %1364 = vector.extract_strided_slice %1142 {offsets = [0, 3, 6, 0], sizes = [1, 4, 16, 1], strides = [1, 1, 1, 1]} : vector<1x10x22x1xf32> to vector<1x4x16x1xf32>
    %1365 = vector.broadcast %1067 : f32 to vector<1x4x16x1xf32>
    %1366 = arith.mulf %1365, %1364 : vector<1x4x16x1xf32>
    %1367 = vector.extract_strided_slice %1146 {offsets = [0, 3, 6, 0], sizes = [1, 4, 16, 1], strides = [1, 1, 1, 1]} : vector<1x10x22x1xf32> to vector<1x4x16x1xf32>
    %1368 = vector.broadcast %1116 : f32 to vector<1x4x16x1xf32>
    %1369 = arith.mulf %1368, %1367 : vector<1x4x16x1xf32>
    %1370 = arith.addf %1366, %1369 : vector<1x4x16x1xf32>
    %1371 = arith.addf %1363, %1370 : vector<1x4x16x1xf32>
    %1372 = vector.extract_strided_slice %1142 {offsets = [0, 4, 0, 0], sizes = [1, 4, 16, 1], strides = [1, 1, 1, 1]} : vector<1x10x22x1xf32> to vector<1x4x16x1xf32>
    %1373 = vector.broadcast %1068 : f32 to vector<1x4x16x1xf32>
    %1374 = arith.mulf %1373, %1372 : vector<1x4x16x1xf32>
    %1375 = vector.extract_strided_slice %1146 {offsets = [0, 4, 0, 0], sizes = [1, 4, 16, 1], strides = [1, 1, 1, 1]} : vector<1x10x22x1xf32> to vector<1x4x16x1xf32>
    %1376 = vector.broadcast %1117 : f32 to vector<1x4x16x1xf32>
    %1377 = arith.mulf %1376, %1375 : vector<1x4x16x1xf32>
    %1378 = arith.addf %1374, %1377 : vector<1x4x16x1xf32>
    %1379 = arith.addf %1371, %1378 : vector<1x4x16x1xf32>
    %1380 = vector.extract_strided_slice %1142 {offsets = [0, 4, 1, 0], sizes = [1, 4, 16, 1], strides = [1, 1, 1, 1]} : vector<1x10x22x1xf32> to vector<1x4x16x1xf32>
    %1381 = vector.broadcast %1069 : f32 to vector<1x4x16x1xf32>
    %1382 = arith.mulf %1381, %1380 : vector<1x4x16x1xf32>
    %1383 = vector.extract_strided_slice %1146 {offsets = [0, 4, 1, 0], sizes = [1, 4, 16, 1], strides = [1, 1, 1, 1]} : vector<1x10x22x1xf32> to vector<1x4x16x1xf32>
    %1384 = vector.broadcast %1118 : f32 to vector<1x4x16x1xf32>
    %1385 = arith.mulf %1384, %1383 : vector<1x4x16x1xf32>
    %1386 = arith.addf %1382, %1385 : vector<1x4x16x1xf32>
    %1387 = arith.addf %1379, %1386 : vector<1x4x16x1xf32>
    %1388 = vector.extract_strided_slice %1142 {offsets = [0, 4, 2, 0], sizes = [1, 4, 16, 1], strides = [1, 1, 1, 1]} : vector<1x10x22x1xf32> to vector<1x4x16x1xf32>
    %1389 = vector.broadcast %1070 : f32 to vector<1x4x16x1xf32>
    %1390 = arith.mulf %1389, %1388 : vector<1x4x16x1xf32>
    %1391 = vector.extract_strided_slice %1146 {offsets = [0, 4, 2, 0], sizes = [1, 4, 16, 1], strides = [1, 1, 1, 1]} : vector<1x10x22x1xf32> to vector<1x4x16x1xf32>
    %1392 = vector.broadcast %1119 : f32 to vector<1x4x16x1xf32>
    %1393 = arith.mulf %1392, %1391 : vector<1x4x16x1xf32>
    %1394 = arith.addf %1390, %1393 : vector<1x4x16x1xf32>
    %1395 = arith.addf %1387, %1394 : vector<1x4x16x1xf32>
    %1396 = vector.extract_strided_slice %1142 {offsets = [0, 4, 3, 0], sizes = [1, 4, 16, 1], strides = [1, 1, 1, 1]} : vector<1x10x22x1xf32> to vector<1x4x16x1xf32>
    %1397 = vector.broadcast %1071 : f32 to vector<1x4x16x1xf32>
    %1398 = arith.mulf %1397, %1396 : vector<1x4x16x1xf32>
    %1399 = vector.extract_strided_slice %1146 {offsets = [0, 4, 3, 0], sizes = [1, 4, 16, 1], strides = [1, 1, 1, 1]} : vector<1x10x22x1xf32> to vector<1x4x16x1xf32>
    %1400 = vector.broadcast %1120 : f32 to vector<1x4x16x1xf32>
    %1401 = arith.mulf %1400, %1399 : vector<1x4x16x1xf32>
    %1402 = arith.addf %1398, %1401 : vector<1x4x16x1xf32>
    %1403 = arith.addf %1395, %1402 : vector<1x4x16x1xf32>
    %1404 = vector.extract_strided_slice %1142 {offsets = [0, 4, 4, 0], sizes = [1, 4, 16, 1], strides = [1, 1, 1, 1]} : vector<1x10x22x1xf32> to vector<1x4x16x1xf32>
    %1405 = vector.broadcast %1072 : f32 to vector<1x4x16x1xf32>
    %1406 = arith.mulf %1405, %1404 : vector<1x4x16x1xf32>
    %1407 = vector.extract_strided_slice %1146 {offsets = [0, 4, 4, 0], sizes = [1, 4, 16, 1], strides = [1, 1, 1, 1]} : vector<1x10x22x1xf32> to vector<1x4x16x1xf32>
    %1408 = vector.broadcast %1121 : f32 to vector<1x4x16x1xf32>
    %1409 = arith.mulf %1408, %1407 : vector<1x4x16x1xf32>
    %1410 = arith.addf %1406, %1409 : vector<1x4x16x1xf32>
    %1411 = arith.addf %1403, %1410 : vector<1x4x16x1xf32>
    %1412 = vector.extract_strided_slice %1142 {offsets = [0, 4, 5, 0], sizes = [1, 4, 16, 1], strides = [1, 1, 1, 1]} : vector<1x10x22x1xf32> to vector<1x4x16x1xf32>
    %1413 = vector.broadcast %1073 : f32 to vector<1x4x16x1xf32>
    %1414 = arith.mulf %1413, %1412 : vector<1x4x16x1xf32>
    %1415 = vector.extract_strided_slice %1146 {offsets = [0, 4, 5, 0], sizes = [1, 4, 16, 1], strides = [1, 1, 1, 1]} : vector<1x10x22x1xf32> to vector<1x4x16x1xf32>
    %1416 = vector.broadcast %1122 : f32 to vector<1x4x16x1xf32>
    %1417 = arith.mulf %1416, %1415 : vector<1x4x16x1xf32>
    %1418 = arith.addf %1414, %1417 : vector<1x4x16x1xf32>
    %1419 = arith.addf %1411, %1418 : vector<1x4x16x1xf32>
    %1420 = vector.extract_strided_slice %1142 {offsets = [0, 4, 6, 0], sizes = [1, 4, 16, 1], strides = [1, 1, 1, 1]} : vector<1x10x22x1xf32> to vector<1x4x16x1xf32>
    %1421 = vector.broadcast %1074 : f32 to vector<1x4x16x1xf32>
    %1422 = arith.mulf %1421, %1420 : vector<1x4x16x1xf32>
    %1423 = vector.extract_strided_slice %1146 {offsets = [0, 4, 6, 0], sizes = [1, 4, 16, 1], strides = [1, 1, 1, 1]} : vector<1x10x22x1xf32> to vector<1x4x16x1xf32>
    %1424 = vector.broadcast %1123 : f32 to vector<1x4x16x1xf32>
    %1425 = arith.mulf %1424, %1423 : vector<1x4x16x1xf32>
    %1426 = arith.addf %1422, %1425 : vector<1x4x16x1xf32>
    %1427 = arith.addf %1419, %1426 : vector<1x4x16x1xf32>
    %1428 = vector.extract_strided_slice %1142 {offsets = [0, 5, 0, 0], sizes = [1, 4, 16, 1], strides = [1, 1, 1, 1]} : vector<1x10x22x1xf32> to vector<1x4x16x1xf32>
    %1429 = vector.broadcast %1075 : f32 to vector<1x4x16x1xf32>
    %1430 = arith.mulf %1429, %1428 : vector<1x4x16x1xf32>
    %1431 = vector.extract_strided_slice %1146 {offsets = [0, 5, 0, 0], sizes = [1, 4, 16, 1], strides = [1, 1, 1, 1]} : vector<1x10x22x1xf32> to vector<1x4x16x1xf32>
    %1432 = vector.broadcast %1124 : f32 to vector<1x4x16x1xf32>
    %1433 = arith.mulf %1432, %1431 : vector<1x4x16x1xf32>
    %1434 = arith.addf %1430, %1433 : vector<1x4x16x1xf32>
    %1435 = arith.addf %1427, %1434 : vector<1x4x16x1xf32>
    %1436 = vector.extract_strided_slice %1142 {offsets = [0, 5, 1, 0], sizes = [1, 4, 16, 1], strides = [1, 1, 1, 1]} : vector<1x10x22x1xf32> to vector<1x4x16x1xf32>
    %1437 = vector.broadcast %1076 : f32 to vector<1x4x16x1xf32>
    %1438 = arith.mulf %1437, %1436 : vector<1x4x16x1xf32>
    %1439 = vector.extract_strided_slice %1146 {offsets = [0, 5, 1, 0], sizes = [1, 4, 16, 1], strides = [1, 1, 1, 1]} : vector<1x10x22x1xf32> to vector<1x4x16x1xf32>
    %1440 = vector.broadcast %1125 : f32 to vector<1x4x16x1xf32>
    %1441 = arith.mulf %1440, %1439 : vector<1x4x16x1xf32>
    %1442 = arith.addf %1438, %1441 : vector<1x4x16x1xf32>
    %1443 = arith.addf %1435, %1442 : vector<1x4x16x1xf32>
    %1444 = vector.extract_strided_slice %1142 {offsets = [0, 5, 2, 0], sizes = [1, 4, 16, 1], strides = [1, 1, 1, 1]} : vector<1x10x22x1xf32> to vector<1x4x16x1xf32>
    %1445 = vector.broadcast %1077 : f32 to vector<1x4x16x1xf32>
    %1446 = arith.mulf %1445, %1444 : vector<1x4x16x1xf32>
    %1447 = vector.extract_strided_slice %1146 {offsets = [0, 5, 2, 0], sizes = [1, 4, 16, 1], strides = [1, 1, 1, 1]} : vector<1x10x22x1xf32> to vector<1x4x16x1xf32>
    %1448 = vector.broadcast %1126 : f32 to vector<1x4x16x1xf32>
    %1449 = arith.mulf %1448, %1447 : vector<1x4x16x1xf32>
    %1450 = arith.addf %1446, %1449 : vector<1x4x16x1xf32>
    %1451 = arith.addf %1443, %1450 : vector<1x4x16x1xf32>
    %1452 = vector.extract_strided_slice %1142 {offsets = [0, 5, 3, 0], sizes = [1, 4, 16, 1], strides = [1, 1, 1, 1]} : vector<1x10x22x1xf32> to vector<1x4x16x1xf32>
    %1453 = vector.broadcast %1078 : f32 to vector<1x4x16x1xf32>
    %1454 = arith.mulf %1453, %1452 : vector<1x4x16x1xf32>
    %1455 = vector.extract_strided_slice %1146 {offsets = [0, 5, 3, 0], sizes = [1, 4, 16, 1], strides = [1, 1, 1, 1]} : vector<1x10x22x1xf32> to vector<1x4x16x1xf32>
    %1456 = vector.broadcast %1127 : f32 to vector<1x4x16x1xf32>
    %1457 = arith.mulf %1456, %1455 : vector<1x4x16x1xf32>
    %1458 = arith.addf %1454, %1457 : vector<1x4x16x1xf32>
    %1459 = arith.addf %1451, %1458 : vector<1x4x16x1xf32>
    %1460 = vector.extract_strided_slice %1142 {offsets = [0, 5, 4, 0], sizes = [1, 4, 16, 1], strides = [1, 1, 1, 1]} : vector<1x10x22x1xf32> to vector<1x4x16x1xf32>
    %1461 = vector.broadcast %1079 : f32 to vector<1x4x16x1xf32>
    %1462 = arith.mulf %1461, %1460 : vector<1x4x16x1xf32>
    %1463 = vector.extract_strided_slice %1146 {offsets = [0, 5, 4, 0], sizes = [1, 4, 16, 1], strides = [1, 1, 1, 1]} : vector<1x10x22x1xf32> to vector<1x4x16x1xf32>
    %1464 = vector.broadcast %1128 : f32 to vector<1x4x16x1xf32>
    %1465 = arith.mulf %1464, %1463 : vector<1x4x16x1xf32>
    %1466 = arith.addf %1462, %1465 : vector<1x4x16x1xf32>
    %1467 = arith.addf %1459, %1466 : vector<1x4x16x1xf32>
    %1468 = vector.extract_strided_slice %1142 {offsets = [0, 5, 5, 0], sizes = [1, 4, 16, 1], strides = [1, 1, 1, 1]} : vector<1x10x22x1xf32> to vector<1x4x16x1xf32>
    %1469 = vector.broadcast %1080 : f32 to vector<1x4x16x1xf32>
    %1470 = arith.mulf %1469, %1468 : vector<1x4x16x1xf32>
    %1471 = vector.extract_strided_slice %1146 {offsets = [0, 5, 5, 0], sizes = [1, 4, 16, 1], strides = [1, 1, 1, 1]} : vector<1x10x22x1xf32> to vector<1x4x16x1xf32>
    %1472 = vector.broadcast %1129 : f32 to vector<1x4x16x1xf32>
    %1473 = arith.mulf %1472, %1471 : vector<1x4x16x1xf32>
    %1474 = arith.addf %1470, %1473 : vector<1x4x16x1xf32>
    %1475 = arith.addf %1467, %1474 : vector<1x4x16x1xf32>
    %1476 = vector.extract_strided_slice %1142 {offsets = [0, 5, 6, 0], sizes = [1, 4, 16, 1], strides = [1, 1, 1, 1]} : vector<1x10x22x1xf32> to vector<1x4x16x1xf32>
    %1477 = vector.broadcast %1081 : f32 to vector<1x4x16x1xf32>
    %1478 = arith.mulf %1477, %1476 : vector<1x4x16x1xf32>
    %1479 = vector.extract_strided_slice %1146 {offsets = [0, 5, 6, 0], sizes = [1, 4, 16, 1], strides = [1, 1, 1, 1]} : vector<1x10x22x1xf32> to vector<1x4x16x1xf32>
    %1480 = vector.broadcast %1130 : f32 to vector<1x4x16x1xf32>
    %1481 = arith.mulf %1480, %1479 : vector<1x4x16x1xf32>
    %1482 = arith.addf %1478, %1481 : vector<1x4x16x1xf32>
    %1483 = arith.addf %1475, %1482 : vector<1x4x16x1xf32>
    %1484 = vector.extract_strided_slice %1142 {offsets = [0, 6, 0, 0], sizes = [1, 4, 16, 1], strides = [1, 1, 1, 1]} : vector<1x10x22x1xf32> to vector<1x4x16x1xf32>
    %1485 = vector.broadcast %1082 : f32 to vector<1x4x16x1xf32>
    %1486 = arith.mulf %1485, %1484 : vector<1x4x16x1xf32>
    %1487 = vector.extract_strided_slice %1146 {offsets = [0, 6, 0, 0], sizes = [1, 4, 16, 1], strides = [1, 1, 1, 1]} : vector<1x10x22x1xf32> to vector<1x4x16x1xf32>
    %1488 = vector.broadcast %1131 : f32 to vector<1x4x16x1xf32>
    %1489 = arith.mulf %1488, %1487 : vector<1x4x16x1xf32>
    %1490 = arith.addf %1486, %1489 : vector<1x4x16x1xf32>
    %1491 = arith.addf %1483, %1490 : vector<1x4x16x1xf32>
    %1492 = vector.extract_strided_slice %1142 {offsets = [0, 6, 1, 0], sizes = [1, 4, 16, 1], strides = [1, 1, 1, 1]} : vector<1x10x22x1xf32> to vector<1x4x16x1xf32>
    %1493 = vector.broadcast %1083 : f32 to vector<1x4x16x1xf32>
    %1494 = arith.mulf %1493, %1492 : vector<1x4x16x1xf32>
    %1495 = vector.extract_strided_slice %1146 {offsets = [0, 6, 1, 0], sizes = [1, 4, 16, 1], strides = [1, 1, 1, 1]} : vector<1x10x22x1xf32> to vector<1x4x16x1xf32>
    %1496 = vector.broadcast %1132 : f32 to vector<1x4x16x1xf32>
    %1497 = arith.mulf %1496, %1495 : vector<1x4x16x1xf32>
    %1498 = arith.addf %1494, %1497 : vector<1x4x16x1xf32>
    %1499 = arith.addf %1491, %1498 : vector<1x4x16x1xf32>
    %1500 = vector.extract_strided_slice %1142 {offsets = [0, 6, 2, 0], sizes = [1, 4, 16, 1], strides = [1, 1, 1, 1]} : vector<1x10x22x1xf32> to vector<1x4x16x1xf32>
    %1501 = vector.broadcast %1084 : f32 to vector<1x4x16x1xf32>
    %1502 = arith.mulf %1501, %1500 : vector<1x4x16x1xf32>
    %1503 = vector.extract_strided_slice %1146 {offsets = [0, 6, 2, 0], sizes = [1, 4, 16, 1], strides = [1, 1, 1, 1]} : vector<1x10x22x1xf32> to vector<1x4x16x1xf32>
    %1504 = vector.broadcast %1133 : f32 to vector<1x4x16x1xf32>
    %1505 = arith.mulf %1504, %1503 : vector<1x4x16x1xf32>
    %1506 = arith.addf %1502, %1505 : vector<1x4x16x1xf32>
    %1507 = arith.addf %1499, %1506 : vector<1x4x16x1xf32>
    %1508 = vector.extract_strided_slice %1142 {offsets = [0, 6, 3, 0], sizes = [1, 4, 16, 1], strides = [1, 1, 1, 1]} : vector<1x10x22x1xf32> to vector<1x4x16x1xf32>
    %1509 = vector.broadcast %1085 : f32 to vector<1x4x16x1xf32>
    %1510 = arith.mulf %1509, %1508 : vector<1x4x16x1xf32>
    %1511 = vector.extract_strided_slice %1146 {offsets = [0, 6, 3, 0], sizes = [1, 4, 16, 1], strides = [1, 1, 1, 1]} : vector<1x10x22x1xf32> to vector<1x4x16x1xf32>
    %1512 = vector.broadcast %1134 : f32 to vector<1x4x16x1xf32>
    %1513 = arith.mulf %1512, %1511 : vector<1x4x16x1xf32>
    %1514 = arith.addf %1510, %1513 : vector<1x4x16x1xf32>
    %1515 = arith.addf %1507, %1514 : vector<1x4x16x1xf32>
    %1516 = vector.extract_strided_slice %1142 {offsets = [0, 6, 4, 0], sizes = [1, 4, 16, 1], strides = [1, 1, 1, 1]} : vector<1x10x22x1xf32> to vector<1x4x16x1xf32>
    %1517 = vector.broadcast %1086 : f32 to vector<1x4x16x1xf32>
    %1518 = arith.mulf %1517, %1516 : vector<1x4x16x1xf32>
    %1519 = vector.extract_strided_slice %1146 {offsets = [0, 6, 4, 0], sizes = [1, 4, 16, 1], strides = [1, 1, 1, 1]} : vector<1x10x22x1xf32> to vector<1x4x16x1xf32>
    %1520 = vector.broadcast %1135 : f32 to vector<1x4x16x1xf32>
    %1521 = arith.mulf %1520, %1519 : vector<1x4x16x1xf32>
    %1522 = arith.addf %1518, %1521 : vector<1x4x16x1xf32>
    %1523 = arith.addf %1515, %1522 : vector<1x4x16x1xf32>
    %1524 = vector.extract_strided_slice %1142 {offsets = [0, 6, 5, 0], sizes = [1, 4, 16, 1], strides = [1, 1, 1, 1]} : vector<1x10x22x1xf32> to vector<1x4x16x1xf32>
    %1525 = vector.broadcast %1087 : f32 to vector<1x4x16x1xf32>
    %1526 = arith.mulf %1525, %1524 : vector<1x4x16x1xf32>
    %1527 = vector.extract_strided_slice %1146 {offsets = [0, 6, 5, 0], sizes = [1, 4, 16, 1], strides = [1, 1, 1, 1]} : vector<1x10x22x1xf32> to vector<1x4x16x1xf32>
    %1528 = vector.broadcast %1136 : f32 to vector<1x4x16x1xf32>
    %1529 = arith.mulf %1528, %1527 : vector<1x4x16x1xf32>
    %1530 = arith.addf %1526, %1529 : vector<1x4x16x1xf32>
    %1531 = arith.addf %1523, %1530 : vector<1x4x16x1xf32>
    %1532 = vector.extract_strided_slice %1142 {offsets = [0, 6, 6, 0], sizes = [1, 4, 16, 1], strides = [1, 1, 1, 1]} : vector<1x10x22x1xf32> to vector<1x4x16x1xf32>
    %1533 = vector.broadcast %1088 : f32 to vector<1x4x16x1xf32>
    %1534 = arith.mulf %1533, %1532 : vector<1x4x16x1xf32>
    %1535 = vector.extract_strided_slice %1146 {offsets = [0, 6, 6, 0], sizes = [1, 4, 16, 1], strides = [1, 1, 1, 1]} : vector<1x10x22x1xf32> to vector<1x4x16x1xf32>
    %1536 = vector.broadcast %1137 : f32 to vector<1x4x16x1xf32>
    %1537 = arith.mulf %1536, %1535 : vector<1x4x16x1xf32>
    %1538 = arith.addf %1534, %1537 : vector<1x4x16x1xf32>
    %1539 = arith.addf %1531, %1538 : vector<1x4x16x1xf32>
    %1540 = vector.broadcast %1138 : f32 to vector<1x4x16x1xf32>
    %1541 = arith.addf %1539, %1540 : vector<1x4x16x1xf32>
    %1542 = arith.negf %1541 : vector<1x4x16x1xf32>
    %1543 = math.exp %1542 : vector<1x4x16x1xf32>
    %cst_522 = arith.constant 1.000000e+00 : f32
    %1544 = vector.broadcast %cst_522 : f32 to vector<1x4x16x1xf32>
    %1545 = arith.addf %1544, %1543 : vector<1x4x16x1xf32>
    %1546 = arith.divf %1544, %1545 : vector<1x4x16x1xf32>
    %1547 = vector.broadcast %520 : vector<1x1x16x16xf32> to vector<1x4x16x16xf32>
    %1548 = vector.broadcast %1033 : vector<1x4x1x16xf32> to vector<1x4x16x16xf32>
    %1549 = arith.addf %1547, %1548 : vector<1x4x16x16xf32>
    %1550 = vector.broadcast %1546 : vector<1x4x16x1xf32> to vector<1x4x16x16xf32>
    %1551 = arith.addf %1549, %1550 : vector<1x4x16x16xf32>
    %cst_523 = arith.constant 0.333333343 : f32
    %1552 = vector.broadcast %cst_523 : f32 to vector<1x4x16x16xf32>
    %1553 = arith.mulf %1551, %1552 : vector<1x4x16x16xf32>
    %1554 = arith.mulf %0, %1553 : vector<1x4x16x16xf32>
    %c0_524 = arith.constant 0 : index
    %c0_525 = arith.constant 0 : index
    %c0_526 = arith.constant 0 : index
    %c0_527 = arith.constant 0 : index
    %1555 = vector.load %arg3[%c0_524, %c0_525, %c0_526, %c0_527] : memref<1x4x16x16xf32, #tpu.memory_space<vmem>>, vector<1x4x16x16xf32>
    tpu.vector_store %arg3[%c0_524, %c0_525, %c0_526, %c0_527], %1554 {strides = array<i32>} : memref<1x4x16x16xf32, #tpu.memory_space<vmem>>, vector<1x4x16x16xf32>,
    return
  }
  func.func @transform_0(%arg0: i32) -> (i32, i32) {
    %c0_i32 = arith.constant 0 : i32
    %c0_i32_0 = arith.constant 0 : i32
    %c0_i32_1 = arith.constant 0 : i32
    return %c0_i32, %c0_i32_0 : i32, i32
  }
  func.func @transform_1(%arg0: i32) -> (i32, i32, i32, i32) {
    %c0_i32 = arith.constant 0 : i32
    %c0_i32_0 = arith.constant 0 : i32
    %c0_i32_1 = arith.constant 0 : i32
    %c0_i32_2 = arith.constant 0 : i32
    return %arg0, %c0_i32, %c0_i32_0, %c0_i32_1 : i32, i32, i32, i32
  }
  func.func @transform_2(%arg0: i32) -> (i32, i32, i32, i32) {
    %c0_i32 = arith.constant 0 : i32
    %c0_i32_0 = arith.constant 0 : i32
    %c0_i32_1 = arith.constant 0 : i32
    %c0_i32_2 = arith.constant 0 : i32
    return %arg0, %c0_i32, %c0_i32_0, %c0_i32_1 : i32, i32, i32, i32
  }
}

</mosaic_0001>

<llo_original>
// kernel: tpu_custom_call.1
$region0: #{tpu_custom_call.1}
  #allocation0 [shape = 'u32[]', space=smem, size = 0x4, offset = 0x4, fixed_abs, tag = 'smem constant byte address 0x4 - core index']
  #allocation1 [shape = 'u32[72,128]{1,0:T(1,128)}', space=vmem, size = 0x9000, scoped, tag = 'internal scratch']
  %s0 = inlined_call_operand.hbm [shape: f32[3,99], index: 0, kind: input, shape index: {}]
  %s1 = inlined_call_operand.hbm [shape: f32[2,4,16,16], index: 1, kind: input, shape index: {}]
  %s2 = inlined_call_operand.hbm [shape: f32[2,4,16,16], index: 2, kind: output, shape index: {}]
  %s3 = sld [smem:[#allocation0]]
  $region49: #{tpu_custom_call.1} parent=0
    _
  %s5 = ssub.s32 1, %s3
  %s6 = scalar_select 0, %s5, %s3
  $region1: #{tpu_custom_call.1} parent=0
    #allocation2 [shape = 'u8[2048]{0}', space=smem, size = 0x800, scoped, tag = 'input window, operand 0, single buffered']
    #allocation3 [shape = 's32[2]{0}', space=sflag, size = 0x8, scoped, tag = 'scoped memory for tpu_custom_call.1']
    #allocation4 [shape = 's32[2]{0}', space=sflag, size = 0x8, scoped, tag = 'scoped memory for tpu_custom_call.1']
    #allocation5 [shape = 's32[2]{0}', space=sflag, size = 0x8, scoped, tag = 'scoped memory for tpu_custom_call.1']
    #allocation6 [shape = 'u8[65536]{0}', space=vmem, size = 0x10000, scoped, tag = 'input window, operand 1']
    #allocation7 [shape = 'u8[65536]{0}', space=vmem, size = 0x10000, scoped, tag = 'output window, operand 0']
    %7 = vsyncpa [#allocation5], 0
    %8 = vsyncpa [#allocation3], 0
    %s9 = scalar_lea.sflag [#allocation3], 1
    %10 = vsyncpa %s9, 0
    %11 = vsyncpa [#allocation4], 0
    %s12 = scalar_lea.sflag [#allocation4], 1
    %13 = vsyncpa %s12, 0
    loop: start=0, step=1, limit=4
    $region2: #{tpu_custom_call.1} parent=1 // loop_pre_header
      _
    $region3: #{tpu_custom_call.1} parent=1 // loop_header
      %s15 = sphi 0, %s19
      %p16 = scmp.ge.s32.totalorder %s15, 4
      %s23 = sphi 0, %s23
      %s25 = sphi 0, %s23
      %s26 = sphi 0, %s25
      %s40 = sphi 0, %s26
      %s46 = sphi 0, %s48
      %s49 = sphi 0, %s46
      %s50 = sphi 0, %s49
      %s66 = sphi 0, %s50
      %s72 = sphi 0, %s74
      %s75 = sphi 0, %s72
      %s76 = sphi 0, %s75
      %s92 = sphi 0, %s76
    $region4: #{tpu_custom_call.1} parent=1 // loop_header_branch
      %18 = sbr.rel (%p16) target = $region8
    $region5: #{tpu_custom_call.1} parent=1 // loop_body
      %s20 = ssub.s32 %s15, 1
      %s21 = ssub.s32 %s15, 2
      %s22 = sadd.s32 %s15, 1
      %s24 = sadd.s32 %s23, 1
      %p27 = scmp.eq.s32.totalorder %s15, 1
      %p28 = scmp.ne.s32.totalorder %s23, %s25
      %p29 = scmp.eq.s32.totalorder %s15, 0
      %p30 = por %p28, %p29
      %p31 = scmp.ne.s32.totalorder %s23, %s25
      %p32 = scmp.eq.s32.totalorder %s20, 1
      %p33 = por %p31, %p32
      %p34 = scmp.ne.s32.totalorder %s25, %s26
      %p35 = scmp.eq.s32.totalorder %s20, 0
      %p36 = por %p34, %p35
      %p37 = scmp.ne.s32.totalorder %s25, %s26
      %p38 = scmp.eq.s32.totalorder %s21, 1
      %p39 = por %p37, %p38
      %p41 = scmp.ne.s32.totalorder %s26, %s40
      %p42 = scmp.eq.s32.totalorder %s21, 0
      %p43 = por %p41, %p42
      %s44 = ssub.s32 %s15, %s22
      %p45 = scmp.eq.s32.totalorder %s44, 0
      %s47 = sadd.s32 %s46, 1
      %s48 = scalar_select %p45, %s46, %s47
      %p51 = pneg %p45
      %p52 = scmp.eq.s32.totalorder %s15, 1
      %p53 = por %p51, %p52
      %p54 = scmp.ne.s32.totalorder %s46, %s49
      %p55 = scmp.eq.s32.totalorder %s15, 0
      %p56 = por %p54, %p55
      %p57 = scmp.ne.s32.totalorder %s46, %s49
      %p58 = scmp.eq.s32.totalorder %s20, 1
      %p59 = por %p57, %p58
      %p60 = scmp.ne.s32.totalorder %s49, %s50
      %p61 = scmp.eq.s32.totalorder %s20, 0
      %p62 = por %p60, %p61
      %p63 = scmp.ne.s32.totalorder %s49, %s50
      %p64 = scmp.eq.s32.totalorder %s21, 1
      %p65 = por %p63, %p64
      %p67 = scmp.ne.s32.totalorder %s50, %s66
      %p68 = scmp.eq.s32.totalorder %s21, 0
      %p69 = por %p67, %p68
      %s70 = ssub.s32 %s15, %s22
      %p71 = scmp.eq.s32.totalorder %s70, 0
      %s73 = sadd.s32 %s72, 1
      %s74 = scalar_select %p71, %s72, %s73
      %p77 = pneg %p71
      %p78 = scmp.eq.s32.totalorder %s15, 1
      %p79 = por %p77, %p78
      %p80 = scmp.ne.s32.totalorder %s72, %s75
      %p81 = scmp.eq.s32.totalorder %s15, 0
      %p82 = por %p80, %p81
      %p83 = scmp.ne.s32.totalorder %s72, %s75
      %p84 = scmp.eq.s32.totalorder %s20, 1
      %p85 = por %p83, %p84
      %p86 = scmp.ne.s32.totalorder %s75, %s76
      %p87 = scmp.eq.s32.totalorder %s20, 0
      %p88 = por %p86, %p87
      %p89 = scmp.ne.s32.totalorder %s75, %s76
      %p90 = scmp.eq.s32.totalorder %s21, 1
      %p91 = por %p89, %p90
      %p93 = scmp.ne.s32.totalorder %s76, %s92
      %p94 = scmp.eq.s32.totalorder %s21, 0
      %p95 = por %p93, %p94
      %p96 = scmp.le.s32.totalorder 1, %s15
      %p97 = scmp.lt.s32.totalorder %s15, 3
      %p98 = pnand %p96, %p97
      %p99 = pneg %p98
      // Predicated region
      $region9: #{tpu_custom_call.1} parent=5 // pred_check
        _
      $region10: #{tpu_custom_call.1} parent=5 // pred_check_branch
        %101 = sbr.rel (%p98) target = $region12
      $region11: #{tpu_custom_call.1} parent=5 // pred_region
        %s102 = ssub.s32 %s15, 1
        // Predicated region
        $region13: #{tpu_custom_call.1} parent=11 // pred_check
          %p103 = pneg %p36
        $region14: #{tpu_custom_call.1} parent=11 // pred_check_branch
          %105 = sbr.rel (%p103) target = $region16
        $region15: #{tpu_custom_call.1} parent=11 // pred_region
          %107 = vsyncadd [#allocation5], 0
          %s109 = sshll.u32 %s0, 4
          %s110 = int_to_ptr.hbm [resolvable:$true] %s109
          %112 = dma.hbm_to_smem %s110, 64, [#allocation2], [#allocation5]
        $region16: #{tpu_custom_call.1} parent=11 // pred_fallthru
          _
      $region12: #{tpu_custom_call.1} parent=5 // pred_fallthru
        _
      %p113 = scmp.lt.s32.totalorder %s15, 2
      // Predicated region
      $region17: #{tpu_custom_call.1} parent=5 // pred_check
        %p114 = pneg %p113
      $region18: #{tpu_custom_call.1} parent=5 // pred_check_branch
        %116 = sbr.rel (%p114) target = $region20
      $region19: #{tpu_custom_call.1} parent=5 // pred_region
        // Predicated region
        $region21: #{tpu_custom_call.1} parent=19 // pred_check
          %p117 = pneg %p56
        $region22: #{tpu_custom_call.1} parent=19 // pred_check_branch
          %119 = sbr.rel (%p117) target = $region24
        $region23: #{tpu_custom_call.1} parent=19 // pred_region
          %s120 = sand.u32 %s46, 1
          %s121 = scalar_lea.sflag [#allocation3], %s120
          %s122 = sand.u32 %s46, 1
          %s123 = smul.addr %s122, 64
          %s124 = scalar_lea.vmem [#allocation6], %s123
          %126 = vsyncadd %s121, 0
          %s127 = smul.addr %s15, 8
          %s128 = smul.addr %s127, 8
          %s129 = scalar_lea.hbm %s1, %s128
          %s130 = sshll.u32 %s129, 4
          %s131 = int_to_ptr.hbm [resolvable:$true] %s130
          %s132 = sshll.u32 %s124, 4
          %s133 = int_to_ptr.vmem [resolvable:$true] %s132
          %138 = dma.hbm_to_vmem [thread:$0]  %s131, 1024, %s133, %s121, 128, 128, 8
        $region24: #{tpu_custom_call.1} parent=19 // pred_fallthru
          _
      $region20: #{tpu_custom_call.1} parent=5 // pred_fallthru
        _
      %p139 = scmp.le.s32.totalorder 1, %s15
      %p140 = scmp.lt.s32.totalorder %s15, 3
      %p141 = pnand %p139, %p140
      %p142 = pneg %p141
      // Predicated region
      $region25: #{tpu_custom_call.1} parent=5 // pred_check
        _
      $region26: #{tpu_custom_call.1} parent=5 // pred_check_branch
        %144 = sbr.rel (%p141) target = $region28
      $region27: #{tpu_custom_call.1} parent=5 // pred_region
        %s145 = ssub.s32 %s15, 1
        // Predicated region
        $region29: #{tpu_custom_call.1} parent=27 // pred_check
          %p146 = pneg %p36
        $region30: #{tpu_custom_call.1} parent=27 // pred_check_branch
          %148 = sbr.rel (%p146) target = $region32
        $region31: #{tpu_custom_call.1} parent=27 // pred_region
          %150 = dma.done [#allocation5], 64
        $region32: #{tpu_custom_call.1} parent=27 // pred_fallthru
          _
        %s151 = sand.u32 %s49, 1
        %s152 = scalar_lea.sflag [#allocation3], %s151
        %s153 = sand.u32 %s49, 1
        %s154 = smul.addr %s153, 64
        %s155 = scalar_lea.vmem [#allocation6], %s154
        // Predicated region
        $region33: #{tpu_custom_call.1} parent=27 // pred_check
          %p156 = pneg %p62
        $region34: #{tpu_custom_call.1} parent=27 // pred_check_branch
          %158 = sbr.rel (%p156) target = $region36
        $region35: #{tpu_custom_call.1} parent=27 // pred_region
          %160 = dma.done %s152, 1024
        $region36: #{tpu_custom_call.1} parent=27 // pred_fallthru
          _
        %161 = sfence
        %p162 = pneg %p36
        %p163 = pneg %p33
        %s164 = sand.u32 %s49, 1
        %s165 = scalar_lea.sflag [#allocation3], %s164
        %s166 = sand.u32 %s49, 1
        %s167 = smul.addr %s166, 64
        %s168 = scalar_lea.vmem [#allocation6], %s167
        %p169 = pneg %p62
        %p170 = pneg %p59
        %p171 = pneg %p88
        %p172 = pneg %p85
        %s173 = sand.u32 %s75, 1
        %s174 = scalar_lea.sflag [#allocation4], %s173
        %s175 = sand.u32 %s75, 1
        %s176 = smul.addr %s175, 64
        %s177 = scalar_lea.vmem [#allocation7], %s176
        %v178 = vld [vmem:[%s155] sm:$0xff]
        %v179 = vld [vmem:[%s155 + $0x8] sm:$0xff]
        %v180 = vld [vmem:[%s155 + $0x10] sm:$0xff]
        %v181 = vld [vmem:[%s155 + $0x18] sm:$0xff]
        %v182 = vld [vmem:[%s155 + $0x20] sm:$0xff]
        %v183 = vld [vmem:[%s155 + $0x28] sm:$0xff]
        %v184 = vld [vmem:[%s155 + $0x30] sm:$0xff]
        %v185 = vld [vmem:[%s155 + $0x38] sm:$0xff]
        %v186 = vmax.f32 %v178, %v180
        %v187 = vmax.f32 %v179, %v181
        %v188 = vadd.f32 %v178, %v180
        %v189 = vadd.f32 %v179, %v181
        %v190 = vmax.f32 %v186, %v182
        %v191 = vmax.f32 %v187, %v183
        %v192 = vadd.f32 %v188, %v182
        %v193 = vadd.f32 %v189, %v183
        %v194 = vmax.f32 %v190, %v184
        %v195 = vmax.f32 %v191, %v185
        %v196 = vadd.f32 %v192, %v184
        %v197 = vadd.f32 %v193, %v185
        %v198 = vmul.f32 %v196, 0.25
        %v199 = vmul.f32 %v197, 0.25
        %s200 = sld [smem:[#allocation2]]
        %s201 = sld [smem:[#allocation2 + $0x1]]
        %s202 = sld [smem:[#allocation2 + $0x2]]
        %s203 = sld [smem:[#allocation2 + $0x3]]
        %s204 = sld [smem:[#allocation2 + $0x4]]
        %s205 = sld [smem:[#allocation2 + $0x5]]
        %s206 = sld [smem:[#allocation2 + $0x6]]
        %s207 = sld [smem:[#allocation2 + $0x7]]
        %s208 = sld [smem:[#allocation2 + $0x8]]
        %s209 = sld [smem:[#allocation2 + $0x9]]
        %s210 = sld [smem:[#allocation2 + $0xa]]
        %s211 = sld [smem:[#allocation2 + $0xb]]
        %s212 = sld [smem:[#allocation2 + $0xc]]
        %s213 = sld [smem:[#allocation2 + $0xd]]
        %s214 = sld [smem:[#allocation2 + $0xe]]
        %s215 = sld [smem:[#allocation2 + $0xf]]
        %s216 = sld [smem:[#allocation2 + $0x10]]
        %s217 = sld [smem:[#allocation2 + $0x11]]
        %s218 = sld [smem:[#allocation2 + $0x12]]
        %s219 = sld [smem:[#allocation2 + $0x13]]
        %s220 = sld [smem:[#allocation2 + $0x14]]
        %s221 = sld [smem:[#allocation2 + $0x15]]
        %s222 = sld [smem:[#allocation2 + $0x16]]
        %s223 = sld [smem:[#allocation2 + $0x17]]
        %s224 = sld [smem:[#allocation2 + $0x18]]
        %s225 = sld [smem:[#allocation2 + $0x19]]
        %s226 = sld [smem:[#allocation2 + $0x1a]]
        %s227 = sld [smem:[#allocation2 + $0x1b]]
        %s228 = sld [smem:[#allocation2 + $0x1c]]
        %s229 = sld [smem:[#allocation2 + $0x1d]]
        %s230 = sld [smem:[#allocation2 + $0x1e]]
        %s231 = sld [smem:[#allocation2 + $0x1f]]
        %s232 = sld [smem:[#allocation2 + $0x20]]
        %s233 = sld [smem:[#allocation2 + $0x21]]
        %s234 = sld [smem:[#allocation2 + $0x22]]
        %s235 = sld [smem:[#allocation2 + $0x23]]
        %s236 = sld [smem:[#allocation2 + $0x24]]
        %s237 = sld [smem:[#allocation2 + $0x25]]
        %s238 = sld [smem:[#allocation2 + $0x26]]
        %s239 = sld [smem:[#allocation2 + $0x27]]
        %s240 = sld [smem:[#allocation2 + $0x28]]
        %s241 = sld [smem:[#allocation2 + $0x29]]
        %s242 = sld [smem:[#allocation2 + $0x2a]]
        %s243 = sld [smem:[#allocation2 + $0x2b]]
        %s244 = sld [smem:[#allocation2 + $0x2c]]
        %s245 = sld [smem:[#allocation2 + $0x2d]]
        %s246 = sld [smem:[#allocation2 + $0x2e]]
        %s247 = sld [smem:[#allocation2 + $0x2f]]
        %s248 = sld [smem:[#allocation2 + $0x30]]
        %s249 = sld [smem:[#allocation2 + $0x31]]
        %s250 = sld [smem:[#allocation2 + $0x32]]
        %s251 = sld [smem:[#allocation2 + $0x33]]
        %s252 = sld [smem:[#allocation2 + $0x34]]
        %s253 = sld [smem:[#allocation2 + $0x35]]
        %s254 = sld [smem:[#allocation2 + $0x36]]
        %s255 = sld [smem:[#allocation2 + $0x37]]
        %s256 = sld [smem:[#allocation2 + $0x38]]
        %s257 = sld [smem:[#allocation2 + $0x39]]
        %s258 = sld [smem:[#allocation2 + $0x3a]]
        %s259 = sld [smem:[#allocation2 + $0x3b]]
        %s260 = sld [smem:[#allocation2 + $0x3c]]
        %s261 = sld [smem:[#allocation2 + $0x3d]]
        %s262 = sld [smem:[#allocation2 + $0x3e]]
        %s263 = sld [smem:[#allocation2 + $0x3f]]
        %s264 = sld [smem:[#allocation2 + $0x40]]
        %s265 = sld [smem:[#allocation2 + $0x41]]
        %s266 = sld [smem:[#allocation2 + $0x42]]
        %s267 = sld [smem:[#allocation2 + $0x43]]
        %s268 = sld [smem:[#allocation2 + $0x44]]
        %s269 = sld [smem:[#allocation2 + $0x45]]
        %s270 = sld [smem:[#allocation2 + $0x46]]
        %s271 = sld [smem:[#allocation2 + $0x47]]
        %s272 = sld [smem:[#allocation2 + $0x48]]
        %s273 = sld [smem:[#allocation2 + $0x49]]
        %s274 = sld [smem:[#allocation2 + $0x4a]]
        %s275 = sld [smem:[#allocation2 + $0x4b]]
        %s276 = sld [smem:[#allocation2 + $0x4c]]
        %s277 = sld [smem:[#allocation2 + $0x4d]]
        %s278 = sld [smem:[#allocation2 + $0x4e]]
        %s279 = sld [smem:[#allocation2 + $0x4f]]
        %s280 = sld [smem:[#allocation2 + $0x50]]
        %s281 = sld [smem:[#allocation2 + $0x51]]
        %s282 = sld [smem:[#allocation2 + $0x52]]
        %s283 = sld [smem:[#allocation2 + $0x53]]
        %s284 = sld [smem:[#allocation2 + $0x54]]
        %s285 = sld [smem:[#allocation2 + $0x55]]
        %s286 = sld [smem:[#allocation2 + $0x56]]
        %s287 = sld [smem:[#allocation2 + $0x57]]
        %s288 = sld [smem:[#allocation2 + $0x58]]
        %s289 = sld [smem:[#allocation2 + $0x59]]
        %s290 = sld [smem:[#allocation2 + $0x5a]]
        %s291 = sld [smem:[#allocation2 + $0x5b]]
        %s292 = sld [smem:[#allocation2 + $0x5c]]
        %s293 = sld [smem:[#allocation2 + $0x5d]]
        %s294 = sld [smem:[#allocation2 + $0x5e]]
        %s295 = sld [smem:[#allocation2 + $0x5f]]
        %s296 = sld [smem:[#allocation2 + $0x60]]
        %s297 = sld [smem:[#allocation2 + $0x61]]
        %s298 = sld [smem:[#allocation2 + $0x62]]
        %vm301 = vcmask 1042432
        %v302 = vrot.slane %v194, 5
        %v303 = vrot.slane %v195, 5
        %v304 = vsel %vm301, %v302, %v303
        %v307 = vsel %vm301, 0.0, %v302
        %v308 = vsel %vm301, %v303, 0.0
        %311 = vrot.lane.b32.xlu0 %v307, 3
        %v312 = vpop.permute.xlu0 %311
        %313 = vrot.lane.b32.xlu0 %v304, 3
        %v314 = vpop.permute.xlu0 %313
        %315 = vrot.lane.b32.xlu0 %v308, 3
        %v316 = vpop.permute.xlu0 %315
        %vm320 = vcmask 23552
        %v321 = vsel %vm320, 0.0, %v312
        %v322 = vsel %vm320, 0.0, %v314
        %v323 = vsel %vm320, 0.0, %v316
        %vm324 = vcmask 154624
        %v325 = vsel %vm324, %v321, 0.0
        %v326 = vsel %vm324, %v322, 0.0
        %v327 = vsel %vm324, %v323, 0.0
        %v330 = vrot.slane %v198, 5
        %v331 = vrot.slane %v199, 5
        %v332 = vsel %vm301, %v330, %v331
        %v335 = vsel %vm301, 0.0, %v330
        %v336 = vsel %vm301, %v331, 0.0
        %339 = vrot.lane.b32.xlu0 %v335, 3
        %v340 = vpop.permute.xlu0 %339
        %341 = vrot.lane.b32.xlu0 %v332, 3
        %v342 = vpop.permute.xlu0 %341
        %343 = vrot.lane.b32.xlu0 %v336, 3
        %v344 = vpop.permute.xlu0 %343
        %v348 = vsel %vm320, 0.0, %v340
        %v349 = vsel %vm320, 0.0, %v342
        %v350 = vsel %vm320, 0.0, %v344
        %v351 = vsel %vm324, %v348, 0.0
        %v352 = vsel %vm324, %v349, 0.0
        %v353 = vsel %vm324, %v350, 0.0
        %v354 = vstv %s200
        %v355 = vmul.f32 %v354, %v325
        %v356 = vmul.f32 %v354, %v326
        %v357 = vstv %s249
        %v358 = vmul.f32 %v357, %v351
        %v359 = vmul.f32 %v357, %v352
        %v360 = vadd.f32 %v355, %v358
        %v361 = vadd.f32 %v356, %v359
        %v362 = vadd.f32 %v360, 0.0
        %v363 = vadd.f32 %v361, 0.0
        %v364 = vstv %s201
        %v365 = vmul.f32 %v364, %v325
        %v366 = vmul.f32 %v364, %v326
        %v367 = vstv %s250
        %v368 = vmul.f32 %v367, %v351
        %v369 = vmul.f32 %v367, %v352
        %v370 = vadd.f32 %v365, %v368
        %v371 = vadd.f32 %v366, %v369
        %374 = vrot.lane.b32.xlu0 %v370, 127
        %v375 = vpop.permute.xlu0 %374
        %376 = vrot.lane.b32.xlu0 %v371, 127
        %v377 = vpop.permute.xlu0 %376
        %v380 = vadd.f32 %v362, %v375
        %v381 = vadd.f32 %v363, %v377
        %v382 = vstv %s202
        %v383 = vmul.f32 %v382, %v325
        %v384 = vmul.f32 %v382, %v326
        %v385 = vstv %s251
        %v386 = vmul.f32 %v385, %v351
        %v387 = vmul.f32 %v385, %v352
        %v388 = vadd.f32 %v383, %v386
        %v389 = vadd.f32 %v384, %v387
        %392 = vrot.lane.b32.xlu0 %v388, 126
        %v393 = vpop.permute.xlu0 %392
        %394 = vrot.lane.b32.xlu0 %v389, 126
        %v395 = vpop.permute.xlu0 %394
        %v398 = vadd.f32 %v380, %v393
        %v399 = vadd.f32 %v381, %v395
        %v400 = vstv %s203
        %v401 = vmul.f32 %v400, %v325
        %v402 = vmul.f32 %v400, %v326
        %v403 = vstv %s252
        %v404 = vmul.f32 %v403, %v351
        %v405 = vmul.f32 %v403, %v352
        %v406 = vadd.f32 %v401, %v404
        %v407 = vadd.f32 %v402, %v405
        %410 = vrot.lane.b32.xlu0 %v406, 125
        %v411 = vpop.permute.xlu0 %410
        %412 = vrot.lane.b32.xlu0 %v407, 125
        %v413 = vpop.permute.xlu0 %412
        %v416 = vadd.f32 %v398, %v411
        %v417 = vadd.f32 %v399, %v413
        %v418 = vstv %s204
        %v419 = vmul.f32 %v418, %v325
        %v420 = vmul.f32 %v418, %v326
        %v421 = vstv %s253
        %v422 = vmul.f32 %v421, %v351
        %v423 = vmul.f32 %v421, %v352
        %v424 = vadd.f32 %v419, %v422
        %v425 = vadd.f32 %v420, %v423
        %428 = vrot.lane.b32.xlu0 %v424, 124
        %v429 = vpop.permute.xlu0 %428
        %430 = vrot.lane.b32.xlu0 %v425, 124
        %v431 = vpop.permute.xlu0 %430
        %v434 = vadd.f32 %v416, %v429
        %v435 = vadd.f32 %v417, %v431
        %v436 = vstv %s205
        %v437 = vmul.f32 %v436, %v325
        %v438 = vmul.f32 %v436, %v326
        %v439 = vstv %s254
        %v440 = vmul.f32 %v439, %v351
        %v441 = vmul.f32 %v439, %v352
        %v442 = vadd.f32 %v437, %v440
        %v443 = vadd.f32 %v438, %v441
        %446 = vrot.lane.b32.xlu0 %v442, 123
        %v447 = vpop.permute.xlu0 %446
        %448 = vrot.lane.b32.xlu0 %v443, 123
        %v449 = vpop.permute.xlu0 %448
        %v452 = vadd.f32 %v434, %v447
        %v453 = vadd.f32 %v435, %v449
        %v454 = vstv %s206
        %v455 = vmul.f32 %v454, %v325
        %v456 = vmul.f32 %v454, %v326
        %v457 = vstv %s255
        %v458 = vmul.f32 %v457, %v351
        %v459 = vmul.f32 %v457, %v352
        %v460 = vadd.f32 %v455, %v458
        %v461 = vadd.f32 %v456, %v459
        %464 = vrot.lane.b32.xlu0 %v460, 122
        %v465 = vpop.permute.xlu0 %464
        %466 = vrot.lane.b32.xlu0 %v461, 122
        %v467 = vpop.permute.xlu0 %466
        %v470 = vadd.f32 %v452, %v465
        %v471 = vadd.f32 %v453, %v467
        %v472 = vstv %s207
        %v473 = vmul.f32 %v472, %v325
        %v474 = vmul.f32 %v472, %v326
        %v475 = vmul.f32 %v472, %v327
        %v476 = vstv %s256
        %v477 = vmul.f32 %v476, %v351
        %v478 = vmul.f32 %v476, %v352
        %v479 = vmul.f32 %v476, %v353
        %v480 = vadd.f32 %v473, %v477
        %v481 = vadd.f32 %v474, %v478
        %v482 = vadd.f32 %v475, %v479
        %vm486 = vcmask 1046528
        %v487 = vrot.slane %v480, 1
        %v488 = vrot.slane %v481, 1
        %v489 = vsel %vm486, %v487, %v488
        %v490 = vrot.slane %v482, 1
        %v491 = vsel %vm486, %v488, %v490
        %v494 = vadd.f32 %v470, %v489
        %v495 = vadd.f32 %v471, %v491
        %v496 = vstv %s208
        %v497 = vmul.f32 %v496, %v325
        %v498 = vmul.f32 %v496, %v326
        %v499 = vmul.f32 %v496, %v327
        %v500 = vstv %s257
        %v501 = vmul.f32 %v500, %v351
        %v502 = vmul.f32 %v500, %v352
        %v503 = vmul.f32 %v500, %v353
        %v504 = vadd.f32 %v497, %v501
        %v505 = vadd.f32 %v498, %v502
        %v506 = vadd.f32 %v499, %v503
        %v510 = vrot.slane %v504, 1
        %v511 = vrot.slane %v505, 1
        %v512 = vsel %vm486, %v510, %v511
        %v513 = vrot.slane %v506, 1
        %v514 = vsel %vm486, %v511, %v513
        %515 = vrot.lane.b32.xlu0 %v512, 127
        %v516 = vpop.permute.xlu0 %515
        %517 = vrot.lane.b32.xlu0 %v514, 127
        %v518 = vpop.permute.xlu0 %517
        %v521 = vadd.f32 %v494, %v516
        %v522 = vadd.f32 %v495, %v518
        %v523 = vstv %s209
        %v524 = vmul.f32 %v523, %v325
        %v525 = vmul.f32 %v523, %v326
        %v526 = vmul.f32 %v523, %v327
        %v527 = vstv %s258
        %v528 = vmul.f32 %v527, %v351
        %v529 = vmul.f32 %v527, %v352
        %v530 = vmul.f32 %v527, %v353
        %v531 = vadd.f32 %v524, %v528
        %v532 = vadd.f32 %v525, %v529
        %v533 = vadd.f32 %v526, %v530
        %v537 = vrot.slane %v531, 1
        %v538 = vrot.slane %v532, 1
        %v539 = vsel %vm486, %v537, %v538
        %v540 = vrot.slane %v533, 1
        %v541 = vsel %vm486, %v538, %v540
        %542 = vrot.lane.b32.xlu0 %v539, 126
        %v543 = vpop.permute.xlu0 %542
        %544 = vrot.lane.b32.xlu0 %v541, 126
        %v545 = vpop.permute.xlu0 %544
        %v548 = vadd.f32 %v521, %v543
        %v549 = vadd.f32 %v522, %v545
        %v550 = vstv %s210
        %v551 = vmul.f32 %v550, %v325
        %v552 = vmul.f32 %v550, %v326
        %v553 = vmul.f32 %v550, %v327
        %v554 = vstv %s259
        %v555 = vmul.f32 %v554, %v351
        %v556 = vmul.f32 %v554, %v352
        %v557 = vmul.f32 %v554, %v353
        %v558 = vadd.f32 %v551, %v555
        %v559 = vadd.f32 %v552, %v556
        %v560 = vadd.f32 %v553, %v557
        %v564 = vrot.slane %v558, 1
        %v565 = vrot.slane %v559, 1
        %v566 = vsel %vm486, %v564, %v565
        %v567 = vrot.slane %v560, 1
        %v568 = vsel %vm486, %v565, %v567
        %569 = vrot.lane.b32.xlu0 %v566, 125
        %v570 = vpop.permute.xlu0 %569
        %571 = vrot.lane.b32.xlu0 %v568, 125
        %v572 = vpop.permute.xlu0 %571
        %v575 = vadd.f32 %v548, %v570
        %v576 = vadd.f32 %v549, %v572
        %v577 = vstv %s211
        %v578 = vmul.f32 %v577, %v325
        %v579 = vmul.f32 %v577, %v326
        %v580 = vmul.f32 %v577, %v327
        %v581 = vstv %s260
        %v582 = vmul.f32 %v581, %v351
        %v583 = vmul.f32 %v581, %v352
        %v584 = vmul.f32 %v581, %v353
        %v585 = vadd.f32 %v578, %v582
        %v586 = vadd.f32 %v579, %v583
        %v587 = vadd.f32 %v580, %v584
        %v591 = vrot.slane %v585, 1
        %v592 = vrot.slane %v586, 1
        %v593 = vsel %vm486, %v591, %v592
        %v594 = vrot.slane %v587, 1
        %v595 = vsel %vm486, %v592, %v594
        %596 = vrot.lane.b32.xlu0 %v593, 124
        %v597 = vpop.permute.xlu0 %596
        %598 = vrot.lane.b32.xlu0 %v595, 124
        %v599 = vpop.permute.xlu0 %598
        %v602 = vadd.f32 %v575, %v597
        %v603 = vadd.f32 %v576, %v599
        %v604 = vstv %s212
        %v605 = vmul.f32 %v604, %v325
        %v606 = vmul.f32 %v604, %v326
        %v607 = vmul.f32 %v604, %v327
        %v608 = vstv %s261
        %v609 = vmul.f32 %v608, %v351
        %v610 = vmul.f32 %v608, %v352
        %v611 = vmul.f32 %v608, %v353
        %v612 = vadd.f32 %v605, %v609
        %v613 = vadd.f32 %v606, %v610
        %v614 = vadd.f32 %v607, %v611
        %v618 = vrot.slane %v612, 1
        %v619 = vrot.slane %v613, 1
        %v620 = vsel %vm486, %v618, %v619
        %v621 = vrot.slane %v614, 1
        %v622 = vsel %vm486, %v619, %v621
        %623 = vrot.lane.b32.xlu0 %v620, 123
        %v624 = vpop.permute.xlu0 %623
        %625 = vrot.lane.b32.xlu0 %v622, 123
        %v626 = vpop.permute.xlu0 %625
        %v629 = vadd.f32 %v602, %v624
        %v630 = vadd.f32 %v603, %v626
        %v631 = vstv %s213
        %v632 = vmul.f32 %v631, %v325
        %v633 = vmul.f32 %v631, %v326
        %v634 = vmul.f32 %v631, %v327
        %v635 = vstv %s262
        %v636 = vmul.f32 %v635, %v351
        %v637 = vmul.f32 %v635, %v352
        %v638 = vmul.f32 %v635, %v353
        %v639 = vadd.f32 %v632, %v636
        %v640 = vadd.f32 %v633, %v637
        %v641 = vadd.f32 %v634, %v638
        %v645 = vrot.slane %v639, 1
        %v646 = vrot.slane %v640, 1
        %v647 = vsel %vm486, %v645, %v646
        %v648 = vrot.slane %v641, 1
        %v649 = vsel %vm486, %v646, %v648
        %650 = vrot.lane.b32.xlu0 %v647, 122
        %v651 = vpop.permute.xlu0 %650
        %652 = vrot.lane.b32.xlu0 %v649, 122
        %v653 = vpop.permute.xlu0 %652
        %v656 = vadd.f32 %v629, %v651
        %v657 = vadd.f32 %v630, %v653
        %v658 = vstv %s214
        %v659 = vmul.f32 %v658, %v325
        %v660 = vmul.f32 %v658, %v326
        %v661 = vmul.f32 %v658, %v327
        %v662 = vstv %s263
        %v663 = vmul.f32 %v662, %v351
        %v664 = vmul.f32 %v662, %v352
        %v665 = vmul.f32 %v662, %v353
        %v666 = vadd.f32 %v659, %v663
        %v667 = vadd.f32 %v660, %v664
        %v668 = vadd.f32 %v661, %v665
        %vm672 = vcmask 1045504
        %v673 = vrot.slane %v666, 2
        %v674 = vrot.slane %v667, 2
        %v675 = vsel %vm672, %v673, %v674
        %v676 = vrot.slane %v668, 2
        %v677 = vsel %vm672, %v674, %v676
        %v680 = vadd.f32 %v656, %v675
        %v681 = vadd.f32 %v657, %v677
        %v682 = vstv %s215
        %v683 = vmul.f32 %v682, %v325
        %v684 = vmul.f32 %v682, %v326
        %v685 = vmul.f32 %v682, %v327
        %v686 = vstv %s264
        %v687 = vmul.f32 %v686, %v351
        %v688 = vmul.f32 %v686, %v352
        %v689 = vmul.f32 %v686, %v353
        %v690 = vadd.f32 %v683, %v687
        %v691 = vadd.f32 %v684, %v688
        %v692 = vadd.f32 %v685, %v689
        %v696 = vrot.slane %v690, 2
        %v697 = vrot.slane %v691, 2
        %v698 = vsel %vm672, %v696, %v697
        %v699 = vrot.slane %v692, 2
        %v700 = vsel %vm672, %v697, %v699
        %701 = vrot.lane.b32.xlu0 %v698, 127
        %v702 = vpop.permute.xlu0 %701
        %703 = vrot.lane.b32.xlu0 %v700, 127
        %v704 = vpop.permute.xlu0 %703
        %v707 = vadd.f32 %v680, %v702
        %v708 = vadd.f32 %v681, %v704
        %v709 = vstv %s216
        %v710 = vmul.f32 %v709, %v325
        %v711 = vmul.f32 %v709, %v326
        %v712 = vmul.f32 %v709, %v327
        %v713 = vstv %s265
        %v714 = vmul.f32 %v713, %v351
        %v715 = vmul.f32 %v713, %v352
        %v716 = vmul.f32 %v713, %v353
        %v717 = vadd.f32 %v710, %v714
        %v718 = vadd.f32 %v711, %v715
        %v719 = vadd.f32 %v712, %v716
        %v723 = vrot.slane %v717, 2
        %v724 = vrot.slane %v718, 2
        %v725 = vsel %vm672, %v723, %v724
        %v726 = vrot.slane %v719, 2
        %v727 = vsel %vm672, %v724, %v726
        %728 = vrot.lane.b32.xlu0 %v725, 126
        %v729 = vpop.permute.xlu0 %728
        %730 = vrot.lane.b32.xlu0 %v727, 126
        %v731 = vpop.permute.xlu0 %730
        %v734 = vadd.f32 %v707, %v729
        %v735 = vadd.f32 %v708, %v731
        %v736 = vstv %s217
        %v737 = vmul.f32 %v736, %v325
        %v738 = vmul.f32 %v736, %v326
        %v739 = vmul.f32 %v736, %v327
        %v740 = vstv %s266
        %v741 = vmul.f32 %v740, %v351
        %v742 = vmul.f32 %v740, %v352
        %v743 = vmul.f32 %v740, %v353
        %v744 = vadd.f32 %v737, %v741
        %v745 = vadd.f32 %v738, %v742
        %v746 = vadd.f32 %v739, %v743
        %v750 = vrot.slane %v744, 2
        %v751 = vrot.slane %v745, 2
        %v752 = vsel %vm672, %v750, %v751
        %v753 = vrot.slane %v746, 2
        %v754 = vsel %vm672, %v751, %v753
        %755 = vrot.lane.b32.xlu0 %v752, 125
        %v756 = vpop.permute.xlu0 %755
        %757 = vrot.lane.b32.xlu0 %v754, 125
        %v758 = vpop.permute.xlu0 %757
        %v761 = vadd.f32 %v734, %v756
        %v762 = vadd.f32 %v735, %v758
        %v763 = vstv %s218
        %v764 = vmul.f32 %v763, %v325
        %v765 = vmul.f32 %v763, %v326
        %v766 = vmul.f32 %v763, %v327
        %v767 = vstv %s267
        %v768 = vmul.f32 %v767, %v351
        %v769 = vmul.f32 %v767, %v352
        %v770 = vmul.f32 %v767, %v353
        %v771 = vadd.f32 %v764, %v768
        %v772 = vadd.f32 %v765, %v769
        %v773 = vadd.f32 %v766, %v770
        %v777 = vrot.slane %v771, 2
        %v778 = vrot.slane %v772, 2
        %v779 = vsel %vm672, %v777, %v778
        %v780 = vrot.slane %v773, 2
        %v781 = vsel %vm672, %v778, %v780
        %782 = vrot.lane.b32.xlu0 %v779, 124
        %v783 = vpop.permute.xlu0 %782
        %784 = vrot.lane.b32.xlu0 %v781, 124
        %v785 = vpop.permute.xlu0 %784
        %v788 = vadd.f32 %v761, %v783
        %v789 = vadd.f32 %v762, %v785
        %v790 = vstv %s219
        %v791 = vmul.f32 %v790, %v325
        %v792 = vmul.f32 %v790, %v326
        %v793 = vmul.f32 %v790, %v327
        %v794 = vstv %s268
        %v795 = vmul.f32 %v794, %v351
        %v796 = vmul.f32 %v794, %v352
        %v797 = vmul.f32 %v794, %v353
        %v798 = vadd.f32 %v791, %v795
        %v799 = vadd.f32 %v792, %v796
        %v800 = vadd.f32 %v793, %v797
        %v804 = vrot.slane %v798, 2
        %v805 = vrot.slane %v799, 2
        %v806 = vsel %vm672, %v804, %v805
        %v807 = vrot.slane %v800, 2
        %v808 = vsel %vm672, %v805, %v807
        %809 = vrot.lane.b32.xlu0 %v806, 123
        %v810 = vpop.permute.xlu0 %809
        %811 = vrot.lane.b32.xlu0 %v808, 123
        %v812 = vpop.permute.xlu0 %811
        %v815 = vadd.f32 %v788, %v810
        %v816 = vadd.f32 %v789, %v812
        %v817 = vstv %s220
        %v818 = vmul.f32 %v817, %v325
        %v819 = vmul.f32 %v817, %v326
        %v820 = vmul.f32 %v817, %v327
        %v821 = vstv %s269
        %v822 = vmul.f32 %v821, %v351
        %v823 = vmul.f32 %v821, %v352
        %v824 = vmul.f32 %v821, %v353
        %v825 = vadd.f32 %v818, %v822
        %v826 = vadd.f32 %v819, %v823
        %v827 = vadd.f32 %v820, %v824
        %v831 = vrot.slane %v825, 2
        %v832 = vrot.slane %v826, 2
        %v833 = vsel %vm672, %v831, %v832
        %v834 = vrot.slane %v827, 2
        %v835 = vsel %vm672, %v832, %v834
        %836 = vrot.lane.b32.xlu0 %v833, 122
        %v837 = vpop.permute.xlu0 %836
        %838 = vrot.lane.b32.xlu0 %v835, 122
        %v839 = vpop.permute.xlu0 %838
        %v842 = vadd.f32 %v815, %v837
        %v843 = vadd.f32 %v816, %v839
        %v844 = vstv %s221
        %v845 = vmul.f32 %v844, %v325
        %v846 = vmul.f32 %v844, %v326
        %v847 = vmul.f32 %v844, %v327
        %v848 = vstv %s270
        %v849 = vmul.f32 %v848, %v351
        %v850 = vmul.f32 %v848, %v352
        %v851 = vmul.f32 %v848, %v353
        %v852 = vadd.f32 %v845, %v849
        %v853 = vadd.f32 %v846, %v850
        %v854 = vadd.f32 %v847, %v851
        %vm858 = vcmask 1044480
        %v859 = vrot.slane %v852, 3
        %v860 = vrot.slane %v853, 3
        %v861 = vsel %vm858, %v859, %v860
        %v862 = vrot.slane %v854, 3
        %v863 = vsel %vm858, %v860, %v862
        %v866 = vadd.f32 %v842, %v861
        %v867 = vadd.f32 %v843, %v863
        %v868 = vstv %s222
        %v869 = vmul.f32 %v868, %v325
        %v870 = vmul.f32 %v868, %v326
        %v871 = vmul.f32 %v868, %v327
        %v872 = vstv %s271
        %v873 = vmul.f32 %v872, %v351
        %v874 = vmul.f32 %v872, %v352
        %v875 = vmul.f32 %v872, %v353
        %v876 = vadd.f32 %v869, %v873
        %v877 = vadd.f32 %v870, %v874
        %v878 = vadd.f32 %v871, %v875
        %v882 = vrot.slane %v876, 3
        %v883 = vrot.slane %v877, 3
        %v884 = vsel %vm858, %v882, %v883
        %v885 = vrot.slane %v878, 3
        %v886 = vsel %vm858, %v883, %v885
        %887 = vrot.lane.b32.xlu0 %v884, 127
        %v888 = vpop.permute.xlu0 %887
        %889 = vrot.lane.b32.xlu0 %v886, 127
        %v890 = vpop.permute.xlu0 %889
        %v893 = vadd.f32 %v866, %v888
        %v894 = vadd.f32 %v867, %v890
        %v895 = vstv %s223
        %v896 = vmul.f32 %v895, %v325
        %v897 = vmul.f32 %v895, %v326
        %v898 = vmul.f32 %v895, %v327
        %v899 = vstv %s272
        %v900 = vmul.f32 %v899, %v351
        %v901 = vmul.f32 %v899, %v352
        %v902 = vmul.f32 %v899, %v353
        %v903 = vadd.f32 %v896, %v900
        %v904 = vadd.f32 %v897, %v901
        %v905 = vadd.f32 %v898, %v902
        %v909 = vrot.slane %v903, 3
        %v910 = vrot.slane %v904, 3
        %v911 = vsel %vm858, %v909, %v910
        %v912 = vrot.slane %v905, 3
        %v913 = vsel %vm858, %v910, %v912
        %914 = vrot.lane.b32.xlu0 %v911, 126
        %v915 = vpop.permute.xlu0 %914
        %916 = vrot.lane.b32.xlu0 %v913, 126
        %v917 = vpop.permute.xlu0 %916
        %v920 = vadd.f32 %v893, %v915
        %v921 = vadd.f32 %v894, %v917
        %v922 = vstv %s224
        %v923 = vmul.f32 %v922, %v325
        %v924 = vmul.f32 %v922, %v326
        %v925 = vmul.f32 %v922, %v327
        %v926 = vstv %s273
        %v927 = vmul.f32 %v926, %v351
        %v928 = vmul.f32 %v926, %v352
        %v929 = vmul.f32 %v926, %v353
        %v930 = vadd.f32 %v923, %v927
        %v931 = vadd.f32 %v924, %v928
        %v932 = vadd.f32 %v925, %v929
        %v936 = vrot.slane %v930, 3
        %v937 = vrot.slane %v931, 3
        %v938 = vsel %vm858, %v936, %v937
        %v939 = vrot.slane %v932, 3
        %v940 = vsel %vm858, %v937, %v939
        %941 = vrot.lane.b32.xlu0 %v938, 125
        %v942 = vpop.permute.xlu0 %941
        %943 = vrot.lane.b32.xlu0 %v940, 125
        %v944 = vpop.permute.xlu0 %943
        %v947 = vadd.f32 %v920, %v942
        %v948 = vadd.f32 %v921, %v944
        %v949 = vstv %s225
        %v950 = vmul.f32 %v949, %v325
        %v951 = vmul.f32 %v949, %v326
        %v952 = vmul.f32 %v949, %v327
        %v953 = vstv %s274
        %v954 = vmul.f32 %v953, %v351
        %v955 = vmul.f32 %v953, %v352
        %v956 = vmul.f32 %v953, %v353
        %v957 = vadd.f32 %v950, %v954
        %v958 = vadd.f32 %v951, %v955
        %v959 = vadd.f32 %v952, %v956
        %v963 = vrot.slane %v957, 3
        %v964 = vrot.slane %v958, 3
        %v965 = vsel %vm858, %v963, %v964
        %v966 = vrot.slane %v959, 3
        %v967 = vsel %vm858, %v964, %v966
        %968 = vrot.lane.b32.xlu0 %v965, 124
        %v969 = vpop.permute.xlu0 %968
        %970 = vrot.lane.b32.xlu0 %v967, 124
        %v971 = vpop.permute.xlu0 %970
        %v974 = vadd.f32 %v947, %v969
        %v975 = vadd.f32 %v948, %v971
        %v976 = vstv %s226
        %v977 = vmul.f32 %v976, %v325
        %v978 = vmul.f32 %v976, %v326
        %v979 = vmul.f32 %v976, %v327
        %v980 = vstv %s275
        %v981 = vmul.f32 %v980, %v351
        %v982 = vmul.f32 %v980, %v352
        %v983 = vmul.f32 %v980, %v353
        %v984 = vadd.f32 %v977, %v981
        %v985 = vadd.f32 %v978, %v982
        %v986 = vadd.f32 %v979, %v983
        %v990 = vrot.slane %v984, 3
        %v991 = vrot.slane %v985, 3
        %v992 = vsel %vm858, %v990, %v991
        %v993 = vrot.slane %v986, 3
        %v994 = vsel %vm858, %v991, %v993
        %995 = vrot.lane.b32.xlu0 %v992, 123
        %v996 = vpop.permute.xlu0 %995
        %997 = vrot.lane.b32.xlu0 %v994, 123
        %v998 = vpop.permute.xlu0 %997
        %v1001 = vadd.f32 %v974, %v996
        %v1002 = vadd.f32 %v975, %v998
        %v1003 = vstv %s227
        %v1004 = vmul.f32 %v1003, %v325
        %v1005 = vmul.f32 %v1003, %v326
        %v1006 = vmul.f32 %v1003, %v327
        %v1007 = vstv %s276
        %v1008 = vmul.f32 %v1007, %v351
        %v1009 = vmul.f32 %v1007, %v352
        %v1010 = vmul.f32 %v1007, %v353
        %v1011 = vadd.f32 %v1004, %v1008
        %v1012 = vadd.f32 %v1005, %v1009
        %v1013 = vadd.f32 %v1006, %v1010
        %v1017 = vrot.slane %v1011, 3
        %v1018 = vrot.slane %v1012, 3
        %v1019 = vsel %vm858, %v1017, %v1018
        %v1020 = vrot.slane %v1013, 3
        %v1021 = vsel %vm858, %v1018, %v1020
        %1022 = vrot.lane.b32.xlu0 %v1019, 122
        %v1023 = vpop.permute.xlu0 %1022
        %1024 = vrot.lane.b32.xlu0 %v1021, 122
        %v1025 = vpop.permute.xlu0 %1024
        %v1028 = vadd.f32 %v1001, %v1023
        %v1029 = vadd.f32 %v1002, %v1025
        %v1030 = vstv %s228
        %v1031 = vmul.f32 %v1030, %v325
        %v1032 = vmul.f32 %v1030, %v326
        %v1033 = vmul.f32 %v1030, %v327
        %v1034 = vstv %s277
        %v1035 = vmul.f32 %v1034, %v351
        %v1036 = vmul.f32 %v1034, %v352
        %v1037 = vmul.f32 %v1034, %v353
        %v1038 = vadd.f32 %v1031, %v1035
        %v1039 = vadd.f32 %v1032, %v1036
        %v1040 = vadd.f32 %v1033, %v1037
        %vm1044 = vcmask 1043456
        %v1045 = vrot.slane %v1038, 4
        %v1046 = vrot.slane %v1039, 4
        %v1047 = vsel %vm1044, %v1045, %v1046
        %v1048 = vrot.slane %v1040, 4
        %v1049 = vsel %vm1044, %v1046, %v1048
        %v1052 = vadd.f32 %v1028, %v1047
        %v1053 = vadd.f32 %v1029, %v1049
        %v1054 = vstv %s229
        %v1055 = vmul.f32 %v1054, %v325
        %v1056 = vmul.f32 %v1054, %v326
        %v1057 = vmul.f32 %v1054, %v327
        %v1058 = vstv %s278
        %v1059 = vmul.f32 %v1058, %v351
        %v1060 = vmul.f32 %v1058, %v352
        %v1061 = vmul.f32 %v1058, %v353
        %v1062 = vadd.f32 %v1055, %v1059
        %v1063 = vadd.f32 %v1056, %v1060
        %v1064 = vadd.f32 %v1057, %v1061
        %v1068 = vrot.slane %v1062, 4
        %v1069 = vrot.slane %v1063, 4
        %v1070 = vsel %vm1044, %v1068, %v1069
        %v1071 = vrot.slane %v1064, 4
        %v1072 = vsel %vm1044, %v1069, %v1071
        %1073 = vrot.lane.b32.xlu0 %v1070, 127
        %v1074 = vpop.permute.xlu0 %1073
        %1075 = vrot.lane.b32.xlu0 %v1072, 127
        %v1076 = vpop.permute.xlu0 %1075
        %v1079 = vadd.f32 %v1052, %v1074
        %v1080 = vadd.f32 %v1053, %v1076
        %v1081 = vstv %s230
        %v1082 = vmul.f32 %v1081, %v325
        %v1083 = vmul.f32 %v1081, %v326
        %v1084 = vmul.f32 %v1081, %v327
        %v1085 = vstv %s279
        %v1086 = vmul.f32 %v1085, %v351
        %v1087 = vmul.f32 %v1085, %v352
        %v1088 = vmul.f32 %v1085, %v353
        %v1089 = vadd.f32 %v1082, %v1086
        %v1090 = vadd.f32 %v1083, %v1087
        %v1091 = vadd.f32 %v1084, %v1088
        %v1095 = vrot.slane %v1089, 4
        %v1096 = vrot.slane %v1090, 4
        %v1097 = vsel %vm1044, %v1095, %v1096
        %v1098 = vrot.slane %v1091, 4
        %v1099 = vsel %vm1044, %v1096, %v1098
        %1100 = vrot.lane.b32.xlu0 %v1097, 126
        %v1101 = vpop.permute.xlu0 %1100
        %1102 = vrot.lane.b32.xlu0 %v1099, 126
        %v1103 = vpop.permute.xlu0 %1102
        %v1106 = vadd.f32 %v1079, %v1101
        %v1107 = vadd.f32 %v1080, %v1103
        %v1108 = vstv %s231
        %v1109 = vmul.f32 %v1108, %v325
        %v1110 = vmul.f32 %v1108, %v326
        %v1111 = vmul.f32 %v1108, %v327
        %v1112 = vstv %s280
        %v1113 = vmul.f32 %v1112, %v351
        %v1114 = vmul.f32 %v1112, %v352
        %v1115 = vmul.f32 %v1112, %v353
        %v1116 = vadd.f32 %v1109, %v1113
        %v1117 = vadd.f32 %v1110, %v1114
        %v1118 = vadd.f32 %v1111, %v1115
        %v1122 = vrot.slane %v1116, 4
        %v1123 = vrot.slane %v1117, 4
        %v1124 = vsel %vm1044, %v1122, %v1123
        %v1125 = vrot.slane %v1118, 4
        %v1126 = vsel %vm1044, %v1123, %v1125
        %1127 = vrot.lane.b32.xlu0 %v1124, 125
        %v1128 = vpop.permute.xlu0 %1127
        %1129 = vrot.lane.b32.xlu0 %v1126, 125
        %v1130 = vpop.permute.xlu0 %1129
        %v1133 = vadd.f32 %v1106, %v1128
        %v1134 = vadd.f32 %v1107, %v1130
        %v1135 = vstv %s232
        %v1136 = vmul.f32 %v1135, %v325
        %v1137 = vmul.f32 %v1135, %v326
        %v1138 = vmul.f32 %v1135, %v327
        %v1139 = vstv %s281
        %v1140 = vmul.f32 %v1139, %v351
        %v1141 = vmul.f32 %v1139, %v352
        %v1142 = vmul.f32 %v1139, %v353
        %v1143 = vadd.f32 %v1136, %v1140
        %v1144 = vadd.f32 %v1137, %v1141
        %v1145 = vadd.f32 %v1138, %v1142
        %v1149 = vrot.slane %v1143, 4
        %v1150 = vrot.slane %v1144, 4
        %v1151 = vsel %vm1044, %v1149, %v1150
        %v1152 = vrot.slane %v1145, 4
        %v1153 = vsel %vm1044, %v1150, %v1152
        %1154 = vrot.lane.b32.xlu0 %v1151, 124
        %v1155 = vpop.permute.xlu0 %1154
        %1156 = vrot.lane.b32.xlu0 %v1153, 124
        %v1157 = vpop.permute.xlu0 %1156
        %v1160 = vadd.f32 %v1133, %v1155
        %v1161 = vadd.f32 %v1134, %v1157
        %v1162 = vstv %s233
        %v1163 = vmul.f32 %v1162, %v325
        %v1164 = vmul.f32 %v1162, %v326
        %v1165 = vmul.f32 %v1162, %v327
        %v1166 = vstv %s282
        %v1167 = vmul.f32 %v1166, %v351
        %v1168 = vmul.f32 %v1166, %v352
        %v1169 = vmul.f32 %v1166, %v353
        %v1170 = vadd.f32 %v1163, %v1167
        %v1171 = vadd.f32 %v1164, %v1168
        %v1172 = vadd.f32 %v1165, %v1169
        %v1176 = vrot.slane %v1170, 4
        %v1177 = vrot.slane %v1171, 4
        %v1178 = vsel %vm1044, %v1176, %v1177
        %v1179 = vrot.slane %v1172, 4
        %v1180 = vsel %vm1044, %v1177, %v1179
        %1181 = vrot.lane.b32.xlu0 %v1178, 123
        %v1182 = vpop.permute.xlu0 %1181
        %1183 = vrot.lane.b32.xlu0 %v1180, 123
        %v1184 = vpop.permute.xlu0 %1183
        %v1187 = vadd.f32 %v1160, %v1182
        %v1188 = vadd.f32 %v1161, %v1184
        %v1189 = vstv %s234
        %v1190 = vmul.f32 %v1189, %v325
        %v1191 = vmul.f32 %v1189, %v326
        %v1192 = vmul.f32 %v1189, %v327
        %v1193 = vstv %s283
        %v1194 = vmul.f32 %v1193, %v351
        %v1195 = vmul.f32 %v1193, %v352
        %v1196 = vmul.f32 %v1193, %v353
        %v1197 = vadd.f32 %v1190, %v1194
        %v1198 = vadd.f32 %v1191, %v1195
        %v1199 = vadd.f32 %v1192, %v1196
        %v1203 = vrot.slane %v1197, 4
        %v1204 = vrot.slane %v1198, 4
        %v1205 = vsel %vm1044, %v1203, %v1204
        %v1206 = vrot.slane %v1199, 4
        %v1207 = vsel %vm1044, %v1204, %v1206
        %1208 = vrot.lane.b32.xlu0 %v1205, 122
        %v1209 = vpop.permute.xlu0 %1208
        %1210 = vrot.lane.b32.xlu0 %v1207, 122
        %v1211 = vpop.permute.xlu0 %1210
        %v1214 = vadd.f32 %v1187, %v1209
        %v1215 = vadd.f32 %v1188, %v1211
        %v1216 = vstv %s235
        %v1217 = vmul.f32 %v1216, %v325
        %v1218 = vmul.f32 %v1216, %v326
        %v1219 = vmul.f32 %v1216, %v327
        %v1220 = vstv %s284
        %v1221 = vmul.f32 %v1220, %v351
        %v1222 = vmul.f32 %v1220, %v352
        %v1223 = vmul.f32 %v1220, %v353
        %v1224 = vadd.f32 %v1217, %v1221
        %v1225 = vadd.f32 %v1218, %v1222
        %v1226 = vadd.f32 %v1219, %v1223
        %v1230 = vrot.slane %v1224, 5
        %v1231 = vrot.slane %v1225, 5
        %v1232 = vsel %vm301, %v1230, %v1231
        %v1233 = vrot.slane %v1226, 5
        %v1234 = vsel %vm301, %v1231, %v1233
        %v1237 = vadd.f32 %v1214, %v1232
        %v1238 = vadd.f32 %v1215, %v1234
        %v1239 = vstv %s236
        %v1240 = vmul.f32 %v1239, %v325
        %v1241 = vmul.f32 %v1239, %v326
        %v1242 = vmul.f32 %v1239, %v327
        %v1243 = vstv %s285
        %v1244 = vmul.f32 %v1243, %v351
        %v1245 = vmul.f32 %v1243, %v352
        %v1246 = vmul.f32 %v1243, %v353
        %v1247 = vadd.f32 %v1240, %v1244
        %v1248 = vadd.f32 %v1241, %v1245
        %v1249 = vadd.f32 %v1242, %v1246
        %v1253 = vrot.slane %v1247, 5
        %v1254 = vrot.slane %v1248, 5
        %v1255 = vsel %vm301, %v1253, %v1254
        %v1256 = vrot.slane %v1249, 5
        %v1257 = vsel %vm301, %v1254, %v1256
        %1258 = vrot.lane.b32.xlu0 %v1255, 127
        %v1259 = vpop.permute.xlu0 %1258
        %1260 = vrot.lane.b32.xlu0 %v1257, 127
        %v1261 = vpop.permute.xlu0 %1260
        %v1264 = vadd.f32 %v1237, %v1259
        %v1265 = vadd.f32 %v1238, %v1261
        %v1266 = vstv %s237
        %v1267 = vmul.f32 %v1266, %v325
        %v1268 = vmul.f32 %v1266, %v326
        %v1269 = vmul.f32 %v1266, %v327
        %v1270 = vstv %s286
        %v1271 = vmul.f32 %v1270, %v351
        %v1272 = vmul.f32 %v1270, %v352
        %v1273 = vmul.f32 %v1270, %v353
        %v1274 = vadd.f32 %v1267, %v1271
        %v1275 = vadd.f32 %v1268, %v1272
        %v1276 = vadd.f32 %v1269, %v1273
        %v1280 = vrot.slane %v1274, 5
        %v1281 = vrot.slane %v1275, 5
        %v1282 = vsel %vm301, %v1280, %v1281
        %v1283 = vrot.slane %v1276, 5
        %v1284 = vsel %vm301, %v1281, %v1283
        %1285 = vrot.lane.b32.xlu0 %v1282, 126
        %v1286 = vpop.permute.xlu0 %1285
        %1287 = vrot.lane.b32.xlu0 %v1284, 126
        %v1288 = vpop.permute.xlu0 %1287
        %v1291 = vadd.f32 %v1264, %v1286
        %v1292 = vadd.f32 %v1265, %v1288
        %v1293 = vstv %s238
        %v1294 = vmul.f32 %v1293, %v325
        %v1295 = vmul.f32 %v1293, %v326
        %v1296 = vmul.f32 %v1293, %v327
        %v1297 = vstv %s287
        %v1298 = vmul.f32 %v1297, %v351
        %v1299 = vmul.f32 %v1297, %v352
        %v1300 = vmul.f32 %v1297, %v353
        %v1301 = vadd.f32 %v1294, %v1298
        %v1302 = vadd.f32 %v1295, %v1299
        %v1303 = vadd.f32 %v1296, %v1300
        %v1307 = vrot.slane %v1301, 5
        %v1308 = vrot.slane %v1302, 5
        %v1309 = vsel %vm301, %v1307, %v1308
        %v1310 = vrot.slane %v1303, 5
        %v1311 = vsel %vm301, %v1308, %v1310
        %1312 = vrot.lane.b32.xlu0 %v1309, 125
        %v1313 = vpop.permute.xlu0 %1312
        %1314 = vrot.lane.b32.xlu0 %v1311, 125
        %v1315 = vpop.permute.xlu0 %1314
        %v1318 = vadd.f32 %v1291, %v1313
        %v1319 = vadd.f32 %v1292, %v1315
        %v1320 = vstv %s239
        %v1321 = vmul.f32 %v1320, %v325
        %v1322 = vmul.f32 %v1320, %v326
        %v1323 = vmul.f32 %v1320, %v327
        %v1324 = vstv %s288
        %v1325 = vmul.f32 %v1324, %v351
        %v1326 = vmul.f32 %v1324, %v352
        %v1327 = vmul.f32 %v1324, %v353
        %v1328 = vadd.f32 %v1321, %v1325
        %v1329 = vadd.f32 %v1322, %v1326
        %v1330 = vadd.f32 %v1323, %v1327
        %v1334 = vrot.slane %v1328, 5
        %v1335 = vrot.slane %v1329, 5
        %v1336 = vsel %vm301, %v1334, %v1335
        %v1337 = vrot.slane %v1330, 5
        %v1338 = vsel %vm301, %v1335, %v1337
        %1339 = vrot.lane.b32.xlu0 %v1336, 124
        %v1340 = vpop.permute.xlu0 %1339
        %1341 = vrot.lane.b32.xlu0 %v1338, 124
        %v1342 = vpop.permute.xlu0 %1341
        %v1345 = vadd.f32 %v1318, %v1340
        %v1346 = vadd.f32 %v1319, %v1342
        %v1347 = vstv %s240
        %v1348 = vmul.f32 %v1347, %v325
        %v1349 = vmul.f32 %v1347, %v326
        %v1350 = vmul.f32 %v1347, %v327
        %v1351 = vstv %s289
        %v1352 = vmul.f32 %v1351, %v351
        %v1353 = vmul.f32 %v1351, %v352
        %v1354 = vmul.f32 %v1351, %v353
        %v1355 = vadd.f32 %v1348, %v1352
        %v1356 = vadd.f32 %v1349, %v1353
        %v1357 = vadd.f32 %v1350, %v1354
        %v1361 = vrot.slane %v1355, 5
        %v1362 = vrot.slane %v1356, 5
        %v1363 = vsel %vm301, %v1361, %v1362
        %v1364 = vrot.slane %v1357, 5
        %v1365 = vsel %vm301, %v1362, %v1364
        %1366 = vrot.lane.b32.xlu0 %v1363, 123
        %v1367 = vpop.permute.xlu0 %1366
        %1368 = vrot.lane.b32.xlu0 %v1365, 123
        %v1369 = vpop.permute.xlu0 %1368
        %v1372 = vadd.f32 %v1345, %v1367
        %v1373 = vadd.f32 %v1346, %v1369
        %v1374 = vstv %s241
        %v1375 = vmul.f32 %v1374, %v325
        %v1376 = vmul.f32 %v1374, %v326
        %v1377 = vmul.f32 %v1374, %v327
        %v1378 = vstv %s290
        %v1379 = vmul.f32 %v1378, %v351
        %v1380 = vmul.f32 %v1378, %v352
        %v1381 = vmul.f32 %v1378, %v353
        %v1382 = vadd.f32 %v1375, %v1379
        %v1383 = vadd.f32 %v1376, %v1380
        %v1384 = vadd.f32 %v1377, %v1381
        %v1388 = vrot.slane %v1382, 5
        %v1389 = vrot.slane %v1383, 5
        %v1390 = vsel %vm301, %v1388, %v1389
        %v1391 = vrot.slane %v1384, 5
        %v1392 = vsel %vm301, %v1389, %v1391
        %1393 = vrot.lane.b32.xlu0 %v1390, 122
        %v1394 = vpop.permute.xlu0 %1393
        %1395 = vrot.lane.b32.xlu0 %v1392, 122
        %v1396 = vpop.permute.xlu0 %1395
        %v1399 = vadd.f32 %v1372, %v1394
        %v1400 = vadd.f32 %v1373, %v1396
        %v1401 = vstv %s242
        %v1402 = vmul.f32 %v1401, %v325
        %v1403 = vmul.f32 %v1401, %v326
        %v1404 = vmul.f32 %v1401, %v327
        %v1405 = vstv %s291
        %v1406 = vmul.f32 %v1405, %v351
        %v1407 = vmul.f32 %v1405, %v352
        %v1408 = vmul.f32 %v1405, %v353
        %v1409 = vadd.f32 %v1402, %v1406
        %v1410 = vadd.f32 %v1403, %v1407
        %v1411 = vadd.f32 %v1404, %v1408
        %vm1415 = vcmask 1041408
        %v1416 = vrot.slane %v1409, 6
        %v1417 = vrot.slane %v1410, 6
        %v1418 = vsel %vm1415, %v1416, %v1417
        %v1419 = vrot.slane %v1411, 6
        %v1420 = vsel %vm1415, %v1417, %v1419
        %v1423 = vadd.f32 %v1399, %v1418
        %v1424 = vadd.f32 %v1400, %v1420
        %v1425 = vstv %s243
        %v1426 = vmul.f32 %v1425, %v325
        %v1427 = vmul.f32 %v1425, %v326
        %v1428 = vmul.f32 %v1425, %v327
        %v1429 = vstv %s292
        %v1430 = vmul.f32 %v1429, %v351
        %v1431 = vmul.f32 %v1429, %v352
        %v1432 = vmul.f32 %v1429, %v353
        %v1433 = vadd.f32 %v1426, %v1430
        %v1434 = vadd.f32 %v1427, %v1431
        %v1435 = vadd.f32 %v1428, %v1432
        %v1439 = vrot.slane %v1433, 6
        %v1440 = vrot.slane %v1434, 6
        %v1441 = vsel %vm1415, %v1439, %v1440
        %v1442 = vrot.slane %v1435, 6
        %v1443 = vsel %vm1415, %v1440, %v1442
        %1444 = vrot.lane.b32.xlu0 %v1441, 127
        %v1445 = vpop.permute.xlu0 %1444
        %1446 = vrot.lane.b32.xlu0 %v1443, 127
        %v1447 = vpop.permute.xlu0 %1446
        %v1450 = vadd.f32 %v1423, %v1445
        %v1451 = vadd.f32 %v1424, %v1447
        %v1452 = vstv %s244
        %v1453 = vmul.f32 %v1452, %v325
        %v1454 = vmul.f32 %v1452, %v326
        %v1455 = vmul.f32 %v1452, %v327
        %v1456 = vstv %s293
        %v1457 = vmul.f32 %v1456, %v351
        %v1458 = vmul.f32 %v1456, %v352
        %v1459 = vmul.f32 %v1456, %v353
        %v1460 = vadd.f32 %v1453, %v1457
        %v1461 = vadd.f32 %v1454, %v1458
        %v1462 = vadd.f32 %v1455, %v1459
        %v1466 = vrot.slane %v1460, 6
        %v1467 = vrot.slane %v1461, 6
        %v1468 = vsel %vm1415, %v1466, %v1467
        %v1469 = vrot.slane %v1462, 6
        %v1470 = vsel %vm1415, %v1467, %v1469
        %1471 = vrot.lane.b32.xlu0 %v1468, 126
        %v1472 = vpop.permute.xlu0 %1471
        %1473 = vrot.lane.b32.xlu0 %v1470, 126
        %v1474 = vpop.permute.xlu0 %1473
        %v1477 = vadd.f32 %v1450, %v1472
        %v1478 = vadd.f32 %v1451, %v1474
        %v1479 = vstv %s245
        %v1480 = vmul.f32 %v1479, %v325
        %v1481 = vmul.f32 %v1479, %v326
        %v1482 = vmul.f32 %v1479, %v327
        %v1483 = vstv %s294
        %v1484 = vmul.f32 %v1483, %v351
        %v1485 = vmul.f32 %v1483, %v352
        %v1486 = vmul.f32 %v1483, %v353
        %v1487 = vadd.f32 %v1480, %v1484
        %v1488 = vadd.f32 %v1481, %v1485
        %v1489 = vadd.f32 %v1482, %v1486
        %v1493 = vrot.slane %v1487, 6
        %v1494 = vrot.slane %v1488, 6
        %v1495 = vsel %vm1415, %v1493, %v1494
        %v1496 = vrot.slane %v1489, 6
        %v1497 = vsel %vm1415, %v1494, %v1496
        %1498 = vrot.lane.b32.xlu0 %v1495, 125
        %v1499 = vpop.permute.xlu0 %1498
        %1500 = vrot.lane.b32.xlu0 %v1497, 125
        %v1501 = vpop.permute.xlu0 %1500
        %v1504 = vadd.f32 %v1477, %v1499
        %v1505 = vadd.f32 %v1478, %v1501
        %v1506 = vstv %s246
        %v1507 = vmul.f32 %v1506, %v325
        %v1508 = vmul.f32 %v1506, %v326
        %v1509 = vmul.f32 %v1506, %v327
        %v1510 = vstv %s295
        %v1511 = vmul.f32 %v1510, %v351
        %v1512 = vmul.f32 %v1510, %v352
        %v1513 = vmul.f32 %v1510, %v353
        %v1514 = vadd.f32 %v1507, %v1511
        %v1515 = vadd.f32 %v1508, %v1512
        %v1516 = vadd.f32 %v1509, %v1513
        %v1520 = vrot.slane %v1514, 6
        %v1521 = vrot.slane %v1515, 6
        %v1522 = vsel %vm1415, %v1520, %v1521
        %v1523 = vrot.slane %v1516, 6
        %v1524 = vsel %vm1415, %v1521, %v1523
        %1525 = vrot.lane.b32.xlu0 %v1522, 124
        %v1526 = vpop.permute.xlu0 %1525
        %1527 = vrot.lane.b32.xlu0 %v1524, 124
        %v1528 = vpop.permute.xlu0 %1527
        %v1531 = vadd.f32 %v1504, %v1526
        %v1532 = vadd.f32 %v1505, %v1528
        %v1533 = vstv %s247
        %v1534 = vmul.f32 %v1533, %v325
        %v1535 = vmul.f32 %v1533, %v326
        %v1536 = vmul.f32 %v1533, %v327
        %v1537 = vstv %s296
        %v1538 = vmul.f32 %v1537, %v351
        %v1539 = vmul.f32 %v1537, %v352
        %v1540 = vmul.f32 %v1537, %v353
        %v1541 = vadd.f32 %v1534, %v1538
        %v1542 = vadd.f32 %v1535, %v1539
        %v1543 = vadd.f32 %v1536, %v1540
        %v1547 = vrot.slane %v1541, 6
        %v1548 = vrot.slane %v1542, 6
        %v1549 = vsel %vm1415, %v1547, %v1548
        %v1550 = vrot.slane %v1543, 6
        %v1551 = vsel %vm1415, %v1548, %v1550
        %1552 = vrot.lane.b32.xlu0 %v1549, 123
        %v1553 = vpop.permute.xlu0 %1552
        %1554 = vrot.lane.b32.xlu0 %v1551, 123
        %v1555 = vpop.permute.xlu0 %1554
        %v1558 = vadd.f32 %v1531, %v1553
        %v1559 = vadd.f32 %v1532, %v1555
        %v1560 = vstv %s248
        %v1561 = vmul.f32 %v1560, %v325
        %v1562 = vmul.f32 %v1560, %v326
        %v1563 = vmul.f32 %v1560, %v327
        %v1564 = vstv %s297
        %v1565 = vmul.f32 %v1564, %v351
        %v1566 = vmul.f32 %v1564, %v352
        %v1567 = vmul.f32 %v1564, %v353
        %v1568 = vadd.f32 %v1561, %v1565
        %v1569 = vadd.f32 %v1562, %v1566
        %v1570 = vadd.f32 %v1563, %v1567
        %v1574 = vrot.slane %v1568, 6
        %v1575 = vrot.slane %v1569, 6
        %v1576 = vsel %vm1415, %v1574, %v1575
        %v1577 = vrot.slane %v1570, 6
        %v1578 = vsel %vm1415, %v1575, %v1577
        %1579 = vrot.lane.b32.xlu0 %v1576, 122
        %v1580 = vpop.permute.xlu0 %1579
        %1581 = vrot.lane.b32.xlu0 %v1578, 122
        %v1582 = vpop.permute.xlu0 %1581
        %v1585 = vadd.f32 %v1558, %v1580
        %v1586 = vadd.f32 %v1559, %v1582
        %v1587 = vstv %s298
        %v1588 = vadd.f32 %v1585, %v1587
        %v1589 = vadd.f32 %v1586, %v1587
        %v1590 = vxor.u32 %v1588, 2147483648
        %v1591 = vxor.u32 %v1589, 2147483648
        %v1592 = vmul.f32 %v1590, 1.442695
        %v1593 = vpow.pop %v1592
        %v1594 = vmul.f32 %v1591, 1.442695
        %v1595 = vpow.pop %v1594
        %v1596 = vadd.f32 %v1593, 1.0
        %v1597 = vadd.f32 %v1595, 1.0
        %v1598 = vrcp.pop %v1596
        %v1599 = vmul.f32 %v1596, %v1598
        %v1600 = vsub.f32 1.0, %v1599
        %v1601 = vmul.f32 %v1598, %v1600
        %v1602 = vadd.f32 %v1598, %v1601
        %vm1603 = vweird.f32 %v1596
        %vm1604 = vweird.f32 %v1598
        %vm1605 = vmor %vm1603, %vm1604
        %v1606 = vsel %vm1605, %v1598, %v1602
        %v1607 = vand.u32 2147483647, %v1596
        %vm1608 = vcmp.eq.f32.partialorder %v1607, 8.507059e+37
        %v1609 = vand.u32 %v1596, 2147483648
        %v1610 = vor.u32 1.1754944e-38, %v1609
        %v1611 = vsel %vm1608, %v1610, %v1606
        %v1612 = vmul.f32 1.0, %v1611
        %v1613 = vrcp.pop %v1597
        %v1614 = vmul.f32 %v1597, %v1613
        %v1615 = vsub.f32 1.0, %v1614
        %v1616 = vmul.f32 %v1613, %v1615
        %v1617 = vadd.f32 %v1613, %v1616
        %vm1618 = vweird.f32 %v1597
        %vm1619 = vweird.f32 %v1613
        %vm1620 = vmor %vm1618, %vm1619
        %v1621 = vsel %vm1620, %v1613, %v1617
        %v1622 = vand.u32 2147483647, %v1597
        %vm1623 = vcmp.eq.f32.partialorder %v1622, 8.507059e+37
        %v1624 = vand.u32 %v1597, 2147483648
        %v1625 = vor.u32 1.1754944e-38, %v1624
        %v1626 = vsel %vm1623, %v1625, %v1621
        %v1627 = vmul.f32 1.0, %v1626
        %vm1628 = vcmask 130048
        %v1629 = vsel %vm1628, %v178, -inf
        %v1630 = vsel %vm1628, %v179, -inf
        %v1631 = vmax.f32 %v1629, %v1630
        %v1632 = vrot.slane %v1631, 4
        %v1633 = vmax.f32 %v1631, %v1632
        %v1634 = vrot.slane %v1633, 2
        %v1635 = vmax.f32 %v1633, %v1634
        %v1636 = vrot.slane %v1635, 1
        %v1637 = vmax.f32 %v1635, %v1636
        %v1638 = vsel %vm1628, %v180, -inf
        %v1639 = vsel %vm1628, %v181, -inf
        %v1640 = vmax.f32 %v1638, %v1639
        %v1641 = vrot.slane %v1640, 4
        %v1642 = vmax.f32 %v1640, %v1641
        %v1643 = vrot.slane %v1642, 2
        %v1644 = vmax.f32 %v1642, %v1643
        %v1645 = vrot.slane %v1644, 1
        %v1646 = vmax.f32 %v1644, %v1645
        %v1647 = vsel %vm1628, %v182, -inf
        %v1648 = vsel %vm1628, %v183, -inf
        %v1649 = vmax.f32 %v1647, %v1648
        %v1650 = vrot.slane %v1649, 4
        %v1651 = vmax.f32 %v1649, %v1650
        %v1652 = vrot.slane %v1651, 2
        %v1653 = vmax.f32 %v1651, %v1652
        %v1654 = vrot.slane %v1653, 1
        %v1655 = vmax.f32 %v1653, %v1654
        %v1656 = vsel %vm1628, %v184, -inf
        %v1657 = vsel %vm1628, %v185, -inf
        %v1658 = vmax.f32 %v1656, %v1657
        %v1659 = vrot.slane %v1658, 4
        %v1660 = vmax.f32 %v1658, %v1659
        %v1661 = vrot.slane %v1660, 2
        %v1662 = vmax.f32 %v1660, %v1661
        %v1663 = vrot.slane %v1662, 1
        %v1664 = vmax.f32 %v1662, %v1663
        %v1665 = vsel %vm1628, %v178, 0.0
        %v1666 = vsel %vm1628, %v179, 0.0
        %v1667 = vadd.f32 %v1665, %v1666
        %v1668 = vrot.slane %v1667, 4
        %v1669 = vadd.f32 %v1667, %v1668
        %v1670 = vrot.slane %v1669, 2
        %v1671 = vadd.f32 %v1669, %v1670
        %v1672 = vrot.slane %v1671, 1
        %v1673 = vadd.f32 %v1671, %v1672
        %v1674 = vsel %vm1628, %v180, 0.0
        %v1675 = vsel %vm1628, %v181, 0.0
        %v1676 = vadd.f32 %v1674, %v1675
        %v1677 = vrot.slane %v1676, 4
        %v1678 = vadd.f32 %v1676, %v1677
        %v1679 = vrot.slane %v1678, 2
        %v1680 = vadd.f32 %v1678, %v1679
        %v1681 = vrot.slane %v1680, 1
        %v1682 = vadd.f32 %v1680, %v1681
        %v1683 = vsel %vm1628, %v182, 0.0
        %v1684 = vsel %vm1628, %v183, 0.0
        %v1685 = vadd.f32 %v1683, %v1684
        %v1686 = vrot.slane %v1685, 4
        %v1687 = vadd.f32 %v1685, %v1686
        %v1688 = vrot.slane %v1687, 2
        %v1689 = vadd.f32 %v1687, %v1688
        %v1690 = vrot.slane %v1689, 1
        %v1691 = vadd.f32 %v1689, %v1690
        %v1692 = vsel %vm1628, %v184, 0.0
        %v1693 = vsel %vm1628, %v185, 0.0
        %v1694 = vadd.f32 %v1692, %v1693
        %v1695 = vrot.slane %v1694, 4
        %v1696 = vadd.f32 %v1694, %v1695
        %v1697 = vrot.slane %v1696, 2
        %v1698 = vadd.f32 %v1696, %v1697
        %v1699 = vrot.slane %v1698, 1
        %v1700 = vadd.f32 %v1698, %v1699
        %v1701 = vrcp.pop 16.0
        %v1702 = vmul.f32 16.0, %v1701
        %v1703 = vsub.f32 1.0, %v1702
        %v1704 = vmul.f32 %v1701, %v1703
        %v1705 = vadd.f32 %v1701, %v1704
        %vm1706 = vweird.f32 %v1701
        %v1707 = vsel %vm1706, %v1701, %v1705
        %v1708 = vmul.f32 %v1673, %v1707
        %v1709 = vmul.f32 %v1682, %v1707
        %v1710 = vmul.f32 %v1691, %v1707
        %v1711 = vmul.f32 %v1700, %v1707
        %s1712 = sld [smem:[#allocation2 + $0x80]]
        %s1713 = sld [smem:[#allocation2 + $0x81]]
        %s1714 = sld [smem:[#allocation2 + $0x82]]
        %s1715 = sld [smem:[#allocation2 + $0x83]]
        %s1716 = sld [smem:[#allocation2 + $0x84]]
        %s1717 = sld [smem:[#allocation2 + $0x85]]
        %s1718 = sld [smem:[#allocation2 + $0x86]]
        %s1719 = sld [smem:[#allocation2 + $0x87]]
        %s1720 = sld [smem:[#allocation2 + $0x88]]
        %s1721 = sld [smem:[#allocation2 + $0x89]]
        %s1722 = sld [smem:[#allocation2 + $0x8a]]
        %s1723 = sld [smem:[#allocation2 + $0x8b]]
        %s1724 = sld [smem:[#allocation2 + $0x8c]]
        %s1725 = sld [smem:[#allocation2 + $0x8d]]
        %s1726 = sld [smem:[#allocation2 + $0x8e]]
        %s1727 = sld [smem:[#allocation2 + $0x8f]]
        %s1728 = sld [smem:[#allocation2 + $0x90]]
        %s1729 = sld [smem:[#allocation2 + $0x91]]
        %s1730 = sld [smem:[#allocation2 + $0x92]]
        %s1731 = sld [smem:[#allocation2 + $0x93]]
        %s1732 = sld [smem:[#allocation2 + $0x94]]
        %s1733 = sld [smem:[#allocation2 + $0x95]]
        %s1734 = sld [smem:[#allocation2 + $0x96]]
        %s1735 = sld [smem:[#allocation2 + $0x97]]
        %s1736 = sld [smem:[#allocation2 + $0x98]]
        %s1737 = sld [smem:[#allocation2 + $0x99]]
        %s1738 = sld [smem:[#allocation2 + $0x9a]]
        %s1739 = sld [smem:[#allocation2 + $0x9b]]
        %s1740 = sld [smem:[#allocation2 + $0x9c]]
        %s1741 = sld [smem:[#allocation2 + $0x9d]]
        %s1742 = sld [smem:[#allocation2 + $0x9e]]
        %s1743 = sld [smem:[#allocation2 + $0x9f]]
        %s1744 = sld [smem:[#allocation2 + $0xa0]]
        %s1745 = sld [smem:[#allocation2 + $0xa1]]
        %s1746 = sld [smem:[#allocation2 + $0xa2]]
        %s1747 = sld [smem:[#allocation2 + $0xa3]]
        %s1748 = sld [smem:[#allocation2 + $0xa4]]
        %s1749 = sld [smem:[#allocation2 + $0xa5]]
        %s1750 = sld [smem:[#allocation2 + $0xa6]]
        %s1751 = sld [smem:[#allocation2 + $0xa7]]
        %s1752 = sld [smem:[#allocation2 + $0xa8]]
        %s1753 = sld [smem:[#allocation2 + $0xa9]]
        %s1754 = sld [smem:[#allocation2 + $0xaa]]
        %s1755 = sld [smem:[#allocation2 + $0xab]]
        %s1756 = sld [smem:[#allocation2 + $0xac]]
        %s1757 = sld [smem:[#allocation2 + $0xad]]
        %s1758 = sld [smem:[#allocation2 + $0xae]]
        %s1759 = sld [smem:[#allocation2 + $0xaf]]
        %s1760 = sld [smem:[#allocation2 + $0xb0]]
        %s1761 = sld [smem:[#allocation2 + $0xb1]]
        %s1762 = sld [smem:[#allocation2 + $0xb2]]
        %s1763 = sld [smem:[#allocation2 + $0xb3]]
        %s1764 = sld [smem:[#allocation2 + $0xb4]]
        %s1765 = sld [smem:[#allocation2 + $0xb5]]
        %s1766 = sld [smem:[#allocation2 + $0xb6]]
        %s1767 = sld [smem:[#allocation2 + $0xb7]]
        %s1768 = sld [smem:[#allocation2 + $0xb8]]
        %s1769 = sld [smem:[#allocation2 + $0xb9]]
        %s1770 = sld [smem:[#allocation2 + $0xba]]
        %s1771 = sld [smem:[#allocation2 + $0xbb]]
        %s1772 = sld [smem:[#allocation2 + $0xbc]]
        %s1773 = sld [smem:[#allocation2 + $0xbd]]
        %s1774 = sld [smem:[#allocation2 + $0xbe]]
        %s1775 = sld [smem:[#allocation2 + $0xbf]]
        %s1776 = sld [smem:[#allocation2 + $0xc0]]
        %s1777 = sld [smem:[#allocation2 + $0xc1]]
        %s1778 = sld [smem:[#allocation2 + $0xc2]]
        %s1779 = sld [smem:[#allocation2 + $0xc3]]
        %s1780 = sld [smem:[#allocation2 + $0xc4]]
        %s1781 = sld [smem:[#allocation2 + $0xc5]]
        %s1782 = sld [smem:[#allocation2 + $0xc6]]
        %s1783 = sld [smem:[#allocation2 + $0xc7]]
        %s1784 = sld [smem:[#allocation2 + $0xc8]]
        %s1785 = sld [smem:[#allocation2 + $0xc9]]
        %s1786 = sld [smem:[#allocation2 + $0xca]]
        %s1787 = sld [smem:[#allocation2 + $0xcb]]
        %s1788 = sld [smem:[#allocation2 + $0xcc]]
        %s1789 = sld [smem:[#allocation2 + $0xcd]]
        %s1790 = sld [smem:[#allocation2 + $0xce]]
        %s1791 = sld [smem:[#allocation2 + $0xcf]]
        %s1792 = sld [smem:[#allocation2 + $0xd0]]
        %s1793 = sld [smem:[#allocation2 + $0xd1]]
        %s1794 = sld [smem:[#allocation2 + $0xd2]]
        %s1795 = sld [smem:[#allocation2 + $0xd3]]
        %s1796 = sld [smem:[#allocation2 + $0xd4]]
        %s1797 = sld [smem:[#allocation2 + $0xd5]]
        %s1798 = sld [smem:[#allocation2 + $0xd6]]
        %s1799 = sld [smem:[#allocation2 + $0xd7]]
        %s1800 = sld [smem:[#allocation2 + $0xd8]]
        %s1801 = sld [smem:[#allocation2 + $0xd9]]
        %s1802 = sld [smem:[#allocation2 + $0xda]]
        %s1803 = sld [smem:[#allocation2 + $0xdb]]
        %s1804 = sld [smem:[#allocation2 + $0xdc]]
        %s1805 = sld [smem:[#allocation2 + $0xdd]]
        %s1806 = sld [smem:[#allocation2 + $0xde]]
        %s1807 = sld [smem:[#allocation2 + $0xdf]]
        %s1808 = sld [smem:[#allocation2 + $0xe0]]
        %s1809 = sld [smem:[#allocation2 + $0xe1]]
        %s1810 = sld [smem:[#allocation2 + $0xe2]]
        %1816 = vrot.lane.b32.xlu0 0.0, 3
        %v1817 = vpop.permute.xlu0 %1816
        %1818 = vrot.lane.b32.xlu0 %v1637, 3
        %v1819 = vpop.permute.xlu0 %1818
        %1820 = vrot.lane.b32.xlu0 %v1646, 3
        %v1821 = vpop.permute.xlu0 %1820
        %1822 = vrot.lane.b32.xlu0 %v1655, 3
        %v1823 = vpop.permute.xlu0 %1822
        %1824 = vrot.lane.b32.xlu0 %v1664, 3
        %v1825 = vpop.permute.xlu0 %1824
        %v1831 = vsel %vm320, 0.0, %v1817
        %v1832 = vsel %vm320, 0.0, %v1819
        %v1833 = vsel %vm320, 0.0, %v1821
        %v1834 = vsel %vm320, 0.0, %v1823
        %v1835 = vsel %vm320, 0.0, %v1825
        %v1836 = vsel %vm324, %v1831, 0.0
        %v1837 = vsel %vm324, %v1832, 0.0
        %v1838 = vsel %vm324, %v1833, 0.0
        %v1839 = vsel %vm324, %v1834, 0.0
        %v1840 = vsel %vm324, %v1835, 0.0
        %1845 = vrot.lane.b32.xlu0 %v1708, 3
        %v1846 = vpop.permute.xlu0 %1845
        %1847 = vrot.lane.b32.xlu0 %v1709, 3
        %v1848 = vpop.permute.xlu0 %1847
        %1849 = vrot.lane.b32.xlu0 %v1710, 3
        %v1850 = vpop.permute.xlu0 %1849
        %1851 = vrot.lane.b32.xlu0 %v1711, 3
        %v1852 = vpop.permute.xlu0 %1851
        %v1857 = vsel %vm320, 0.0, %v1846
        %v1858 = vsel %vm320, 0.0, %v1848
        %v1859 = vsel %vm320, 0.0, %v1850
        %v1860 = vsel %vm320, 0.0, %v1852
        %v1861 = vsel %vm324, %v1857, 0.0
        %v1862 = vsel %vm324, %v1858, 0.0
        %v1863 = vsel %vm324, %v1859, 0.0
        %v1864 = vsel %vm324, %v1860, 0.0
        %v1865 = vstv %s1712
        %v1866 = vmul.f32 %v1865, %v1836
        %v1867 = vmul.f32 %v1865, %v1837
        %v1868 = vstv %s1761
        %v1869 = vmul.f32 %v1868, %v1836
        %v1870 = vmul.f32 %v1868, %v1861
        %v1871 = vadd.f32 %v1866, %v1869
        %v1872 = vadd.f32 %v1867, %v1870
        %v1873 = vadd.f32 %v1871, 0.0
        %v1874 = vadd.f32 %v1872, 0.0
        %v1875 = vstv %s1713
        %v1876 = vmul.f32 %v1875, %v1836
        %v1877 = vmul.f32 %v1875, %v1837
        %v1878 = vstv %s1762
        %v1879 = vmul.f32 %v1878, %v1836
        %v1880 = vmul.f32 %v1878, %v1861
        %v1881 = vadd.f32 %v1876, %v1879
        %v1882 = vadd.f32 %v1877, %v1880
        %1885 = vrot.lane.b32.xlu0 %v1881, 127
        %v1886 = vpop.permute.xlu0 %1885
        %1887 = vrot.lane.b32.xlu0 %v1882, 127
        %v1888 = vpop.permute.xlu0 %1887
        %v1891 = vadd.f32 %v1873, %v1886
        %v1892 = vadd.f32 %v1874, %v1888
        %v1893 = vstv %s1714
        %v1894 = vmul.f32 %v1893, %v1836
        %v1895 = vmul.f32 %v1893, %v1837
        %v1896 = vstv %s1763
        %v1897 = vmul.f32 %v1896, %v1836
        %v1898 = vmul.f32 %v1896, %v1861
        %v1899 = vadd.f32 %v1894, %v1897
        %v1900 = vadd.f32 %v1895, %v1898
        %1903 = vrot.lane.b32.xlu0 %v1899, 126
        %v1904 = vpop.permute.xlu0 %1903
        %1905 = vrot.lane.b32.xlu0 %v1900, 126
        %v1906 = vpop.permute.xlu0 %1905
        %v1909 = vadd.f32 %v1891, %v1904
        %v1910 = vadd.f32 %v1892, %v1906
        %v1911 = vstv %s1715
        %v1912 = vmul.f32 %v1911, %v1836
        %v1913 = vmul.f32 %v1911, %v1837
        %v1914 = vstv %s1764
        %v1915 = vmul.f32 %v1914, %v1836
        %v1916 = vmul.f32 %v1914, %v1861
        %v1917 = vadd.f32 %v1912, %v1915
        %v1918 = vadd.f32 %v1913, %v1916
        %1921 = vrot.lane.b32.xlu0 %v1917, 125
        %v1922 = vpop.permute.xlu0 %1921
        %1923 = vrot.lane.b32.xlu0 %v1918, 125
        %v1924 = vpop.permute.xlu0 %1923
        %v1927 = vadd.f32 %v1909, %v1922
        %v1928 = vadd.f32 %v1910, %v1924
        %v1929 = vstv %s1716
        %v1930 = vmul.f32 %v1929, %v1836
        %v1931 = vmul.f32 %v1929, %v1837
        %v1932 = vstv %s1765
        %v1933 = vmul.f32 %v1932, %v1836
        %v1934 = vmul.f32 %v1932, %v1861
        %v1935 = vadd.f32 %v1930, %v1933
        %v1936 = vadd.f32 %v1931, %v1934
        %1939 = vrot.lane.b32.xlu0 %v1935, 124
        %v1940 = vpop.permute.xlu0 %1939
        %1941 = vrot.lane.b32.xlu0 %v1936, 124
        %v1942 = vpop.permute.xlu0 %1941
        %v1945 = vadd.f32 %v1927, %v1940
        %v1946 = vadd.f32 %v1928, %v1942
        %v1947 = vstv %s1717
        %v1948 = vmul.f32 %v1947, %v1836
        %v1949 = vmul.f32 %v1947, %v1837
        %v1950 = vstv %s1766
        %v1951 = vmul.f32 %v1950, %v1836
        %v1952 = vmul.f32 %v1950, %v1861
        %v1953 = vadd.f32 %v1948, %v1951
        %v1954 = vadd.f32 %v1949, %v1952
        %1957 = vrot.lane.b32.xlu0 %v1953, 123
        %v1958 = vpop.permute.xlu0 %1957
        %1959 = vrot.lane.b32.xlu0 %v1954, 123
        %v1960 = vpop.permute.xlu0 %1959
        %v1963 = vadd.f32 %v1945, %v1958
        %v1964 = vadd.f32 %v1946, %v1960
        %v1965 = vstv %s1718
        %v1966 = vmul.f32 %v1965, %v1836
        %v1967 = vmul.f32 %v1965, %v1837
        %v1968 = vstv %s1767
        %v1969 = vmul.f32 %v1968, %v1836
        %v1970 = vmul.f32 %v1968, %v1861
        %v1971 = vadd.f32 %v1966, %v1969
        %v1972 = vadd.f32 %v1967, %v1970
        %1975 = vrot.lane.b32.xlu0 %v1971, 122
        %v1976 = vpop.permute.xlu0 %1975
        %1977 = vrot.lane.b32.xlu0 %v1972, 122
        %v1978 = vpop.permute.xlu0 %1977
        %v1981 = vadd.f32 %v1963, %v1976
        %v1982 = vadd.f32 %v1964, %v1978
        %v1983 = vstv %s1719
        %v1984 = vmul.f32 %v1983, %v1836
        %v1985 = vmul.f32 %v1983, %v1837
        %v1986 = vmul.f32 %v1983, %v1838
        %v1987 = vstv %s1768
        %v1988 = vmul.f32 %v1987, %v1836
        %v1989 = vmul.f32 %v1987, %v1861
        %v1990 = vmul.f32 %v1987, %v1862
        %v1991 = vadd.f32 %v1984, %v1988
        %v1992 = vadd.f32 %v1985, %v1989
        %v1993 = vadd.f32 %v1986, %v1990
        %v1994 = vadd.f32 %v1981, %v1991
        %v1995 = vadd.f32 %v1981, %v1992
        %v1996 = vadd.f32 %v1982, %v1993
        %v1997 = vstv %s1720
        %v1998 = vmul.f32 %v1997, %v1836
        %v1999 = vmul.f32 %v1997, %v1837
        %v2000 = vmul.f32 %v1997, %v1838
        %v2001 = vstv %s1769
        %v2002 = vmul.f32 %v2001, %v1836
        %v2003 = vmul.f32 %v2001, %v1861
        %v2004 = vmul.f32 %v2001, %v1862
        %v2005 = vadd.f32 %v1998, %v2002
        %v2006 = vadd.f32 %v1999, %v2003
        %v2007 = vadd.f32 %v2000, %v2004
        %2011 = vrot.lane.b32.xlu0 %v2005, 127
        %v2012 = vpop.permute.xlu0 %2011
        %2013 = vrot.lane.b32.xlu0 %v2006, 127
        %v2014 = vpop.permute.xlu0 %2013
        %2015 = vrot.lane.b32.xlu0 %v2007, 127
        %v2016 = vpop.permute.xlu0 %2015
        %v2020 = vadd.f32 %v1994, %v2012
        %v2021 = vadd.f32 %v1995, %v2014
        %v2022 = vadd.f32 %v1996, %v2016
        %v2023 = vstv %s1721
        %v2024 = vmul.f32 %v2023, %v1836
        %v2025 = vmul.f32 %v2023, %v1837
        %v2026 = vmul.f32 %v2023, %v1838
        %v2027 = vstv %s1770
        %v2028 = vmul.f32 %v2027, %v1836
        %v2029 = vmul.f32 %v2027, %v1861
        %v2030 = vmul.f32 %v2027, %v1862
        %v2031 = vadd.f32 %v2024, %v2028
        %v2032 = vadd.f32 %v2025, %v2029
        %v2033 = vadd.f32 %v2026, %v2030
        %2037 = vrot.lane.b32.xlu0 %v2031, 126
        %v2038 = vpop.permute.xlu0 %2037
        %2039 = vrot.lane.b32.xlu0 %v2032, 126
        %v2040 = vpop.permute.xlu0 %2039
        %2041 = vrot.lane.b32.xlu0 %v2033, 126
        %v2042 = vpop.permute.xlu0 %2041
        %v2046 = vadd.f32 %v2020, %v2038
        %v2047 = vadd.f32 %v2021, %v2040
        %v2048 = vadd.f32 %v2022, %v2042
        %v2049 = vstv %s1722
        %v2050 = vmul.f32 %v2049, %v1836
        %v2051 = vmul.f32 %v2049, %v1837
        %v2052 = vmul.f32 %v2049, %v1838
        %v2053 = vstv %s1771
        %v2054 = vmul.f32 %v2053, %v1836
        %v2055 = vmul.f32 %v2053, %v1861
        %v2056 = vmul.f32 %v2053, %v1862
        %v2057 = vadd.f32 %v2050, %v2054
        %v2058 = vadd.f32 %v2051, %v2055
        %v2059 = vadd.f32 %v2052, %v2056
        %2063 = vrot.lane.b32.xlu0 %v2057, 125
        %v2064 = vpop.permute.xlu0 %2063
        %2065 = vrot.lane.b32.xlu0 %v2058, 125
        %v2066 = vpop.permute.xlu0 %2065
        %2067 = vrot.lane.b32.xlu0 %v2059, 125
        %v2068 = vpop.permute.xlu0 %2067
        %v2072 = vadd.f32 %v2046, %v2064
        %v2073 = vadd.f32 %v2047, %v2066
        %v2074 = vadd.f32 %v2048, %v2068
        %v2075 = vstv %s1723
        %v2076 = vmul.f32 %v2075, %v1836
        %v2077 = vmul.f32 %v2075, %v1837
        %v2078 = vmul.f32 %v2075, %v1838
        %v2079 = vstv %s1772
        %v2080 = vmul.f32 %v2079, %v1836
        %v2081 = vmul.f32 %v2079, %v1861
        %v2082 = vmul.f32 %v2079, %v1862
        %v2083 = vadd.f32 %v2076, %v2080
        %v2084 = vadd.f32 %v2077, %v2081
        %v2085 = vadd.f32 %v2078, %v2082
        %2089 = vrot.lane.b32.xlu0 %v2083, 124
        %v2090 = vpop.permute.xlu0 %2089
        %2091 = vrot.lane.b32.xlu0 %v2084, 124
        %v2092 = vpop.permute.xlu0 %2091
        %2093 = vrot.lane.b32.xlu0 %v2085, 124
        %v2094 = vpop.permute.xlu0 %2093
        %v2098 = vadd.f32 %v2072, %v2090
        %v2099 = vadd.f32 %v2073, %v2092
        %v2100 = vadd.f32 %v2074, %v2094
        %v2101 = vstv %s1724
        %v2102 = vmul.f32 %v2101, %v1836
        %v2103 = vmul.f32 %v2101, %v1837
        %v2104 = vmul.f32 %v2101, %v1838
        %v2105 = vstv %s1773
        %v2106 = vmul.f32 %v2105, %v1836
        %v2107 = vmul.f32 %v2105, %v1861
        %v2108 = vmul.f32 %v2105, %v1862
        %v2109 = vadd.f32 %v2102, %v2106
        %v2110 = vadd.f32 %v2103, %v2107
        %v2111 = vadd.f32 %v2104, %v2108
        %2115 = vrot.lane.b32.xlu0 %v2109, 123
        %v2116 = vpop.permute.xlu0 %2115
        %2117 = vrot.lane.b32.xlu0 %v2110, 123
        %v2118 = vpop.permute.xlu0 %2117
        %2119 = vrot.lane.b32.xlu0 %v2111, 123
        %v2120 = vpop.permute.xlu0 %2119
        %v2124 = vadd.f32 %v2098, %v2116
        %v2125 = vadd.f32 %v2099, %v2118
        %v2126 = vadd.f32 %v2100, %v2120
        %v2127 = vstv %s1725
        %v2128 = vmul.f32 %v2127, %v1836
        %v2129 = vmul.f32 %v2127, %v1837
        %v2130 = vmul.f32 %v2127, %v1838
        %v2131 = vstv %s1774
        %v2132 = vmul.f32 %v2131, %v1836
        %v2133 = vmul.f32 %v2131, %v1861
        %v2134 = vmul.f32 %v2131, %v1862
        %v2135 = vadd.f32 %v2128, %v2132
        %v2136 = vadd.f32 %v2129, %v2133
        %v2137 = vadd.f32 %v2130, %v2134
        %2141 = vrot.lane.b32.xlu0 %v2135, 122
        %v2142 = vpop.permute.xlu0 %2141
        %2143 = vrot.lane.b32.xlu0 %v2136, 122
        %v2144 = vpop.permute.xlu0 %2143
        %2145 = vrot.lane.b32.xlu0 %v2137, 122
        %v2146 = vpop.permute.xlu0 %2145
        %v2150 = vadd.f32 %v2124, %v2142
        %v2151 = vadd.f32 %v2125, %v2144
        %v2152 = vadd.f32 %v2126, %v2146
        %v2153 = vstv %s1726
        %v2154 = vmul.f32 %v2153, %v1836
        %v2155 = vmul.f32 %v2153, %v1837
        %v2156 = vmul.f32 %v2153, %v1838
        %v2157 = vmul.f32 %v2153, %v1839
        %v2158 = vstv %s1775
        %v2159 = vmul.f32 %v2158, %v1836
        %v2160 = vmul.f32 %v2158, %v1861
        %v2161 = vmul.f32 %v2158, %v1862
        %v2162 = vmul.f32 %v2158, %v1863
        %v2163 = vadd.f32 %v2154, %v2159
        %v2164 = vadd.f32 %v2155, %v2160
        %v2165 = vadd.f32 %v2156, %v2161
        %v2166 = vadd.f32 %v2157, %v2162
        %v2167 = vadd.f32 %v2150, %v2163
        %v2168 = vadd.f32 %v2150, %v2164
        %v2169 = vadd.f32 %v2151, %v2165
        %v2170 = vadd.f32 %v2152, %v2166
        %v2171 = vstv %s1727
        %v2172 = vmul.f32 %v2171, %v1836
        %v2173 = vmul.f32 %v2171, %v1837
        %v2174 = vmul.f32 %v2171, %v1838
        %v2175 = vmul.f32 %v2171, %v1839
        %v2176 = vstv %s1776
        %v2177 = vmul.f32 %v2176, %v1836
        %v2178 = vmul.f32 %v2176, %v1861
        %v2179 = vmul.f32 %v2176, %v1862
        %v2180 = vmul.f32 %v2176, %v1863
        %v2181 = vadd.f32 %v2172, %v2177
        %v2182 = vadd.f32 %v2173, %v2178
        %v2183 = vadd.f32 %v2174, %v2179
        %v2184 = vadd.f32 %v2175, %v2180
        %2189 = vrot.lane.b32.xlu0 %v2181, 127
        %v2190 = vpop.permute.xlu0 %2189
        %2191 = vrot.lane.b32.xlu0 %v2182, 127
        %v2192 = vpop.permute.xlu0 %2191
        %2193 = vrot.lane.b32.xlu0 %v2183, 127
        %v2194 = vpop.permute.xlu0 %2193
        %2195 = vrot.lane.b32.xlu0 %v2184, 127
        %v2196 = vpop.permute.xlu0 %2195
        %v2201 = vadd.f32 %v2167, %v2190
        %v2202 = vadd.f32 %v2168, %v2192
        %v2203 = vadd.f32 %v2169, %v2194
        %v2204 = vadd.f32 %v2170, %v2196
        %v2205 = vstv %s1728
        %v2206 = vmul.f32 %v2205, %v1836
        %v2207 = vmul.f32 %v2205, %v1837
        %v2208 = vmul.f32 %v2205, %v1838
        %v2209 = vmul.f32 %v2205, %v1839
        %v2210 = vstv %s1777
        %v2211 = vmul.f32 %v2210, %v1836
        %v2212 = vmul.f32 %v2210, %v1861
        %v2213 = vmul.f32 %v2210, %v1862
        %v2214 = vmul.f32 %v2210, %v1863
        %v2215 = vadd.f32 %v2206, %v2211
        %v2216 = vadd.f32 %v2207, %v2212
        %v2217 = vadd.f32 %v2208, %v2213
        %v2218 = vadd.f32 %v2209, %v2214
        %2223 = vrot.lane.b32.xlu0 %v2215, 126
        %v2224 = vpop.permute.xlu0 %2223
        %2225 = vrot.lane.b32.xlu0 %v2216, 126
        %v2226 = vpop.permute.xlu0 %2225
        %2227 = vrot.lane.b32.xlu0 %v2217, 126
        %v2228 = vpop.permute.xlu0 %2227
        %2229 = vrot.lane.b32.xlu0 %v2218, 126
        %v2230 = vpop.permute.xlu0 %2229
        %v2235 = vadd.f32 %v2201, %v2224
        %v2236 = vadd.f32 %v2202, %v2226
        %v2237 = vadd.f32 %v2203, %v2228
        %v2238 = vadd.f32 %v2204, %v2230
        %v2239 = vstv %s1729
        %v2240 = vmul.f32 %v2239, %v1836
        %v2241 = vmul.f32 %v2239, %v1837
        %v2242 = vmul.f32 %v2239, %v1838
        %v2243 = vmul.f32 %v2239, %v1839
        %v2244 = vstv %s1778
        %v2245 = vmul.f32 %v2244, %v1836
        %v2246 = vmul.f32 %v2244, %v1861
        %v2247 = vmul.f32 %v2244, %v1862
        %v2248 = vmul.f32 %v2244, %v1863
        %v2249 = vadd.f32 %v2240, %v2245
        %v2250 = vadd.f32 %v2241, %v2246
        %v2251 = vadd.f32 %v2242, %v2247
        %v2252 = vadd.f32 %v2243, %v2248
        %2257 = vrot.lane.b32.xlu0 %v2249, 125
        %v2258 = vpop.permute.xlu0 %2257
        %2259 = vrot.lane.b32.xlu0 %v2250, 125
        %v2260 = vpop.permute.xlu0 %2259
        %2261 = vrot.lane.b32.xlu0 %v2251, 125
        %v2262 = vpop.permute.xlu0 %2261
        %2263 = vrot.lane.b32.xlu0 %v2252, 125
        %v2264 = vpop.permute.xlu0 %2263
        %v2269 = vadd.f32 %v2235, %v2258
        %v2270 = vadd.f32 %v2236, %v2260
        %v2271 = vadd.f32 %v2237, %v2262
        %v2272 = vadd.f32 %v2238, %v2264
        %v2273 = vstv %s1730
        %v2274 = vmul.f32 %v2273, %v1836
        %v2275 = vmul.f32 %v2273, %v1837
        %v2276 = vmul.f32 %v2273, %v1838
        %v2277 = vmul.f32 %v2273, %v1839
        %v2278 = vstv %s1779
        %v2279 = vmul.f32 %v2278, %v1836
        %v2280 = vmul.f32 %v2278, %v1861
        %v2281 = vmul.f32 %v2278, %v1862
        %v2282 = vmul.f32 %v2278, %v1863
        %v2283 = vadd.f32 %v2274, %v2279
        %v2284 = vadd.f32 %v2275, %v2280
        %v2285 = vadd.f32 %v2276, %v2281
        %v2286 = vadd.f32 %v2277, %v2282
        %2291 = vrot.lane.b32.xlu0 %v2283, 124
        %v2292 = vpop.permute.xlu0 %2291
        %2293 = vrot.lane.b32.xlu0 %v2284, 124
        %v2294 = vpop.permute.xlu0 %2293
        %2295 = vrot.lane.b32.xlu0 %v2285, 124
        %v2296 = vpop.permute.xlu0 %2295
        %2297 = vrot.lane.b32.xlu0 %v2286, 124
        %v2298 = vpop.permute.xlu0 %2297
        %v2303 = vadd.f32 %v2269, %v2292
        %v2304 = vadd.f32 %v2270, %v2294
        %v2305 = vadd.f32 %v2271, %v2296
        %v2306 = vadd.f32 %v2272, %v2298
        %v2307 = vstv %s1731
        %v2308 = vmul.f32 %v2307, %v1836
        %v2309 = vmul.f32 %v2307, %v1837
        %v2310 = vmul.f32 %v2307, %v1838
        %v2311 = vmul.f32 %v2307, %v1839
        %v2312 = vstv %s1780
        %v2313 = vmul.f32 %v2312, %v1836
        %v2314 = vmul.f32 %v2312, %v1861
        %v2315 = vmul.f32 %v2312, %v1862
        %v2316 = vmul.f32 %v2312, %v1863
        %v2317 = vadd.f32 %v2308, %v2313
        %v2318 = vadd.f32 %v2309, %v2314
        %v2319 = vadd.f32 %v2310, %v2315
        %v2320 = vadd.f32 %v2311, %v2316
        %2325 = vrot.lane.b32.xlu0 %v2317, 123
        %v2326 = vpop.permute.xlu0 %2325
        %2327 = vrot.lane.b32.xlu0 %v2318, 123
        %v2328 = vpop.permute.xlu0 %2327
        %2329 = vrot.lane.b32.xlu0 %v2319, 123
        %v2330 = vpop.permute.xlu0 %2329
        %2331 = vrot.lane.b32.xlu0 %v2320, 123
        %v2332 = vpop.permute.xlu0 %2331
        %v2337 = vadd.f32 %v2303, %v2326
        %v2338 = vadd.f32 %v2304, %v2328
        %v2339 = vadd.f32 %v2305, %v2330
        %v2340 = vadd.f32 %v2306, %v2332
        %v2341 = vstv %s1732
        %v2342 = vmul.f32 %v2341, %v1836
        %v2343 = vmul.f32 %v2341, %v1837
        %v2344 = vmul.f32 %v2341, %v1838
        %v2345 = vmul.f32 %v2341, %v1839
        %v2346 = vstv %s1781
        %v2347 = vmul.f32 %v2346, %v1836
        %v2348 = vmul.f32 %v2346, %v1861
        %v2349 = vmul.f32 %v2346, %v1862
        %v2350 = vmul.f32 %v2346, %v1863
        %v2351 = vadd.f32 %v2342, %v2347
        %v2352 = vadd.f32 %v2343, %v2348
        %v2353 = vadd.f32 %v2344, %v2349
        %v2354 = vadd.f32 %v2345, %v2350
        %2359 = vrot.lane.b32.xlu0 %v2351, 122
        %v2360 = vpop.permute.xlu0 %2359
        %2361 = vrot.lane.b32.xlu0 %v2352, 122
        %v2362 = vpop.permute.xlu0 %2361
        %2363 = vrot.lane.b32.xlu0 %v2353, 122
        %v2364 = vpop.permute.xlu0 %2363
        %2365 = vrot.lane.b32.xlu0 %v2354, 122
        %v2366 = vpop.permute.xlu0 %2365
        %v2371 = vadd.f32 %v2337, %v2360
        %v2372 = vadd.f32 %v2338, %v2362
        %v2373 = vadd.f32 %v2339, %v2364
        %v2374 = vadd.f32 %v2340, %v2366
        %v2375 = vstv %s1733
        %v2376 = vmul.f32 %v2375, %v1837
        %v2377 = vmul.f32 %v2375, %v1838
        %v2378 = vmul.f32 %v2375, %v1839
        %v2379 = vmul.f32 %v2375, %v1840
        %v2380 = vstv %s1782
        %v2381 = vmul.f32 %v2380, %v1861
        %v2382 = vmul.f32 %v2380, %v1862
        %v2383 = vmul.f32 %v2380, %v1863
        %v2384 = vmul.f32 %v2380, %v1864
        %v2385 = vadd.f32 %v2376, %v2381
        %v2386 = vadd.f32 %v2377, %v2382
        %v2387 = vadd.f32 %v2378, %v2383
        %v2388 = vadd.f32 %v2379, %v2384
        %v2389 = vadd.f32 %v2371, %v2385
        %v2390 = vadd.f32 %v2372, %v2386
        %v2391 = vadd.f32 %v2373, %v2387
        %v2392 = vadd.f32 %v2374, %v2388
        %v2393 = vstv %s1734
        %v2394 = vmul.f32 %v2393, %v1837
        %v2395 = vmul.f32 %v2393, %v1838
        %v2396 = vmul.f32 %v2393, %v1839
        %v2397 = vmul.f32 %v2393, %v1840
        %v2398 = vstv %s1783
        %v2399 = vmul.f32 %v2398, %v1861
        %v2400 = vmul.f32 %v2398, %v1862
        %v2401 = vmul.f32 %v2398, %v1863
        %v2402 = vmul.f32 %v2398, %v1864
        %v2403 = vadd.f32 %v2394, %v2399
        %v2404 = vadd.f32 %v2395, %v2400
        %v2405 = vadd.f32 %v2396, %v2401
        %v2406 = vadd.f32 %v2397, %v2402
        %2411 = vrot.lane.b32.xlu0 %v2403, 127
        %v2412 = vpop.permute.xlu0 %2411
        %2413 = vrot.lane.b32.xlu0 %v2404, 127
        %v2414 = vpop.permute.xlu0 %2413
        %2415 = vrot.lane.b32.xlu0 %v2405, 127
        %v2416 = vpop.permute.xlu0 %2415
        %2417 = vrot.lane.b32.xlu0 %v2406, 127
        %v2418 = vpop.permute.xlu0 %2417
        %v2423 = vadd.f32 %v2389, %v2412
        %v2424 = vadd.f32 %v2390, %v2414
        %v2425 = vadd.f32 %v2391, %v2416
        %v2426 = vadd.f32 %v2392, %v2418
        %v2427 = vstv %s1735
        %v2428 = vmul.f32 %v2427, %v1837
        %v2429 = vmul.f32 %v2427, %v1838
        %v2430 = vmul.f32 %v2427, %v1839
        %v2431 = vmul.f32 %v2427, %v1840
        %v2432 = vstv %s1784
        %v2433 = vmul.f32 %v2432, %v1861
        %v2434 = vmul.f32 %v2432, %v1862
        %v2435 = vmul.f32 %v2432, %v1863
        %v2436 = vmul.f32 %v2432, %v1864
        %v2437 = vadd.f32 %v2428, %v2433
        %v2438 = vadd.f32 %v2429, %v2434
        %v2439 = vadd.f32 %v2430, %v2435
        %v2440 = vadd.f32 %v2431, %v2436
        %2445 = vrot.lane.b32.xlu0 %v2437, 126
        %v2446 = vpop.permute.xlu0 %2445
        %2447 = vrot.lane.b32.xlu0 %v2438, 126
        %v2448 = vpop.permute.xlu0 %2447
        %2449 = vrot.lane.b32.xlu0 %v2439, 126
        %v2450 = vpop.permute.xlu0 %2449
        %2451 = vrot.lane.b32.xlu0 %v2440, 126
        %v2452 = vpop.permute.xlu0 %2451
        %v2457 = vadd.f32 %v2423, %v2446
        %v2458 = vadd.f32 %v2424, %v2448
        %v2459 = vadd.f32 %v2425, %v2450
        %v2460 = vadd.f32 %v2426, %v2452
        %v2461 = vstv %s1736
        %v2462 = vmul.f32 %v2461, %v1837
        %v2463 = vmul.f32 %v2461, %v1838
        %v2464 = vmul.f32 %v2461, %v1839
        %v2465 = vmul.f32 %v2461, %v1840
        %v2466 = vstv %s1785
        %v2467 = vmul.f32 %v2466, %v1861
        %v2468 = vmul.f32 %v2466, %v1862
        %v2469 = vmul.f32 %v2466, %v1863
        %v2470 = vmul.f32 %v2466, %v1864
        %v2471 = vadd.f32 %v2462, %v2467
        %v2472 = vadd.f32 %v2463, %v2468
        %v2473 = vadd.f32 %v2464, %v2469
        %v2474 = vadd.f32 %v2465, %v2470
        %2479 = vrot.lane.b32.xlu0 %v2471, 125
        %v2480 = vpop.permute.xlu0 %2479
        %2481 = vrot.lane.b32.xlu0 %v2472, 125
        %v2482 = vpop.permute.xlu0 %2481
        %2483 = vrot.lane.b32.xlu0 %v2473, 125
        %v2484 = vpop.permute.xlu0 %2483
        %2485 = vrot.lane.b32.xlu0 %v2474, 125
        %v2486 = vpop.permute.xlu0 %2485
        %v2491 = vadd.f32 %v2457, %v2480
        %v2492 = vadd.f32 %v2458, %v2482
        %v2493 = vadd.f32 %v2459, %v2484
        %v2494 = vadd.f32 %v2460, %v2486
        %v2495 = vstv %s1737
        %v2496 = vmul.f32 %v2495, %v1837
        %v2497 = vmul.f32 %v2495, %v1838
        %v2498 = vmul.f32 %v2495, %v1839
        %v2499 = vmul.f32 %v2495, %v1840
        %v2500 = vstv %s1786
        %v2501 = vmul.f32 %v2500, %v1861
        %v2502 = vmul.f32 %v2500, %v1862
        %v2503 = vmul.f32 %v2500, %v1863
        %v2504 = vmul.f32 %v2500, %v1864
        %v2505 = vadd.f32 %v2496, %v2501
        %v2506 = vadd.f32 %v2497, %v2502
        %v2507 = vadd.f32 %v2498, %v2503
        %v2508 = vadd.f32 %v2499, %v2504
        %2513 = vrot.lane.b32.xlu0 %v2505, 124
        %v2514 = vpop.permute.xlu0 %2513
        %2515 = vrot.lane.b32.xlu0 %v2506, 124
        %v2516 = vpop.permute.xlu0 %2515
        %2517 = vrot.lane.b32.xlu0 %v2507, 124
        %v2518 = vpop.permute.xlu0 %2517
        %2519 = vrot.lane.b32.xlu0 %v2508, 124
        %v2520 = vpop.permute.xlu0 %2519
        %v2525 = vadd.f32 %v2491, %v2514
        %v2526 = vadd.f32 %v2492, %v2516
        %v2527 = vadd.f32 %v2493, %v2518
        %v2528 = vadd.f32 %v2494, %v2520
        %v2529 = vstv %s1738
        %v2530 = vmul.f32 %v2529, %v1837
        %v2531 = vmul.f32 %v2529, %v1838
        %v2532 = vmul.f32 %v2529, %v1839
        %v2533 = vmul.f32 %v2529, %v1840
        %v2534 = vstv %s1787
        %v2535 = vmul.f32 %v2534, %v1861
        %v2536 = vmul.f32 %v2534, %v1862
        %v2537 = vmul.f32 %v2534, %v1863
        %v2538 = vmul.f32 %v2534, %v1864
        %v2539 = vadd.f32 %v2530, %v2535
        %v2540 = vadd.f32 %v2531, %v2536
        %v2541 = vadd.f32 %v2532, %v2537
        %v2542 = vadd.f32 %v2533, %v2538
        %2547 = vrot.lane.b32.xlu0 %v2539, 123
        %v2548 = vpop.permute.xlu0 %2547
        %2549 = vrot.lane.b32.xlu0 %v2540, 123
        %v2550 = vpop.permute.xlu0 %2549
        %2551 = vrot.lane.b32.xlu0 %v2541, 123
        %v2552 = vpop.permute.xlu0 %2551
        %2553 = vrot.lane.b32.xlu0 %v2542, 123
        %v2554 = vpop.permute.xlu0 %2553
        %v2559 = vadd.f32 %v2525, %v2548
        %v2560 = vadd.f32 %v2526, %v2550
        %v2561 = vadd.f32 %v2527, %v2552
        %v2562 = vadd.f32 %v2528, %v2554
        %v2563 = vstv %s1739
        %v2564 = vmul.f32 %v2563, %v1837
        %v2565 = vmul.f32 %v2563, %v1838
        %v2566 = vmul.f32 %v2563, %v1839
        %v2567 = vmul.f32 %v2563, %v1840
        %v2568 = vstv %s1788
        %v2569 = vmul.f32 %v2568, %v1861
        %v2570 = vmul.f32 %v2568, %v1862
        %v2571 = vmul.f32 %v2568, %v1863
        %v2572 = vmul.f32 %v2568, %v1864
        %v2573 = vadd.f32 %v2564, %v2569
        %v2574 = vadd.f32 %v2565, %v2570
        %v2575 = vadd.f32 %v2566, %v2571
        %v2576 = vadd.f32 %v2567, %v2572
        %2581 = vrot.lane.b32.xlu0 %v2573, 122
        %v2582 = vpop.permute.xlu0 %2581
        %2583 = vrot.lane.b32.xlu0 %v2574, 122
        %v2584 = vpop.permute.xlu0 %2583
        %2585 = vrot.lane.b32.xlu0 %v2575, 122
        %v2586 = vpop.permute.xlu0 %2585
        %2587 = vrot.lane.b32.xlu0 %v2576, 122
        %v2588 = vpop.permute.xlu0 %2587
        %v2593 = vadd.f32 %v2559, %v2582
        %v2594 = vadd.f32 %v2560, %v2584
        %v2595 = vadd.f32 %v2561, %v2586
        %v2596 = vadd.f32 %v2562, %v2588
        %v2597 = vstv %s1740
        %v2598 = vmul.f32 %v2597, %v1838
        %v2599 = vmul.f32 %v2597, %v1839
        %v2600 = vmul.f32 %v2597, %v1840
        %v2601 = vmul.f32 %v2597, %v1836
        %v2602 = vstv %s1789
        %v2603 = vmul.f32 %v2602, %v1862
        %v2604 = vmul.f32 %v2602, %v1863
        %v2605 = vmul.f32 %v2602, %v1864
        %v2606 = vmul.f32 %v2602, %v1836
        %v2607 = vadd.f32 %v2598, %v2603
        %v2608 = vadd.f32 %v2599, %v2604
        %v2609 = vadd.f32 %v2600, %v2605
        %v2610 = vadd.f32 %v2601, %v2606
        %v2611 = vadd.f32 %v2593, %v2607
        %v2612 = vadd.f32 %v2594, %v2608
        %v2613 = vadd.f32 %v2595, %v2609
        %v2614 = vadd.f32 %v2596, %v2610
        %v2615 = vstv %s1741
        %v2616 = vmul.f32 %v2615, %v1838
        %v2617 = vmul.f32 %v2615, %v1839
        %v2618 = vmul.f32 %v2615, %v1840
        %v2619 = vmul.f32 %v2615, %v1836
        %v2620 = vstv %s1790
        %v2621 = vmul.f32 %v2620, %v1862
        %v2622 = vmul.f32 %v2620, %v1863
        %v2623 = vmul.f32 %v2620, %v1864
        %v2624 = vmul.f32 %v2620, %v1836
        %v2625 = vadd.f32 %v2616, %v2621
        %v2626 = vadd.f32 %v2617, %v2622
        %v2627 = vadd.f32 %v2618, %v2623
        %v2628 = vadd.f32 %v2619, %v2624
        %2633 = vrot.lane.b32.xlu0 %v2625, 127
        %v2634 = vpop.permute.xlu0 %2633
        %2635 = vrot.lane.b32.xlu0 %v2626, 127
        %v2636 = vpop.permute.xlu0 %2635
        %2637 = vrot.lane.b32.xlu0 %v2627, 127
        %v2638 = vpop.permute.xlu0 %2637
        %2639 = vrot.lane.b32.xlu0 %v2628, 127
        %v2640 = vpop.permute.xlu0 %2639
        %v2645 = vadd.f32 %v2611, %v2634
        %v2646 = vadd.f32 %v2612, %v2636
        %v2647 = vadd.f32 %v2613, %v2638
        %v2648 = vadd.f32 %v2614, %v2640
        %v2649 = vstv %s1742
        %v2650 = vmul.f32 %v2649, %v1838
        %v2651 = vmul.f32 %v2649, %v1839
        %v2652 = vmul.f32 %v2649, %v1840
        %v2653 = vmul.f32 %v2649, %v1836
        %v2654 = vstv %s1791
        %v2655 = vmul.f32 %v2654, %v1862
        %v2656 = vmul.f32 %v2654, %v1863
        %v2657 = vmul.f32 %v2654, %v1864
        %v2658 = vmul.f32 %v2654, %v1836
        %v2659 = vadd.f32 %v2650, %v2655
        %v2660 = vadd.f32 %v2651, %v2656
        %v2661 = vadd.f32 %v2652, %v2657
        %v2662 = vadd.f32 %v2653, %v2658
        %2667 = vrot.lane.b32.xlu0 %v2659, 126
        %v2668 = vpop.permute.xlu0 %2667
        %2669 = vrot.lane.b32.xlu0 %v2660, 126
        %v2670 = vpop.permute.xlu0 %2669
        %2671 = vrot.lane.b32.xlu0 %v2661, 126
        %v2672 = vpop.permute.xlu0 %2671
        %2673 = vrot.lane.b32.xlu0 %v2662, 126
        %v2674 = vpop.permute.xlu0 %2673
        %v2679 = vadd.f32 %v2645, %v2668
        %v2680 = vadd.f32 %v2646, %v2670
        %v2681 = vadd.f32 %v2647, %v2672
        %v2682 = vadd.f32 %v2648, %v2674
        %v2683 = vstv %s1743
        %v2684 = vmul.f32 %v2683, %v1838
        %v2685 = vmul.f32 %v2683, %v1839
        %v2686 = vmul.f32 %v2683, %v1840
        %v2687 = vmul.f32 %v2683, %v1836
        %v2688 = vstv %s1792
        %v2689 = vmul.f32 %v2688, %v1862
        %v2690 = vmul.f32 %v2688, %v1863
        %v2691 = vmul.f32 %v2688, %v1864
        %v2692 = vmul.f32 %v2688, %v1836
        %v2693 = vadd.f32 %v2684, %v2689
        %v2694 = vadd.f32 %v2685, %v2690
        %v2695 = vadd.f32 %v2686, %v2691
        %v2696 = vadd.f32 %v2687, %v2692
        %2701 = vrot.lane.b32.xlu0 %v2693, 125
        %v2702 = vpop.permute.xlu0 %2701
        %2703 = vrot.lane.b32.xlu0 %v2694, 125
        %v2704 = vpop.permute.xlu0 %2703
        %2705 = vrot.lane.b32.xlu0 %v2695, 125
        %v2706 = vpop.permute.xlu0 %2705
        %2707 = vrot.lane.b32.xlu0 %v2696, 125
        %v2708 = vpop.permute.xlu0 %2707
        %v2713 = vadd.f32 %v2679, %v2702
        %v2714 = vadd.f32 %v2680, %v2704
        %v2715 = vadd.f32 %v2681, %v2706
        %v2716 = vadd.f32 %v2682, %v2708
        %v2717 = vstv %s1744
        %v2718 = vmul.f32 %v2717, %v1838
        %v2719 = vmul.f32 %v2717, %v1839
        %v2720 = vmul.f32 %v2717, %v1840
        %v2721 = vmul.f32 %v2717, %v1836
        %v2722 = vstv %s1793
        %v2723 = vmul.f32 %v2722, %v1862
        %v2724 = vmul.f32 %v2722, %v1863
        %v2725 = vmul.f32 %v2722, %v1864
        %v2726 = vmul.f32 %v2722, %v1836
        %v2727 = vadd.f32 %v2718, %v2723
        %v2728 = vadd.f32 %v2719, %v2724
        %v2729 = vadd.f32 %v2720, %v2725
        %v2730 = vadd.f32 %v2721, %v2726
        %2735 = vrot.lane.b32.xlu0 %v2727, 124
        %v2736 = vpop.permute.xlu0 %2735
        %2737 = vrot.lane.b32.xlu0 %v2728, 124
        %v2738 = vpop.permute.xlu0 %2737
        %2739 = vrot.lane.b32.xlu0 %v2729, 124
        %v2740 = vpop.permute.xlu0 %2739
        %2741 = vrot.lane.b32.xlu0 %v2730, 124
        %v2742 = vpop.permute.xlu0 %2741
        %v2747 = vadd.f32 %v2713, %v2736
        %v2748 = vadd.f32 %v2714, %v2738
        %v2749 = vadd.f32 %v2715, %v2740
        %v2750 = vadd.f32 %v2716, %v2742
        %v2751 = vstv %s1745
        %v2752 = vmul.f32 %v2751, %v1838
        %v2753 = vmul.f32 %v2751, %v1839
        %v2754 = vmul.f32 %v2751, %v1840
        %v2755 = vmul.f32 %v2751, %v1836
        %v2756 = vstv %s1794
        %v2757 = vmul.f32 %v2756, %v1862
        %v2758 = vmul.f32 %v2756, %v1863
        %v2759 = vmul.f32 %v2756, %v1864
        %v2760 = vmul.f32 %v2756, %v1836
        %v2761 = vadd.f32 %v2752, %v2757
        %v2762 = vadd.f32 %v2753, %v2758
        %v2763 = vadd.f32 %v2754, %v2759
        %v2764 = vadd.f32 %v2755, %v2760
        %2769 = vrot.lane.b32.xlu0 %v2761, 123
        %v2770 = vpop.permute.xlu0 %2769
        %2771 = vrot.lane.b32.xlu0 %v2762, 123
        %v2772 = vpop.permute.xlu0 %2771
        %2773 = vrot.lane.b32.xlu0 %v2763, 123
        %v2774 = vpop.permute.xlu0 %2773
        %2775 = vrot.lane.b32.xlu0 %v2764, 123
        %v2776 = vpop.permute.xlu0 %2775
        %v2781 = vadd.f32 %v2747, %v2770
        %v2782 = vadd.f32 %v2748, %v2772
        %v2783 = vadd.f32 %v2749, %v2774
        %v2784 = vadd.f32 %v2750, %v2776
        %v2785 = vstv %s1746
        %v2786 = vmul.f32 %v2785, %v1838
        %v2787 = vmul.f32 %v2785, %v1839
        %v2788 = vmul.f32 %v2785, %v1840
        %v2789 = vmul.f32 %v2785, %v1836
        %v2790 = vstv %s1795
        %v2791 = vmul.f32 %v2790, %v1862
        %v2792 = vmul.f32 %v2790, %v1863
        %v2793 = vmul.f32 %v2790, %v1864
        %v2794 = vmul.f32 %v2790, %v1836
        %v2795 = vadd.f32 %v2786, %v2791
        %v2796 = vadd.f32 %v2787, %v2792
        %v2797 = vadd.f32 %v2788, %v2793
        %v2798 = vadd.f32 %v2789, %v2794
        %2803 = vrot.lane.b32.xlu0 %v2795, 122
        %v2804 = vpop.permute.xlu0 %2803
        %2805 = vrot.lane.b32.xlu0 %v2796, 122
        %v2806 = vpop.permute.xlu0 %2805
        %2807 = vrot.lane.b32.xlu0 %v2797, 122
        %v2808 = vpop.permute.xlu0 %2807
        %2809 = vrot.lane.b32.xlu0 %v2798, 122
        %v2810 = vpop.permute.xlu0 %2809
        %v2815 = vadd.f32 %v2781, %v2804
        %v2816 = vadd.f32 %v2782, %v2806
        %v2817 = vadd.f32 %v2783, %v2808
        %v2818 = vadd.f32 %v2784, %v2810
        %v2819 = vstv %s1747
        %v2820 = vmul.f32 %v2819, %v1839
        %v2821 = vmul.f32 %v2819, %v1840
        %v2822 = vmul.f32 %v2819, %v1836
        %v2823 = vstv %s1796
        %v2824 = vmul.f32 %v2823, %v1863
        %v2825 = vmul.f32 %v2823, %v1864
        %v2826 = vmul.f32 %v2823, %v1836
        %v2827 = vadd.f32 %v2820, %v2824
        %v2828 = vadd.f32 %v2821, %v2825
        %v2829 = vadd.f32 %v2822, %v2826
        %v2830 = vadd.f32 %v2815, %v2827
        %v2831 = vadd.f32 %v2816, %v2828
        %v2832 = vadd.f32 %v2817, %v2829
        %v2833 = vadd.f32 %v2818, %v2829
        %v2834 = vstv %s1748
        %v2835 = vmul.f32 %v2834, %v1839
        %v2836 = vmul.f32 %v2834, %v1840
        %v2837 = vmul.f32 %v2834, %v1836
        %v2838 = vstv %s1797
        %v2839 = vmul.f32 %v2838, %v1863
        %v2840 = vmul.f32 %v2838, %v1864
        %v2841 = vmul.f32 %v2838, %v1836
        %v2842 = vadd.f32 %v2835, %v2839
        %v2843 = vadd.f32 %v2836, %v2840
        %v2844 = vadd.f32 %v2837, %v2841
        %2848 = vrot.lane.b32.xlu0 %v2842, 127
        %v2849 = vpop.permute.xlu0 %2848
        %2850 = vrot.lane.b32.xlu0 %v2843, 127
        %v2851 = vpop.permute.xlu0 %2850
        %2852 = vrot.lane.b32.xlu0 %v2844, 127
        %v2853 = vpop.permute.xlu0 %2852
        %v2857 = vadd.f32 %v2830, %v2849
        %v2858 = vadd.f32 %v2831, %v2851
        %v2859 = vadd.f32 %v2832, %v2853
        %v2860 = vadd.f32 %v2833, %v2853
        %v2861 = vstv %s1749
        %v2862 = vmul.f32 %v2861, %v1839
        %v2863 = vmul.f32 %v2861, %v1840
        %v2864 = vmul.f32 %v2861, %v1836
        %v2865 = vstv %s1798
        %v2866 = vmul.f32 %v2865, %v1863
        %v2867 = vmul.f32 %v2865, %v1864
        %v2868 = vmul.f32 %v2865, %v1836
        %v2869 = vadd.f32 %v2862, %v2866
        %v2870 = vadd.f32 %v2863, %v2867
        %v2871 = vadd.f32 %v2864, %v2868
        %2875 = vrot.lane.b32.xlu0 %v2869, 126
        %v2876 = vpop.permute.xlu0 %2875
        %2877 = vrot.lane.b32.xlu0 %v2870, 126
        %v2878 = vpop.permute.xlu0 %2877
        %2879 = vrot.lane.b32.xlu0 %v2871, 126
        %v2880 = vpop.permute.xlu0 %2879
        %v2884 = vadd.f32 %v2857, %v2876
        %v2885 = vadd.f32 %v2858, %v2878
        %v2886 = vadd.f32 %v2859, %v2880
        %v2887 = vadd.f32 %v2860, %v2880
        %v2888 = vstv %s1750
        %v2889 = vmul.f32 %v2888, %v1839
        %v2890 = vmul.f32 %v2888, %v1840
        %v2891 = vmul.f32 %v2888, %v1836
        %v2892 = vstv %s1799
        %v2893 = vmul.f32 %v2892, %v1863
        %v2894 = vmul.f32 %v2892, %v1864
        %v2895 = vmul.f32 %v2892, %v1836
        %v2896 = vadd.f32 %v2889, %v2893
        %v2897 = vadd.f32 %v2890, %v2894
        %v2898 = vadd.f32 %v2891, %v2895
        %2902 = vrot.lane.b32.xlu0 %v2896, 125
        %v2903 = vpop.permute.xlu0 %2902
        %2904 = vrot.lane.b32.xlu0 %v2897, 125
        %v2905 = vpop.permute.xlu0 %2904
        %2906 = vrot.lane.b32.xlu0 %v2898, 125
        %v2907 = vpop.permute.xlu0 %2906
        %v2911 = vadd.f32 %v2884, %v2903
        %v2912 = vadd.f32 %v2885, %v2905
        %v2913 = vadd.f32 %v2886, %v2907
        %v2914 = vadd.f32 %v2887, %v2907
        %v2915 = vstv %s1751
        %v2916 = vmul.f32 %v2915, %v1839
        %v2917 = vmul.f32 %v2915, %v1840
        %v2918 = vmul.f32 %v2915, %v1836
        %v2919 = vstv %s1800
        %v2920 = vmul.f32 %v2919, %v1863
        %v2921 = vmul.f32 %v2919, %v1864
        %v2922 = vmul.f32 %v2919, %v1836
        %v2923 = vadd.f32 %v2916, %v2920
        %v2924 = vadd.f32 %v2917, %v2921
        %v2925 = vadd.f32 %v2918, %v2922
        %2929 = vrot.lane.b32.xlu0 %v2923, 124
        %v2930 = vpop.permute.xlu0 %2929
        %2931 = vrot.lane.b32.xlu0 %v2924, 124
        %v2932 = vpop.permute.xlu0 %2931
        %2933 = vrot.lane.b32.xlu0 %v2925, 124
        %v2934 = vpop.permute.xlu0 %2933
        %v2938 = vadd.f32 %v2911, %v2930
        %v2939 = vadd.f32 %v2912, %v2932
        %v2940 = vadd.f32 %v2913, %v2934
        %v2941 = vadd.f32 %v2914, %v2934
        %v2942 = vstv %s1752
        %v2943 = vmul.f32 %v2942, %v1839
        %v2944 = vmul.f32 %v2942, %v1840
        %v2945 = vmul.f32 %v2942, %v1836
        %v2946 = vstv %s1801
        %v2947 = vmul.f32 %v2946, %v1863
        %v2948 = vmul.f32 %v2946, %v1864
        %v2949 = vmul.f32 %v2946, %v1836
        %v2950 = vadd.f32 %v2943, %v2947
        %v2951 = vadd.f32 %v2944, %v2948
        %v2952 = vadd.f32 %v2945, %v2949
        %2956 = vrot.lane.b32.xlu0 %v2950, 123
        %v2957 = vpop.permute.xlu0 %2956
        %2958 = vrot.lane.b32.xlu0 %v2951, 123
        %v2959 = vpop.permute.xlu0 %2958
        %2960 = vrot.lane.b32.xlu0 %v2952, 123
        %v2961 = vpop.permute.xlu0 %2960
        %v2965 = vadd.f32 %v2938, %v2957
        %v2966 = vadd.f32 %v2939, %v2959
        %v2967 = vadd.f32 %v2940, %v2961
        %v2968 = vadd.f32 %v2941, %v2961
        %v2969 = vstv %s1753
        %v2970 = vmul.f32 %v2969, %v1839
        %v2971 = vmul.f32 %v2969, %v1840
        %v2972 = vmul.f32 %v2969, %v1836
        %v2973 = vstv %s1802
        %v2974 = vmul.f32 %v2973, %v1863
        %v2975 = vmul.f32 %v2973, %v1864
        %v2976 = vmul.f32 %v2973, %v1836
        %v2977 = vadd.f32 %v2970, %v2974
        %v2978 = vadd.f32 %v2971, %v2975
        %v2979 = vadd.f32 %v2972, %v2976
        %2983 = vrot.lane.b32.xlu0 %v2977, 122
        %v2984 = vpop.permute.xlu0 %2983
        %2985 = vrot.lane.b32.xlu0 %v2978, 122
        %v2986 = vpop.permute.xlu0 %2985
        %2987 = vrot.lane.b32.xlu0 %v2979, 122
        %v2988 = vpop.permute.xlu0 %2987
        %v2992 = vadd.f32 %v2965, %v2984
        %v2993 = vadd.f32 %v2966, %v2986
        %v2994 = vadd.f32 %v2967, %v2988
        %v2995 = vadd.f32 %v2968, %v2988
        %v2996 = vstv %s1754
        %v2997 = vmul.f32 %v2996, %v1840
        %v2998 = vmul.f32 %v2996, %v1836
        %v2999 = vstv %s1803
        %v3000 = vmul.f32 %v2999, %v1864
        %v3001 = vmul.f32 %v2999, %v1836
        %v3002 = vadd.f32 %v2997, %v3000
        %v3003 = vadd.f32 %v2998, %v3001
        %v3004 = vadd.f32 %v2992, %v3002
        %v3005 = vadd.f32 %v2993, %v3003
        %v3006 = vadd.f32 %v2994, %v3003
        %v3007 = vadd.f32 %v2995, %v3003
        %v3008 = vstv %s1755
        %v3009 = vmul.f32 %v3008, %v1840
        %v3010 = vmul.f32 %v3008, %v1836
        %v3011 = vstv %s1804
        %v3012 = vmul.f32 %v3011, %v1864
        %v3013 = vmul.f32 %v3011, %v1836
        %v3014 = vadd.f32 %v3009, %v3012
        %v3015 = vadd.f32 %v3010, %v3013
        %3018 = vrot.lane.b32.xlu0 %v3014, 127
        %v3019 = vpop.permute.xlu0 %3018
        %3020 = vrot.lane.b32.xlu0 %v3015, 127
        %v3021 = vpop.permute.xlu0 %3020
        %v3024 = vadd.f32 %v3004, %v3019
        %v3025 = vadd.f32 %v3005, %v3021
        %v3026 = vadd.f32 %v3006, %v3021
        %v3027 = vadd.f32 %v3007, %v3021
        %v3028 = vstv %s1756
        %v3029 = vmul.f32 %v3028, %v1840
        %v3030 = vmul.f32 %v3028, %v1836
        %v3031 = vstv %s1805
        %v3032 = vmul.f32 %v3031, %v1864
        %v3033 = vmul.f32 %v3031, %v1836
        %v3034 = vadd.f32 %v3029, %v3032
        %v3035 = vadd.f32 %v3030, %v3033
        %3038 = vrot.lane.b32.xlu0 %v3034, 126
        %v3039 = vpop.permute.xlu0 %3038
        %3040 = vrot.lane.b32.xlu0 %v3035, 126
        %v3041 = vpop.permute.xlu0 %3040
        %v3044 = vadd.f32 %v3024, %v3039
        %v3045 = vadd.f32 %v3025, %v3041
        %v3046 = vadd.f32 %v3026, %v3041
        %v3047 = vadd.f32 %v3027, %v3041
        %v3048 = vstv %s1757
        %v3049 = vmul.f32 %v3048, %v1840
        %v3050 = vmul.f32 %v3048, %v1836
        %v3051 = vstv %s1806
        %v3052 = vmul.f32 %v3051, %v1864
        %v3053 = vmul.f32 %v3051, %v1836
        %v3054 = vadd.f32 %v3049, %v3052
        %v3055 = vadd.f32 %v3050, %v3053
        %3058 = vrot.lane.b32.xlu0 %v3054, 125
        %v3059 = vpop.permute.xlu0 %3058
        %3060 = vrot.lane.b32.xlu0 %v3055, 125
        %v3061 = vpop.permute.xlu0 %3060
        %v3064 = vadd.f32 %v3044, %v3059
        %v3065 = vadd.f32 %v3045, %v3061
        %v3066 = vadd.f32 %v3046, %v3061
        %v3067 = vadd.f32 %v3047, %v3061
        %v3068 = vstv %s1758
        %v3069 = vmul.f32 %v3068, %v1840
        %v3070 = vmul.f32 %v3068, %v1836
        %v3071 = vstv %s1807
        %v3072 = vmul.f32 %v3071, %v1864
        %v3073 = vmul.f32 %v3071, %v1836
        %v3074 = vadd.f32 %v3069, %v3072
        %v3075 = vadd.f32 %v3070, %v3073
        %3078 = vrot.lane.b32.xlu0 %v3074, 124
        %v3079 = vpop.permute.xlu0 %3078
        %3080 = vrot.lane.b32.xlu0 %v3075, 124
        %v3081 = vpop.permute.xlu0 %3080
        %v3084 = vadd.f32 %v3064, %v3079
        %v3085 = vadd.f32 %v3065, %v3081
        %v3086 = vadd.f32 %v3066, %v3081
        %v3087 = vadd.f32 %v3067, %v3081
        %v3088 = vstv %s1759
        %v3089 = vmul.f32 %v3088, %v1840
        %v3090 = vmul.f32 %v3088, %v1836
        %v3091 = vstv %s1808
        %v3092 = vmul.f32 %v3091, %v1864
        %v3093 = vmul.f32 %v3091, %v1836
        %v3094 = vadd.f32 %v3089, %v3092
        %v3095 = vadd.f32 %v3090, %v3093
        %3098 = vrot.lane.b32.xlu0 %v3094, 123
        %v3099 = vpop.permute.xlu0 %3098
        %3100 = vrot.lane.b32.xlu0 %v3095, 123
        %v3101 = vpop.permute.xlu0 %3100
        %v3104 = vadd.f32 %v3084, %v3099
        %v3105 = vadd.f32 %v3085, %v3101
        %v3106 = vadd.f32 %v3086, %v3101
        %v3107 = vadd.f32 %v3087, %v3101
        %v3108 = vstv %s1760
        %v3109 = vmul.f32 %v3108, %v1840
        %v3110 = vmul.f32 %v3108, %v1836
        %v3111 = vstv %s1809
        %v3112 = vmul.f32 %v3111, %v1864
        %v3113 = vmul.f32 %v3111, %v1836
        %v3114 = vadd.f32 %v3109, %v3112
        %v3115 = vadd.f32 %v3110, %v3113
        %3118 = vrot.lane.b32.xlu0 %v3114, 122
        %v3119 = vpop.permute.xlu0 %3118
        %3120 = vrot.lane.b32.xlu0 %v3115, 122
        %v3121 = vpop.permute.xlu0 %3120
        %v3124 = vadd.f32 %v3104, %v3119
        %v3125 = vadd.f32 %v3105, %v3121
        %v3126 = vadd.f32 %v3106, %v3121
        %v3127 = vadd.f32 %v3107, %v3121
        %v3128 = vstv %s1810
        %v3129 = vadd.f32 %v3124, %v3128
        %v3130 = vadd.f32 %v3125, %v3128
        %v3131 = vadd.f32 %v3126, %v3128
        %v3132 = vadd.f32 %v3127, %v3128
        %v3133 = vxor.u32 %v3129, 2147483648
        %v3134 = vxor.u32 %v3130, 2147483648
        %v3135 = vxor.u32 %v3131, 2147483648
        %v3136 = vxor.u32 %v3132, 2147483648
        %v3137 = vmul.f32 %v3133, 1.442695
        %v3138 = vpow.pop %v3137
        %v3139 = vmul.f32 %v3134, 1.442695
        %v3140 = vpow.pop %v3139
        %v3141 = vmul.f32 %v3135, 1.442695
        %v3142 = vpow.pop %v3141
        %v3143 = vmul.f32 %v3136, 1.442695
        %v3144 = vpow.pop %v3143
        %v3145 = vadd.f32 %v3138, 1.0
        %v3146 = vadd.f32 %v3140, 1.0
        %v3147 = vadd.f32 %v3142, 1.0
        %v3148 = vadd.f32 %v3144, 1.0
        %v3149 = vrcp.pop %v3145
        %v3150 = vmul.f32 %v3145, %v3149
        %v3151 = vsub.f32 1.0, %v3150
        %v3152 = vmul.f32 %v3149, %v3151
        %v3153 = vadd.f32 %v3149, %v3152
        %vm3154 = vweird.f32 %v3145
        %vm3155 = vweird.f32 %v3149
        %vm3156 = vmor %vm3154, %vm3155
        %v3157 = vsel %vm3156, %v3149, %v3153
        %v3158 = vand.u32 2147483647, %v3145
        %vm3159 = vcmp.eq.f32.partialorder %v3158, 8.507059e+37
        %v3160 = vand.u32 %v3145, 2147483648
        %v3161 = vor.u32 1.1754944e-38, %v3160
        %v3162 = vsel %vm3159, %v3161, %v3157
        %v3163 = vmul.f32 1.0, %v3162
        %v3164 = vrcp.pop %v3146
        %v3165 = vmul.f32 %v3146, %v3164
        %v3166 = vsub.f32 1.0, %v3165
        %v3167 = vmul.f32 %v3164, %v3166
        %v3168 = vadd.f32 %v3164, %v3167
        %vm3169 = vweird.f32 %v3146
        %vm3170 = vweird.f32 %v3164
        %vm3171 = vmor %vm3169, %vm3170
        %v3172 = vsel %vm3171, %v3164, %v3168
        %v3173 = vand.u32 2147483647, %v3146
        %vm3174 = vcmp.eq.f32.partialorder %v3173, 8.507059e+37
        %v3175 = vand.u32 %v3146, 2147483648
        %v3176 = vor.u32 1.1754944e-38, %v3175
        %v3177 = vsel %vm3174, %v3176, %v3172
        %v3178 = vmul.f32 1.0, %v3177
        %v3179 = vrcp.pop %v3147
        %v3180 = vmul.f32 %v3147, %v3179
        %v3181 = vsub.f32 1.0, %v3180
        %v3182 = vmul.f32 %v3179, %v3181
        %v3183 = vadd.f32 %v3179, %v3182
        %vm3184 = vweird.f32 %v3147
        %vm3185 = vweird.f32 %v3179
        %vm3186 = vmor %vm3184, %vm3185
        %v3187 = vsel %vm3186, %v3179, %v3183
        %v3188 = vand.u32 2147483647, %v3147
        %vm3189 = vcmp.eq.f32.partialorder %v3188, 8.507059e+37
        %v3190 = vand.u32 %v3147, 2147483648
        %v3191 = vor.u32 1.1754944e-38, %v3190
        %v3192 = vsel %vm3189, %v3191, %v3187
        %v3193 = vmul.f32 1.0, %v3192
        %v3194 = vrcp.pop %v3148
        %v3195 = vmul.f32 %v3148, %v3194
        %v3196 = vsub.f32 1.0, %v3195
        %v3197 = vmul.f32 %v3194, %v3196
        %v3198 = vadd.f32 %v3194, %v3197
        %vm3199 = vweird.f32 %v3148
        %vm3200 = vweird.f32 %v3194
        %vm3201 = vmor %vm3199, %vm3200
        %v3202 = vsel %vm3201, %v3194, %v3198
        %v3203 = vand.u32 2147483647, %v3148
        %vm3204 = vcmp.eq.f32.partialorder %v3203, 8.507059e+37
        %v3205 = vand.u32 %v3148, 2147483648
        %v3206 = vor.u32 1.1754944e-38, %v3205
        %v3207 = vsel %vm3204, %v3206, %v3202
        %v3208 = vmul.f32 1.0, %v3207
        %3209 = vmax.xlane.f32.xlu0 %v1629
        %v3210 = vpop.xlane.xlu0 %3209
        %3211 = vmax.xlane.f32.xlu0 %v1630
        %v3212 = vpop.xlane.xlu0 %3211
        %3213 = vmax.xlane.f32.xlu0 %v1638
        %v3214 = vpop.xlane.xlu0 %3213
        %3215 = vmax.xlane.f32.xlu0 %v1639
        %v3216 = vpop.xlane.xlu0 %3215
        %3217 = vmax.xlane.f32.xlu0 %v1647
        %v3218 = vpop.xlane.xlu0 %3217
        %3219 = vmax.xlane.f32.xlu0 %v1648
        %v3220 = vpop.xlane.xlu0 %3219
        %3221 = vmax.xlane.f32.xlu0 %v1656
        %v3222 = vpop.xlane.xlu0 %3221
        %3223 = vmax.xlane.f32.xlu0 %v1657
        %v3224 = vpop.xlane.xlu0 %3223
        %3225 = vadd.xlane.f32.xlu0 %v1665
        %v3226 = vpop.xlane.xlu0 %3225
        %3227 = vadd.xlane.f32.xlu0 %v1666
        %v3228 = vpop.xlane.xlu0 %3227
        %3229 = vadd.xlane.f32.xlu0 %v1674
        %v3230 = vpop.xlane.xlu0 %3229
        %3231 = vadd.xlane.f32.xlu0 %v1675
        %v3232 = vpop.xlane.xlu0 %3231
        %3233 = vadd.xlane.f32.xlu0 %v1683
        %v3234 = vpop.xlane.xlu0 %3233
        %3235 = vadd.xlane.f32.xlu0 %v1684
        %v3236 = vpop.xlane.xlu0 %3235
        %3237 = vadd.xlane.f32.xlu0 %v1692
        %v3238 = vpop.xlane.xlu0 %3237
        %3239 = vadd.xlane.f32.xlu0 %v1693
        %v3240 = vpop.xlane.xlu0 %3239
        %v3241 = vmul.f32 %v3226, %v1707
        %v3242 = vmul.f32 %v3228, %v1707
        %v3243 = vmul.f32 %v3230, %v1707
        %v3244 = vmul.f32 %v3232, %v1707
        %v3245 = vmul.f32 %v3234, %v1707
        %v3246 = vmul.f32 %v3236, %v1707
        %v3247 = vmul.f32 %v3238, %v1707
        %v3248 = vmul.f32 %v3240, %v1707
        %s3249 = sld [smem:[#allocation2 + $0x100]]
        %s3250 = sld [smem:[#allocation2 + $0x101]]
        %s3251 = sld [smem:[#allocation2 + $0x102]]
        %s3252 = sld [smem:[#allocation2 + $0x103]]
        %s3253 = sld [smem:[#allocation2 + $0x104]]
        %s3254 = sld [smem:[#allocation2 + $0x105]]
        %s3255 = sld [smem:[#allocation2 + $0x106]]
        %s3256 = sld [smem:[#allocation2 + $0x107]]
        %s3257 = sld [smem:[#allocation2 + $0x108]]
        %s3258 = sld [smem:[#allocation2 + $0x109]]
        %s3259 = sld [smem:[#allocation2 + $0x10a]]
        %s3260 = sld [smem:[#allocation2 + $0x10b]]
        %s3261 = sld [smem:[#allocation2 + $0x10c]]
        %s3262 = sld [smem:[#allocation2 + $0x10d]]
        %s3263 = sld [smem:[#allocation2 + $0x10e]]
        %s3264 = sld [smem:[#allocation2 + $0x10f]]
        %s3265 = sld [smem:[#allocation2 + $0x110]]
        %s3266 = sld [smem:[#allocation2 + $0x111]]
        %s3267 = sld [smem:[#allocation2 + $0x112]]
        %s3268 = sld [smem:[#allocation2 + $0x113]]
        %s3269 = sld [smem:[#allocation2 + $0x114]]
        %s3270 = sld [smem:[#allocation2 + $0x115]]
        %s3271 = sld [smem:[#allocation2 + $0x116]]
        %s3272 = sld [smem:[#allocation2 + $0x117]]
        %s3273 = sld [smem:[#allocation2 + $0x118]]
        %s3274 = sld [smem:[#allocation2 + $0x119]]
        %s3275 = sld [smem:[#allocation2 + $0x11a]]
        %s3276 = sld [smem:[#allocation2 + $0x11b]]
        %s3277 = sld [smem:[#allocation2 + $0x11c]]
        %s3278 = sld [smem:[#allocation2 + $0x11d]]
        %s3279 = sld [smem:[#allocation2 + $0x11e]]
        %s3280 = sld [smem:[#allocation2 + $0x11f]]
        %s3281 = sld [smem:[#allocation2 + $0x120]]
        %s3282 = sld [smem:[#allocation2 + $0x121]]
        %s3283 = sld [smem:[#allocation2 + $0x122]]
        %s3284 = sld [smem:[#allocation2 + $0x123]]
        %s3285 = sld [smem:[#allocation2 + $0x124]]
        %s3286 = sld [smem:[#allocation2 + $0x125]]
        %s3287 = sld [smem:[#allocation2 + $0x126]]
        %s3288 = sld [smem:[#allocation2 + $0x127]]
        %s3289 = sld [smem:[#allocation2 + $0x128]]
        %s3290 = sld [smem:[#allocation2 + $0x129]]
        %s3291 = sld [smem:[#allocation2 + $0x12a]]
        %s3292 = sld [smem:[#allocation2 + $0x12b]]
        %s3293 = sld [smem:[#allocation2 + $0x12c]]
        %s3294 = sld [smem:[#allocation2 + $0x12d]]
        %s3295 = sld [smem:[#allocation2 + $0x12e]]
        %s3296 = sld [smem:[#allocation2 + $0x12f]]
        %s3297 = sld [smem:[#allocation2 + $0x130]]
        %s3298 = sld [smem:[#allocation2 + $0x131]]
        %s3299 = sld [smem:[#allocation2 + $0x132]]
        %s3300 = sld [smem:[#allocation2 + $0x133]]
        %s3301 = sld [smem:[#allocation2 + $0x134]]
        %s3302 = sld [smem:[#allocation2 + $0x135]]
        %s3303 = sld [smem:[#allocation2 + $0x136]]
        %s3304 = sld [smem:[#allocation2 + $0x137]]
        %s3305 = sld [smem:[#allocation2 + $0x138]]
        %s3306 = sld [smem:[#allocation2 + $0x139]]
        %s3307 = sld [smem:[#allocation2 + $0x13a]]
        %s3308 = sld [smem:[#allocation2 + $0x13b]]
        %s3309 = sld [smem:[#allocation2 + $0x13c]]
        %s3310 = sld [smem:[#allocation2 + $0x13d]]
        %s3311 = sld [smem:[#allocation2 + $0x13e]]
        %s3312 = sld [smem:[#allocation2 + $0x13f]]
        %s3313 = sld [smem:[#allocation2 + $0x140]]
        %s3314 = sld [smem:[#allocation2 + $0x141]]
        %s3315 = sld [smem:[#allocation2 + $0x142]]
        %s3316 = sld [smem:[#allocation2 + $0x143]]
        %s3317 = sld [smem:[#allocation2 + $0x144]]
        %s3318 = sld [smem:[#allocation2 + $0x145]]
        %s3319 = sld [smem:[#allocation2 + $0x146]]
        %s3320 = sld [smem:[#allocation2 + $0x147]]
        %s3321 = sld [smem:[#allocation2 + $0x148]]
        %s3322 = sld [smem:[#allocation2 + $0x149]]
        %s3323 = sld [smem:[#allocation2 + $0x14a]]
        %s3324 = sld [smem:[#allocation2 + $0x14b]]
        %s3325 = sld [smem:[#allocation2 + $0x14c]]
        %s3326 = sld [smem:[#allocation2 + $0x14d]]
        %s3327 = sld [smem:[#allocation2 + $0x14e]]
        %s3328 = sld [smem:[#allocation2 + $0x14f]]
        %s3329 = sld [smem:[#allocation2 + $0x150]]
        %s3330 = sld [smem:[#allocation2 + $0x151]]
        %s3331 = sld [smem:[#allocation2 + $0x152]]
        %s3332 = sld [smem:[#allocation2 + $0x153]]
        %s3333 = sld [smem:[#allocation2 + $0x154]]
        %s3334 = sld [smem:[#allocation2 + $0x155]]
        %s3335 = sld [smem:[#allocation2 + $0x156]]
        %s3336 = sld [smem:[#allocation2 + $0x157]]
        %s3337 = sld [smem:[#allocation2 + $0x158]]
        %s3338 = sld [smem:[#allocation2 + $0x159]]
        %s3339 = sld [smem:[#allocation2 + $0x15a]]
        %s3340 = sld [smem:[#allocation2 + $0x15b]]
        %s3341 = sld [smem:[#allocation2 + $0x15c]]
        %s3342 = sld [smem:[#allocation2 + $0x15d]]
        %s3343 = sld [smem:[#allocation2 + $0x15e]]
        %s3344 = sld [smem:[#allocation2 + $0x15f]]
        %s3345 = sld [smem:[#allocation2 + $0x160]]
        %s3346 = sld [smem:[#allocation2 + $0x161]]
        %s3347 = sld [smem:[#allocation2 + $0x162]]
        %v3356 = vrot.slane 0.0, 5
        %v3357 = vsel %vm301, %v3356, %v3356
        %v3358 = vrot.slane %v3210, 5
        %v3359 = vrot.slane %v3212, 5
        %v3360 = vsel %vm301, %v3358, %v3359
        %v3361 = vrot.slane %v3214, 5
        %v3362 = vrot.slane %v3216, 5
        %v3363 = vsel %vm301, %v3361, %v3362
        %v3364 = vrot.slane %v3218, 5
        %v3365 = vrot.slane %v3220, 5
        %v3366 = vsel %vm301, %v3364, %v3365
        %v3367 = vrot.slane %v3222, 5
        %v3368 = vrot.slane %v3224, 5
        %v3369 = vsel %vm301, %v3367, %v3368
        %v3384 = vsel %vm301, 0.0, %v3356
        %v3385 = vsel %vm301, 0.0, %v3358
        %v3386 = vsel %vm301, 0.0, %v3361
        %v3387 = vsel %vm301, 0.0, %v3364
        %v3388 = vsel %vm301, 0.0, %v3367
        %v3389 = vsel %vm301, %v3356, 0.0
        %v3390 = vsel %vm301, %v3359, 0.0
        %v3391 = vsel %vm301, %v3362, 0.0
        %v3392 = vsel %vm301, %v3365, 0.0
        %v3393 = vsel %vm301, %v3368, 0.0
        %v3402 = vrot.slane %v3241, 5
        %v3403 = vrot.slane %v3242, 5
        %v3404 = vsel %vm301, %v3402, %v3403
        %v3405 = vrot.slane %v3243, 5
        %v3406 = vrot.slane %v3244, 5
        %v3407 = vsel %vm301, %v3405, %v3406
        %v3408 = vrot.slane %v3245, 5
        %v3409 = vrot.slane %v3246, 5
        %v3410 = vsel %vm301, %v3408, %v3409
        %v3411 = vrot.slane %v3247, 5
        %v3412 = vrot.slane %v3248, 5
        %v3413 = vsel %vm301, %v3411, %v3412
        %v3426 = vsel %vm301, 0.0, %v3402
        %v3427 = vsel %vm301, 0.0, %v3405
        %v3428 = vsel %vm301, 0.0, %v3408
        %v3429 = vsel %vm301, 0.0, %v3411
        %v3430 = vsel %vm301, %v3403, 0.0
        %v3431 = vsel %vm301, %v3406, 0.0
        %v3432 = vsel %vm301, %v3409, 0.0
        %v3433 = vsel %vm301, %v3412, 0.0
        %v3434 = vstv %s3249
        %v3435 = vmul.f32 %v3434, %v3384
        %v3436 = vmul.f32 %v3434, %v3357
        %v3437 = vmul.f32 %v3434, %v3385
        %v3438 = vmul.f32 %v3434, %v3360
        %v3439 = vstv %s3298
        %v3440 = vmul.f32 %v3439, %v3384
        %v3441 = vmul.f32 %v3439, %v3357
        %v3442 = vmul.f32 %v3439, %v3426
        %v3443 = vmul.f32 %v3439, %v3404
        %v3444 = vadd.f32 %v3435, %v3440
        %v3445 = vadd.f32 %v3436, %v3441
        %v3446 = vadd.f32 %v3437, %v3442
        %v3447 = vadd.f32 %v3438, %v3443
        %v3448 = vadd.f32 %v3444, 0.0
        %v3449 = vadd.f32 %v3445, 0.0
        %v3450 = vadd.f32 %v3446, 0.0
        %v3451 = vadd.f32 %v3447, 0.0
        %v3452 = vstv %s3250
        %v3453 = vmul.f32 %v3452, %v3384
        %v3454 = vmul.f32 %v3452, %v3357
        %v3455 = vmul.f32 %v3452, %v3389
        %v3456 = vmul.f32 %v3452, %v3385
        %v3457 = vmul.f32 %v3452, %v3360
        %v3458 = vmul.f32 %v3452, %v3390
        %v3459 = vstv %s3299
        %v3460 = vmul.f32 %v3459, %v3384
        %v3461 = vmul.f32 %v3459, %v3357
        %v3462 = vmul.f32 %v3459, %v3389
        %v3463 = vmul.f32 %v3459, %v3426
        %v3464 = vmul.f32 %v3459, %v3404
        %v3465 = vmul.f32 %v3459, %v3430
        %v3466 = vadd.f32 %v3453, %v3460
        %v3467 = vadd.f32 %v3454, %v3461
        %v3468 = vadd.f32 %v3455, %v3462
        %v3469 = vadd.f32 %v3456, %v3463
        %v3470 = vadd.f32 %v3457, %v3464
        %v3471 = vadd.f32 %v3458, %v3465
        %v3478 = vrot.slane %v3466, 1
        %v3479 = vrot.slane %v3467, 1
        %v3480 = vsel %vm486, %v3478, %v3479
        %v3481 = vrot.slane %v3468, 1
        %v3482 = vsel %vm486, %v3479, %v3481
        %v3483 = vrot.slane %v3469, 1
        %v3484 = vrot.slane %v3470, 1
        %v3485 = vsel %vm486, %v3483, %v3484
        %v3486 = vrot.slane %v3471, 1
        %v3487 = vsel %vm486, %v3484, %v3486
        %v3492 = vadd.f32 %v3448, %v3480
        %v3493 = vadd.f32 %v3449, %v3482
        %v3494 = vadd.f32 %v3450, %v3485
        %v3495 = vadd.f32 %v3451, %v3487
        %v3496 = vstv %s3251
        %v3497 = vmul.f32 %v3496, %v3384
        %v3498 = vmul.f32 %v3496, %v3357
        %v3499 = vmul.f32 %v3496, %v3389
        %v3500 = vmul.f32 %v3496, %v3385
        %v3501 = vmul.f32 %v3496, %v3360
        %v3502 = vmul.f32 %v3496, %v3390
        %v3503 = vstv %s3300
        %v3504 = vmul.f32 %v3503, %v3384
        %v3505 = vmul.f32 %v3503, %v3357
        %v3506 = vmul.f32 %v3503, %v3389
        %v3507 = vmul.f32 %v3503, %v3426
        %v3508 = vmul.f32 %v3503, %v3404
        %v3509 = vmul.f32 %v3503, %v3430
        %v3510 = vadd.f32 %v3497, %v3504
        %v3511 = vadd.f32 %v3498, %v3505
        %v3512 = vadd.f32 %v3499, %v3506
        %v3513 = vadd.f32 %v3500, %v3507
        %v3514 = vadd.f32 %v3501, %v3508
        %v3515 = vadd.f32 %v3502, %v3509
        %v3522 = vrot.slane %v3510, 2
        %v3523 = vrot.slane %v3511, 2
        %v3524 = vsel %vm672, %v3522, %v3523
        %v3525 = vrot.slane %v3512, 2
        %v3526 = vsel %vm672, %v3523, %v3525
        %v3527 = vrot.slane %v3513, 2
        %v3528 = vrot.slane %v3514, 2
        %v3529 = vsel %vm672, %v3527, %v3528
        %v3530 = vrot.slane %v3515, 2
        %v3531 = vsel %vm672, %v3528, %v3530
        %v3536 = vadd.f32 %v3492, %v3524
        %v3537 = vadd.f32 %v3493, %v3526
        %v3538 = vadd.f32 %v3494, %v3529
        %v3539 = vadd.f32 %v3495, %v3531
        %v3540 = vstv %s3252
        %v3541 = vmul.f32 %v3540, %v3384
        %v3542 = vmul.f32 %v3540, %v3357
        %v3543 = vmul.f32 %v3540, %v3389
        %v3544 = vmul.f32 %v3540, %v3385
        %v3545 = vmul.f32 %v3540, %v3360
        %v3546 = vmul.f32 %v3540, %v3390
        %v3547 = vstv %s3301
        %v3548 = vmul.f32 %v3547, %v3384
        %v3549 = vmul.f32 %v3547, %v3357
        %v3550 = vmul.f32 %v3547, %v3389
        %v3551 = vmul.f32 %v3547, %v3426
        %v3552 = vmul.f32 %v3547, %v3404
        %v3553 = vmul.f32 %v3547, %v3430
        %v3554 = vadd.f32 %v3541, %v3548
        %v3555 = vadd.f32 %v3542, %v3549
        %v3556 = vadd.f32 %v3543, %v3550
        %v3557 = vadd.f32 %v3544, %v3551
        %v3558 = vadd.f32 %v3545, %v3552
        %v3559 = vadd.f32 %v3546, %v3553
        %v3566 = vrot.slane %v3554, 3
        %v3567 = vrot.slane %v3555, 3
        %v3568 = vsel %vm858, %v3566, %v3567
        %v3569 = vrot.slane %v3556, 3
        %v3570 = vsel %vm858, %v3567, %v3569
        %v3571 = vrot.slane %v3557, 3
        %v3572 = vrot.slane %v3558, 3
        %v3573 = vsel %vm858, %v3571, %v3572
        %v3574 = vrot.slane %v3559, 3
        %v3575 = vsel %vm858, %v3572, %v3574
        %v3580 = vadd.f32 %v3536, %v3568
        %v3581 = vadd.f32 %v3537, %v3570
        %v3582 = vadd.f32 %v3538, %v3573
        %v3583 = vadd.f32 %v3539, %v3575
        %v3584 = vstv %s3253
        %v3585 = vmul.f32 %v3584, %v3384
        %v3586 = vmul.f32 %v3584, %v3357
        %v3587 = vmul.f32 %v3584, %v3389
        %v3588 = vmul.f32 %v3584, %v3385
        %v3589 = vmul.f32 %v3584, %v3360
        %v3590 = vmul.f32 %v3584, %v3390
        %v3591 = vstv %s3302
        %v3592 = vmul.f32 %v3591, %v3384
        %v3593 = vmul.f32 %v3591, %v3357
        %v3594 = vmul.f32 %v3591, %v3389
        %v3595 = vmul.f32 %v3591, %v3426
        %v3596 = vmul.f32 %v3591, %v3404
        %v3597 = vmul.f32 %v3591, %v3430
        %v3598 = vadd.f32 %v3585, %v3592
        %v3599 = vadd.f32 %v3586, %v3593
        %v3600 = vadd.f32 %v3587, %v3594
        %v3601 = vadd.f32 %v3588, %v3595
        %v3602 = vadd.f32 %v3589, %v3596
        %v3603 = vadd.f32 %v3590, %v3597
        %v3610 = vrot.slane %v3598, 4
        %v3611 = vrot.slane %v3599, 4
        %v3612 = vsel %vm1044, %v3610, %v3611
        %v3613 = vrot.slane %v3600, 4
        %v3614 = vsel %vm1044, %v3611, %v3613
        %v3615 = vrot.slane %v3601, 4
        %v3616 = vrot.slane %v3602, 4
        %v3617 = vsel %vm1044, %v3615, %v3616
        %v3618 = vrot.slane %v3603, 4
        %v3619 = vsel %vm1044, %v3616, %v3618
        %v3624 = vadd.f32 %v3580, %v3612
        %v3625 = vadd.f32 %v3581, %v3614
        %v3626 = vadd.f32 %v3582, %v3617
        %v3627 = vadd.f32 %v3583, %v3619
        %v3628 = vstv %s3254
        %v3629 = vmul.f32 %v3628, %v3384
        %v3630 = vmul.f32 %v3628, %v3357
        %v3631 = vmul.f32 %v3628, %v3389
        %v3632 = vmul.f32 %v3628, %v3385
        %v3633 = vmul.f32 %v3628, %v3360
        %v3634 = vmul.f32 %v3628, %v3390
        %v3635 = vstv %s3303
        %v3636 = vmul.f32 %v3635, %v3384
        %v3637 = vmul.f32 %v3635, %v3357
        %v3638 = vmul.f32 %v3635, %v3389
        %v3639 = vmul.f32 %v3635, %v3426
        %v3640 = vmul.f32 %v3635, %v3404
        %v3641 = vmul.f32 %v3635, %v3430
        %v3642 = vadd.f32 %v3629, %v3636
        %v3643 = vadd.f32 %v3630, %v3637
        %v3644 = vadd.f32 %v3631, %v3638
        %v3645 = vadd.f32 %v3632, %v3639
        %v3646 = vadd.f32 %v3633, %v3640
        %v3647 = vadd.f32 %v3634, %v3641
        %v3654 = vrot.slane %v3642, 5
        %v3655 = vrot.slane %v3643, 5
        %v3656 = vsel %vm301, %v3654, %v3655
        %v3657 = vrot.slane %v3644, 5
        %v3658 = vsel %vm301, %v3655, %v3657
        %v3659 = vrot.slane %v3645, 5
        %v3660 = vrot.slane %v3646, 5
        %v3661 = vsel %vm301, %v3659, %v3660
        %v3662 = vrot.slane %v3647, 5
        %v3663 = vsel %vm301, %v3660, %v3662
        %v3668 = vadd.f32 %v3624, %v3656
        %v3669 = vadd.f32 %v3625, %v3658
        %v3670 = vadd.f32 %v3626, %v3661
        %v3671 = vadd.f32 %v3627, %v3663
        %v3672 = vstv %s3255
        %v3673 = vmul.f32 %v3672, %v3384
        %v3674 = vmul.f32 %v3672, %v3357
        %v3675 = vmul.f32 %v3672, %v3389
        %v3676 = vmul.f32 %v3672, %v3385
        %v3677 = vmul.f32 %v3672, %v3360
        %v3678 = vmul.f32 %v3672, %v3390
        %v3679 = vstv %s3304
        %v3680 = vmul.f32 %v3679, %v3384
        %v3681 = vmul.f32 %v3679, %v3357
        %v3682 = vmul.f32 %v3679, %v3389
        %v3683 = vmul.f32 %v3679, %v3426
        %v3684 = vmul.f32 %v3679, %v3404
        %v3685 = vmul.f32 %v3679, %v3430
        %v3686 = vadd.f32 %v3673, %v3680
        %v3687 = vadd.f32 %v3674, %v3681
        %v3688 = vadd.f32 %v3675, %v3682
        %v3689 = vadd.f32 %v3676, %v3683
        %v3690 = vadd.f32 %v3677, %v3684
        %v3691 = vadd.f32 %v3678, %v3685
        %v3698 = vrot.slane %v3686, 6
        %v3699 = vrot.slane %v3687, 6
        %v3700 = vsel %vm1415, %v3698, %v3699
        %v3701 = vrot.slane %v3688, 6
        %v3702 = vsel %vm1415, %v3699, %v3701
        %v3703 = vrot.slane %v3689, 6
        %v3704 = vrot.slane %v3690, 6
        %v3705 = vsel %vm1415, %v3703, %v3704
        %v3706 = vrot.slane %v3691, 6
        %v3707 = vsel %vm1415, %v3704, %v3706
        %v3712 = vadd.f32 %v3668, %v3700
        %v3713 = vadd.f32 %v3669, %v3702
        %v3714 = vadd.f32 %v3670, %v3705
        %v3715 = vadd.f32 %v3671, %v3707
        %v3716 = vstv %s3256
        %v3717 = vmul.f32 %v3716, %v3384
        %v3718 = vmul.f32 %v3716, %v3357
        %v3719 = vmul.f32 %v3716, %v3385
        %v3720 = vmul.f32 %v3716, %v3360
        %v3721 = vmul.f32 %v3716, %v3386
        %v3722 = vmul.f32 %v3716, %v3363
        %v3723 = vstv %s3305
        %v3724 = vmul.f32 %v3723, %v3384
        %v3725 = vmul.f32 %v3723, %v3357
        %v3726 = vmul.f32 %v3723, %v3426
        %v3727 = vmul.f32 %v3723, %v3404
        %v3728 = vmul.f32 %v3723, %v3427
        %v3729 = vmul.f32 %v3723, %v3407
        %v3730 = vadd.f32 %v3717, %v3724
        %v3731 = vadd.f32 %v3718, %v3725
        %v3732 = vadd.f32 %v3719, %v3726
        %v3733 = vadd.f32 %v3720, %v3727
        %v3734 = vadd.f32 %v3721, %v3728
        %v3735 = vadd.f32 %v3722, %v3729
        %v3736 = vadd.f32 %v3712, %v3730
        %v3737 = vadd.f32 %v3713, %v3731
        %v3738 = vadd.f32 %v3712, %v3732
        %v3739 = vadd.f32 %v3713, %v3733
        %v3740 = vadd.f32 %v3714, %v3734
        %v3741 = vadd.f32 %v3715, %v3735
        %v3742 = vstv %s3257
        %v3743 = vmul.f32 %v3742, %v3384
        %v3744 = vmul.f32 %v3742, %v3357
        %v3745 = vmul.f32 %v3742, %v3389
        %v3746 = vmul.f32 %v3742, %v3385
        %v3747 = vmul.f32 %v3742, %v3360
        %v3748 = vmul.f32 %v3742, %v3390
        %v3749 = vmul.f32 %v3742, %v3386
        %v3750 = vmul.f32 %v3742, %v3363
        %v3751 = vmul.f32 %v3742, %v3391
        %v3752 = vstv %s3306
        %v3753 = vmul.f32 %v3752, %v3384
        %v3754 = vmul.f32 %v3752, %v3357
        %v3755 = vmul.f32 %v3752, %v3389
        %v3756 = vmul.f32 %v3752, %v3426
        %v3757 = vmul.f32 %v3752, %v3404
        %v3758 = vmul.f32 %v3752, %v3430
        %v3759 = vmul.f32 %v3752, %v3427
        %v3760 = vmul.f32 %v3752, %v3407
        %v3761 = vmul.f32 %v3752, %v3431
        %v3762 = vadd.f32 %v3743, %v3753
        %v3763 = vadd.f32 %v3744, %v3754
        %v3764 = vadd.f32 %v3745, %v3755
        %v3765 = vadd.f32 %v3746, %v3756
        %v3766 = vadd.f32 %v3747, %v3757
        %v3767 = vadd.f32 %v3748, %v3758
        %v3768 = vadd.f32 %v3749, %v3759
        %v3769 = vadd.f32 %v3750, %v3760
        %v3770 = vadd.f32 %v3751, %v3761
        %v3780 = vrot.slane %v3762, 1
        %v3781 = vrot.slane %v3763, 1
        %v3782 = vsel %vm486, %v3780, %v3781
        %v3783 = vrot.slane %v3764, 1
        %v3784 = vsel %vm486, %v3781, %v3783
        %v3785 = vrot.slane %v3765, 1
        %v3786 = vrot.slane %v3766, 1
        %v3787 = vsel %vm486, %v3785, %v3786
        %v3788 = vrot.slane %v3767, 1
        %v3789 = vsel %vm486, %v3786, %v3788
        %v3790 = vrot.slane %v3768, 1
        %v3791 = vrot.slane %v3769, 1
        %v3792 = vsel %vm486, %v3790, %v3791
        %v3793 = vrot.slane %v3770, 1
        %v3794 = vsel %vm486, %v3791, %v3793
        %v3801 = vadd.f32 %v3736, %v3782
        %v3802 = vadd.f32 %v3737, %v3784
        %v3803 = vadd.f32 %v3738, %v3787
        %v3804 = vadd.f32 %v3739, %v3789
        %v3805 = vadd.f32 %v3740, %v3792
        %v3806 = vadd.f32 %v3741, %v3794
        %v3807 = vstv %s3258
        %v3808 = vmul.f32 %v3807, %v3384
        %v3809 = vmul.f32 %v3807, %v3357
        %v3810 = vmul.f32 %v3807, %v3389
        %v3811 = vmul.f32 %v3807, %v3385
        %v3812 = vmul.f32 %v3807, %v3360
        %v3813 = vmul.f32 %v3807, %v3390
        %v3814 = vmul.f32 %v3807, %v3386
        %v3815 = vmul.f32 %v3807, %v3363
        %v3816 = vmul.f32 %v3807, %v3391
        %v3817 = vstv %s3307
        %v3818 = vmul.f32 %v3817, %v3384
        %v3819 = vmul.f32 %v3817, %v3357
        %v3820 = vmul.f32 %v3817, %v3389
        %v3821 = vmul.f32 %v3817, %v3426
        %v3822 = vmul.f32 %v3817, %v3404
        %v3823 = vmul.f32 %v3817, %v3430
        %v3824 = vmul.f32 %v3817, %v3427
        %v3825 = vmul.f32 %v3817, %v3407
        %v3826 = vmul.f32 %v3817, %v3431
        %v3827 = vadd.f32 %v3808, %v3818
        %v3828 = vadd.f32 %v3809, %v3819
        %v3829 = vadd.f32 %v3810, %v3820
        %v3830 = vadd.f32 %v3811, %v3821
        %v3831 = vadd.f32 %v3812, %v3822
        %v3832 = vadd.f32 %v3813, %v3823
        %v3833 = vadd.f32 %v3814, %v3824
        %v3834 = vadd.f32 %v3815, %v3825
        %v3835 = vadd.f32 %v3816, %v3826
        %v3845 = vrot.slane %v3827, 2
        %v3846 = vrot.slane %v3828, 2
        %v3847 = vsel %vm672, %v3845, %v3846
        %v3848 = vrot.slane %v3829, 2
        %v3849 = vsel %vm672, %v3846, %v3848
        %v3850 = vrot.slane %v3830, 2
        %v3851 = vrot.slane %v3831, 2
        %v3852 = vsel %vm672, %v3850, %v3851
        %v3853 = vrot.slane %v3832, 2
        %v3854 = vsel %vm672, %v3851, %v3853
        %v3855 = vrot.slane %v3833, 2
        %v3856 = vrot.slane %v3834, 2
        %v3857 = vsel %vm672, %v3855, %v3856
        %v3858 = vrot.slane %v3835, 2
        %v3859 = vsel %vm672, %v3856, %v3858
        %v3866 = vadd.f32 %v3801, %v3847
        %v3867 = vadd.f32 %v3802, %v3849
        %v3868 = vadd.f32 %v3803, %v3852
        %v3869 = vadd.f32 %v3804, %v3854
        %v3870 = vadd.f32 %v3805, %v3857
        %v3871 = vadd.f32 %v3806, %v3859
        %v3872 = vstv %s3259
        %v3873 = vmul.f32 %v3872, %v3384
        %v3874 = vmul.f32 %v3872, %v3357
        %v3875 = vmul.f32 %v3872, %v3389
        %v3876 = vmul.f32 %v3872, %v3385
        %v3877 = vmul.f32 %v3872, %v3360
        %v3878 = vmul.f32 %v3872, %v3390
        %v3879 = vmul.f32 %v3872, %v3386
        %v3880 = vmul.f32 %v3872, %v3363
        %v3881 = vmul.f32 %v3872, %v3391
        %v3882 = vstv %s3308
        %v3883 = vmul.f32 %v3882, %v3384
        %v3884 = vmul.f32 %v3882, %v3357
        %v3885 = vmul.f32 %v3882, %v3389
        %v3886 = vmul.f32 %v3882, %v3426
        %v3887 = vmul.f32 %v3882, %v3404
        %v3888 = vmul.f32 %v3882, %v3430
        %v3889 = vmul.f32 %v3882, %v3427
        %v3890 = vmul.f32 %v3882, %v3407
        %v3891 = vmul.f32 %v3882, %v3431
        %v3892 = vadd.f32 %v3873, %v3883
        %v3893 = vadd.f32 %v3874, %v3884
        %v3894 = vadd.f32 %v3875, %v3885
        %v3895 = vadd.f32 %v3876, %v3886
        %v3896 = vadd.f32 %v3877, %v3887
        %v3897 = vadd.f32 %v3878, %v3888
        %v3898 = vadd.f32 %v3879, %v3889
        %v3899 = vadd.f32 %v3880, %v3890
        %v3900 = vadd.f32 %v3881, %v3891
        %v3910 = vrot.slane %v3892, 3
        %v3911 = vrot.slane %v3893, 3
        %v3912 = vsel %vm858, %v3910, %v3911
        %v3913 = vrot.slane %v3894, 3
        %v3914 = vsel %vm858, %v3911, %v3913
        %v3915 = vrot.slane %v3895, 3
        %v3916 = vrot.slane %v3896, 3
        %v3917 = vsel %vm858, %v3915, %v3916
        %v3918 = vrot.slane %v3897, 3
        %v3919 = vsel %vm858, %v3916, %v3918
        %v3920 = vrot.slane %v3898, 3
        %v3921 = vrot.slane %v3899, 3
        %v3922 = vsel %vm858, %v3920, %v3921
        %v3923 = vrot.slane %v3900, 3
        %v3924 = vsel %vm858, %v3921, %v3923
        %v3931 = vadd.f32 %v3866, %v3912
        %v3932 = vadd.f32 %v3867, %v3914
        %v3933 = vadd.f32 %v3868, %v3917
        %v3934 = vadd.f32 %v3869, %v3919
        %v3935 = vadd.f32 %v3870, %v3922
        %v3936 = vadd.f32 %v3871, %v3924
        %v3937 = vstv %s3260
        %v3938 = vmul.f32 %v3937, %v3384
        %v3939 = vmul.f32 %v3937, %v3357
        %v3940 = vmul.f32 %v3937, %v3389
        %v3941 = vmul.f32 %v3937, %v3385
        %v3942 = vmul.f32 %v3937, %v3360
        %v3943 = vmul.f32 %v3937, %v3390
        %v3944 = vmul.f32 %v3937, %v3386
        %v3945 = vmul.f32 %v3937, %v3363
        %v3946 = vmul.f32 %v3937, %v3391
        %v3947 = vstv %s3309
        %v3948 = vmul.f32 %v3947, %v3384
        %v3949 = vmul.f32 %v3947, %v3357
        %v3950 = vmul.f32 %v3947, %v3389
        %v3951 = vmul.f32 %v3947, %v3426
        %v3952 = vmul.f32 %v3947, %v3404
        %v3953 = vmul.f32 %v3947, %v3430
        %v3954 = vmul.f32 %v3947, %v3427
        %v3955 = vmul.f32 %v3947, %v3407
        %v3956 = vmul.f32 %v3947, %v3431
        %v3957 = vadd.f32 %v3938, %v3948
        %v3958 = vadd.f32 %v3939, %v3949
        %v3959 = vadd.f32 %v3940, %v3950
        %v3960 = vadd.f32 %v3941, %v3951
        %v3961 = vadd.f32 %v3942, %v3952
        %v3962 = vadd.f32 %v3943, %v3953
        %v3963 = vadd.f32 %v3944, %v3954
        %v3964 = vadd.f32 %v3945, %v3955
        %v3965 = vadd.f32 %v3946, %v3956
        %v3975 = vrot.slane %v3957, 4
        %v3976 = vrot.slane %v3958, 4
        %v3977 = vsel %vm1044, %v3975, %v3976
        %v3978 = vrot.slane %v3959, 4
        %v3979 = vsel %vm1044, %v3976, %v3978
        %v3980 = vrot.slane %v3960, 4
        %v3981 = vrot.slane %v3961, 4
        %v3982 = vsel %vm1044, %v3980, %v3981
        %v3983 = vrot.slane %v3962, 4
        %v3984 = vsel %vm1044, %v3981, %v3983
        %v3985 = vrot.slane %v3963, 4
        %v3986 = vrot.slane %v3964, 4
        %v3987 = vsel %vm1044, %v3985, %v3986
        %v3988 = vrot.slane %v3965, 4
        %v3989 = vsel %vm1044, %v3986, %v3988
        %v3996 = vadd.f32 %v3931, %v3977
        %v3997 = vadd.f32 %v3932, %v3979
        %v3998 = vadd.f32 %v3933, %v3982
        %v3999 = vadd.f32 %v3934, %v3984
        %v4000 = vadd.f32 %v3935, %v3987
        %v4001 = vadd.f32 %v3936, %v3989
        %v4002 = vstv %s3261
        %v4003 = vmul.f32 %v4002, %v3384
        %v4004 = vmul.f32 %v4002, %v3357
        %v4005 = vmul.f32 %v4002, %v3389
        %v4006 = vmul.f32 %v4002, %v3385
        %v4007 = vmul.f32 %v4002, %v3360
        %v4008 = vmul.f32 %v4002, %v3390
        %v4009 = vmul.f32 %v4002, %v3386
        %v4010 = vmul.f32 %v4002, %v3363
        %v4011 = vmul.f32 %v4002, %v3391
        %v4012 = vstv %s3310
        %v4013 = vmul.f32 %v4012, %v3384
        %v4014 = vmul.f32 %v4012, %v3357
        %v4015 = vmul.f32 %v4012, %v3389
        %v4016 = vmul.f32 %v4012, %v3426
        %v4017 = vmul.f32 %v4012, %v3404
        %v4018 = vmul.f32 %v4012, %v3430
        %v4019 = vmul.f32 %v4012, %v3427
        %v4020 = vmul.f32 %v4012, %v3407
        %v4021 = vmul.f32 %v4012, %v3431
        %v4022 = vadd.f32 %v4003, %v4013
        %v4023 = vadd.f32 %v4004, %v4014
        %v4024 = vadd.f32 %v4005, %v4015
        %v4025 = vadd.f32 %v4006, %v4016
        %v4026 = vadd.f32 %v4007, %v4017
        %v4027 = vadd.f32 %v4008, %v4018
        %v4028 = vadd.f32 %v4009, %v4019
        %v4029 = vadd.f32 %v4010, %v4020
        %v4030 = vadd.f32 %v4011, %v4021
        %v4040 = vrot.slane %v4022, 5
        %v4041 = vrot.slane %v4023, 5
        %v4042 = vsel %vm301, %v4040, %v4041
        %v4043 = vrot.slane %v4024, 5
        %v4044 = vsel %vm301, %v4041, %v4043
        %v4045 = vrot.slane %v4025, 5
        %v4046 = vrot.slane %v4026, 5
        %v4047 = vsel %vm301, %v4045, %v4046
        %v4048 = vrot.slane %v4027, 5
        %v4049 = vsel %vm301, %v4046, %v4048
        %v4050 = vrot.slane %v4028, 5
        %v4051 = vrot.slane %v4029, 5
        %v4052 = vsel %vm301, %v4050, %v4051
        %v4053 = vrot.slane %v4030, 5
        %v4054 = vsel %vm301, %v4051, %v4053
        %v4061 = vadd.f32 %v3996, %v4042
        %v4062 = vadd.f32 %v3997, %v4044
        %v4063 = vadd.f32 %v3998, %v4047
        %v4064 = vadd.f32 %v3999, %v4049
        %v4065 = vadd.f32 %v4000, %v4052
        %v4066 = vadd.f32 %v4001, %v4054
        %v4067 = vstv %s3262
        %v4068 = vmul.f32 %v4067, %v3384
        %v4069 = vmul.f32 %v4067, %v3357
        %v4070 = vmul.f32 %v4067, %v3389
        %v4071 = vmul.f32 %v4067, %v3385
        %v4072 = vmul.f32 %v4067, %v3360
        %v4073 = vmul.f32 %v4067, %v3390
        %v4074 = vmul.f32 %v4067, %v3386
        %v4075 = vmul.f32 %v4067, %v3363
        %v4076 = vmul.f32 %v4067, %v3391
        %v4077 = vstv %s3311
        %v4078 = vmul.f32 %v4077, %v3384
        %v4079 = vmul.f32 %v4077, %v3357
        %v4080 = vmul.f32 %v4077, %v3389
        %v4081 = vmul.f32 %v4077, %v3426
        %v4082 = vmul.f32 %v4077, %v3404
        %v4083 = vmul.f32 %v4077, %v3430
        %v4084 = vmul.f32 %v4077, %v3427
        %v4085 = vmul.f32 %v4077, %v3407
        %v4086 = vmul.f32 %v4077, %v3431
        %v4087 = vadd.f32 %v4068, %v4078
        %v4088 = vadd.f32 %v4069, %v4079
        %v4089 = vadd.f32 %v4070, %v4080
        %v4090 = vadd.f32 %v4071, %v4081
        %v4091 = vadd.f32 %v4072, %v4082
        %v4092 = vadd.f32 %v4073, %v4083
        %v4093 = vadd.f32 %v4074, %v4084
        %v4094 = vadd.f32 %v4075, %v4085
        %v4095 = vadd.f32 %v4076, %v4086
        %v4105 = vrot.slane %v4087, 6
        %v4106 = vrot.slane %v4088, 6
        %v4107 = vsel %vm1415, %v4105, %v4106
        %v4108 = vrot.slane %v4089, 6
        %v4109 = vsel %vm1415, %v4106, %v4108
        %v4110 = vrot.slane %v4090, 6
        %v4111 = vrot.slane %v4091, 6
        %v4112 = vsel %vm1415, %v4110, %v4111
        %v4113 = vrot.slane %v4092, 6
        %v4114 = vsel %vm1415, %v4111, %v4113
        %v4115 = vrot.slane %v4093, 6
        %v4116 = vrot.slane %v4094, 6
        %v4117 = vsel %vm1415, %v4115, %v4116
        %v4118 = vrot.slane %v4095, 6
        %v4119 = vsel %vm1415, %v4116, %v4118
        %v4126 = vadd.f32 %v4061, %v4107
        %v4127 = vadd.f32 %v4062, %v4109
        %v4128 = vadd.f32 %v4063, %v4112
        %v4129 = vadd.f32 %v4064, %v4114
        %v4130 = vadd.f32 %v4065, %v4117
        %v4131 = vadd.f32 %v4066, %v4119
        %v4132 = vstv %s3263
        %v4133 = vmul.f32 %v4132, %v3384
        %v4134 = vmul.f32 %v4132, %v3357
        %v4135 = vmul.f32 %v4132, %v3385
        %v4136 = vmul.f32 %v4132, %v3360
        %v4137 = vmul.f32 %v4132, %v3386
        %v4138 = vmul.f32 %v4132, %v3363
        %v4139 = vmul.f32 %v4132, %v3387
        %v4140 = vmul.f32 %v4132, %v3366
        %v4141 = vstv %s3312
        %v4142 = vmul.f32 %v4141, %v3384
        %v4143 = vmul.f32 %v4141, %v3357
        %v4144 = vmul.f32 %v4141, %v3426
        %v4145 = vmul.f32 %v4141, %v3404
        %v4146 = vmul.f32 %v4141, %v3427
        %v4147 = vmul.f32 %v4141, %v3407
        %v4148 = vmul.f32 %v4141, %v3428
        %v4149 = vmul.f32 %v4141, %v3410
        %v4150 = vadd.f32 %v4133, %v4142
        %v4151 = vadd.f32 %v4134, %v4143
        %v4152 = vadd.f32 %v4135, %v4144
        %v4153 = vadd.f32 %v4136, %v4145
        %v4154 = vadd.f32 %v4137, %v4146
        %v4155 = vadd.f32 %v4138, %v4147
        %v4156 = vadd.f32 %v4139, %v4148
        %v4157 = vadd.f32 %v4140, %v4149
        %v4158 = vadd.f32 %v4126, %v4150
        %v4159 = vadd.f32 %v4127, %v4151
        %v4160 = vadd.f32 %v4126, %v4152
        %v4161 = vadd.f32 %v4127, %v4153
        %v4162 = vadd.f32 %v4128, %v4154
        %v4163 = vadd.f32 %v4129, %v4155
        %v4164 = vadd.f32 %v4130, %v4156
        %v4165 = vadd.f32 %v4131, %v4157
        %v4166 = vstv %s3264
        %v4167 = vmul.f32 %v4166, %v3384
        %v4168 = vmul.f32 %v4166, %v3357
        %v4169 = vmul.f32 %v4166, %v3389
        %v4170 = vmul.f32 %v4166, %v3385
        %v4171 = vmul.f32 %v4166, %v3360
        %v4172 = vmul.f32 %v4166, %v3390
        %v4173 = vmul.f32 %v4166, %v3386
        %v4174 = vmul.f32 %v4166, %v3363
        %v4175 = vmul.f32 %v4166, %v3391
        %v4176 = vmul.f32 %v4166, %v3387
        %v4177 = vmul.f32 %v4166, %v3366
        %v4178 = vmul.f32 %v4166, %v3392
        %v4179 = vstv %s3313
        %v4180 = vmul.f32 %v4179, %v3384
        %v4181 = vmul.f32 %v4179, %v3357
        %v4182 = vmul.f32 %v4179, %v3389
        %v4183 = vmul.f32 %v4179, %v3426
        %v4184 = vmul.f32 %v4179, %v3404
        %v4185 = vmul.f32 %v4179, %v3430
        %v4186 = vmul.f32 %v4179, %v3427
        %v4187 = vmul.f32 %v4179, %v3407
        %v4188 = vmul.f32 %v4179, %v3431
        %v4189 = vmul.f32 %v4179, %v3428
        %v4190 = vmul.f32 %v4179, %v3410
        %v4191 = vmul.f32 %v4179, %v3432
        %v4192 = vadd.f32 %v4167, %v4180
        %v4193 = vadd.f32 %v4168, %v4181
        %v4194 = vadd.f32 %v4169, %v4182
        %v4195 = vadd.f32 %v4170, %v4183
        %v4196 = vadd.f32 %v4171, %v4184
        %v4197 = vadd.f32 %v4172, %v4185
        %v4198 = vadd.f32 %v4173, %v4186
        %v4199 = vadd.f32 %v4174, %v4187
        %v4200 = vadd.f32 %v4175, %v4188
        %v4201 = vadd.f32 %v4176, %v4189
        %v4202 = vadd.f32 %v4177, %v4190
        %v4203 = vadd.f32 %v4178, %v4191
        %v4216 = vrot.slane %v4192, 1
        %v4217 = vrot.slane %v4193, 1
        %v4218 = vsel %vm486, %v4216, %v4217
        %v4219 = vrot.slane %v4194, 1
        %v4220 = vsel %vm486, %v4217, %v4219
        %v4221 = vrot.slane %v4195, 1
        %v4222 = vrot.slane %v4196, 1
        %v4223 = vsel %vm486, %v4221, %v4222
        %v4224 = vrot.slane %v4197, 1
        %v4225 = vsel %vm486, %v4222, %v4224
        %v4226 = vrot.slane %v4198, 1
        %v4227 = vrot.slane %v4199, 1
        %v4228 = vsel %vm486, %v4226, %v4227
        %v4229 = vrot.slane %v4200, 1
        %v4230 = vsel %vm486, %v4227, %v4229
        %v4231 = vrot.slane %v4201, 1
        %v4232 = vrot.slane %v4202, 1
        %v4233 = vsel %vm486, %v4231, %v4232
        %v4234 = vrot.slane %v4203, 1
        %v4235 = vsel %vm486, %v4232, %v4234
        %v4244 = vadd.f32 %v4158, %v4218
        %v4245 = vadd.f32 %v4159, %v4220
        %v4246 = vadd.f32 %v4160, %v4223
        %v4247 = vadd.f32 %v4161, %v4225
        %v4248 = vadd.f32 %v4162, %v4228
        %v4249 = vadd.f32 %v4163, %v4230
        %v4250 = vadd.f32 %v4164, %v4233
        %v4251 = vadd.f32 %v4165, %v4235
        %v4252 = vstv %s3265
        %v4253 = vmul.f32 %v4252, %v3384
        %v4254 = vmul.f32 %v4252, %v3357
        %v4255 = vmul.f32 %v4252, %v3389
        %v4256 = vmul.f32 %v4252, %v3385
        %v4257 = vmul.f32 %v4252, %v3360
        %v4258 = vmul.f32 %v4252, %v3390
        %v4259 = vmul.f32 %v4252, %v3386
        %v4260 = vmul.f32 %v4252, %v3363
        %v4261 = vmul.f32 %v4252, %v3391
        %v4262 = vmul.f32 %v4252, %v3387
        %v4263 = vmul.f32 %v4252, %v3366
        %v4264 = vmul.f32 %v4252, %v3392
        %v4265 = vstv %s3314
        %v4266 = vmul.f32 %v4265, %v3384
        %v4267 = vmul.f32 %v4265, %v3357
        %v4268 = vmul.f32 %v4265, %v3389
        %v4269 = vmul.f32 %v4265, %v3426
        %v4270 = vmul.f32 %v4265, %v3404
        %v4271 = vmul.f32 %v4265, %v3430
        %v4272 = vmul.f32 %v4265, %v3427
        %v4273 = vmul.f32 %v4265, %v3407
        %v4274 = vmul.f32 %v4265, %v3431
        %v4275 = vmul.f32 %v4265, %v3428
        %v4276 = vmul.f32 %v4265, %v3410
        %v4277 = vmul.f32 %v4265, %v3432
        %v4278 = vadd.f32 %v4253, %v4266
        %v4279 = vadd.f32 %v4254, %v4267
        %v4280 = vadd.f32 %v4255, %v4268
        %v4281 = vadd.f32 %v4256, %v4269
        %v4282 = vadd.f32 %v4257, %v4270
        %v4283 = vadd.f32 %v4258, %v4271
        %v4284 = vadd.f32 %v4259, %v4272
        %v4285 = vadd.f32 %v4260, %v4273
        %v4286 = vadd.f32 %v4261, %v4274
        %v4287 = vadd.f32 %v4262, %v4275
        %v4288 = vadd.f32 %v4263, %v4276
        %v4289 = vadd.f32 %v4264, %v4277
        %v4302 = vrot.slane %v4278, 2
        %v4303 = vrot.slane %v4279, 2
        %v4304 = vsel %vm672, %v4302, %v4303
        %v4305 = vrot.slane %v4280, 2
        %v4306 = vsel %vm672, %v4303, %v4305
        %v4307 = vrot.slane %v4281, 2
        %v4308 = vrot.slane %v4282, 2
        %v4309 = vsel %vm672, %v4307, %v4308
        %v4310 = vrot.slane %v4283, 2
        %v4311 = vsel %vm672, %v4308, %v4310
        %v4312 = vrot.slane %v4284, 2
        %v4313 = vrot.slane %v4285, 2
        %v4314 = vsel %vm672, %v4312, %v4313
        %v4315 = vrot.slane %v4286, 2
        %v4316 = vsel %vm672, %v4313, %v4315
        %v4317 = vrot.slane %v4287, 2
        %v4318 = vrot.slane %v4288, 2
        %v4319 = vsel %vm672, %v4317, %v4318
        %v4320 = vrot.slane %v4289, 2
        %v4321 = vsel %vm672, %v4318, %v4320
        %v4330 = vadd.f32 %v4244, %v4304
        %v4331 = vadd.f32 %v4245, %v4306
        %v4332 = vadd.f32 %v4246, %v4309
        %v4333 = vadd.f32 %v4247, %v4311
        %v4334 = vadd.f32 %v4248, %v4314
        %v4335 = vadd.f32 %v4249, %v4316
        %v4336 = vadd.f32 %v4250, %v4319
        %v4337 = vadd.f32 %v4251, %v4321
        %v4338 = vstv %s3266
        %v4339 = vmul.f32 %v4338, %v3384
        %v4340 = vmul.f32 %v4338, %v3357
        %v4341 = vmul.f32 %v4338, %v3389
        %v4342 = vmul.f32 %v4338, %v3385
        %v4343 = vmul.f32 %v4338, %v3360
        %v4344 = vmul.f32 %v4338, %v3390
        %v4345 = vmul.f32 %v4338, %v3386
        %v4346 = vmul.f32 %v4338, %v3363
        %v4347 = vmul.f32 %v4338, %v3391
        %v4348 = vmul.f32 %v4338, %v3387
        %v4349 = vmul.f32 %v4338, %v3366
        %v4350 = vmul.f32 %v4338, %v3392
        %v4351 = vstv %s3315
        %v4352 = vmul.f32 %v4351, %v3384
        %v4353 = vmul.f32 %v4351, %v3357
        %v4354 = vmul.f32 %v4351, %v3389
        %v4355 = vmul.f32 %v4351, %v3426
        %v4356 = vmul.f32 %v4351, %v3404
        %v4357 = vmul.f32 %v4351, %v3430
        %v4358 = vmul.f32 %v4351, %v3427
        %v4359 = vmul.f32 %v4351, %v3407
        %v4360 = vmul.f32 %v4351, %v3431
        %v4361 = vmul.f32 %v4351, %v3428
        %v4362 = vmul.f32 %v4351, %v3410
        %v4363 = vmul.f32 %v4351, %v3432
        %v4364 = vadd.f32 %v4339, %v4352
        %v4365 = vadd.f32 %v4340, %v4353
        %v4366 = vadd.f32 %v4341, %v4354
        %v4367 = vadd.f32 %v4342, %v4355
        %v4368 = vadd.f32 %v4343, %v4356
        %v4369 = vadd.f32 %v4344, %v4357
        %v4370 = vadd.f32 %v4345, %v4358
        %v4371 = vadd.f32 %v4346, %v4359
        %v4372 = vadd.f32 %v4347, %v4360
        %v4373 = vadd.f32 %v4348, %v4361
        %v4374 = vadd.f32 %v4349, %v4362
        %v4375 = vadd.f32 %v4350, %v4363
        %v4388 = vrot.slane %v4364, 3
        %v4389 = vrot.slane %v4365, 3
        %v4390 = vsel %vm858, %v4388, %v4389
        %v4391 = vrot.slane %v4366, 3
        %v4392 = vsel %vm858, %v4389, %v4391
        %v4393 = vrot.slane %v4367, 3
        %v4394 = vrot.slane %v4368, 3
        %v4395 = vsel %vm858, %v4393, %v4394
        %v4396 = vrot.slane %v4369, 3
        %v4397 = vsel %vm858, %v4394, %v4396
        %v4398 = vrot.slane %v4370, 3
        %v4399 = vrot.slane %v4371, 3
        %v4400 = vsel %vm858, %v4398, %v4399
        %v4401 = vrot.slane %v4372, 3
        %v4402 = vsel %vm858, %v4399, %v4401
        %v4403 = vrot.slane %v4373, 3
        %v4404 = vrot.slane %v4374, 3
        %v4405 = vsel %vm858, %v4403, %v4404
        %v4406 = vrot.slane %v4375, 3
        %v4407 = vsel %vm858, %v4404, %v4406
        %v4416 = vadd.f32 %v4330, %v4390
        %v4417 = vadd.f32 %v4331, %v4392
        %v4418 = vadd.f32 %v4332, %v4395
        %v4419 = vadd.f32 %v4333, %v4397
        %v4420 = vadd.f32 %v4334, %v4400
        %v4421 = vadd.f32 %v4335, %v4402
        %v4422 = vadd.f32 %v4336, %v4405
        %v4423 = vadd.f32 %v4337, %v4407
        %v4424 = vstv %s3267
        %v4425 = vmul.f32 %v4424, %v3384
        %v4426 = vmul.f32 %v4424, %v3357
        %v4427 = vmul.f32 %v4424, %v3389
        %v4428 = vmul.f32 %v4424, %v3385
        %v4429 = vmul.f32 %v4424, %v3360
        %v4430 = vmul.f32 %v4424, %v3390
        %v4431 = vmul.f32 %v4424, %v3386
        %v4432 = vmul.f32 %v4424, %v3363
        %v4433 = vmul.f32 %v4424, %v3391
        %v4434 = vmul.f32 %v4424, %v3387
        %v4435 = vmul.f32 %v4424, %v3366
        %v4436 = vmul.f32 %v4424, %v3392
        %v4437 = vstv %s3316
        %v4438 = vmul.f32 %v4437, %v3384
        %v4439 = vmul.f32 %v4437, %v3357
        %v4440 = vmul.f32 %v4437, %v3389
        %v4441 = vmul.f32 %v4437, %v3426
        %v4442 = vmul.f32 %v4437, %v3404
        %v4443 = vmul.f32 %v4437, %v3430
        %v4444 = vmul.f32 %v4437, %v3427
        %v4445 = vmul.f32 %v4437, %v3407
        %v4446 = vmul.f32 %v4437, %v3431
        %v4447 = vmul.f32 %v4437, %v3428
        %v4448 = vmul.f32 %v4437, %v3410
        %v4449 = vmul.f32 %v4437, %v3432
        %v4450 = vadd.f32 %v4425, %v4438
        %v4451 = vadd.f32 %v4426, %v4439
        %v4452 = vadd.f32 %v4427, %v4440
        %v4453 = vadd.f32 %v4428, %v4441
        %v4454 = vadd.f32 %v4429, %v4442
        %v4455 = vadd.f32 %v4430, %v4443
        %v4456 = vadd.f32 %v4431, %v4444
        %v4457 = vadd.f32 %v4432, %v4445
        %v4458 = vadd.f32 %v4433, %v4446
        %v4459 = vadd.f32 %v4434, %v4447
        %v4460 = vadd.f32 %v4435, %v4448
        %v4461 = vadd.f32 %v4436, %v4449
        %v4474 = vrot.slane %v4450, 4
        %v4475 = vrot.slane %v4451, 4
        %v4476 = vsel %vm1044, %v4474, %v4475
        %v4477 = vrot.slane %v4452, 4
        %v4478 = vsel %vm1044, %v4475, %v4477
        %v4479 = vrot.slane %v4453, 4
        %v4480 = vrot.slane %v4454, 4
        %v4481 = vsel %vm1044, %v4479, %v4480
        %v4482 = vrot.slane %v4455, 4
        %v4483 = vsel %vm1044, %v4480, %v4482
        %v4484 = vrot.slane %v4456, 4
        %v4485 = vrot.slane %v4457, 4
        %v4486 = vsel %vm1044, %v4484, %v4485
        %v4487 = vrot.slane %v4458, 4
        %v4488 = vsel %vm1044, %v4485, %v4487
        %v4489 = vrot.slane %v4459, 4
        %v4490 = vrot.slane %v4460, 4
        %v4491 = vsel %vm1044, %v4489, %v4490
        %v4492 = vrot.slane %v4461, 4
        %v4493 = vsel %vm1044, %v4490, %v4492
        %v4502 = vadd.f32 %v4416, %v4476
        %v4503 = vadd.f32 %v4417, %v4478
        %v4504 = vadd.f32 %v4418, %v4481
        %v4505 = vadd.f32 %v4419, %v4483
        %v4506 = vadd.f32 %v4420, %v4486
        %v4507 = vadd.f32 %v4421, %v4488
        %v4508 = vadd.f32 %v4422, %v4491
        %v4509 = vadd.f32 %v4423, %v4493
        %v4510 = vstv %s3268
        %v4511 = vmul.f32 %v4510, %v3384
        %v4512 = vmul.f32 %v4510, %v3357
        %v4513 = vmul.f32 %v4510, %v3389
        %v4514 = vmul.f32 %v4510, %v3385
        %v4515 = vmul.f32 %v4510, %v3360
        %v4516 = vmul.f32 %v4510, %v3390
        %v4517 = vmul.f32 %v4510, %v3386
        %v4518 = vmul.f32 %v4510, %v3363
        %v4519 = vmul.f32 %v4510, %v3391
        %v4520 = vmul.f32 %v4510, %v3387
        %v4521 = vmul.f32 %v4510, %v3366
        %v4522 = vmul.f32 %v4510, %v3392
        %v4523 = vstv %s3317
        %v4524 = vmul.f32 %v4523, %v3384
        %v4525 = vmul.f32 %v4523, %v3357
        %v4526 = vmul.f32 %v4523, %v3389
        %v4527 = vmul.f32 %v4523, %v3426
        %v4528 = vmul.f32 %v4523, %v3404
        %v4529 = vmul.f32 %v4523, %v3430
        %v4530 = vmul.f32 %v4523, %v3427
        %v4531 = vmul.f32 %v4523, %v3407
        %v4532 = vmul.f32 %v4523, %v3431
        %v4533 = vmul.f32 %v4523, %v3428
        %v4534 = vmul.f32 %v4523, %v3410
        %v4535 = vmul.f32 %v4523, %v3432
        %v4536 = vadd.f32 %v4511, %v4524
        %v4537 = vadd.f32 %v4512, %v4525
        %v4538 = vadd.f32 %v4513, %v4526
        %v4539 = vadd.f32 %v4514, %v4527
        %v4540 = vadd.f32 %v4515, %v4528
        %v4541 = vadd.f32 %v4516, %v4529
        %v4542 = vadd.f32 %v4517, %v4530
        %v4543 = vadd.f32 %v4518, %v4531
        %v4544 = vadd.f32 %v4519, %v4532
        %v4545 = vadd.f32 %v4520, %v4533
        %v4546 = vadd.f32 %v4521, %v4534
        %v4547 = vadd.f32 %v4522, %v4535
        %v4560 = vrot.slane %v4536, 5
        %v4561 = vrot.slane %v4537, 5
        %v4562 = vsel %vm301, %v4560, %v4561
        %v4563 = vrot.slane %v4538, 5
        %v4564 = vsel %vm301, %v4561, %v4563
        %v4565 = vrot.slane %v4539, 5
        %v4566 = vrot.slane %v4540, 5
        %v4567 = vsel %vm301, %v4565, %v4566
        %v4568 = vrot.slane %v4541, 5
        %v4569 = vsel %vm301, %v4566, %v4568
        %v4570 = vrot.slane %v4542, 5
        %v4571 = vrot.slane %v4543, 5
        %v4572 = vsel %vm301, %v4570, %v4571
        %v4573 = vrot.slane %v4544, 5
        %v4574 = vsel %vm301, %v4571, %v4573
        %v4575 = vrot.slane %v4545, 5
        %v4576 = vrot.slane %v4546, 5
        %v4577 = vsel %vm301, %v4575, %v4576
        %v4578 = vrot.slane %v4547, 5
        %v4579 = vsel %vm301, %v4576, %v4578
        %v4588 = vadd.f32 %v4502, %v4562
        %v4589 = vadd.f32 %v4503, %v4564
        %v4590 = vadd.f32 %v4504, %v4567
        %v4591 = vadd.f32 %v4505, %v4569
        %v4592 = vadd.f32 %v4506, %v4572
        %v4593 = vadd.f32 %v4507, %v4574
        %v4594 = vadd.f32 %v4508, %v4577
        %v4595 = vadd.f32 %v4509, %v4579
        %v4596 = vstv %s3269
        %v4597 = vmul.f32 %v4596, %v3384
        %v4598 = vmul.f32 %v4596, %v3357
        %v4599 = vmul.f32 %v4596, %v3389
        %v4600 = vmul.f32 %v4596, %v3385
        %v4601 = vmul.f32 %v4596, %v3360
        %v4602 = vmul.f32 %v4596, %v3390
        %v4603 = vmul.f32 %v4596, %v3386
        %v4604 = vmul.f32 %v4596, %v3363
        %v4605 = vmul.f32 %v4596, %v3391
        %v4606 = vmul.f32 %v4596, %v3387
        %v4607 = vmul.f32 %v4596, %v3366
        %v4608 = vmul.f32 %v4596, %v3392
        %v4609 = vstv %s3318
        %v4610 = vmul.f32 %v4609, %v3384
        %v4611 = vmul.f32 %v4609, %v3357
        %v4612 = vmul.f32 %v4609, %v3389
        %v4613 = vmul.f32 %v4609, %v3426
        %v4614 = vmul.f32 %v4609, %v3404
        %v4615 = vmul.f32 %v4609, %v3430
        %v4616 = vmul.f32 %v4609, %v3427
        %v4617 = vmul.f32 %v4609, %v3407
        %v4618 = vmul.f32 %v4609, %v3431
        %v4619 = vmul.f32 %v4609, %v3428
        %v4620 = vmul.f32 %v4609, %v3410
        %v4621 = vmul.f32 %v4609, %v3432
        %v4622 = vadd.f32 %v4597, %v4610
        %v4623 = vadd.f32 %v4598, %v4611
        %v4624 = vadd.f32 %v4599, %v4612
        %v4625 = vadd.f32 %v4600, %v4613
        %v4626 = vadd.f32 %v4601, %v4614
        %v4627 = vadd.f32 %v4602, %v4615
        %v4628 = vadd.f32 %v4603, %v4616
        %v4629 = vadd.f32 %v4604, %v4617
        %v4630 = vadd.f32 %v4605, %v4618
        %v4631 = vadd.f32 %v4606, %v4619
        %v4632 = vadd.f32 %v4607, %v4620
        %v4633 = vadd.f32 %v4608, %v4621
        %v4646 = vrot.slane %v4622, 6
        %v4647 = vrot.slane %v4623, 6
        %v4648 = vsel %vm1415, %v4646, %v4647
        %v4649 = vrot.slane %v4624, 6
        %v4650 = vsel %vm1415, %v4647, %v4649
        %v4651 = vrot.slane %v4625, 6
        %v4652 = vrot.slane %v4626, 6
        %v4653 = vsel %vm1415, %v4651, %v4652
        %v4654 = vrot.slane %v4627, 6
        %v4655 = vsel %vm1415, %v4652, %v4654
        %v4656 = vrot.slane %v4628, 6
        %v4657 = vrot.slane %v4629, 6
        %v4658 = vsel %vm1415, %v4656, %v4657
        %v4659 = vrot.slane %v4630, 6
        %v4660 = vsel %vm1415, %v4657, %v4659
        %v4661 = vrot.slane %v4631, 6
        %v4662 = vrot.slane %v4632, 6
        %v4663 = vsel %vm1415, %v4661, %v4662
        %v4664 = vrot.slane %v4633, 6
        %v4665 = vsel %vm1415, %v4662, %v4664
        %v4674 = vadd.f32 %v4588, %v4648
        %v4675 = vadd.f32 %v4589, %v4650
        %v4676 = vadd.f32 %v4590, %v4653
        %v4677 = vadd.f32 %v4591, %v4655
        %v4678 = vadd.f32 %v4592, %v4658
        %v4679 = vadd.f32 %v4593, %v4660
        %v4680 = vadd.f32 %v4594, %v4663
        %v4681 = vadd.f32 %v4595, %v4665
        %v4682 = vstv %s3270
        %v4683 = vmul.f32 %v4682, %v3385
        %v4684 = vmul.f32 %v4682, %v3360
        %v4685 = vmul.f32 %v4682, %v3386
        %v4686 = vmul.f32 %v4682, %v3363
        %v4687 = vmul.f32 %v4682, %v3387
        %v4688 = vmul.f32 %v4682, %v3366
        %v4689 = vmul.f32 %v4682, %v3388
        %v4690 = vmul.f32 %v4682, %v3369
        %v4691 = vstv %s3319
        %v4692 = vmul.f32 %v4691, %v3426
        %v4693 = vmul.f32 %v4691, %v3404
        %v4694 = vmul.f32 %v4691, %v3427
        %v4695 = vmul.f32 %v4691, %v3407
        %v4696 = vmul.f32 %v4691, %v3428
        %v4697 = vmul.f32 %v4691, %v3410
        %v4698 = vmul.f32 %v4691, %v3429
        %v4699 = vmul.f32 %v4691, %v3413
        %v4700 = vadd.f32 %v4683, %v4692
        %v4701 = vadd.f32 %v4684, %v4693
        %v4702 = vadd.f32 %v4685, %v4694
        %v4703 = vadd.f32 %v4686, %v4695
        %v4704 = vadd.f32 %v4687, %v4696
        %v4705 = vadd.f32 %v4688, %v4697
        %v4706 = vadd.f32 %v4689, %v4698
        %v4707 = vadd.f32 %v4690, %v4699
        %v4708 = vadd.f32 %v4674, %v4700
        %v4709 = vadd.f32 %v4675, %v4701
        %v4710 = vadd.f32 %v4676, %v4702
        %v4711 = vadd.f32 %v4677, %v4703
        %v4712 = vadd.f32 %v4678, %v4704
        %v4713 = vadd.f32 %v4679, %v4705
        %v4714 = vadd.f32 %v4680, %v4706
        %v4715 = vadd.f32 %v4681, %v4707
        %v4716 = vstv %s3271
        %v4717 = vmul.f32 %v4716, %v3385
        %v4718 = vmul.f32 %v4716, %v3360
        %v4719 = vmul.f32 %v4716, %v3390
        %v4720 = vmul.f32 %v4716, %v3386
        %v4721 = vmul.f32 %v4716, %v3363
        %v4722 = vmul.f32 %v4716, %v3391
        %v4723 = vmul.f32 %v4716, %v3387
        %v4724 = vmul.f32 %v4716, %v3366
        %v4725 = vmul.f32 %v4716, %v3392
        %v4726 = vmul.f32 %v4716, %v3388
        %v4727 = vmul.f32 %v4716, %v3369
        %v4728 = vmul.f32 %v4716, %v3393
        %v4729 = vstv %s3320
        %v4730 = vmul.f32 %v4729, %v3426
        %v4731 = vmul.f32 %v4729, %v3404
        %v4732 = vmul.f32 %v4729, %v3430
        %v4733 = vmul.f32 %v4729, %v3427
        %v4734 = vmul.f32 %v4729, %v3407
        %v4735 = vmul.f32 %v4729, %v3431
        %v4736 = vmul.f32 %v4729, %v3428
        %v4737 = vmul.f32 %v4729, %v3410
        %v4738 = vmul.f32 %v4729, %v3432
        %v4739 = vmul.f32 %v4729, %v3429
        %v4740 = vmul.f32 %v4729, %v3413
        %v4741 = vmul.f32 %v4729, %v3433
        %v4742 = vadd.f32 %v4717, %v4730
        %v4743 = vadd.f32 %v4718, %v4731
        %v4744 = vadd.f32 %v4719, %v4732
        %v4745 = vadd.f32 %v4720, %v4733
        %v4746 = vadd.f32 %v4721, %v4734
        %v4747 = vadd.f32 %v4722, %v4735
        %v4748 = vadd.f32 %v4723, %v4736
        %v4749 = vadd.f32 %v4724, %v4737
        %v4750 = vadd.f32 %v4725, %v4738
        %v4751 = vadd.f32 %v4726, %v4739
        %v4752 = vadd.f32 %v4727, %v4740
        %v4753 = vadd.f32 %v4728, %v4741
        %v4766 = vrot.slane %v4742, 1
        %v4767 = vrot.slane %v4743, 1
        %v4768 = vsel %vm486, %v4766, %v4767
        %v4769 = vrot.slane %v4744, 1
        %v4770 = vsel %vm486, %v4767, %v4769
        %v4771 = vrot.slane %v4745, 1
        %v4772 = vrot.slane %v4746, 1
        %v4773 = vsel %vm486, %v4771, %v4772
        %v4774 = vrot.slane %v4747, 1
        %v4775 = vsel %vm486, %v4772, %v4774
        %v4776 = vrot.slane %v4748, 1
        %v4777 = vrot.slane %v4749, 1
        %v4778 = vsel %vm486, %v4776, %v4777
        %v4779 = vrot.slane %v4750, 1
        %v4780 = vsel %vm486, %v4777, %v4779
        %v4781 = vrot.slane %v4751, 1
        %v4782 = vrot.slane %v4752, 1
        %v4783 = vsel %vm486, %v4781, %v4782
        %v4784 = vrot.slane %v4753, 1
        %v4785 = vsel %vm486, %v4782, %v4784
        %v4794 = vadd.f32 %v4708, %v4768
        %v4795 = vadd.f32 %v4709, %v4770
        %v4796 = vadd.f32 %v4710, %v4773
        %v4797 = vadd.f32 %v4711, %v4775
        %v4798 = vadd.f32 %v4712, %v4778
        %v4799 = vadd.f32 %v4713, %v4780
        %v4800 = vadd.f32 %v4714, %v4783
        %v4801 = vadd.f32 %v4715, %v4785
        %v4802 = vstv %s3272
        %v4803 = vmul.f32 %v4802, %v3385
        %v4804 = vmul.f32 %v4802, %v3360
        %v4805 = vmul.f32 %v4802, %v3390
        %v4806 = vmul.f32 %v4802, %v3386
        %v4807 = vmul.f32 %v4802, %v3363
        %v4808 = vmul.f32 %v4802, %v3391
        %v4809 = vmul.f32 %v4802, %v3387
        %v4810 = vmul.f32 %v4802, %v3366
        %v4811 = vmul.f32 %v4802, %v3392
        %v4812 = vmul.f32 %v4802, %v3388
        %v4813 = vmul.f32 %v4802, %v3369
        %v4814 = vmul.f32 %v4802, %v3393
        %v4815 = vstv %s3321
        %v4816 = vmul.f32 %v4815, %v3426
        %v4817 = vmul.f32 %v4815, %v3404
        %v4818 = vmul.f32 %v4815, %v3430
        %v4819 = vmul.f32 %v4815, %v3427
        %v4820 = vmul.f32 %v4815, %v3407
        %v4821 = vmul.f32 %v4815, %v3431
        %v4822 = vmul.f32 %v4815, %v3428
        %v4823 = vmul.f32 %v4815, %v3410
        %v4824 = vmul.f32 %v4815, %v3432
        %v4825 = vmul.f32 %v4815, %v3429
        %v4826 = vmul.f32 %v4815, %v3413
        %v4827 = vmul.f32 %v4815, %v3433
        %v4828 = vadd.f32 %v4803, %v4816
        %v4829 = vadd.f32 %v4804, %v4817
        %v4830 = vadd.f32 %v4805, %v4818
        %v4831 = vadd.f32 %v4806, %v4819
        %v4832 = vadd.f32 %v4807, %v4820
        %v4833 = vadd.f32 %v4808, %v4821
        %v4834 = vadd.f32 %v4809, %v4822
        %v4835 = vadd.f32 %v4810, %v4823
        %v4836 = vadd.f32 %v4811, %v4824
        %v4837 = vadd.f32 %v4812, %v4825
        %v4838 = vadd.f32 %v4813, %v4826
        %v4839 = vadd.f32 %v4814, %v4827
        %v4852 = vrot.slane %v4828, 2
        %v4853 = vrot.slane %v4829, 2
        %v4854 = vsel %vm672, %v4852, %v4853
        %v4855 = vrot.slane %v4830, 2
        %v4856 = vsel %vm672, %v4853, %v4855
        %v4857 = vrot.slane %v4831, 2
        %v4858 = vrot.slane %v4832, 2
        %v4859 = vsel %vm672, %v4857, %v4858
        %v4860 = vrot.slane %v4833, 2
        %v4861 = vsel %vm672, %v4858, %v4860
        %v4862 = vrot.slane %v4834, 2
        %v4863 = vrot.slane %v4835, 2
        %v4864 = vsel %vm672, %v4862, %v4863
        %v4865 = vrot.slane %v4836, 2
        %v4866 = vsel %vm672, %v4863, %v4865
        %v4867 = vrot.slane %v4837, 2
        %v4868 = vrot.slane %v4838, 2
        %v4869 = vsel %vm672, %v4867, %v4868
        %v4870 = vrot.slane %v4839, 2
        %v4871 = vsel %vm672, %v4868, %v4870
        %v4880 = vadd.f32 %v4794, %v4854
        %v4881 = vadd.f32 %v4795, %v4856
        %v4882 = vadd.f32 %v4796, %v4859
        %v4883 = vadd.f32 %v4797, %v4861
        %v4884 = vadd.f32 %v4798, %v4864
        %v4885 = vadd.f32 %v4799, %v4866
        %v4886 = vadd.f32 %v4800, %v4869
        %v4887 = vadd.f32 %v4801, %v4871
        %v4888 = vstv %s3273
        %v4889 = vmul.f32 %v4888, %v3385
        %v4890 = vmul.f32 %v4888, %v3360
        %v4891 = vmul.f32 %v4888, %v3390
        %v4892 = vmul.f32 %v4888, %v3386
        %v4893 = vmul.f32 %v4888, %v3363
        %v4894 = vmul.f32 %v4888, %v3391
        %v4895 = vmul.f32 %v4888, %v3387
        %v4896 = vmul.f32 %v4888, %v3366
        %v4897 = vmul.f32 %v4888, %v3392
        %v4898 = vmul.f32 %v4888, %v3388
        %v4899 = vmul.f32 %v4888, %v3369
        %v4900 = vmul.f32 %v4888, %v3393
        %v4901 = vstv %s3322
        %v4902 = vmul.f32 %v4901, %v3426
        %v4903 = vmul.f32 %v4901, %v3404
        %v4904 = vmul.f32 %v4901, %v3430
        %v4905 = vmul.f32 %v4901, %v3427
        %v4906 = vmul.f32 %v4901, %v3407
        %v4907 = vmul.f32 %v4901, %v3431
        %v4908 = vmul.f32 %v4901, %v3428
        %v4909 = vmul.f32 %v4901, %v3410
        %v4910 = vmul.f32 %v4901, %v3432
        %v4911 = vmul.f32 %v4901, %v3429
        %v4912 = vmul.f32 %v4901, %v3413
        %v4913 = vmul.f32 %v4901, %v3433
        %v4914 = vadd.f32 %v4889, %v4902
        %v4915 = vadd.f32 %v4890, %v4903
        %v4916 = vadd.f32 %v4891, %v4904
        %v4917 = vadd.f32 %v4892, %v4905
        %v4918 = vadd.f32 %v4893, %v4906
        %v4919 = vadd.f32 %v4894, %v4907
        %v4920 = vadd.f32 %v4895, %v4908
        %v4921 = vadd.f32 %v4896, %v4909
        %v4922 = vadd.f32 %v4897, %v4910
        %v4923 = vadd.f32 %v4898, %v4911
        %v4924 = vadd.f32 %v4899, %v4912
        %v4925 = vadd.f32 %v4900, %v4913
        %v4938 = vrot.slane %v4914, 3
        %v4939 = vrot.slane %v4915, 3
        %v4940 = vsel %vm858, %v4938, %v4939
        %v4941 = vrot.slane %v4916, 3
        %v4942 = vsel %vm858, %v4939, %v4941
        %v4943 = vrot.slane %v4917, 3
        %v4944 = vrot.slane %v4918, 3
        %v4945 = vsel %vm858, %v4943, %v4944
        %v4946 = vrot.slane %v4919, 3
        %v4947 = vsel %vm858, %v4944, %v4946
        %v4948 = vrot.slane %v4920, 3
        %v4949 = vrot.slane %v4921, 3
        %v4950 = vsel %vm858, %v4948, %v4949
        %v4951 = vrot.slane %v4922, 3
        %v4952 = vsel %vm858, %v4949, %v4951
        %v4953 = vrot.slane %v4923, 3
        %v4954 = vrot.slane %v4924, 3
        %v4955 = vsel %vm858, %v4953, %v4954
        %v4956 = vrot.slane %v4925, 3
        %v4957 = vsel %vm858, %v4954, %v4956
        %v4966 = vadd.f32 %v4880, %v4940
        %v4967 = vadd.f32 %v4881, %v4942
        %v4968 = vadd.f32 %v4882, %v4945
        %v4969 = vadd.f32 %v4883, %v4947
        %v4970 = vadd.f32 %v4884, %v4950
        %v4971 = vadd.f32 %v4885, %v4952
        %v4972 = vadd.f32 %v4886, %v4955
        %v4973 = vadd.f32 %v4887, %v4957
        %v4974 = vstv %s3274
        %v4975 = vmul.f32 %v4974, %v3385
        %v4976 = vmul.f32 %v4974, %v3360
        %v4977 = vmul.f32 %v4974, %v3390
        %v4978 = vmul.f32 %v4974, %v3386
        %v4979 = vmul.f32 %v4974, %v3363
        %v4980 = vmul.f32 %v4974, %v3391
        %v4981 = vmul.f32 %v4974, %v3387
        %v4982 = vmul.f32 %v4974, %v3366
        %v4983 = vmul.f32 %v4974, %v3392
        %v4984 = vmul.f32 %v4974, %v3388
        %v4985 = vmul.f32 %v4974, %v3369
        %v4986 = vmul.f32 %v4974, %v3393
        %v4987 = vstv %s3323
        %v4988 = vmul.f32 %v4987, %v3426
        %v4989 = vmul.f32 %v4987, %v3404
        %v4990 = vmul.f32 %v4987, %v3430
        %v4991 = vmul.f32 %v4987, %v3427
        %v4992 = vmul.f32 %v4987, %v3407
        %v4993 = vmul.f32 %v4987, %v3431
        %v4994 = vmul.f32 %v4987, %v3428
        %v4995 = vmul.f32 %v4987, %v3410
        %v4996 = vmul.f32 %v4987, %v3432
        %v4997 = vmul.f32 %v4987, %v3429
        %v4998 = vmul.f32 %v4987, %v3413
        %v4999 = vmul.f32 %v4987, %v3433
        %v5000 = vadd.f32 %v4975, %v4988
        %v5001 = vadd.f32 %v4976, %v4989
        %v5002 = vadd.f32 %v4977, %v4990
        %v5003 = vadd.f32 %v4978, %v4991
        %v5004 = vadd.f32 %v4979, %v4992
        %v5005 = vadd.f32 %v4980, %v4993
        %v5006 = vadd.f32 %v4981, %v4994
        %v5007 = vadd.f32 %v4982, %v4995
        %v5008 = vadd.f32 %v4983, %v4996
        %v5009 = vadd.f32 %v4984, %v4997
        %v5010 = vadd.f32 %v4985, %v4998
        %v5011 = vadd.f32 %v4986, %v4999
        %v5024 = vrot.slane %v5000, 4
        %v5025 = vrot.slane %v5001, 4
        %v5026 = vsel %vm1044, %v5024, %v5025
        %v5027 = vrot.slane %v5002, 4
        %v5028 = vsel %vm1044, %v5025, %v5027
        %v5029 = vrot.slane %v5003, 4
        %v5030 = vrot.slane %v5004, 4
        %v5031 = vsel %vm1044, %v5029, %v5030
        %v5032 = vrot.slane %v5005, 4
        %v5033 = vsel %vm1044, %v5030, %v5032
        %v5034 = vrot.slane %v5006, 4
        %v5035 = vrot.slane %v5007, 4
        %v5036 = vsel %vm1044, %v5034, %v5035
        %v5037 = vrot.slane %v5008, 4
        %v5038 = vsel %vm1044, %v5035, %v5037
        %v5039 = vrot.slane %v5009, 4
        %v5040 = vrot.slane %v5010, 4
        %v5041 = vsel %vm1044, %v5039, %v5040
        %v5042 = vrot.slane %v5011, 4
        %v5043 = vsel %vm1044, %v5040, %v5042
        %v5052 = vadd.f32 %v4966, %v5026
        %v5053 = vadd.f32 %v4967, %v5028
        %v5054 = vadd.f32 %v4968, %v5031
        %v5055 = vadd.f32 %v4969, %v5033
        %v5056 = vadd.f32 %v4970, %v5036
        %v5057 = vadd.f32 %v4971, %v5038
        %v5058 = vadd.f32 %v4972, %v5041
        %v5059 = vadd.f32 %v4973, %v5043
        %v5060 = vstv %s3275
        %v5061 = vmul.f32 %v5060, %v3385
        %v5062 = vmul.f32 %v5060, %v3360
        %v5063 = vmul.f32 %v5060, %v3390
        %v5064 = vmul.f32 %v5060, %v3386
        %v5065 = vmul.f32 %v5060, %v3363
        %v5066 = vmul.f32 %v5060, %v3391
        %v5067 = vmul.f32 %v5060, %v3387
        %v5068 = vmul.f32 %v5060, %v3366
        %v5069 = vmul.f32 %v5060, %v3392
        %v5070 = vmul.f32 %v5060, %v3388
        %v5071 = vmul.f32 %v5060, %v3369
        %v5072 = vmul.f32 %v5060, %v3393
        %v5073 = vstv %s3324
        %v5074 = vmul.f32 %v5073, %v3426
        %v5075 = vmul.f32 %v5073, %v3404
        %v5076 = vmul.f32 %v5073, %v3430
        %v5077 = vmul.f32 %v5073, %v3427
        %v5078 = vmul.f32 %v5073, %v3407
        %v5079 = vmul.f32 %v5073, %v3431
        %v5080 = vmul.f32 %v5073, %v3428
        %v5081 = vmul.f32 %v5073, %v3410
        %v5082 = vmul.f32 %v5073, %v3432
        %v5083 = vmul.f32 %v5073, %v3429
        %v5084 = vmul.f32 %v5073, %v3413
        %v5085 = vmul.f32 %v5073, %v3433
        %v5086 = vadd.f32 %v5061, %v5074
        %v5087 = vadd.f32 %v5062, %v5075
        %v5088 = vadd.f32 %v5063, %v5076
        %v5089 = vadd.f32 %v5064, %v5077
        %v5090 = vadd.f32 %v5065, %v5078
        %v5091 = vadd.f32 %v5066, %v5079
        %v5092 = vadd.f32 %v5067, %v5080
        %v5093 = vadd.f32 %v5068, %v5081
        %v5094 = vadd.f32 %v5069, %v5082
        %v5095 = vadd.f32 %v5070, %v5083
        %v5096 = vadd.f32 %v5071, %v5084
        %v5097 = vadd.f32 %v5072, %v5085
        %v5110 = vrot.slane %v5086, 5
        %v5111 = vrot.slane %v5087, 5
        %v5112 = vsel %vm301, %v5110, %v5111
        %v5113 = vrot.slane %v5088, 5
        %v5114 = vsel %vm301, %v5111, %v5113
        %v5115 = vrot.slane %v5089, 5
        %v5116 = vrot.slane %v5090, 5
        %v5117 = vsel %vm301, %v5115, %v5116
        %v5118 = vrot.slane %v5091, 5
        %v5119 = vsel %vm301, %v5116, %v5118
        %v5120 = vrot.slane %v5092, 5
        %v5121 = vrot.slane %v5093, 5
        %v5122 = vsel %vm301, %v5120, %v5121
        %v5123 = vrot.slane %v5094, 5
        %v5124 = vsel %vm301, %v5121, %v5123
        %v5125 = vrot.slane %v5095, 5
        %v5126 = vrot.slane %v5096, 5
        %v5127 = vsel %vm301, %v5125, %v5126
        %v5128 = vrot.slane %v5097, 5
        %v5129 = vsel %vm301, %v5126, %v5128
        %v5138 = vadd.f32 %v5052, %v5112
        %v5139 = vadd.f32 %v5053, %v5114
        %v5140 = vadd.f32 %v5054, %v5117
        %v5141 = vadd.f32 %v5055, %v5119
        %v5142 = vadd.f32 %v5056, %v5122
        %v5143 = vadd.f32 %v5057, %v5124
        %v5144 = vadd.f32 %v5058, %v5127
        %v5145 = vadd.f32 %v5059, %v5129
        %v5146 = vstv %s3276
        %v5147 = vmul.f32 %v5146, %v3385
        %v5148 = vmul.f32 %v5146, %v3360
        %v5149 = vmul.f32 %v5146, %v3390
        %v5150 = vmul.f32 %v5146, %v3386
        %v5151 = vmul.f32 %v5146, %v3363
        %v5152 = vmul.f32 %v5146, %v3391
        %v5153 = vmul.f32 %v5146, %v3387
        %v5154 = vmul.f32 %v5146, %v3366
        %v5155 = vmul.f32 %v5146, %v3392
        %v5156 = vmul.f32 %v5146, %v3388
        %v5157 = vmul.f32 %v5146, %v3369
        %v5158 = vmul.f32 %v5146, %v3393
        %v5159 = vstv %s3325
        %v5160 = vmul.f32 %v5159, %v3426
        %v5161 = vmul.f32 %v5159, %v3404
        %v5162 = vmul.f32 %v5159, %v3430
        %v5163 = vmul.f32 %v5159, %v3427
        %v5164 = vmul.f32 %v5159, %v3407
        %v5165 = vmul.f32 %v5159, %v3431
        %v5166 = vmul.f32 %v5159, %v3428
        %v5167 = vmul.f32 %v5159, %v3410
        %v5168 = vmul.f32 %v5159, %v3432
        %v5169 = vmul.f32 %v5159, %v3429
        %v5170 = vmul.f32 %v5159, %v3413
        %v5171 = vmul.f32 %v5159, %v3433
        %v5172 = vadd.f32 %v5147, %v5160
        %v5173 = vadd.f32 %v5148, %v5161
        %v5174 = vadd.f32 %v5149, %v5162
        %v5175 = vadd.f32 %v5150, %v5163
        %v5176 = vadd.f32 %v5151, %v5164
        %v5177 = vadd.f32 %v5152, %v5165
        %v5178 = vadd.f32 %v5153, %v5166
        %v5179 = vadd.f32 %v5154, %v5167
        %v5180 = vadd.f32 %v5155, %v5168
        %v5181 = vadd.f32 %v5156, %v5169
        %v5182 = vadd.f32 %v5157, %v5170
        %v5183 = vadd.f32 %v5158, %v5171
        %v5196 = vrot.slane %v5172, 6
        %v5197 = vrot.slane %v5173, 6
        %v5198 = vsel %vm1415, %v5196, %v5197
        %v5199 = vrot.slane %v5174, 6
        %v5200 = vsel %vm1415, %v5197, %v5199
        %v5201 = vrot.slane %v5175, 6
        %v5202 = vrot.slane %v5176, 6
        %v5203 = vsel %vm1415, %v5201, %v5202
        %v5204 = vrot.slane %v5177, 6
        %v5205 = vsel %vm1415, %v5202, %v5204
        %v5206 = vrot.slane %v5178, 6
        %v5207 = vrot.slane %v5179, 6
        %v5208 = vsel %vm1415, %v5206, %v5207
        %v5209 = vrot.slane %v5180, 6
        %v5210 = vsel %vm1415, %v5207, %v5209
        %v5211 = vrot.slane %v5181, 6
        %v5212 = vrot.slane %v5182, 6
        %v5213 = vsel %vm1415, %v5211, %v5212
        %v5214 = vrot.slane %v5183, 6
        %v5215 = vsel %vm1415, %v5212, %v5214
        %v5224 = vadd.f32 %v5138, %v5198
        %v5225 = vadd.f32 %v5139, %v5200
        %v5226 = vadd.f32 %v5140, %v5203
        %v5227 = vadd.f32 %v5141, %v5205
        %v5228 = vadd.f32 %v5142, %v5208
        %v5229 = vadd.f32 %v5143, %v5210
        %v5230 = vadd.f32 %v5144, %v5213
        %v5231 = vadd.f32 %v5145, %v5215
        %v5232 = vstv %s3277
        %v5233 = vmul.f32 %v5232, %v3386
        %v5234 = vmul.f32 %v5232, %v3363
        %v5235 = vmul.f32 %v5232, %v3387
        %v5236 = vmul.f32 %v5232, %v3366
        %v5237 = vmul.f32 %v5232, %v3388
        %v5238 = vmul.f32 %v5232, %v3369
        %v5239 = vmul.f32 %v5232, %v3384
        %v5240 = vmul.f32 %v5232, %v3357
        %v5241 = vstv %s3326
        %v5242 = vmul.f32 %v5241, %v3427
        %v5243 = vmul.f32 %v5241, %v3407
        %v5244 = vmul.f32 %v5241, %v3428
        %v5245 = vmul.f32 %v5241, %v3410
        %v5246 = vmul.f32 %v5241, %v3429
        %v5247 = vmul.f32 %v5241, %v3413
        %v5248 = vmul.f32 %v5241, %v3384
        %v5249 = vmul.f32 %v5241, %v3357
        %v5250 = vadd.f32 %v5233, %v5242
        %v5251 = vadd.f32 %v5234, %v5243
        %v5252 = vadd.f32 %v5235, %v5244
        %v5253 = vadd.f32 %v5236, %v5245
        %v5254 = vadd.f32 %v5237, %v5246
        %v5255 = vadd.f32 %v5238, %v5247
        %v5256 = vadd.f32 %v5239, %v5248
        %v5257 = vadd.f32 %v5240, %v5249
        %v5258 = vadd.f32 %v5224, %v5250
        %v5259 = vadd.f32 %v5225, %v5251
        %v5260 = vadd.f32 %v5226, %v5252
        %v5261 = vadd.f32 %v5227, %v5253
        %v5262 = vadd.f32 %v5228, %v5254
        %v5263 = vadd.f32 %v5229, %v5255
        %v5264 = vadd.f32 %v5230, %v5256
        %v5265 = vadd.f32 %v5231, %v5257
        %v5266 = vstv %s3278
        %v5267 = vmul.f32 %v5266, %v3386
        %v5268 = vmul.f32 %v5266, %v3363
        %v5269 = vmul.f32 %v5266, %v3391
        %v5270 = vmul.f32 %v5266, %v3387
        %v5271 = vmul.f32 %v5266, %v3366
        %v5272 = vmul.f32 %v5266, %v3392
        %v5273 = vmul.f32 %v5266, %v3388
        %v5274 = vmul.f32 %v5266, %v3369
        %v5275 = vmul.f32 %v5266, %v3393
        %v5276 = vmul.f32 %v5266, %v3384
        %v5277 = vmul.f32 %v5266, %v3357
        %v5278 = vmul.f32 %v5266, %v3389
        %v5279 = vstv %s3327
        %v5280 = vmul.f32 %v5279, %v3427
        %v5281 = vmul.f32 %v5279, %v3407
        %v5282 = vmul.f32 %v5279, %v3431
        %v5283 = vmul.f32 %v5279, %v3428
        %v5284 = vmul.f32 %v5279, %v3410
        %v5285 = vmul.f32 %v5279, %v3432
        %v5286 = vmul.f32 %v5279, %v3429
        %v5287 = vmul.f32 %v5279, %v3413
        %v5288 = vmul.f32 %v5279, %v3433
        %v5289 = vmul.f32 %v5279, %v3384
        %v5290 = vmul.f32 %v5279, %v3357
        %v5291 = vmul.f32 %v5279, %v3389
        %v5292 = vadd.f32 %v5267, %v5280
        %v5293 = vadd.f32 %v5268, %v5281
        %v5294 = vadd.f32 %v5269, %v5282
        %v5295 = vadd.f32 %v5270, %v5283
        %v5296 = vadd.f32 %v5271, %v5284
        %v5297 = vadd.f32 %v5272, %v5285
        %v5298 = vadd.f32 %v5273, %v5286
        %v5299 = vadd.f32 %v5274, %v5287
        %v5300 = vadd.f32 %v5275, %v5288
        %v5301 = vadd.f32 %v5276, %v5289
        %v5302 = vadd.f32 %v5277, %v5290
        %v5303 = vadd.f32 %v5278, %v5291
        %v5316 = vrot.slane %v5292, 1
        %v5317 = vrot.slane %v5293, 1
        %v5318 = vsel %vm486, %v5316, %v5317
        %v5319 = vrot.slane %v5294, 1
        %v5320 = vsel %vm486, %v5317, %v5319
        %v5321 = vrot.slane %v5295, 1
        %v5322 = vrot.slane %v5296, 1
        %v5323 = vsel %vm486, %v5321, %v5322
        %v5324 = vrot.slane %v5297, 1
        %v5325 = vsel %vm486, %v5322, %v5324
        %v5326 = vrot.slane %v5298, 1
        %v5327 = vrot.slane %v5299, 1
        %v5328 = vsel %vm486, %v5326, %v5327
        %v5329 = vrot.slane %v5300, 1
        %v5330 = vsel %vm486, %v5327, %v5329
        %v5331 = vrot.slane %v5301, 1
        %v5332 = vrot.slane %v5302, 1
        %v5333 = vsel %vm486, %v5331, %v5332
        %v5334 = vrot.slane %v5303, 1
        %v5335 = vsel %vm486, %v5332, %v5334
        %v5344 = vadd.f32 %v5258, %v5318
        %v5345 = vadd.f32 %v5259, %v5320
        %v5346 = vadd.f32 %v5260, %v5323
        %v5347 = vadd.f32 %v5261, %v5325
        %v5348 = vadd.f32 %v5262, %v5328
        %v5349 = vadd.f32 %v5263, %v5330
        %v5350 = vadd.f32 %v5264, %v5333
        %v5351 = vadd.f32 %v5265, %v5335
        %v5352 = vstv %s3279
        %v5353 = vmul.f32 %v5352, %v3386
        %v5354 = vmul.f32 %v5352, %v3363
        %v5355 = vmul.f32 %v5352, %v3391
        %v5356 = vmul.f32 %v5352, %v3387
        %v5357 = vmul.f32 %v5352, %v3366
        %v5358 = vmul.f32 %v5352, %v3392
        %v5359 = vmul.f32 %v5352, %v3388
        %v5360 = vmul.f32 %v5352, %v3369
        %v5361 = vmul.f32 %v5352, %v3393
        %v5362 = vmul.f32 %v5352, %v3384
        %v5363 = vmul.f32 %v5352, %v3357
        %v5364 = vmul.f32 %v5352, %v3389
        %v5365 = vstv %s3328
        %v5366 = vmul.f32 %v5365, %v3427
        %v5367 = vmul.f32 %v5365, %v3407
        %v5368 = vmul.f32 %v5365, %v3431
        %v5369 = vmul.f32 %v5365, %v3428
        %v5370 = vmul.f32 %v5365, %v3410
        %v5371 = vmul.f32 %v5365, %v3432
        %v5372 = vmul.f32 %v5365, %v3429
        %v5373 = vmul.f32 %v5365, %v3413
        %v5374 = vmul.f32 %v5365, %v3433
        %v5375 = vmul.f32 %v5365, %v3384
        %v5376 = vmul.f32 %v5365, %v3357
        %v5377 = vmul.f32 %v5365, %v3389
        %v5378 = vadd.f32 %v5353, %v5366
        %v5379 = vadd.f32 %v5354, %v5367
        %v5380 = vadd.f32 %v5355, %v5368
        %v5381 = vadd.f32 %v5356, %v5369
        %v5382 = vadd.f32 %v5357, %v5370
        %v5383 = vadd.f32 %v5358, %v5371
        %v5384 = vadd.f32 %v5359, %v5372
        %v5385 = vadd.f32 %v5360, %v5373
        %v5386 = vadd.f32 %v5361, %v5374
        %v5387 = vadd.f32 %v5362, %v5375
        %v5388 = vadd.f32 %v5363, %v5376
        %v5389 = vadd.f32 %v5364, %v5377
        %v5402 = vrot.slane %v5378, 2
        %v5403 = vrot.slane %v5379, 2
        %v5404 = vsel %vm672, %v5402, %v5403
        %v5405 = vrot.slane %v5380, 2
        %v5406 = vsel %vm672, %v5403, %v5405
        %v5407 = vrot.slane %v5381, 2
        %v5408 = vrot.slane %v5382, 2
        %v5409 = vsel %vm672, %v5407, %v5408
        %v5410 = vrot.slane %v5383, 2
        %v5411 = vsel %vm672, %v5408, %v5410
        %v5412 = vrot.slane %v5384, 2
        %v5413 = vrot.slane %v5385, 2
        %v5414 = vsel %vm672, %v5412, %v5413
        %v5415 = vrot.slane %v5386, 2
        %v5416 = vsel %vm672, %v5413, %v5415
        %v5417 = vrot.slane %v5387, 2
        %v5418 = vrot.slane %v5388, 2
        %v5419 = vsel %vm672, %v5417, %v5418
        %v5420 = vrot.slane %v5389, 2
        %v5421 = vsel %vm672, %v5418, %v5420
        %v5430 = vadd.f32 %v5344, %v5404
        %v5431 = vadd.f32 %v5345, %v5406
        %v5432 = vadd.f32 %v5346, %v5409
        %v5433 = vadd.f32 %v5347, %v5411
        %v5434 = vadd.f32 %v5348, %v5414
        %v5435 = vadd.f32 %v5349, %v5416
        %v5436 = vadd.f32 %v5350, %v5419
        %v5437 = vadd.f32 %v5351, %v5421
        %v5438 = vstv %s3280
        %v5439 = vmul.f32 %v5438, %v3386
        %v5440 = vmul.f32 %v5438, %v3363
        %v5441 = vmul.f32 %v5438, %v3391
        %v5442 = vmul.f32 %v5438, %v3387
        %v5443 = vmul.f32 %v5438, %v3366
        %v5444 = vmul.f32 %v5438, %v3392
        %v5445 = vmul.f32 %v5438, %v3388
        %v5446 = vmul.f32 %v5438, %v3369
        %v5447 = vmul.f32 %v5438, %v3393
        %v5448 = vmul.f32 %v5438, %v3384
        %v5449 = vmul.f32 %v5438, %v3357
        %v5450 = vmul.f32 %v5438, %v3389
        %v5451 = vstv %s3329
        %v5452 = vmul.f32 %v5451, %v3427
        %v5453 = vmul.f32 %v5451, %v3407
        %v5454 = vmul.f32 %v5451, %v3431
        %v5455 = vmul.f32 %v5451, %v3428
        %v5456 = vmul.f32 %v5451, %v3410
        %v5457 = vmul.f32 %v5451, %v3432
        %v5458 = vmul.f32 %v5451, %v3429
        %v5459 = vmul.f32 %v5451, %v3413
        %v5460 = vmul.f32 %v5451, %v3433
        %v5461 = vmul.f32 %v5451, %v3384
        %v5462 = vmul.f32 %v5451, %v3357
        %v5463 = vmul.f32 %v5451, %v3389
        %v5464 = vadd.f32 %v5439, %v5452
        %v5465 = vadd.f32 %v5440, %v5453
        %v5466 = vadd.f32 %v5441, %v5454
        %v5467 = vadd.f32 %v5442, %v5455
        %v5468 = vadd.f32 %v5443, %v5456
        %v5469 = vadd.f32 %v5444, %v5457
        %v5470 = vadd.f32 %v5445, %v5458
        %v5471 = vadd.f32 %v5446, %v5459
        %v5472 = vadd.f32 %v5447, %v5460
        %v5473 = vadd.f32 %v5448, %v5461
        %v5474 = vadd.f32 %v5449, %v5462
        %v5475 = vadd.f32 %v5450, %v5463
        %v5488 = vrot.slane %v5464, 3
        %v5489 = vrot.slane %v5465, 3
        %v5490 = vsel %vm858, %v5488, %v5489
        %v5491 = vrot.slane %v5466, 3
        %v5492 = vsel %vm858, %v5489, %v5491
        %v5493 = vrot.slane %v5467, 3
        %v5494 = vrot.slane %v5468, 3
        %v5495 = vsel %vm858, %v5493, %v5494
        %v5496 = vrot.slane %v5469, 3
        %v5497 = vsel %vm858, %v5494, %v5496
        %v5498 = vrot.slane %v5470, 3
        %v5499 = vrot.slane %v5471, 3
        %v5500 = vsel %vm858, %v5498, %v5499
        %v5501 = vrot.slane %v5472, 3
        %v5502 = vsel %vm858, %v5499, %v5501
        %v5503 = vrot.slane %v5473, 3
        %v5504 = vrot.slane %v5474, 3
        %v5505 = vsel %vm858, %v5503, %v5504
        %v5506 = vrot.slane %v5475, 3
        %v5507 = vsel %vm858, %v5504, %v5506
        %v5516 = vadd.f32 %v5430, %v5490
        %v5517 = vadd.f32 %v5431, %v5492
        %v5518 = vadd.f32 %v5432, %v5495
        %v5519 = vadd.f32 %v5433, %v5497
        %v5520 = vadd.f32 %v5434, %v5500
        %v5521 = vadd.f32 %v5435, %v5502
        %v5522 = vadd.f32 %v5436, %v5505
        %v5523 = vadd.f32 %v5437, %v5507
        %v5524 = vstv %s3281
        %v5525 = vmul.f32 %v5524, %v3386
        %v5526 = vmul.f32 %v5524, %v3363
        %v5527 = vmul.f32 %v5524, %v3391
        %v5528 = vmul.f32 %v5524, %v3387
        %v5529 = vmul.f32 %v5524, %v3366
        %v5530 = vmul.f32 %v5524, %v3392
        %v5531 = vmul.f32 %v5524, %v3388
        %v5532 = vmul.f32 %v5524, %v3369
        %v5533 = vmul.f32 %v5524, %v3393
        %v5534 = vmul.f32 %v5524, %v3384
        %v5535 = vmul.f32 %v5524, %v3357
        %v5536 = vmul.f32 %v5524, %v3389
        %v5537 = vstv %s3330
        %v5538 = vmul.f32 %v5537, %v3427
        %v5539 = vmul.f32 %v5537, %v3407
        %v5540 = vmul.f32 %v5537, %v3431
        %v5541 = vmul.f32 %v5537, %v3428
        %v5542 = vmul.f32 %v5537, %v3410
        %v5543 = vmul.f32 %v5537, %v3432
        %v5544 = vmul.f32 %v5537, %v3429
        %v5545 = vmul.f32 %v5537, %v3413
        %v5546 = vmul.f32 %v5537, %v3433
        %v5547 = vmul.f32 %v5537, %v3384
        %v5548 = vmul.f32 %v5537, %v3357
        %v5549 = vmul.f32 %v5537, %v3389
        %v5550 = vadd.f32 %v5525, %v5538
        %v5551 = vadd.f32 %v5526, %v5539
        %v5552 = vadd.f32 %v5527, %v5540
        %v5553 = vadd.f32 %v5528, %v5541
        %v5554 = vadd.f32 %v5529, %v5542
        %v5555 = vadd.f32 %v5530, %v5543
        %v5556 = vadd.f32 %v5531, %v5544
        %v5557 = vadd.f32 %v5532, %v5545
        %v5558 = vadd.f32 %v5533, %v5546
        %v5559 = vadd.f32 %v5534, %v5547
        %v5560 = vadd.f32 %v5535, %v5548
        %v5561 = vadd.f32 %v5536, %v5549
        %v5574 = vrot.slane %v5550, 4
        %v5575 = vrot.slane %v5551, 4
        %v5576 = vsel %vm1044, %v5574, %v5575
        %v5577 = vrot.slane %v5552, 4
        %v5578 = vsel %vm1044, %v5575, %v5577
        %v5579 = vrot.slane %v5553, 4
        %v5580 = vrot.slane %v5554, 4
        %v5581 = vsel %vm1044, %v5579, %v5580
        %v5582 = vrot.slane %v5555, 4
        %v5583 = vsel %vm1044, %v5580, %v5582
        %v5584 = vrot.slane %v5556, 4
        %v5585 = vrot.slane %v5557, 4
        %v5586 = vsel %vm1044, %v5584, %v5585
        %v5587 = vrot.slane %v5558, 4
        %v5588 = vsel %vm1044, %v5585, %v5587
        %v5589 = vrot.slane %v5559, 4
        %v5590 = vrot.slane %v5560, 4
        %v5591 = vsel %vm1044, %v5589, %v5590
        %v5592 = vrot.slane %v5561, 4
        %v5593 = vsel %vm1044, %v5590, %v5592
        %v5602 = vadd.f32 %v5516, %v5576
        %v5603 = vadd.f32 %v5517, %v5578
        %v5604 = vadd.f32 %v5518, %v5581
        %v5605 = vadd.f32 %v5519, %v5583
        %v5606 = vadd.f32 %v5520, %v5586
        %v5607 = vadd.f32 %v5521, %v5588
        %v5608 = vadd.f32 %v5522, %v5591
        %v5609 = vadd.f32 %v5523, %v5593
        %v5610 = vstv %s3282
        %v5611 = vmul.f32 %v5610, %v3386
        %v5612 = vmul.f32 %v5610, %v3363
        %v5613 = vmul.f32 %v5610, %v3391
        %v5614 = vmul.f32 %v5610, %v3387
        %v5615 = vmul.f32 %v5610, %v3366
        %v5616 = vmul.f32 %v5610, %v3392
        %v5617 = vmul.f32 %v5610, %v3388
        %v5618 = vmul.f32 %v5610, %v3369
        %v5619 = vmul.f32 %v5610, %v3393
        %v5620 = vmul.f32 %v5610, %v3384
        %v5621 = vmul.f32 %v5610, %v3357
        %v5622 = vmul.f32 %v5610, %v3389
        %v5623 = vstv %s3331
        %v5624 = vmul.f32 %v5623, %v3427
        %v5625 = vmul.f32 %v5623, %v3407
        %v5626 = vmul.f32 %v5623, %v3431
        %v5627 = vmul.f32 %v5623, %v3428
        %v5628 = vmul.f32 %v5623, %v3410
        %v5629 = vmul.f32 %v5623, %v3432
        %v5630 = vmul.f32 %v5623, %v3429
        %v5631 = vmul.f32 %v5623, %v3413
        %v5632 = vmul.f32 %v5623, %v3433
        %v5633 = vmul.f32 %v5623, %v3384
        %v5634 = vmul.f32 %v5623, %v3357
        %v5635 = vmul.f32 %v5623, %v3389
        %v5636 = vadd.f32 %v5611, %v5624
        %v5637 = vadd.f32 %v5612, %v5625
        %v5638 = vadd.f32 %v5613, %v5626
        %v5639 = vadd.f32 %v5614, %v5627
        %v5640 = vadd.f32 %v5615, %v5628
        %v5641 = vadd.f32 %v5616, %v5629
        %v5642 = vadd.f32 %v5617, %v5630
        %v5643 = vadd.f32 %v5618, %v5631
        %v5644 = vadd.f32 %v5619, %v5632
        %v5645 = vadd.f32 %v5620, %v5633
        %v5646 = vadd.f32 %v5621, %v5634
        %v5647 = vadd.f32 %v5622, %v5635
        %v5660 = vrot.slane %v5636, 5
        %v5661 = vrot.slane %v5637, 5
        %v5662 = vsel %vm301, %v5660, %v5661
        %v5663 = vrot.slane %v5638, 5
        %v5664 = vsel %vm301, %v5661, %v5663
        %v5665 = vrot.slane %v5639, 5
        %v5666 = vrot.slane %v5640, 5
        %v5667 = vsel %vm301, %v5665, %v5666
        %v5668 = vrot.slane %v5641, 5
        %v5669 = vsel %vm301, %v5666, %v5668
        %v5670 = vrot.slane %v5642, 5
        %v5671 = vrot.slane %v5643, 5
        %v5672 = vsel %vm301, %v5670, %v5671
        %v5673 = vrot.slane %v5644, 5
        %v5674 = vsel %vm301, %v5671, %v5673
        %v5675 = vrot.slane %v5645, 5
        %v5676 = vrot.slane %v5646, 5
        %v5677 = vsel %vm301, %v5675, %v5676
        %v5678 = vrot.slane %v5647, 5
        %v5679 = vsel %vm301, %v5676, %v5678
        %v5688 = vadd.f32 %v5602, %v5662
        %v5689 = vadd.f32 %v5603, %v5664
        %v5690 = vadd.f32 %v5604, %v5667
        %v5691 = vadd.f32 %v5605, %v5669
        %v5692 = vadd.f32 %v5606, %v5672
        %v5693 = vadd.f32 %v5607, %v5674
        %v5694 = vadd.f32 %v5608, %v5677
        %v5695 = vadd.f32 %v5609, %v5679
        %v5696 = vstv %s3283
        %v5697 = vmul.f32 %v5696, %v3386
        %v5698 = vmul.f32 %v5696, %v3363
        %v5699 = vmul.f32 %v5696, %v3391
        %v5700 = vmul.f32 %v5696, %v3387
        %v5701 = vmul.f32 %v5696, %v3366
        %v5702 = vmul.f32 %v5696, %v3392
        %v5703 = vmul.f32 %v5696, %v3388
        %v5704 = vmul.f32 %v5696, %v3369
        %v5705 = vmul.f32 %v5696, %v3393
        %v5706 = vmul.f32 %v5696, %v3384
        %v5707 = vmul.f32 %v5696, %v3357
        %v5708 = vmul.f32 %v5696, %v3389
        %v5709 = vstv %s3332
        %v5710 = vmul.f32 %v5709, %v3427
        %v5711 = vmul.f32 %v5709, %v3407
        %v5712 = vmul.f32 %v5709, %v3431
        %v5713 = vmul.f32 %v5709, %v3428
        %v5714 = vmul.f32 %v5709, %v3410
        %v5715 = vmul.f32 %v5709, %v3432
        %v5716 = vmul.f32 %v5709, %v3429
        %v5717 = vmul.f32 %v5709, %v3413
        %v5718 = vmul.f32 %v5709, %v3433
        %v5719 = vmul.f32 %v5709, %v3384
        %v5720 = vmul.f32 %v5709, %v3357
        %v5721 = vmul.f32 %v5709, %v3389
        %v5722 = vadd.f32 %v5697, %v5710
        %v5723 = vadd.f32 %v5698, %v5711
        %v5724 = vadd.f32 %v5699, %v5712
        %v5725 = vadd.f32 %v5700, %v5713
        %v5726 = vadd.f32 %v5701, %v5714
        %v5727 = vadd.f32 %v5702, %v5715
        %v5728 = vadd.f32 %v5703, %v5716
        %v5729 = vadd.f32 %v5704, %v5717
        %v5730 = vadd.f32 %v5705, %v5718
        %v5731 = vadd.f32 %v5706, %v5719
        %v5732 = vadd.f32 %v5707, %v5720
        %v5733 = vadd.f32 %v5708, %v5721
        %v5746 = vrot.slane %v5722, 6
        %v5747 = vrot.slane %v5723, 6
        %v5748 = vsel %vm1415, %v5746, %v5747
        %v5749 = vrot.slane %v5724, 6
        %v5750 = vsel %vm1415, %v5747, %v5749
        %v5751 = vrot.slane %v5725, 6
        %v5752 = vrot.slane %v5726, 6
        %v5753 = vsel %vm1415, %v5751, %v5752
        %v5754 = vrot.slane %v5727, 6
        %v5755 = vsel %vm1415, %v5752, %v5754
        %v5756 = vrot.slane %v5728, 6
        %v5757 = vrot.slane %v5729, 6
        %v5758 = vsel %vm1415, %v5756, %v5757
        %v5759 = vrot.slane %v5730, 6
        %v5760 = vsel %vm1415, %v5757, %v5759
        %v5761 = vrot.slane %v5731, 6
        %v5762 = vrot.slane %v5732, 6
        %v5763 = vsel %vm1415, %v5761, %v5762
        %v5764 = vrot.slane %v5733, 6
        %v5765 = vsel %vm1415, %v5762, %v5764
        %v5774 = vadd.f32 %v5688, %v5748
        %v5775 = vadd.f32 %v5689, %v5750
        %v5776 = vadd.f32 %v5690, %v5753
        %v5777 = vadd.f32 %v5691, %v5755
        %v5778 = vadd.f32 %v5692, %v5758
        %v5779 = vadd.f32 %v5693, %v5760
        %v5780 = vadd.f32 %v5694, %v5763
        %v5781 = vadd.f32 %v5695, %v5765
        %v5782 = vstv %s3284
        %v5783 = vmul.f32 %v5782, %v3387
        %v5784 = vmul.f32 %v5782, %v3366
        %v5785 = vmul.f32 %v5782, %v3388
        %v5786 = vmul.f32 %v5782, %v3369
        %v5787 = vmul.f32 %v5782, %v3384
        %v5788 = vmul.f32 %v5782, %v3357
        %v5789 = vstv %s3333
        %v5790 = vmul.f32 %v5789, %v3428
        %v5791 = vmul.f32 %v5789, %v3410
        %v5792 = vmul.f32 %v5789, %v3429
        %v5793 = vmul.f32 %v5789, %v3413
        %v5794 = vmul.f32 %v5789, %v3384
        %v5795 = vmul.f32 %v5789, %v3357
        %v5796 = vadd.f32 %v5783, %v5790
        %v5797 = vadd.f32 %v5784, %v5791
        %v5798 = vadd.f32 %v5785, %v5792
        %v5799 = vadd.f32 %v5786, %v5793
        %v5800 = vadd.f32 %v5787, %v5794
        %v5801 = vadd.f32 %v5788, %v5795
        %v5802 = vadd.f32 %v5774, %v5796
        %v5803 = vadd.f32 %v5775, %v5797
        %v5804 = vadd.f32 %v5776, %v5798
        %v5805 = vadd.f32 %v5777, %v5799
        %v5806 = vadd.f32 %v5778, %v5800
        %v5807 = vadd.f32 %v5779, %v5801
        %v5808 = vadd.f32 %v5780, %v5800
        %v5809 = vadd.f32 %v5781, %v5801
        %v5810 = vstv %s3285
        %v5811 = vmul.f32 %v5810, %v3387
        %v5812 = vmul.f32 %v5810, %v3366
        %v5813 = vmul.f32 %v5810, %v3392
        %v5814 = vmul.f32 %v5810, %v3388
        %v5815 = vmul.f32 %v5810, %v3369
        %v5816 = vmul.f32 %v5810, %v3393
        %v5817 = vmul.f32 %v5810, %v3384
        %v5818 = vmul.f32 %v5810, %v3357
        %v5819 = vmul.f32 %v5810, %v3389
        %v5820 = vstv %s3334
        %v5821 = vmul.f32 %v5820, %v3428
        %v5822 = vmul.f32 %v5820, %v3410
        %v5823 = vmul.f32 %v5820, %v3432
        %v5824 = vmul.f32 %v5820, %v3429
        %v5825 = vmul.f32 %v5820, %v3413
        %v5826 = vmul.f32 %v5820, %v3433
        %v5827 = vmul.f32 %v5820, %v3384
        %v5828 = vmul.f32 %v5820, %v3357
        %v5829 = vmul.f32 %v5820, %v3389
        %v5830 = vadd.f32 %v5811, %v5821
        %v5831 = vadd.f32 %v5812, %v5822
        %v5832 = vadd.f32 %v5813, %v5823
        %v5833 = vadd.f32 %v5814, %v5824
        %v5834 = vadd.f32 %v5815, %v5825
        %v5835 = vadd.f32 %v5816, %v5826
        %v5836 = vadd.f32 %v5817, %v5827
        %v5837 = vadd.f32 %v5818, %v5828
        %v5838 = vadd.f32 %v5819, %v5829
        %v5848 = vrot.slane %v5830, 1
        %v5849 = vrot.slane %v5831, 1
        %v5850 = vsel %vm486, %v5848, %v5849
        %v5851 = vrot.slane %v5832, 1
        %v5852 = vsel %vm486, %v5849, %v5851
        %v5853 = vrot.slane %v5833, 1
        %v5854 = vrot.slane %v5834, 1
        %v5855 = vsel %vm486, %v5853, %v5854
        %v5856 = vrot.slane %v5835, 1
        %v5857 = vsel %vm486, %v5854, %v5856
        %v5858 = vrot.slane %v5836, 1
        %v5859 = vrot.slane %v5837, 1
        %v5860 = vsel %vm486, %v5858, %v5859
        %v5861 = vrot.slane %v5838, 1
        %v5862 = vsel %vm486, %v5859, %v5861
        %v5869 = vadd.f32 %v5802, %v5850
        %v5870 = vadd.f32 %v5803, %v5852
        %v5871 = vadd.f32 %v5804, %v5855
        %v5872 = vadd.f32 %v5805, %v5857
        %v5873 = vadd.f32 %v5806, %v5860
        %v5874 = vadd.f32 %v5807, %v5862
        %v5875 = vadd.f32 %v5808, %v5860
        %v5876 = vadd.f32 %v5809, %v5862
        %v5877 = vstv %s3286
        %v5878 = vmul.f32 %v5877, %v3387
        %v5879 = vmul.f32 %v5877, %v3366
        %v5880 = vmul.f32 %v5877, %v3392
        %v5881 = vmul.f32 %v5877, %v3388
        %v5882 = vmul.f32 %v5877, %v3369
        %v5883 = vmul.f32 %v5877, %v3393
        %v5884 = vmul.f32 %v5877, %v3384
        %v5885 = vmul.f32 %v5877, %v3357
        %v5886 = vmul.f32 %v5877, %v3389
        %v5887 = vstv %s3335
        %v5888 = vmul.f32 %v5887, %v3428
        %v5889 = vmul.f32 %v5887, %v3410
        %v5890 = vmul.f32 %v5887, %v3432
        %v5891 = vmul.f32 %v5887, %v3429
        %v5892 = vmul.f32 %v5887, %v3413
        %v5893 = vmul.f32 %v5887, %v3433
        %v5894 = vmul.f32 %v5887, %v3384
        %v5895 = vmul.f32 %v5887, %v3357
        %v5896 = vmul.f32 %v5887, %v3389
        %v5897 = vadd.f32 %v5878, %v5888
        %v5898 = vadd.f32 %v5879, %v5889
        %v5899 = vadd.f32 %v5880, %v5890
        %v5900 = vadd.f32 %v5881, %v5891
        %v5901 = vadd.f32 %v5882, %v5892
        %v5902 = vadd.f32 %v5883, %v5893
        %v5903 = vadd.f32 %v5884, %v5894
        %v5904 = vadd.f32 %v5885, %v5895
        %v5905 = vadd.f32 %v5886, %v5896
        %v5915 = vrot.slane %v5897, 2
        %v5916 = vrot.slane %v5898, 2
        %v5917 = vsel %vm672, %v5915, %v5916
        %v5918 = vrot.slane %v5899, 2
        %v5919 = vsel %vm672, %v5916, %v5918
        %v5920 = vrot.slane %v5900, 2
        %v5921 = vrot.slane %v5901, 2
        %v5922 = vsel %vm672, %v5920, %v5921
        %v5923 = vrot.slane %v5902, 2
        %v5924 = vsel %vm672, %v5921, %v5923
        %v5925 = vrot.slane %v5903, 2
        %v5926 = vrot.slane %v5904, 2
        %v5927 = vsel %vm672, %v5925, %v5926
        %v5928 = vrot.slane %v5905, 2
        %v5929 = vsel %vm672, %v5926, %v5928
        %v5936 = vadd.f32 %v5869, %v5917
        %v5937 = vadd.f32 %v5870, %v5919
        %v5938 = vadd.f32 %v5871, %v5922
        %v5939 = vadd.f32 %v5872, %v5924
        %v5940 = vadd.f32 %v5873, %v5927
        %v5941 = vadd.f32 %v5874, %v5929
        %v5942 = vadd.f32 %v5875, %v5927
        %v5943 = vadd.f32 %v5876, %v5929
        %v5944 = vstv %s3287
        %v5945 = vmul.f32 %v5944, %v3387
        %v5946 = vmul.f32 %v5944, %v3366
        %v5947 = vmul.f32 %v5944, %v3392
        %v5948 = vmul.f32 %v5944, %v3388
        %v5949 = vmul.f32 %v5944, %v3369
        %v5950 = vmul.f32 %v5944, %v3393
        %v5951 = vmul.f32 %v5944, %v3384
        %v5952 = vmul.f32 %v5944, %v3357
        %v5953 = vmul.f32 %v5944, %v3389
        %v5954 = vstv %s3336
        %v5955 = vmul.f32 %v5954, %v3428
        %v5956 = vmul.f32 %v5954, %v3410
        %v5957 = vmul.f32 %v5954, %v3432
        %v5958 = vmul.f32 %v5954, %v3429
        %v5959 = vmul.f32 %v5954, %v3413
        %v5960 = vmul.f32 %v5954, %v3433
        %v5961 = vmul.f32 %v5954, %v3384
        %v5962 = vmul.f32 %v5954, %v3357
        %v5963 = vmul.f32 %v5954, %v3389
        %v5964 = vadd.f32 %v5945, %v5955
        %v5965 = vadd.f32 %v5946, %v5956
        %v5966 = vadd.f32 %v5947, %v5957
        %v5967 = vadd.f32 %v5948, %v5958
        %v5968 = vadd.f32 %v5949, %v5959
        %v5969 = vadd.f32 %v5950, %v5960
        %v5970 = vadd.f32 %v5951, %v5961
        %v5971 = vadd.f32 %v5952, %v5962
        %v5972 = vadd.f32 %v5953, %v5963
        %v5982 = vrot.slane %v5964, 3
        %v5983 = vrot.slane %v5965, 3
        %v5984 = vsel %vm858, %v5982, %v5983
        %v5985 = vrot.slane %v5966, 3
        %v5986 = vsel %vm858, %v5983, %v5985
        %v5987 = vrot.slane %v5967, 3
        %v5988 = vrot.slane %v5968, 3
        %v5989 = vsel %vm858, %v5987, %v5988
        %v5990 = vrot.slane %v5969, 3
        %v5991 = vsel %vm858, %v5988, %v5990
        %v5992 = vrot.slane %v5970, 3
        %v5993 = vrot.slane %v5971, 3
        %v5994 = vsel %vm858, %v5992, %v5993
        %v5995 = vrot.slane %v5972, 3
        %v5996 = vsel %vm858, %v5993, %v5995
        %v6003 = vadd.f32 %v5936, %v5984
        %v6004 = vadd.f32 %v5937, %v5986
        %v6005 = vadd.f32 %v5938, %v5989
        %v6006 = vadd.f32 %v5939, %v5991
        %v6007 = vadd.f32 %v5940, %v5994
        %v6008 = vadd.f32 %v5941, %v5996
        %v6009 = vadd.f32 %v5942, %v5994
        %v6010 = vadd.f32 %v5943, %v5996
        %v6011 = vstv %s3288
        %v6012 = vmul.f32 %v6011, %v3387
        %v6013 = vmul.f32 %v6011, %v3366
        %v6014 = vmul.f32 %v6011, %v3392
        %v6015 = vmul.f32 %v6011, %v3388
        %v6016 = vmul.f32 %v6011, %v3369
        %v6017 = vmul.f32 %v6011, %v3393
        %v6018 = vmul.f32 %v6011, %v3384
        %v6019 = vmul.f32 %v6011, %v3357
        %v6020 = vmul.f32 %v6011, %v3389
        %v6021 = vstv %s3337
        %v6022 = vmul.f32 %v6021, %v3428
        %v6023 = vmul.f32 %v6021, %v3410
        %v6024 = vmul.f32 %v6021, %v3432
        %v6025 = vmul.f32 %v6021, %v3429
        %v6026 = vmul.f32 %v6021, %v3413
        %v6027 = vmul.f32 %v6021, %v3433
        %v6028 = vmul.f32 %v6021, %v3384
        %v6029 = vmul.f32 %v6021, %v3357
        %v6030 = vmul.f32 %v6021, %v3389
        %v6031 = vadd.f32 %v6012, %v6022
        %v6032 = vadd.f32 %v6013, %v6023
        %v6033 = vadd.f32 %v6014, %v6024
        %v6034 = vadd.f32 %v6015, %v6025
        %v6035 = vadd.f32 %v6016, %v6026
        %v6036 = vadd.f32 %v6017, %v6027
        %v6037 = vadd.f32 %v6018, %v6028
        %v6038 = vadd.f32 %v6019, %v6029
        %v6039 = vadd.f32 %v6020, %v6030
        %v6049 = vrot.slane %v6031, 4
        %v6050 = vrot.slane %v6032, 4
        %v6051 = vsel %vm1044, %v6049, %v6050
        %v6052 = vrot.slane %v6033, 4
        %v6053 = vsel %vm1044, %v6050, %v6052
        %v6054 = vrot.slane %v6034, 4
        %v6055 = vrot.slane %v6035, 4
        %v6056 = vsel %vm1044, %v6054, %v6055
        %v6057 = vrot.slane %v6036, 4
        %v6058 = vsel %vm1044, %v6055, %v6057
        %v6059 = vrot.slane %v6037, 4
        %v6060 = vrot.slane %v6038, 4
        %v6061 = vsel %vm1044, %v6059, %v6060
        %v6062 = vrot.slane %v6039, 4
        %v6063 = vsel %vm1044, %v6060, %v6062
        %v6070 = vadd.f32 %v6003, %v6051
        %v6071 = vadd.f32 %v6004, %v6053
        %v6072 = vadd.f32 %v6005, %v6056
        %v6073 = vadd.f32 %v6006, %v6058
        %v6074 = vadd.f32 %v6007, %v6061
        %v6075 = vadd.f32 %v6008, %v6063
        %v6076 = vadd.f32 %v6009, %v6061
        %v6077 = vadd.f32 %v6010, %v6063
        %v6078 = vstv %s3289
        %v6079 = vmul.f32 %v6078, %v3387
        %v6080 = vmul.f32 %v6078, %v3366
        %v6081 = vmul.f32 %v6078, %v3392
        %v6082 = vmul.f32 %v6078, %v3388
        %v6083 = vmul.f32 %v6078, %v3369
        %v6084 = vmul.f32 %v6078, %v3393
        %v6085 = vmul.f32 %v6078, %v3384
        %v6086 = vmul.f32 %v6078, %v3357
        %v6087 = vmul.f32 %v6078, %v3389
        %v6088 = vstv %s3338
        %v6089 = vmul.f32 %v6088, %v3428
        %v6090 = vmul.f32 %v6088, %v3410
        %v6091 = vmul.f32 %v6088, %v3432
        %v6092 = vmul.f32 %v6088, %v3429
        %v6093 = vmul.f32 %v6088, %v3413
        %v6094 = vmul.f32 %v6088, %v3433
        %v6095 = vmul.f32 %v6088, %v3384
        %v6096 = vmul.f32 %v6088, %v3357
        %v6097 = vmul.f32 %v6088, %v3389
        %v6098 = vadd.f32 %v6079, %v6089
        %v6099 = vadd.f32 %v6080, %v6090
        %v6100 = vadd.f32 %v6081, %v6091
        %v6101 = vadd.f32 %v6082, %v6092
        %v6102 = vadd.f32 %v6083, %v6093
        %v6103 = vadd.f32 %v6084, %v6094
        %v6104 = vadd.f32 %v6085, %v6095
        %v6105 = vadd.f32 %v6086, %v6096
        %v6106 = vadd.f32 %v6087, %v6097
        %v6116 = vrot.slane %v6098, 5
        %v6117 = vrot.slane %v6099, 5
        %v6118 = vsel %vm301, %v6116, %v6117
        %v6119 = vrot.slane %v6100, 5
        %v6120 = vsel %vm301, %v6117, %v6119
        %v6121 = vrot.slane %v6101, 5
        %v6122 = vrot.slane %v6102, 5
        %v6123 = vsel %vm301, %v6121, %v6122
        %v6124 = vrot.slane %v6103, 5
        %v6125 = vsel %vm301, %v6122, %v6124
        %v6126 = vrot.slane %v6104, 5
        %v6127 = vrot.slane %v6105, 5
        %v6128 = vsel %vm301, %v6126, %v6127
        %v6129 = vrot.slane %v6106, 5
        %v6130 = vsel %vm301, %v6127, %v6129
        %v6137 = vadd.f32 %v6070, %v6118
        %v6138 = vadd.f32 %v6071, %v6120
        %v6139 = vadd.f32 %v6072, %v6123
        %v6140 = vadd.f32 %v6073, %v6125
        %v6141 = vadd.f32 %v6074, %v6128
        %v6142 = vadd.f32 %v6075, %v6130
        %v6143 = vadd.f32 %v6076, %v6128
        %v6144 = vadd.f32 %v6077, %v6130
        %v6145 = vstv %s3290
        %v6146 = vmul.f32 %v6145, %v3387
        %v6147 = vmul.f32 %v6145, %v3366
        %v6148 = vmul.f32 %v6145, %v3392
        %v6149 = vmul.f32 %v6145, %v3388
        %v6150 = vmul.f32 %v6145, %v3369
        %v6151 = vmul.f32 %v6145, %v3393
        %v6152 = vmul.f32 %v6145, %v3384
        %v6153 = vmul.f32 %v6145, %v3357
        %v6154 = vmul.f32 %v6145, %v3389
        %v6155 = vstv %s3339
        %v6156 = vmul.f32 %v6155, %v3428
        %v6157 = vmul.f32 %v6155, %v3410
        %v6158 = vmul.f32 %v6155, %v3432
        %v6159 = vmul.f32 %v6155, %v3429
        %v6160 = vmul.f32 %v6155, %v3413
        %v6161 = vmul.f32 %v6155, %v3433
        %v6162 = vmul.f32 %v6155, %v3384
        %v6163 = vmul.f32 %v6155, %v3357
        %v6164 = vmul.f32 %v6155, %v3389
        %v6165 = vadd.f32 %v6146, %v6156
        %v6166 = vadd.f32 %v6147, %v6157
        %v6167 = vadd.f32 %v6148, %v6158
        %v6168 = vadd.f32 %v6149, %v6159
        %v6169 = vadd.f32 %v6150, %v6160
        %v6170 = vadd.f32 %v6151, %v6161
        %v6171 = vadd.f32 %v6152, %v6162
        %v6172 = vadd.f32 %v6153, %v6163
        %v6173 = vadd.f32 %v6154, %v6164
        %v6183 = vrot.slane %v6165, 6
        %v6184 = vrot.slane %v6166, 6
        %v6185 = vsel %vm1415, %v6183, %v6184
        %v6186 = vrot.slane %v6167, 6
        %v6187 = vsel %vm1415, %v6184, %v6186
        %v6188 = vrot.slane %v6168, 6
        %v6189 = vrot.slane %v6169, 6
        %v6190 = vsel %vm1415, %v6188, %v6189
        %v6191 = vrot.slane %v6170, 6
        %v6192 = vsel %vm1415, %v6189, %v6191
        %v6193 = vrot.slane %v6171, 6
        %v6194 = vrot.slane %v6172, 6
        %v6195 = vsel %vm1415, %v6193, %v6194
        %v6196 = vrot.slane %v6173, 6
        %v6197 = vsel %vm1415, %v6194, %v6196
        %v6204 = vadd.f32 %v6137, %v6185
        %v6205 = vadd.f32 %v6138, %v6187
        %v6206 = vadd.f32 %v6139, %v6190
        %v6207 = vadd.f32 %v6140, %v6192
        %v6208 = vadd.f32 %v6141, %v6195
        %v6209 = vadd.f32 %v6142, %v6197
        %v6210 = vadd.f32 %v6143, %v6195
        %v6211 = vadd.f32 %v6144, %v6197
        %v6212 = vstv %s3291
        %v6213 = vmul.f32 %v6212, %v3388
        %v6214 = vmul.f32 %v6212, %v3369
        %v6215 = vmul.f32 %v6212, %v3384
        %v6216 = vmul.f32 %v6212, %v3357
        %v6217 = vstv %s3340
        %v6218 = vmul.f32 %v6217, %v3429
        %v6219 = vmul.f32 %v6217, %v3413
        %v6220 = vmul.f32 %v6217, %v3384
        %v6221 = vmul.f32 %v6217, %v3357
        %v6222 = vadd.f32 %v6213, %v6218
        %v6223 = vadd.f32 %v6214, %v6219
        %v6224 = vadd.f32 %v6215, %v6220
        %v6225 = vadd.f32 %v6216, %v6221
        %v6226 = vadd.f32 %v6204, %v6222
        %v6227 = vadd.f32 %v6205, %v6223
        %v6228 = vadd.f32 %v6206, %v6224
        %v6229 = vadd.f32 %v6207, %v6225
        %v6230 = vadd.f32 %v6208, %v6224
        %v6231 = vadd.f32 %v6209, %v6225
        %v6232 = vadd.f32 %v6210, %v6224
        %v6233 = vadd.f32 %v6211, %v6225
        %v6234 = vstv %s3292
        %v6235 = vmul.f32 %v6234, %v3388
        %v6236 = vmul.f32 %v6234, %v3369
        %v6237 = vmul.f32 %v6234, %v3393
        %v6238 = vmul.f32 %v6234, %v3384
        %v6239 = vmul.f32 %v6234, %v3357
        %v6240 = vmul.f32 %v6234, %v3389
        %v6241 = vstv %s3341
        %v6242 = vmul.f32 %v6241, %v3429
        %v6243 = vmul.f32 %v6241, %v3413
        %v6244 = vmul.f32 %v6241, %v3433
        %v6245 = vmul.f32 %v6241, %v3384
        %v6246 = vmul.f32 %v6241, %v3357
        %v6247 = vmul.f32 %v6241, %v3389
        %v6248 = vadd.f32 %v6235, %v6242
        %v6249 = vadd.f32 %v6236, %v6243
        %v6250 = vadd.f32 %v6237, %v6244
        %v6251 = vadd.f32 %v6238, %v6245
        %v6252 = vadd.f32 %v6239, %v6246
        %v6253 = vadd.f32 %v6240, %v6247
        %v6260 = vrot.slane %v6248, 1
        %v6261 = vrot.slane %v6249, 1
        %v6262 = vsel %vm486, %v6260, %v6261
        %v6263 = vrot.slane %v6250, 1
        %v6264 = vsel %vm486, %v6261, %v6263
        %v6265 = vrot.slane %v6251, 1
        %v6266 = vrot.slane %v6252, 1
        %v6267 = vsel %vm486, %v6265, %v6266
        %v6268 = vrot.slane %v6253, 1
        %v6269 = vsel %vm486, %v6266, %v6268
        %v6274 = vadd.f32 %v6226, %v6262
        %v6275 = vadd.f32 %v6227, %v6264
        %v6276 = vadd.f32 %v6228, %v6267
        %v6277 = vadd.f32 %v6229, %v6269
        %v6278 = vadd.f32 %v6230, %v6267
        %v6279 = vadd.f32 %v6231, %v6269
        %v6280 = vadd.f32 %v6232, %v6267
        %v6281 = vadd.f32 %v6233, %v6269
        %v6282 = vstv %s3293
        %v6283 = vmul.f32 %v6282, %v3388
        %v6284 = vmul.f32 %v6282, %v3369
        %v6285 = vmul.f32 %v6282, %v3393
        %v6286 = vmul.f32 %v6282, %v3384
        %v6287 = vmul.f32 %v6282, %v3357
        %v6288 = vmul.f32 %v6282, %v3389
        %v6289 = vstv %s3342
        %v6290 = vmul.f32 %v6289, %v3429
        %v6291 = vmul.f32 %v6289, %v3413
        %v6292 = vmul.f32 %v6289, %v3433
        %v6293 = vmul.f32 %v6289, %v3384
        %v6294 = vmul.f32 %v6289, %v3357
        %v6295 = vmul.f32 %v6289, %v3389
        %v6296 = vadd.f32 %v6283, %v6290
        %v6297 = vadd.f32 %v6284, %v6291
        %v6298 = vadd.f32 %v6285, %v6292
        %v6299 = vadd.f32 %v6286, %v6293
        %v6300 = vadd.f32 %v6287, %v6294
        %v6301 = vadd.f32 %v6288, %v6295
        %v6308 = vrot.slane %v6296, 2
        %v6309 = vrot.slane %v6297, 2
        %v6310 = vsel %vm672, %v6308, %v6309
        %v6311 = vrot.slane %v6298, 2
        %v6312 = vsel %vm672, %v6309, %v6311
        %v6313 = vrot.slane %v6299, 2
        %v6314 = vrot.slane %v6300, 2
        %v6315 = vsel %vm672, %v6313, %v6314
        %v6316 = vrot.slane %v6301, 2
        %v6317 = vsel %vm672, %v6314, %v6316
        %v6322 = vadd.f32 %v6274, %v6310
        %v6323 = vadd.f32 %v6275, %v6312
        %v6324 = vadd.f32 %v6276, %v6315
        %v6325 = vadd.f32 %v6277, %v6317
        %v6326 = vadd.f32 %v6278, %v6315
        %v6327 = vadd.f32 %v6279, %v6317
        %v6328 = vadd.f32 %v6280, %v6315
        %v6329 = vadd.f32 %v6281, %v6317
        %v6330 = vstv %s3294
        %v6331 = vmul.f32 %v6330, %v3388
        %v6332 = vmul.f32 %v6330, %v3369
        %v6333 = vmul.f32 %v6330, %v3393
        %v6334 = vmul.f32 %v6330, %v3384
        %v6335 = vmul.f32 %v6330, %v3357
        %v6336 = vmul.f32 %v6330, %v3389
        %v6337 = vstv %s3343
        %v6338 = vmul.f32 %v6337, %v3429
        %v6339 = vmul.f32 %v6337, %v3413
        %v6340 = vmul.f32 %v6337, %v3433
        %v6341 = vmul.f32 %v6337, %v3384
        %v6342 = vmul.f32 %v6337, %v3357
        %v6343 = vmul.f32 %v6337, %v3389
        %v6344 = vadd.f32 %v6331, %v6338
        %v6345 = vadd.f32 %v6332, %v6339
        %v6346 = vadd.f32 %v6333, %v6340
        %v6347 = vadd.f32 %v6334, %v6341
        %v6348 = vadd.f32 %v6335, %v6342
        %v6349 = vadd.f32 %v6336, %v6343
        %v6356 = vrot.slane %v6344, 3
        %v6357 = vrot.slane %v6345, 3
        %v6358 = vsel %vm858, %v6356, %v6357
        %v6359 = vrot.slane %v6346, 3
        %v6360 = vsel %vm858, %v6357, %v6359
        %v6361 = vrot.slane %v6347, 3
        %v6362 = vrot.slane %v6348, 3
        %v6363 = vsel %vm858, %v6361, %v6362
        %v6364 = vrot.slane %v6349, 3
        %v6365 = vsel %vm858, %v6362, %v6364
        %v6370 = vadd.f32 %v6322, %v6358
        %v6371 = vadd.f32 %v6323, %v6360
        %v6372 = vadd.f32 %v6324, %v6363
        %v6373 = vadd.f32 %v6325, %v6365
        %v6374 = vadd.f32 %v6326, %v6363
        %v6375 = vadd.f32 %v6327, %v6365
        %v6376 = vadd.f32 %v6328, %v6363
        %v6377 = vadd.f32 %v6329, %v6365
        %v6378 = vstv %s3295
        %v6379 = vmul.f32 %v6378, %v3388
        %v6380 = vmul.f32 %v6378, %v3369
        %v6381 = vmul.f32 %v6378, %v3393
        %v6382 = vmul.f32 %v6378, %v3384
        %v6383 = vmul.f32 %v6378, %v3357
        %v6384 = vmul.f32 %v6378, %v3389
        %v6385 = vstv %s3344
        %v6386 = vmul.f32 %v6385, %v3429
        %v6387 = vmul.f32 %v6385, %v3413
        %v6388 = vmul.f32 %v6385, %v3433
        %v6389 = vmul.f32 %v6385, %v3384
        %v6390 = vmul.f32 %v6385, %v3357
        %v6391 = vmul.f32 %v6385, %v3389
        %v6392 = vadd.f32 %v6379, %v6386
        %v6393 = vadd.f32 %v6380, %v6387
        %v6394 = vadd.f32 %v6381, %v6388
        %v6395 = vadd.f32 %v6382, %v6389
        %v6396 = vadd.f32 %v6383, %v6390
        %v6397 = vadd.f32 %v6384, %v6391
        %v6404 = vrot.slane %v6392, 4
        %v6405 = vrot.slane %v6393, 4
        %v6406 = vsel %vm1044, %v6404, %v6405
        %v6407 = vrot.slane %v6394, 4
        %v6408 = vsel %vm1044, %v6405, %v6407
        %v6409 = vrot.slane %v6395, 4
        %v6410 = vrot.slane %v6396, 4
        %v6411 = vsel %vm1044, %v6409, %v6410
        %v6412 = vrot.slane %v6397, 4
        %v6413 = vsel %vm1044, %v6410, %v6412
        %v6418 = vadd.f32 %v6370, %v6406
        %v6419 = vadd.f32 %v6371, %v6408
        %v6420 = vadd.f32 %v6372, %v6411
        %v6421 = vadd.f32 %v6373, %v6413
        %v6422 = vadd.f32 %v6374, %v6411
        %v6423 = vadd.f32 %v6375, %v6413
        %v6424 = vadd.f32 %v6376, %v6411
        %v6425 = vadd.f32 %v6377, %v6413
        %v6426 = vstv %s3296
        %v6427 = vmul.f32 %v6426, %v3388
        %v6428 = vmul.f32 %v6426, %v3369
        %v6429 = vmul.f32 %v6426, %v3393
        %v6430 = vmul.f32 %v6426, %v3384
        %v6431 = vmul.f32 %v6426, %v3357
        %v6432 = vmul.f32 %v6426, %v3389
        %v6433 = vstv %s3345
        %v6434 = vmul.f32 %v6433, %v3429
        %v6435 = vmul.f32 %v6433, %v3413
        %v6436 = vmul.f32 %v6433, %v3433
        %v6437 = vmul.f32 %v6433, %v3384
        %v6438 = vmul.f32 %v6433, %v3357
        %v6439 = vmul.f32 %v6433, %v3389
        %v6440 = vadd.f32 %v6427, %v6434
        %v6441 = vadd.f32 %v6428, %v6435
        %v6442 = vadd.f32 %v6429, %v6436
        %v6443 = vadd.f32 %v6430, %v6437
        %v6444 = vadd.f32 %v6431, %v6438
        %v6445 = vadd.f32 %v6432, %v6439
        %v6452 = vrot.slane %v6440, 5
        %v6453 = vrot.slane %v6441, 5
        %v6454 = vsel %vm301, %v6452, %v6453
        %v6455 = vrot.slane %v6442, 5
        %v6456 = vsel %vm301, %v6453, %v6455
        %v6457 = vrot.slane %v6443, 5
        %v6458 = vrot.slane %v6444, 5
        %v6459 = vsel %vm301, %v6457, %v6458
        %v6460 = vrot.slane %v6445, 5
        %v6461 = vsel %vm301, %v6458, %v6460
        %v6466 = vadd.f32 %v6418, %v6454
        %v6467 = vadd.f32 %v6419, %v6456
        %v6468 = vadd.f32 %v6420, %v6459
        %v6469 = vadd.f32 %v6421, %v6461
        %v6470 = vadd.f32 %v6422, %v6459
        %v6471 = vadd.f32 %v6423, %v6461
        %v6472 = vadd.f32 %v6424, %v6459
        %v6473 = vadd.f32 %v6425, %v6461
        %v6474 = vstv %s3297
        %v6475 = vmul.f32 %v6474, %v3388
        %v6476 = vmul.f32 %v6474, %v3369
        %v6477 = vmul.f32 %v6474, %v3393
        %v6478 = vmul.f32 %v6474, %v3384
        %v6479 = vmul.f32 %v6474, %v3357
        %v6480 = vmul.f32 %v6474, %v3389
        %v6481 = vstv %s3346
        %v6482 = vmul.f32 %v6481, %v3429
        %v6483 = vmul.f32 %v6481, %v3413
        %v6484 = vmul.f32 %v6481, %v3433
        %v6485 = vmul.f32 %v6481, %v3384
        %v6486 = vmul.f32 %v6481, %v3357
        %v6487 = vmul.f32 %v6481, %v3389
        %v6488 = vadd.f32 %v6475, %v6482
        %v6489 = vadd.f32 %v6476, %v6483
        %v6490 = vadd.f32 %v6477, %v6484
        %v6491 = vadd.f32 %v6478, %v6485
        %v6492 = vadd.f32 %v6479, %v6486
        %v6493 = vadd.f32 %v6480, %v6487
        %v6500 = vrot.slane %v6488, 6
        %v6501 = vrot.slane %v6489, 6
        %v6502 = vsel %vm1415, %v6500, %v6501
        %v6503 = vrot.slane %v6490, 6
        %v6504 = vsel %vm1415, %v6501, %v6503
        %v6505 = vrot.slane %v6491, 6
        %v6506 = vrot.slane %v6492, 6
        %v6507 = vsel %vm1415, %v6505, %v6506
        %v6508 = vrot.slane %v6493, 6
        %v6509 = vsel %vm1415, %v6506, %v6508
        %v6514 = vadd.f32 %v6466, %v6502
        %v6515 = vadd.f32 %v6467, %v6504
        %v6516 = vadd.f32 %v6468, %v6507
        %v6517 = vadd.f32 %v6469, %v6509
        %v6518 = vadd.f32 %v6470, %v6507
        %v6519 = vadd.f32 %v6471, %v6509
        %v6520 = vadd.f32 %v6472, %v6507
        %v6521 = vadd.f32 %v6473, %v6509
        %v6522 = vstv %s3347
        %v6523 = vadd.f32 %v6514, %v6522
        %v6524 = vadd.f32 %v6515, %v6522
        %v6525 = vadd.f32 %v6516, %v6522
        %v6526 = vadd.f32 %v6517, %v6522
        %v6527 = vadd.f32 %v6518, %v6522
        %v6528 = vadd.f32 %v6519, %v6522
        %v6529 = vadd.f32 %v6520, %v6522
        %v6530 = vadd.f32 %v6521, %v6522
        %v6531 = vxor.u32 %v6523, 2147483648
        %v6532 = vxor.u32 %v6524, 2147483648
        %v6533 = vxor.u32 %v6525, 2147483648
        %v6534 = vxor.u32 %v6526, 2147483648
        %v6535 = vxor.u32 %v6527, 2147483648
        %v6536 = vxor.u32 %v6528, 2147483648
        %v6537 = vxor.u32 %v6529, 2147483648
        %v6538 = vxor.u32 %v6530, 2147483648
        %v6539 = vmul.f32 %v6531, 1.442695
        %v6540 = vpow.pop %v6539
        %v6541 = vmul.f32 %v6532, 1.442695
        %v6542 = vpow.pop %v6541
        %v6543 = vmul.f32 %v6533, 1.442695
        %v6544 = vpow.pop %v6543
        %v6545 = vmul.f32 %v6534, 1.442695
        %v6546 = vpow.pop %v6545
        %v6547 = vmul.f32 %v6535, 1.442695
        %v6548 = vpow.pop %v6547
        %v6549 = vmul.f32 %v6536, 1.442695
        %v6550 = vpow.pop %v6549
        %v6551 = vmul.f32 %v6537, 1.442695
        %v6552 = vpow.pop %v6551
        %v6553 = vmul.f32 %v6538, 1.442695
        %v6554 = vpow.pop %v6553
        %v6555 = vadd.f32 %v6540, 1.0
        %v6556 = vadd.f32 %v6542, 1.0
        %v6557 = vadd.f32 %v6544, 1.0
        %v6558 = vadd.f32 %v6546, 1.0
        %v6559 = vadd.f32 %v6548, 1.0
        %v6560 = vadd.f32 %v6550, 1.0
        %v6561 = vadd.f32 %v6552, 1.0
        %v6562 = vadd.f32 %v6554, 1.0
        %v6563 = vrcp.pop %v6555
        %v6564 = vmul.f32 %v6555, %v6563
        %v6565 = vsub.f32 1.0, %v6564
        %v6566 = vmul.f32 %v6563, %v6565
        %v6567 = vadd.f32 %v6563, %v6566
        %vm6568 = vweird.f32 %v6555
        %vm6569 = vweird.f32 %v6563
        %vm6570 = vmor %vm6568, %vm6569
        %v6571 = vsel %vm6570, %v6563, %v6567
        %v6572 = vand.u32 2147483647, %v6555
        %vm6573 = vcmp.eq.f32.partialorder %v6572, 8.507059e+37
        %v6574 = vand.u32 %v6555, 2147483648
        %v6575 = vor.u32 1.1754944e-38, %v6574
        %v6576 = vsel %vm6573, %v6575, %v6571
        %v6577 = vmul.f32 1.0, %v6576
        %v6578 = vrcp.pop %v6556
        %v6579 = vmul.f32 %v6556, %v6578
        %v6580 = vsub.f32 1.0, %v6579
        %v6581 = vmul.f32 %v6578, %v6580
        %v6582 = vadd.f32 %v6578, %v6581
        %vm6583 = vweird.f32 %v6556
        %vm6584 = vweird.f32 %v6578
        %vm6585 = vmor %vm6583, %vm6584
        %v6586 = vsel %vm6585, %v6578, %v6582
        %v6587 = vand.u32 2147483647, %v6556
        %vm6588 = vcmp.eq.f32.partialorder %v6587, 8.507059e+37
        %v6589 = vand.u32 %v6556, 2147483648
        %v6590 = vor.u32 1.1754944e-38, %v6589
        %v6591 = vsel %vm6588, %v6590, %v6586
        %v6592 = vmul.f32 1.0, %v6591
        %v6593 = vrcp.pop %v6557
        %v6594 = vmul.f32 %v6557, %v6593
        %v6595 = vsub.f32 1.0, %v6594
        %v6596 = vmul.f32 %v6593, %v6595
        %v6597 = vadd.f32 %v6593, %v6596
        %vm6598 = vweird.f32 %v6557
        %vm6599 = vweird.f32 %v6593
        %vm6600 = vmor %vm6598, %vm6599
        %v6601 = vsel %vm6600, %v6593, %v6597
        %v6602 = vand.u32 2147483647, %v6557
        %vm6603 = vcmp.eq.f32.partialorder %v6602, 8.507059e+37
        %v6604 = vand.u32 %v6557, 2147483648
        %v6605 = vor.u32 1.1754944e-38, %v6604
        %v6606 = vsel %vm6603, %v6605, %v6601
        %v6607 = vmul.f32 1.0, %v6606
        %v6608 = vrcp.pop %v6558
        %v6609 = vmul.f32 %v6558, %v6608
        %v6610 = vsub.f32 1.0, %v6609
        %v6611 = vmul.f32 %v6608, %v6610
        %v6612 = vadd.f32 %v6608, %v6611
        %vm6613 = vweird.f32 %v6558
        %vm6614 = vweird.f32 %v6608
        %vm6615 = vmor %vm6613, %vm6614
        %v6616 = vsel %vm6615, %v6608, %v6612
        %v6617 = vand.u32 2147483647, %v6558
        %vm6618 = vcmp.eq.f32.partialorder %v6617, 8.507059e+37
        %v6619 = vand.u32 %v6558, 2147483648
        %v6620 = vor.u32 1.1754944e-38, %v6619
        %v6621 = vsel %vm6618, %v6620, %v6616
        %v6622 = vmul.f32 1.0, %v6621
        %v6623 = vrcp.pop %v6559
        %v6624 = vmul.f32 %v6559, %v6623
        %v6625 = vsub.f32 1.0, %v6624
        %v6626 = vmul.f32 %v6623, %v6625
        %v6627 = vadd.f32 %v6623, %v6626
        %vm6628 = vweird.f32 %v6559
        %vm6629 = vweird.f32 %v6623
        %vm6630 = vmor %vm6628, %vm6629
        %v6631 = vsel %vm6630, %v6623, %v6627
        %v6632 = vand.u32 2147483647, %v6559
        %vm6633 = vcmp.eq.f32.partialorder %v6632, 8.507059e+37
        %v6634 = vand.u32 %v6559, 2147483648
        %v6635 = vor.u32 1.1754944e-38, %v6634
        %v6636 = vsel %vm6633, %v6635, %v6631
        %v6637 = vmul.f32 1.0, %v6636
        %v6638 = vrcp.pop %v6560
        %v6639 = vmul.f32 %v6560, %v6638
        %v6640 = vsub.f32 1.0, %v6639
        %v6641 = vmul.f32 %v6638, %v6640
        %v6642 = vadd.f32 %v6638, %v6641
        %vm6643 = vweird.f32 %v6560
        %vm6644 = vweird.f32 %v6638
        %vm6645 = vmor %vm6643, %vm6644
        %v6646 = vsel %vm6645, %v6638, %v6642
        %v6647 = vand.u32 2147483647, %v6560
        %vm6648 = vcmp.eq.f32.partialorder %v6647, 8.507059e+37
        %v6649 = vand.u32 %v6560, 2147483648
        %v6650 = vor.u32 1.1754944e-38, %v6649
        %v6651 = vsel %vm6648, %v6650, %v6646
        %v6652 = vmul.f32 1.0, %v6651
        %v6653 = vrcp.pop %v6561
        %v6654 = vmul.f32 %v6561, %v6653
        %v6655 = vsub.f32 1.0, %v6654
        %v6656 = vmul.f32 %v6653, %v6655
        %v6657 = vadd.f32 %v6653, %v6656
        %vm6658 = vweird.f32 %v6561
        %vm6659 = vweird.f32 %v6653
        %vm6660 = vmor %vm6658, %vm6659
        %v6661 = vsel %vm6660, %v6653, %v6657
        %v6662 = vand.u32 2147483647, %v6561
        %vm6663 = vcmp.eq.f32.partialorder %v6662, 8.507059e+37
        %v6664 = vand.u32 %v6561, 2147483648
        %v6665 = vor.u32 1.1754944e-38, %v6664
        %v6666 = vsel %vm6663, %v6665, %v6661
        %v6667 = vmul.f32 1.0, %v6666
        %v6668 = vrcp.pop %v6562
        %v6669 = vmul.f32 %v6562, %v6668
        %v6670 = vsub.f32 1.0, %v6669
        %v6671 = vmul.f32 %v6668, %v6670
        %v6672 = vadd.f32 %v6668, %v6671
        %vm6673 = vweird.f32 %v6562
        %vm6674 = vweird.f32 %v6668
        %vm6675 = vmor %vm6673, %vm6674
        %v6676 = vsel %vm6675, %v6668, %v6672
        %v6677 = vand.u32 2147483647, %v6562
        %vm6678 = vcmp.eq.f32.partialorder %v6677, 8.507059e+37
        %v6679 = vand.u32 %v6562, 2147483648
        %v6680 = vor.u32 1.1754944e-38, %v6679
        %v6681 = vsel %vm6678, %v6680, %v6676
        %v6682 = vmul.f32 1.0, %v6681
        %v6683 = vperm.slane %v3163, 0
        %v6684 = vperm.slane %v3178, 0
        %v6685 = vperm.slane %v3193, 0
        %v6686 = vperm.slane %v3208, 0
        %v6687 = vadd.f32 %v1612, %v6683
        %v6688 = vadd.f32 %v1627, %v6683
        %v6689 = vadd.f32 %v1612, %v6684
        %v6690 = vadd.f32 %v1627, %v6684
        %v6691 = vadd.f32 %v1612, %v6685
        %v6692 = vadd.f32 %v1627, %v6685
        %v6693 = vadd.f32 %v1612, %v6686
        %v6694 = vadd.f32 %v1627, %v6686
        %6696 = vset.pattern.permute.xlu0 0
        %6697 = vperm.xlu0 %6696, %v6577
        %v6698 = vpop.permute.xlu0 %6697
        %6701 = vset.pattern.permute.xlu0 0
        %6702 = vperm.xlu0 %6701, %v6592
        %v6703 = vpop.permute.xlu0 %6702
        %6706 = vset.pattern.permute.xlu0 0
        %6707 = vperm.xlu0 %6706, %v6607
        %v6708 = vpop.permute.xlu0 %6707
        %6711 = vset.pattern.permute.xlu0 0
        %6712 = vperm.xlu0 %6711, %v6622
        %v6713 = vpop.permute.xlu0 %6712
        %6716 = vset.pattern.permute.xlu0 0
        %6717 = vperm.xlu0 %6716, %v6637
        %v6718 = vpop.permute.xlu0 %6717
        %6721 = vset.pattern.permute.xlu0 0
        %6722 = vperm.xlu0 %6721, %v6652
        %v6723 = vpop.permute.xlu0 %6722
        %6726 = vset.pattern.permute.xlu0 0
        %6727 = vperm.xlu0 %6726, %v6667
        %v6728 = vpop.permute.xlu0 %6727
        %6731 = vset.pattern.permute.xlu0 0
        %6732 = vperm.xlu0 %6731, %v6682
        %v6733 = vpop.permute.xlu0 %6732
        %v6735 = vadd.f32 %v6687, %v6698
        %v6736 = vadd.f32 %v6688, %v6703
        %v6737 = vadd.f32 %v6689, %v6708
        %v6738 = vadd.f32 %v6690, %v6713
        %v6739 = vadd.f32 %v6691, %v6718
        %v6740 = vadd.f32 %v6692, %v6723
        %v6741 = vadd.f32 %v6693, %v6728
        %v6742 = vadd.f32 %v6694, %v6733
        %v6743 = vmul.f32 %v6735, 0.33333334
        %v6744 = vmul.f32 %v6736, 0.33333334
        %v6745 = vmul.f32 %v6737, 0.33333334
        %v6746 = vmul.f32 %v6738, 0.33333334
        %v6747 = vmul.f32 %v6739, 0.33333334
        %v6748 = vmul.f32 %v6740, 0.33333334
        %v6749 = vmul.f32 %v6741, 0.33333334
        %v6750 = vmul.f32 %v6742, 0.33333334
        %v6751 = vmul.f32 %v178, %v6743
        %v6752 = vmul.f32 %v179, %v6744
        %v6753 = vmul.f32 %v180, %v6745
        %v6754 = vmul.f32 %v181, %v6746
        %v6755 = vmul.f32 %v182, %v6747
        %v6756 = vmul.f32 %v183, %v6748
        %v6757 = vmul.f32 %v184, %v6749
        %v6758 = vmul.f32 %v185, %v6750
        %6759 = vst.msk [vmem:[%s177] sm:$0xff] %vm1628, %v6751
        %6760 = vst.msk [vmem:[%s177 + $0x8] sm:$0xff] %vm1628, %v6752
        %6761 = vst.msk [vmem:[%s177 + $0x10] sm:$0xff] %vm1628, %v6753
        %6762 = vst.msk [vmem:[%s177 + $0x18] sm:$0xff] %vm1628, %v6754
        %6763 = vst.msk [vmem:[%s177 + $0x20] sm:$0xff] %vm1628, %v6755
        %6764 = vst.msk [vmem:[%s177 + $0x28] sm:$0xff] %vm1628, %v6756
        %6765 = vst.msk [vmem:[%s177 + $0x30] sm:$0xff] %vm1628, %v6757
        %6766 = vst.msk [vmem:[%s177 + $0x38] sm:$0xff] %vm1628, %v6758
        %s6767 = sand.u32 %s75, 1
        %s6768 = scalar_lea.sflag [#allocation4], %s6767
        %s6769 = sand.u32 %s75, 1
        %s6770 = smul.addr %s6769, 64
        %s6771 = scalar_lea.vmem [#allocation7], %s6770
        // Predicated region
        $region37: #{tpu_custom_call.1} parent=27 // pred_check
          %p6772 = pneg %p85
        $region38: #{tpu_custom_call.1} parent=27 // pred_check_branch
          %6774 = sbr.rel (%p6772) target = $region40
        $region39: #{tpu_custom_call.1} parent=27 // pred_region
          %6776 = vsyncadd %s6768, 0
          %s6777 = smul.addr %s20, 8
          %s6778 = smul.addr %s6777, 8
          %s6779 = scalar_lea.hbm %s2, %s6778
          %s6780 = sshll.u32 %s6771, 4
          %s6781 = int_to_ptr.vmem [resolvable:$true] %s6780
          %s6782 = sshll.u32 %s6779, 4
          %s6783 = int_to_ptr.hbm [resolvable:$true] %s6782
          %6788 = dma.vmem_to_hbm [thread:$0]  %s6781, 1024, %s6783, %s6768, 128, 128, 8
        $region40: #{tpu_custom_call.1} parent=27 // pred_fallthru
          _
      $region28: #{tpu_custom_call.1} parent=5 // pred_fallthru
        _
      %p6789 = scmp.le.s32.totalorder 2, %s15
      // Predicated region
      $region41: #{tpu_custom_call.1} parent=5 // pred_check
        %p6790 = pneg %p6789
      $region42: #{tpu_custom_call.1} parent=5 // pred_check_branch
        %6792 = sbr.rel (%p6790) target = $region44
      $region43: #{tpu_custom_call.1} parent=5 // pred_region
        %s6793 = ssub.s32 %s15, 2
        // Predicated region
        $region45: #{tpu_custom_call.1} parent=43 // pred_check
          %p6794 = pneg %p91
        $region46: #{tpu_custom_call.1} parent=43 // pred_check_branch
          %6796 = sbr.rel (%p6794) target = $region48
        $region47: #{tpu_custom_call.1} parent=43 // pred_region
          %s6797 = sand.u32 %s76, 1
          %s6798 = scalar_lea.sflag [#allocation4], %s6797
          %s6799 = sand.u32 %s76, 1
          %s6800 = smul.addr %s6799, 64
          %s6801 = scalar_lea.vmem [#allocation7], %s6800
          %6803 = dma.done %s6798, 1024
        $region48: #{tpu_custom_call.1} parent=43 // pred_fallthru
          _
      $region44: #{tpu_custom_call.1} parent=5 // pred_fallthru
        _
    $region6: #{tpu_custom_call.1} parent=1 // loop_footer
      %s19 = sadd.s32 1, %s15
    $region7: #{tpu_custom_call.1} parent=1 // loop_footer_branch
      %14 = sbr.rel target = $region3
    $region8: #{tpu_custom_call.1} parent=1 // loop_exit
      _
    %6804 = vsyncpa [#allocation3], 1
    %s6805 = scalar_lea.sflag [#allocation3], 1
    %6806 = vsyncpa %s6805, 1
    %6807 = vsyncpa [#allocation4], 1
    %s6808 = scalar_lea.sflag [#allocation4], 1
    %6809 = vsyncpa %s6808, 1
    %6810 = vsyncpa [#allocation5], 1
    %s6811 = scalar_lea.sflag [#allocation5], 1
    %6812 = vsyncpa %s6811, 1

</llo_original>
